<compile_context>
chip_gen: v6e
topology: v6e:2x2x1
jax: 0.10.0
libtpu: 0.0.40
codegen_flags: <defaults>
</compile_context>

<pallas_src>
import jax
import jax.numpy as jnp
from jax import lax
from jax.experimental import pallas as pl
from jax.experimental.pallas import tpu as pltpu

_VMEM_LIMIT = 32 * 1024 * 1024


# ---------------------------------------------------------------------------
# Conv-stage kernel.  Grid axis = siamese branch (2), marked "parallel".
#   out[g] = BN( ReLU( W[g] @ patches[g] + b[g] ) )        with out (Cout, B*Ho*Wo)
# ---------------------------------------------------------------------------
def _conv_stage_kernel(w_ref, p_ref, b_ref, s_ref, t_ref, o_ref):
    y = jnp.dot(w_ref[0], p_ref[0], preferred_element_type=jnp.float32)
    y = jnp.maximum(y + b_ref[0], 0.0)          # Conv bias + ReLU
    y = y * s_ref[0] + t_ref[0]                 # folded BatchNorm (eval); Dropout2d eval = identity
    o_ref[0] = y.astype(o_ref.dtype)


def _conv_stage_matmul(wf, patches, b, s, t):
    G, Cout, K = wf.shape
    _, _, M = patches.shape

    def spec3(shape):
        return pl.BlockSpec(shape, lambda g: (g, 0, 0))

    return pl.pallas_call(
        _conv_stage_kernel,
        out_shape=jax.ShapeDtypeStruct((G, Cout, M), jnp.float32),
        grid_spec=pltpu.PrefetchScalarGridSpec(
            num_scalar_prefetch=0,
            grid=(G,),
            in_specs=[
                spec3((1, Cout, K)),     # stacked conv weights (flattened)
                spec3((1, K, M)),        # stacked im2col patches
                spec3((1, Cout, 1)),     # conv bias
                spec3((1, Cout, 1)),     # BN scale
                spec3((1, Cout, 1)),     # BN shift
            ],
            out_specs=spec3((1, Cout, M)),
        ),
        compiler_params=pltpu.CompilerParams(
            dimension_semantics=("parallel",),
            vmem_limit_bytes=_VMEM_LIMIT),
    )(wf, patches, b, s, t)


# ---------------------------------------------------------------------------
# Conv-stage glue (cheap JAX layout plumbing, no transposes).
# Activation layout: (branch, C, B, H, W).
# ---------------------------------------------------------------------------
def _reflect_pad(x):
    return jnp.pad(x, ((0, 0), (0, 0), (0, 0), (1, 1), (1, 1)), mode="reflect")


def _im2col(x, k=5):
    # x: (G, C, B, Hp, Wp) -> (G, C*k*k, B*Ho*Wo); row order (cin, kh, kw) matches
    # PyTorch's weight.reshape(Cout, Cin*k*k).
    G, C, B, Hp, Wp = x.shape
    Ho, Wo = Hp - k + 1, Wp - k + 1
    cols = [x[:, :, :, kh:kh + Ho, kw:kw + Wo].reshape(G, C, B * Ho * Wo)
            for kh in range(k) for kw in range(k)]
    p = jnp.stack(cols, axis=2)                  # (G, C, k*k, M)
    return p.reshape(G, C * k * k, B * Ho * Wo), Ho, Wo


def _fold_bn(b, gamma, beta, rmean, rvar):
    inv = gamma / jnp.sqrt(rvar + 1e-5)
    return (b.reshape(-1, 1), inv.reshape(-1, 1), (beta - rmean * inv).reshape(-1, 1))


def conv_stage(x, p_branch0, p_branch1):
    # One stage (pad + conv + relu + BN + dropout-eval) for BOTH branches in one pallas_call.
    G, Cin, B, H, W = x.shape
    Cout = p_branch0[0].shape[0]
    patches, Ho, Wo = _im2col(_reflect_pad(x), 5)

    wf = jnp.stack([p_branch0[0].reshape(Cout, -1),
                    p_branch1[0].reshape(Cout, -1)], axis=0)       # (2, Cout, Cin*25)
    b0, s0, t0 = _fold_bn(*p_branch0[1:])
    b1, s1, t1 = _fold_bn(*p_branch1[1:])
    bb = jnp.stack([b0, b1], axis=0)
    ss = jnp.stack([s0, s1], axis=0)
    tt = jnp.stack([t0, t1], axis=0)

    y = _conv_stage_matmul(wf, patches, bb, ss, tt)                # (2, Cout, B*Ho*Wo)
    return y.reshape(G, Cout, B, Ho, Wo)


# ---------------------------------------------------------------------------
# Fused FC head: Linear(8192,512)+ReLU -> Linear(512,512)+ReLU -> Linear(512,256)+ReLU
#                -> Linear(256,128) -> L2 normalize.  Both branches batched along M.
# FC1's K is tiled over the grid (accumulator pattern); FC2-4 run in the finalize step.
# ---------------------------------------------------------------------------
def _fc_head_kernel(x_ref, w1_ref, b1_ref, w2_ref, b2_ref, w3_ref, b3_ref,
                    w4_ref, b4_ref, o_ref, acc_ref):
    k = pl.program_id(0)

    @pl.when(k == 0)
    def _():
        acc_ref[...] = jnp.zeros_like(acc_ref)

    # FC1 partial product: bf16 MXU inputs, f32 accumulation.
    acc_ref[...] += jnp.dot(x_ref[...].astype(jnp.bfloat16), w1_ref[...],
                            preferred_element_type=jnp.float32)

    @pl.when(k == pl.num_programs(0) - 1)
    def _():
        h = jnp.maximum(acc_ref[...] + b1_ref[...], 0.0)                      # FC1 + ReLU
        h = jnp.dot(h.astype(jnp.bfloat16), w2_ref[...],
                    preferred_element_type=jnp.float32) + b2_ref[...]
        h = jnp.maximum(h, 0.0)                                               # FC2 + ReLU (+Dropout eval)
        h = jnp.dot(h.astype(jnp.bfloat16), w3_ref[...],
                    preferred_element_type=jnp.float32) + b3_ref[...]
        h = jnp.maximum(h, 0.0)                                               # FC3 + ReLU (+Dropout eval)
        h = jnp.dot(h.astype(jnp.bfloat16), w4_ref[...],
                    preferred_element_type=jnp.float32) + b4_ref[...]         # FC4
        # F.normalize(p=2, dim=1, eps=1e-12): 1/max(||h||,eps) == rsqrt(max(||h||^2, eps^2))
        inv = lax.rsqrt(jnp.maximum(jnp.sum(h * h, axis=1, keepdims=True), 1e-24))
        o_ref[...] = (h * inv).astype(o_ref.dtype)


def fc_head(x, fc_params, *, kt=2048):
    (w1, b1), (w2, b2), (w3, b3), (w4, b4) = fc_params   # weights (in,out) bf16, biases f32
    M, K = x.shape
    N1, N2, N3, N4 = w1.shape[1], w2.shape[1], w3.shape[1], w4.shape[1]
    kt = min(kt, K)
    assert K % kt == 0
    grid = (K // kt,)

    def fixed(shape):
        return pl.BlockSpec(shape, lambda k: (0, 0))

    return pl.pallas_call(
        _fc_head_kernel,
        out_shape=jax.ShapeDtypeStruct((M, N4), jnp.float32),
        grid_spec=pltpu.PrefetchScalarGridSpec(
            num_scalar_prefetch=0,
            grid=grid,
            in_specs=[
                pl.BlockSpec((M, kt), lambda k: (0, k)),     # x        (K-tiled)
                pl.BlockSpec((kt, N1), lambda k: (k, 0)),    # w1 bf16  (K-tiled)
                fixed((1, N1)),                              # b1
                fixed((N1, N2)), fixed((1, N2)),             # w2, b2   (VMEM-resident)
                fixed((N2, N3)), fixed((1, N3)),             # w3, b3
                fixed((N3, N4)), fixed((1, N4)),             # w4, b4
            ],
            out_specs=fixed((M, N4)),
            scratch_shapes=[pltpu.VMEM((M, N1), jnp.float32)],
        ),
        compiler_params=pltpu.CompilerParams(
            dimension_semantics=("arbitrary",),
            vmem_limit_bytes=_VMEM_LIMIT),
    )(x, w1, b1.reshape(1, N1), w2, b2.reshape(1, N2),
      w3, b3.reshape(1, N3), w4, b4.reshape(1, N4))


# ---------------------------------------------------------------------------
# Parameter init (deterministic, synthetic).
# ---------------------------------------------------------------------------
def _init_conv_block(key, cin, cout):
    ks = jax.random.split(key, 6)
    w = 0.1 * jax.random.normal(ks[0], (cout, cin, 5, 5), jnp.float32)
    b = 0.1 * jax.random.normal(ks[1], (cout,), jnp.float32)
    gamma = 1.0 + 0.1 * jax.random.normal(ks[2], (cout,), jnp.float32)
    beta = 0.1 * jax.random.normal(ks[3], (cout,), jnp.float32)
    rmean = 0.1 * jax.random.normal(ks[4], (cout,), jnp.float32)
    rvar = 1.0 + 0.1 * jax.random.uniform(ks[5], (cout,), jnp.float32)
    return (w, b, gamma, beta, rmean, rvar)


def _init_linear(key, din, dout):
    k1, k2 = jax.random.split(key)
    # stored (in, out) == PyTorch (out, in) transposed; bf16 in HBM (halves FC1's dominant
    # HBM read); accumulation / epilogue stay f32 in the kernel.
    w = (jax.random.normal(k1, (din, dout), jnp.float32) / jnp.sqrt(din)).astype(jnp.bfloat16)
    b = 0.1 * jax.random.normal(k2, (dout,), jnp.float32)
    return (w, b)


def init_params(key, flat_dim):
    chans = [1, 4, 8, 16, 32]
    k_cnn1, k_cnn2, k_fc = jax.random.split(key, 3)
    cnn1 = [_init_conv_block(k, chans[i], chans[i + 1])
            for i, k in enumerate(jax.random.split(k_cnn1, 4))]
    cnn2 = [_init_conv_block(k, chans[i], chans[i + 1])
            for i, k in enumerate(jax.random.split(k_cnn2, 4))]
    fc_dims = [flat_dim, 512, 512, 256, 128]
    fc = [_init_linear(k, fc_dims[i], fc_dims[i + 1])
          for i, k in enumerate(jax.random.split(k_fc, 4))]
    return cnn1, cnn2, fc


# ---------------------------------------------------------------------------
# Forward pass.
# ---------------------------------------------------------------------------
def siamese_forward(img0, img1, cnn1_params, cnn2_params, fc_params):
    B = img0.shape[0]
    # NCHW -> (branch, C, B, H, W): conv outputs (Cout, B*Ho*Wo) reshape straight into the
    # next stage's layout -> no inter-block transposes.
    x = jnp.stack([jnp.transpose(img0, (1, 0, 2, 3)),
                   jnp.transpose(img1, (1, 0, 2, 3))], axis=0)
    for p0, p1 in zip(cnn1_params, cnn2_params):
        x = conv_stage(x, p0, p1)

    # Flatten each (branch, batch) row in PyTorch .view(B, -1) order: (c, h, w).
    G, C, _, H, W = x.shape
    feats = jnp.transpose(x.reshape(G, C, B, H * W), (0, 2, 1, 3)).reshape(G * B, C * H * W)

    out = fc_head(feats, fc_params)     # both branches batched through the shared head
    return out[:B], out[B:]


# ---------------------------------------------------------------------------
# Pure-JAX reference (NCHW, lax.conv) for a correctness cross-check.
# ---------------------------------------------------------------------------
def _ref_forward(img0, img1, cnn1_params, cnn2_params, fc_params):
    def conv_block(x, p):
        w, b, gamma, beta, rmean, rvar = p
        xp = jnp.pad(x, ((0, 0), (0, 0), (1, 1), (1, 1)), mode="reflect")
        y = lax.conv_general_dilated(xp, w, (1, 1), "VALID",
                                     dimension_numbers=("NCHW", "OIHW", "NCHW"))
        y = jnp.maximum(y + b.reshape(1, -1, 1, 1), 0.0)
        inv = gamma / jnp.sqrt(rvar + 1e-5)
        return y * inv.reshape(1, -1, 1, 1) + (beta - rmean * inv).reshape(1, -1, 1, 1)

    def branch(x, cnn_params):
        for p in cnn_params:
            x = conv_block(x, p)
        x = x.reshape(x.shape[0], -1)
        (w1, b1), (w2, b2), (w3, b3), (w4, b4) = fc_params
        h = jnp.maximum(jnp.dot(x.astype(jnp.bfloat16), w1,
                                preferred_element_type=jnp.float32) + b1, 0.0)
        h = jnp.maximum(jnp.dot(h.astype(jnp.bfloat16), w2,
                                preferred_element_type=jnp.float32) + b2, 0.0)
        h = jnp.maximum(jnp.dot(h.astype(jnp.bfloat16), w3,
                                preferred_element_type=jnp.float32) + b3, 0.0)
        h = jnp.dot(h.astype(jnp.bfloat16), w4,
                    preferred_element_type=jnp.float32) + b4
        n = jnp.maximum(jnp.sqrt(jnp.sum(h * h, axis=1, keepdims=True)), 1e-12)
        return h / n

    return branch(img0, cnn1_params), branch(img1, cnn2_params)


if __name__ == "__main__":
    B, H, W = 2, 24, 24          # each conv block shrinks H,W by 2 -> 16x16; flat = 32*16*16 = 8192
    flat_dim = 32 * (H - 8) * (W - 8)

    key = jax.random.PRNGKey(0)
    k_img0, k_img1, k_par = jax.random.split(key, 3)
    img0 = jax.random.normal(k_img0, (B, 1, H, W), jnp.float32)
    img1 = jax.random.normal(k_img1, (B, 1, H, W), jnp.float32)

    cnn1_p, cnn2_p, fc_p = init_params(k_par, flat_dim)

    out0, out1 = jax.jit(siamese_forward)(img0, img1, cnn1_p, cnn2_p, fc_p)
    jax.block_until_ready((out0, out1))

    assert out0.shape == (B, 128) and out1.shape == (B, 128)
    # outputs are L2-normalized rows
    assert jnp.allclose(jnp.linalg.norm(out0, axis=1), 1.0, atol=1e-4)
    assert jnp.allclose(jnp.linalg.norm(out1, axis=1), 1.0, atol=1e-4)

    # cross-check against a pure-JAX NCHW reference (same bf16 weights / f32 accumulation)
    ref0, ref1 = jax.jit(_ref_forward)(img0, img1, cnn1_p, cnn2_p, fc_p)
    assert jnp.allclose(out0, ref0, atol=2e-3), float(jnp.max(jnp.abs(out0 - ref0)))
    assert jnp.allclose(out1, ref1, atol=2e-3), float(jnp.max(jnp.abs(out1 - ref1)))

    print("KERNEL_OK")
</pallas_src>

<mosaic_0001>
module attributes {stable_mosaic.version = 11 : i64} {
  func.func @_conv_stage_kernel(%arg0: i32, %arg1: memref<1x4x25xf32, #tpu.memory_space<vmem>>, %arg2: memref<1x25x968xf32, #tpu.memory_space<vmem>>, %arg3: memref<1x4x1xf32, #tpu.memory_space<vmem>>, %arg4: memref<1x4x1xf32, #tpu.memory_space<vmem>>, %arg5: memref<1x4x1xf32, #tpu.memory_space<vmem>>, %arg6: memref<1x4x968xf32, #tpu.memory_space<vmem>>) attributes {dimension_semantics = [#tpu.dimension_semantics<parallel>], iteration_bounds = array<i64: 2>, scalar_prefetch = 0 : i64, scratch_operands = 0 : i64, tpu.core_type = #tpu.core_type<tc>, window_params = [{transform_indices = @transform_0, window_bounds = array<i64: 1, 4, 25>}, {transform_indices = @transform_1, window_bounds = array<i64: 1, 25, 968>}, {transform_indices = @transform_2, window_bounds = array<i64: 1, 4, 1>}, {transform_indices = @transform_3, window_bounds = array<i64: 1, 4, 1>}, {transform_indices = @transform_4, window_bounds = array<i64: 1, 4, 1>}, {transform_indices = @transform_5, window_bounds = array<i64: 1, 4, 968>}]} {
    %c0 = arith.constant 0 : index
    %c0_0 = arith.constant 0 : index
    %c0_1 = arith.constant 0 : index
    %0 = vector.load %arg1[%c0, %c0_0, %c0_1] : memref<1x4x25xf32, #tpu.memory_space<vmem>>, vector<1x4x25xf32>
    %1 = vector.shape_cast %0 : vector<1x4x25xf32> to vector<4x25xf32>
    %c0_2 = arith.constant 0 : index
    %c0_3 = arith.constant 0 : index
    %c0_4 = arith.constant 0 : index
    %2 = vector.load %arg2[%c0_2, %c0_3, %c0_4] : memref<1x25x968xf32, #tpu.memory_space<vmem>>, vector<1x25x968xf32>
    %3 = vector.shape_cast %2 : vector<1x25x968xf32> to vector<25x968xf32>
    %cst = arith.constant dense<0.000000e+00> : vector<4x968xf32>
    %4 = tpu.matmul %1, %3, %cst {dimension_numbers = #tpu.dot_dimension_numbers<[1], [0], [0], [1], [0, 0, 1, 1], [], []>} : vector<4x25xf32>, vector<25x968xf32>, vector<4x968xf32> -> vector<4x968xf32>
    %c0_5 = arith.constant 0 : index
    %c0_6 = arith.constant 0 : index
    %c0_7 = arith.constant 0 : index
    %5 = vector.load %arg3[%c0_5, %c0_6, %c0_7] : memref<1x4x1xf32, #tpu.memory_space<vmem>>, vector<1x4x1xf32>
    %6 = vector.shape_cast %5 : vector<1x4x1xf32> to vector<4x1xf32>
    %7 = vector.broadcast %6 : vector<4x1xf32> to vector<4x968xf32>
    %8 = arith.addf %4, %7 : vector<4x968xf32>
    %cst_8 = arith.constant 0.000000e+00 : f32
    %9 = vector.broadcast %cst_8 : f32 to vector<4x968xf32>
    %10 = arith.maximumf %8, %9 : vector<4x968xf32>
    %c0_9 = arith.constant 0 : index
    %c0_10 = arith.constant 0 : index
    %c0_11 = arith.constant 0 : index
    %11 = vector.load %arg4[%c0_9, %c0_10, %c0_11] : memref<1x4x1xf32, #tpu.memory_space<vmem>>, vector<1x4x1xf32>
    %12 = vector.shape_cast %11 : vector<1x4x1xf32> to vector<4x1xf32>
    %13 = vector.broadcast %12 : vector<4x1xf32> to vector<4x968xf32>
    %14 = arith.mulf %10, %13 : vector<4x968xf32>
    %c0_12 = arith.constant 0 : index
    %c0_13 = arith.constant 0 : index
    %c0_14 = arith.constant 0 : index
    %15 = vector.load %arg5[%c0_12, %c0_13, %c0_14] : memref<1x4x1xf32, #tpu.memory_space<vmem>>, vector<1x4x1xf32>
    %16 = vector.shape_cast %15 : vector<1x4x1xf32> to vector<4x1xf32>
    %17 = vector.broadcast %16 : vector<4x1xf32> to vector<4x968xf32>
    %18 = arith.addf %14, %17 : vector<4x968xf32>
    %c0_15 = arith.constant 0 : index
    %c0_16 = arith.constant 0 : index
    %c0_17 = arith.constant 0 : index
    %19 = vector.load %arg6[%c0_15, %c0_16, %c0_17] : memref<1x4x968xf32, #tpu.memory_space<vmem>>, vector<1x4x968xf32>
    %20 = vector.shape_cast %19 : vector<1x4x968xf32> to vector<4x968xf32>
    %21 = vector.shape_cast %18 : vector<4x968xf32> to vector<1x4x968xf32>
    tpu.vector_store %arg6[%c0_15, %c0_16, %c0_17], %21 {strides = array<i32>} : memref<1x4x968xf32, #tpu.memory_space<vmem>>, vector<1x4x968xf32>,
    return
  }
  func.func @transform_0(%arg0: i32) -> (i32, i32, i32) {
    %c0_i32 = arith.constant 0 : i32
    %c0_i32_0 = arith.constant 0 : i32
    %c0_i32_1 = arith.constant 0 : i32
    return %arg0, %c0_i32, %c0_i32_0 : i32, i32, i32
  }
  func.func @transform_1(%arg0: i32) -> (i32, i32, i32) {
    %c0_i32 = arith.constant 0 : i32
    %c0_i32_0 = arith.constant 0 : i32
    %c0_i32_1 = arith.constant 0 : i32
    return %arg0, %c0_i32, %c0_i32_0 : i32, i32, i32
  }
  func.func @transform_2(%arg0: i32) -> (i32, i32, i32) {
    %c0_i32 = arith.constant 0 : i32
    %c0_i32_0 = arith.constant 0 : i32
    %c0_i32_1 = arith.constant 0 : i32
    return %arg0, %c0_i32, %c0_i32_0 : i32, i32, i32
  }
  func.func @transform_3(%arg0: i32) -> (i32, i32, i32) {
    %c0_i32 = arith.constant 0 : i32
    %c0_i32_0 = arith.constant 0 : i32
    %c0_i32_1 = arith.constant 0 : i32
    return %arg0, %c0_i32, %c0_i32_0 : i32, i32, i32
  }
  func.func @transform_4(%arg0: i32) -> (i32, i32, i32) {
    %c0_i32 = arith.constant 0 : i32
    %c0_i32_0 = arith.constant 0 : i32
    %c0_i32_1 = arith.constant 0 : i32
    return %arg0, %c0_i32, %c0_i32_0 : i32, i32, i32
  }
  func.func @transform_5(%arg0: i32) -> (i32, i32, i32) {
    %c0_i32 = arith.constant 0 : i32
    %c0_i32_0 = arith.constant 0 : i32
    %c0_i32_1 = arith.constant 0 : i32
    return %arg0, %c0_i32, %c0_i32_0 : i32, i32, i32
  }
}

module attributes {stable_mosaic.version = 11 : i64} {
  func.func @_conv_stage_kernel(%arg0: i32, %arg1: memref<1x8x100xf32, #tpu.memory_space<vmem>>, %arg2: memref<1x100x800xf32, #tpu.memory_space<vmem>>, %arg3: memref<1x8x1xf32, #tpu.memory_space<vmem>>, %arg4: memref<1x8x1xf32, #tpu.memory_space<vmem>>, %arg5: memref<1x8x1xf32, #tpu.memory_space<vmem>>, %arg6: memref<1x8x800xf32, #tpu.memory_space<vmem>>) attributes {dimension_semantics = [#tpu.dimension_semantics<parallel>], iteration_bounds = array<i64: 2>, scalar_prefetch = 0 : i64, scratch_operands = 0 : i64, tpu.core_type = #tpu.core_type<tc>, window_params = [{transform_indices = @transform_0, window_bounds = array<i64: 1, 8, 100>}, {transform_indices = @transform_1, window_bounds = array<i64: 1, 100, 800>}, {transform_indices = @transform_2, window_bounds = array<i64: 1, 8, 1>}, {transform_indices = @transform_3, window_bounds = array<i64: 1, 8, 1>}, {transform_indices = @transform_4, window_bounds = array<i64: 1, 8, 1>}, {transform_indices = @transform_5, window_bounds = array<i64: 1, 8, 800>}]} {
    %c0 = arith.constant 0 : index
    %c0_0 = arith.constant 0 : index
    %c0_1 = arith.constant 0 : index
    %0 = vector.load %arg1[%c0, %c0_0, %c0_1] : memref<1x8x100xf32, #tpu.memory_space<vmem>>, vector<1x8x100xf32>
    %1 = vector.shape_cast %0 : vector<1x8x100xf32> to vector<8x100xf32>
    %c0_2 = arith.constant 0 : index
    %c0_3 = arith.constant 0 : index
    %c0_4 = arith.constant 0 : index
    %2 = vector.load %arg2[%c0_2, %c0_3, %c0_4] : memref<1x100x800xf32, #tpu.memory_space<vmem>>, vector<1x100x800xf32>
    %3 = vector.shape_cast %2 : vector<1x100x800xf32> to vector<100x800xf32>
    %cst = arith.constant dense<0.000000e+00> : vector<8x800xf32>
    %4 = tpu.matmul %1, %3, %cst {dimension_numbers = #tpu.dot_dimension_numbers<[1], [0], [0], [1], [0, 0, 1, 1], [], []>} : vector<8x100xf32>, vector<100x800xf32>, vector<8x800xf32> -> vector<8x800xf32>
    %c0_5 = arith.constant 0 : index
    %c0_6 = arith.constant 0 : index
    %c0_7 = arith.constant 0 : index
    %5 = vector.load %arg3[%c0_5, %c0_6, %c0_7] : memref<1x8x1xf32, #tpu.memory_space<vmem>>, vector<1x8x1xf32>
    %6 = vector.shape_cast %5 : vector<1x8x1xf32> to vector<8x1xf32>
    %7 = vector.broadcast %6 : vector<8x1xf32> to vector<8x800xf32>
    %8 = arith.addf %4, %7 : vector<8x800xf32>
    %cst_8 = arith.constant 0.000000e+00 : f32
    %9 = vector.broadcast %cst_8 : f32 to vector<8x800xf32>
    %10 = arith.maximumf %8, %9 : vector<8x800xf32>
    %c0_9 = arith.constant 0 : index
    %c0_10 = arith.constant 0 : index
    %c0_11 = arith.constant 0 : index
    %11 = vector.load %arg4[%c0_9, %c0_10, %c0_11] : memref<1x8x1xf32, #tpu.memory_space<vmem>>, vector<1x8x1xf32>
    %12 = vector.shape_cast %11 : vector<1x8x1xf32> to vector<8x1xf32>
    %13 = vector.broadcast %12 : vector<8x1xf32> to vector<8x800xf32>
    %14 = arith.mulf %10, %13 : vector<8x800xf32>
    %c0_12 = arith.constant 0 : index
    %c0_13 = arith.constant 0 : index
    %c0_14 = arith.constant 0 : index
    %15 = vector.load %arg5[%c0_12, %c0_13, %c0_14] : memref<1x8x1xf32, #tpu.memory_space<vmem>>, vector<1x8x1xf32>
    %16 = vector.shape_cast %15 : vector<1x8x1xf32> to vector<8x1xf32>
    %17 = vector.broadcast %16 : vector<8x1xf32> to vector<8x800xf32>
    %18 = arith.addf %14, %17 : vector<8x800xf32>
    %c0_15 = arith.constant 0 : index
    %c0_16 = arith.constant 0 : index
    %c0_17 = arith.constant 0 : index
    %19 = vector.load %arg6[%c0_15, %c0_16, %c0_17] : memref<1x8x800xf32, #tpu.memory_space<vmem>>, vector<1x8x800xf32>
    %20 = vector.shape_cast %19 : vector<1x8x800xf32> to vector<8x800xf32>
    %21 = vector.shape_cast %18 : vector<8x800xf32> to vector<1x8x800xf32>
    tpu.vector_store %arg6[%c0_15, %c0_16, %c0_17], %21 {strides = array<i32>} : memref<1x8x800xf32, #tpu.memory_space<vmem>>, vector<1x8x800xf32>,
    return
  }
  func.func @transform_0(%arg0: i32) -> (i32, i32, i32) {
    %c0_i32 = arith.constant 0 : i32
    %c0_i32_0 = arith.constant 0 : i32
    %c0_i32_1 = arith.constant 0 : i32
    return %arg0, %c0_i32, %c0_i32_0 : i32, i32, i32
  }
  func.func @transform_1(%arg0: i32) -> (i32, i32, i32) {
    %c0_i32 = arith.constant 0 : i32
    %c0_i32_0 = arith.constant 0 : i32
    %c0_i32_1 = arith.constant 0 : i32
    return %arg0, %c0_i32, %c0_i32_0 : i32, i32, i32
  }
  func.func @transform_2(%arg0: i32) -> (i32, i32, i32) {
    %c0_i32 = arith.constant 0 : i32
    %c0_i32_0 = arith.constant 0 : i32
    %c0_i32_1 = arith.constant 0 : i32
    return %arg0, %c0_i32, %c0_i32_0 : i32, i32, i32
  }
  func.func @transform_3(%arg0: i32) -> (i32, i32, i32) {
    %c0_i32 = arith.constant 0 : i32
    %c0_i32_0 = arith.constant 0 : i32
    %c0_i32_1 = arith.constant 0 : i32
    return %arg0, %c0_i32, %c0_i32_0 : i32, i32, i32
  }
  func.func @transform_4(%arg0: i32) -> (i32, i32, i32) {
    %c0_i32 = arith.constant 0 : i32
    %c0_i32_0 = arith.constant 0 : i32
    %c0_i32_1 = arith.constant 0 : i32
    return %arg0, %c0_i32, %c0_i32_0 : i32, i32, i32
  }
  func.func @transform_5(%arg0: i32) -> (i32, i32, i32) {
    %c0_i32 = arith.constant 0 : i32
    %c0_i32_0 = arith.constant 0 : i32
    %c0_i32_1 = arith.constant 0 : i32
    return %arg0, %c0_i32, %c0_i32_0 : i32, i32, i32
  }
}

module attributes {stable_mosaic.version = 11 : i64} {
  func.func @_conv_stage_kernel(%arg0: i32, %arg1: memref<1x16x200xf32, #tpu.memory_space<vmem>>, %arg2: memref<1x200x648xf32, #tpu.memory_space<vmem>>, %arg3: memref<1x16x1xf32, #tpu.memory_space<vmem>>, %arg4: memref<1x16x1xf32, #tpu.memory_space<vmem>>, %arg5: memref<1x16x1xf32, #tpu.memory_space<vmem>>, %arg6: memref<1x16x648xf32, #tpu.memory_space<vmem>>) attributes {dimension_semantics = [#tpu.dimension_semantics<parallel>], iteration_bounds = array<i64: 2>, scalar_prefetch = 0 : i64, scratch_operands = 0 : i64, tpu.core_type = #tpu.core_type<tc>, window_params = [{transform_indices = @transform_0, window_bounds = array<i64: 1, 16, 200>}, {transform_indices = @transform_1, window_bounds = array<i64: 1, 200, 648>}, {transform_indices = @transform_2, window_bounds = array<i64: 1, 16, 1>}, {transform_indices = @transform_3, window_bounds = array<i64: 1, 16, 1>}, {transform_indices = @transform_4, window_bounds = array<i64: 1, 16, 1>}, {transform_indices = @transform_5, window_bounds = array<i64: 1, 16, 648>}]} {
    %c0 = arith.constant 0 : index
    %c0_0 = arith.constant 0 : index
    %c0_1 = arith.constant 0 : index
    %0 = vector.load %arg1[%c0, %c0_0, %c0_1] : memref<1x16x200xf32, #tpu.memory_space<vmem>>, vector<1x16x200xf32>
    %1 = vector.shape_cast %0 : vector<1x16x200xf32> to vector<16x200xf32>
    %c0_2 = arith.constant 0 : index
    %c0_3 = arith.constant 0 : index
    %c0_4 = arith.constant 0 : index
    %2 = vector.load %arg2[%c0_2, %c0_3, %c0_4] : memref<1x200x648xf32, #tpu.memory_space<vmem>>, vector<1x200x648xf32>
    %3 = vector.shape_cast %2 : vector<1x200x648xf32> to vector<200x648xf32>
    %cst = arith.constant dense<0.000000e+00> : vector<16x648xf32>
    %4 = tpu.matmul %1, %3, %cst {dimension_numbers = #tpu.dot_dimension_numbers<[1], [0], [0], [1], [0, 0, 1, 1], [], []>} : vector<16x200xf32>, vector<200x648xf32>, vector<16x648xf32> -> vector<16x648xf32>
    %c0_5 = arith.constant 0 : index
    %c0_6 = arith.constant 0 : index
    %c0_7 = arith.constant 0 : index
    %5 = vector.load %arg3[%c0_5, %c0_6, %c0_7] : memref<1x16x1xf32, #tpu.memory_space<vmem>>, vector<1x16x1xf32>
    %6 = vector.shape_cast %5 : vector<1x16x1xf32> to vector<16x1xf32>
    %7 = vector.broadcast %6 : vector<16x1xf32> to vector<16x648xf32>
    %8 = arith.addf %4, %7 : vector<16x648xf32>
    %cst_8 = arith.constant 0.000000e+00 : f32
    %9 = vector.broadcast %cst_8 : f32 to vector<16x648xf32>
    %10 = arith.maximumf %8, %9 : vector<16x648xf32>
    %c0_9 = arith.constant 0 : index
    %c0_10 = arith.constant 0 : index
    %c0_11 = arith.constant 0 : index
    %11 = vector.load %arg4[%c0_9, %c0_10, %c0_11] : memref<1x16x1xf32, #tpu.memory_space<vmem>>, vector<1x16x1xf32>
    %12 = vector.shape_cast %11 : vector<1x16x1xf32> to vector<16x1xf32>
    %13 = vector.broadcast %12 : vector<16x1xf32> to vector<16x648xf32>
    %14 = arith.mulf %10, %13 : vector<16x648xf32>
    %c0_12 = arith.constant 0 : index
    %c0_13 = arith.constant 0 : index
    %c0_14 = arith.constant 0 : index
    %15 = vector.load %arg5[%c0_12, %c0_13, %c0_14] : memref<1x16x1xf32, #tpu.memory_space<vmem>>, vector<1x16x1xf32>
    %16 = vector.shape_cast %15 : vector<1x16x1xf32> to vector<16x1xf32>
    %17 = vector.broadcast %16 : vector<16x1xf32> to vector<16x648xf32>
    %18 = arith.addf %14, %17 : vector<16x648xf32>
    %c0_15 = arith.constant 0 : index
    %c0_16 = arith.constant 0 : index
    %c0_17 = arith.constant 0 : index
    %19 = vector.load %arg6[%c0_15, %c0_16, %c0_17] : memref<1x16x648xf32, #tpu.memory_space<vmem>>, vector<1x16x648xf32>
    %20 = vector.shape_cast %19 : vector<1x16x648xf32> to vector<16x648xf32>
    %21 = vector.shape_cast %18 : vector<16x648xf32> to vector<1x16x648xf32>
    tpu.vector_store %arg6[%c0_15, %c0_16, %c0_17], %21 {strides = array<i32>} : memref<1x16x648xf32, #tpu.memory_space<vmem>>, vector<1x16x648xf32>,
    return
  }
  func.func @transform_0(%arg0: i32) -> (i32, i32, i32) {
    %c0_i32 = arith.constant 0 : i32
    %c0_i32_0 = arith.constant 0 : i32
    %c0_i32_1 = arith.constant 0 : i32
    return %arg0, %c0_i32, %c0_i32_0 : i32, i32, i32
  }
  func.func @transform_1(%arg0: i32) -> (i32, i32, i32) {
    %c0_i32 = arith.constant 0 : i32
    %c0_i32_0 = arith.constant 0 : i32
    %c0_i32_1 = arith.constant 0 : i32
    return %arg0, %c0_i32, %c0_i32_0 : i32, i32, i32
  }
  func.func @transform_2(%arg0: i32) -> (i32, i32, i32) {
    %c0_i32 = arith.constant 0 : i32
    %c0_i32_0 = arith.constant 0 : i32
    %c0_i32_1 = arith.constant 0 : i32
    return %arg0, %c0_i32, %c0_i32_0 : i32, i32, i32
  }
  func.func @transform_3(%arg0: i32) -> (i32, i32, i32) {
    %c0_i32 = arith.constant 0 : i32
    %c0_i32_0 = arith.constant 0 : i32
    %c0_i32_1 = arith.constant 0 : i32
    return %arg0, %c0_i32, %c0_i32_0 : i32, i32, i32
  }
  func.func @transform_4(%arg0: i32) -> (i32, i32, i32) {
    %c0_i32 = arith.constant 0 : i32
    %c0_i32_0 = arith.constant 0 : i32
    %c0_i32_1 = arith.constant 0 : i32
    return %arg0, %c0_i32, %c0_i32_0 : i32, i32, i32
  }
  func.func @transform_5(%arg0: i32) -> (i32, i32, i32) {
    %c0_i32 = arith.constant 0 : i32
    %c0_i32_0 = arith.constant 0 : i32
    %c0_i32_1 = arith.constant 0 : i32
    return %arg0, %c0_i32, %c0_i32_0 : i32, i32, i32
  }
}

module attributes {stable_mosaic.version = 11 : i64} {
  func.func @_conv_stage_kernel(%arg0: i32, %arg1: memref<1x32x400xf32, #tpu.memory_space<vmem>>, %arg2: memref<1x400x512xf32, #tpu.memory_space<vmem>>, %arg3: memref<1x32x1xf32, #tpu.memory_space<vmem>>, %arg4: memref<1x32x1xf32, #tpu.memory_space<vmem>>, %arg5: memref<1x32x1xf32, #tpu.memory_space<vmem>>, %arg6: memref<1x32x512xf32, #tpu.memory_space<vmem>>) attributes {dimension_semantics = [#tpu.dimension_semantics<parallel>], iteration_bounds = array<i64: 2>, scalar_prefetch = 0 : i64, scratch_operands = 0 : i64, tpu.core_type = #tpu.core_type<tc>, window_params = [{transform_indices = @transform_0, window_bounds = array<i64: 1, 32, 400>}, {transform_indices = @transform_1, window_bounds = array<i64: 1, 400, 512>}, {transform_indices = @transform_2, window_bounds = array<i64: 1, 32, 1>}, {transform_indices = @transform_3, window_bounds = array<i64: 1, 32, 1>}, {transform_indices = @transform_4, window_bounds = array<i64: 1, 32, 1>}, {transform_indices = @transform_5, window_bounds = array<i64: 1, 32, 512>}]} {
    %c0 = arith.constant 0 : index
    %c0_0 = arith.constant 0 : index
    %c0_1 = arith.constant 0 : index
    %0 = vector.load %arg1[%c0, %c0_0, %c0_1] : memref<1x32x400xf32, #tpu.memory_space<vmem>>, vector<1x32x400xf32>
    %1 = vector.shape_cast %0 : vector<1x32x400xf32> to vector<32x400xf32>
    %c0_2 = arith.constant 0 : index
    %c0_3 = arith.constant 0 : index
    %c0_4 = arith.constant 0 : index
    %2 = vector.load %arg2[%c0_2, %c0_3, %c0_4] : memref<1x400x512xf32, #tpu.memory_space<vmem>>, vector<1x400x512xf32>
    %3 = vector.shape_cast %2 : vector<1x400x512xf32> to vector<400x512xf32>
    %cst = arith.constant dense<0.000000e+00> : vector<32x512xf32>
    %4 = tpu.matmul %1, %3, %cst {dimension_numbers = #tpu.dot_dimension_numbers<[1], [0], [0], [1], [0, 0, 1, 1], [], []>} : vector<32x400xf32>, vector<400x512xf32>, vector<32x512xf32> -> vector<32x512xf32>
    %c0_5 = arith.constant 0 : index
    %c0_6 = arith.constant 0 : index
    %c0_7 = arith.constant 0 : index
    %5 = vector.load %arg3[%c0_5, %c0_6, %c0_7] : memref<1x32x1xf32, #tpu.memory_space<vmem>>, vector<1x32x1xf32>
    %6 = vector.shape_cast %5 : vector<1x32x1xf32> to vector<32x1xf32>
    %7 = vector.broadcast %6 : vector<32x1xf32> to vector<32x512xf32>
    %8 = arith.addf %4, %7 : vector<32x512xf32>
    %cst_8 = arith.constant 0.000000e+00 : f32
    %9 = vector.broadcast %cst_8 : f32 to vector<32x512xf32>
    %10 = arith.maximumf %8, %9 : vector<32x512xf32>
    %c0_9 = arith.constant 0 : index
    %c0_10 = arith.constant 0 : index
    %c0_11 = arith.constant 0 : index
    %11 = vector.load %arg4[%c0_9, %c0_10, %c0_11] : memref<1x32x1xf32, #tpu.memory_space<vmem>>, vector<1x32x1xf32>
    %12 = vector.shape_cast %11 : vector<1x32x1xf32> to vector<32x1xf32>
    %13 = vector.broadcast %12 : vector<32x1xf32> to vector<32x512xf32>
    %14 = arith.mulf %10, %13 : vector<32x512xf32>
    %c0_12 = arith.constant 0 : index
    %c0_13 = arith.constant 0 : index
    %c0_14 = arith.constant 0 : index
    %15 = vector.load %arg5[%c0_12, %c0_13, %c0_14] : memref<1x32x1xf32, #tpu.memory_space<vmem>>, vector<1x32x1xf32>
    %16 = vector.shape_cast %15 : vector<1x32x1xf32> to vector<32x1xf32>
    %17 = vector.broadcast %16 : vector<32x1xf32> to vector<32x512xf32>
    %18 = arith.addf %14, %17 : vector<32x512xf32>
    %c0_15 = arith.constant 0 : index
    %c0_16 = arith.constant 0 : index
    %c0_17 = arith.constant 0 : index
    %19 = vector.load %arg6[%c0_15, %c0_16, %c0_17] : memref<1x32x512xf32, #tpu.memory_space<vmem>>, vector<1x32x512xf32>
    %20 = vector.shape_cast %19 : vector<1x32x512xf32> to vector<32x512xf32>
    %21 = vector.shape_cast %18 : vector<32x512xf32> to vector<1x32x512xf32>
    tpu.vector_store %arg6[%c0_15, %c0_16, %c0_17], %21 {strides = array<i32>} : memref<1x32x512xf32, #tpu.memory_space<vmem>>, vector<1x32x512xf32>,
    return
  }
  func.func @transform_0(%arg0: i32) -> (i32, i32, i32) {
    %c0_i32 = arith.constant 0 : i32
    %c0_i32_0 = arith.constant 0 : i32
    %c0_i32_1 = arith.constant 0 : i32
    return %arg0, %c0_i32, %c0_i32_0 : i32, i32, i32
  }
  func.func @transform_1(%arg0: i32) -> (i32, i32, i32) {
    %c0_i32 = arith.constant 0 : i32
    %c0_i32_0 = arith.constant 0 : i32
    %c0_i32_1 = arith.constant 0 : i32
    return %arg0, %c0_i32, %c0_i32_0 : i32, i32, i32
  }
  func.func @transform_2(%arg0: i32) -> (i32, i32, i32) {
    %c0_i32 = arith.constant 0 : i32
    %c0_i32_0 = arith.constant 0 : i32
    %c0_i32_1 = arith.constant 0 : i32
    return %arg0, %c0_i32, %c0_i32_0 : i32, i32, i32
  }
  func.func @transform_3(%arg0: i32) -> (i32, i32, i32) {
    %c0_i32 = arith.constant 0 : i32
    %c0_i32_0 = arith.constant 0 : i32
    %c0_i32_1 = arith.constant 0 : i32
    return %arg0, %c0_i32, %c0_i32_0 : i32, i32, i32
  }
  func.func @transform_4(%arg0: i32) -> (i32, i32, i32) {
    %c0_i32 = arith.constant 0 : i32
    %c0_i32_0 = arith.constant 0 : i32
    %c0_i32_1 = arith.constant 0 : i32
    return %arg0, %c0_i32, %c0_i32_0 : i32, i32, i32
  }
  func.func @transform_5(%arg0: i32) -> (i32, i32, i32) {
    %c0_i32 = arith.constant 0 : i32
    %c0_i32_0 = arith.constant 0 : i32
    %c0_i32_1 = arith.constant 0 : i32
    return %arg0, %c0_i32, %c0_i32_0 : i32, i32, i32
  }
}

module attributes {stable_mosaic.version = 11 : i64} {
  func.func @_fc_head_kernel(%arg0: i32, %arg1: memref<4x2048xf32, #tpu.memory_space<vmem>>, %arg2: memref<2048x512xbf16, #tpu.memory_space<vmem>>, %arg3: memref<1x512xf32, #tpu.memory_space<vmem>>, %arg4: memref<512x512xbf16, #tpu.memory_space<vmem>>, %arg5: memref<1x512xf32, #tpu.memory_space<vmem>>, %arg6: memref<512x256xbf16, #tpu.memory_space<vmem>>, %arg7: memref<1x256xf32, #tpu.memory_space<vmem>>, %arg8: memref<256x128xbf16, #tpu.memory_space<vmem>>, %arg9: memref<1x128xf32, #tpu.memory_space<vmem>>, %arg10: memref<4x128xf32, #tpu.memory_space<vmem>>, %arg11: memref<4x512xf32, #tpu.memory_space<vmem>>) attributes {dimension_semantics = [#tpu.dimension_semantics<arbitrary>], iteration_bounds = array<i64: 4>, scalar_prefetch = 0 : i64, scratch_operands = 1 : i64, tpu.core_type = #tpu.core_type<tc>, window_params = [{transform_indices = @transform_0, window_bounds = array<i64: 4, 2048>}, {transform_indices = @transform_1, window_bounds = array<i64: 2048, 512>}, {pipeline_mode = #tpu.pipeline_mode<synchronous>, transform_indices = @transform_2, window_bounds = array<i64: 1, 512>}, {pipeline_mode = #tpu.pipeline_mode<synchronous>, transform_indices = @transform_3, window_bounds = array<i64: 512, 512>}, {pipeline_mode = #tpu.pipeline_mode<synchronous>, transform_indices = @transform_4, window_bounds = array<i64: 1, 512>}, {pipeline_mode = #tpu.pipeline_mode<synchronous>, transform_indices = @transform_5, window_bounds = array<i64: 512, 256>}, {pipeline_mode = #tpu.pipeline_mode<synchronous>, transform_indices = @transform_6, window_bounds = array<i64: 1, 256>}, {pipeline_mode = #tpu.pipeline_mode<synchronous>, transform_indices = @transform_7, window_bounds = array<i64: 256, 128>}, {pipeline_mode = #tpu.pipeline_mode<synchronous>, transform_indices = @transform_8, window_bounds = array<i64: 1, 128>}, {pipeline_mode = #tpu.pipeline_mode<synchronous>, transform_indices = @transform_9, window_bounds = array<i64: 4, 128>}]} {
    %c0_i32 = arith.constant 0 : i32
    %0 = arith.cmpi eq, %arg0, %c0_i32 : i32
    %1 = arith.extui %0 : i1 to i32
    %c0_i32_0 = arith.constant 0 : i32
    %2 = arith.cmpi ne, %1, %c0_i32_0 : i32
    scf.if %2 {
      %cst_9 = arith.constant 0.000000e+00 : f32
      %13 = vector.broadcast %cst_9 : f32 to vector<4x512xf32>
      %c0_10 = arith.constant 0 : index
      %c0_11 = arith.constant 0 : index
      %14 = vector.load %arg11[%c0_10, %c0_11] : memref<4x512xf32, #tpu.memory_space<vmem>>, vector<4x512xf32>
      tpu.vector_store %arg11[%c0_10, %c0_11], %13 {strides = array<i32>} : memref<4x512xf32, #tpu.memory_space<vmem>>, vector<4x512xf32>,
    } else {
    }
    %c0 = arith.constant 0 : index
    %c0_1 = arith.constant 0 : index
    %3 = vector.load %arg11[%c0, %c0_1] : memref<4x512xf32, #tpu.memory_space<vmem>>, vector<4x512xf32>
    %c0_2 = arith.constant 0 : index
    %c0_3 = arith.constant 0 : index
    %4 = vector.load %arg1[%c0_2, %c0_3] : memref<4x2048xf32, #tpu.memory_space<vmem>>, vector<4x2048xf32>
    %5 = arith.truncf %4 : vector<4x2048xf32> to vector<4x2048xbf16>
    %c0_4 = arith.constant 0 : index
    %c0_5 = arith.constant 0 : index
    %6 = vector.load %arg2[%c0_4, %c0_5] : memref<2048x512xbf16, #tpu.memory_space<vmem>>, vector<2048x512xbf16>
    %cst = arith.constant dense<0.000000e+00> : vector<4x512xf32>
    %7 = tpu.matmul %5, %6, %cst {dimension_numbers = #tpu.dot_dimension_numbers<[1], [0], [0], [1], [0, 0, 1, 1], [], []>} : vector<4x2048xbf16>, vector<2048x512xbf16>, vector<4x512xf32> -> vector<4x512xf32>
    %8 = arith.addf %3, %7 : vector<4x512xf32>
    %c0_6 = arith.constant 0 : index
    %c0_7 = arith.constant 0 : index
    %9 = vector.load %arg11[%c0_6, %c0_7] : memref<4x512xf32, #tpu.memory_space<vmem>>, vector<4x512xf32>
    tpu.vector_store %arg11[%c0_6, %c0_7], %8 {strides = array<i32>} : memref<4x512xf32, #tpu.memory_space<vmem>>, vector<4x512xf32>,
    %c3_i32 = arith.constant 3 : i32
    %10 = arith.cmpi eq, %arg0, %c3_i32 : i32
    %11 = arith.extui %10 : i1 to i32
    %c0_i32_8 = arith.constant 0 : i32
    %12 = arith.cmpi ne, %11, %c0_i32_8 : i32
    scf.if %12 {
      %c0_9 = arith.constant 0 : index
      %c0_10 = arith.constant 0 : index
      %13 = vector.load %arg11[%c0_9, %c0_10] : memref<4x512xf32, #tpu.memory_space<vmem>>, vector<4x512xf32>
      %c0_11 = arith.constant 0 : index
      %c0_12 = arith.constant 0 : index
      %14 = vector.load %arg3[%c0_11, %c0_12] : memref<1x512xf32, #tpu.memory_space<vmem>>, vector<1x512xf32>
      %15 = vector.broadcast %14 : vector<1x512xf32> to vector<4x512xf32>
      %16 = arith.addf %13, %15 : vector<4x512xf32>
      %cst_13 = arith.constant 0.000000e+00 : f32
      %17 = vector.broadcast %cst_13 : f32 to vector<4x512xf32>
      %18 = arith.maximumf %16, %17 : vector<4x512xf32>
      %19 = arith.truncf %18 : vector<4x512xf32> to vector<4x512xbf16>
      %c0_14 = arith.constant 0 : index
      %c0_15 = arith.constant 0 : index
      %20 = vector.load %arg4[%c0_14, %c0_15] : memref<512x512xbf16, #tpu.memory_space<vmem>>, vector<512x512xbf16>
      %cst_16 = arith.constant dense<0.000000e+00> : vector<4x512xf32>
      %21 = tpu.matmul %19, %20, %cst_16 {dimension_numbers = #tpu.dot_dimension_numbers<[1], [0], [0], [1], [0, 0, 1, 1], [], []>} : vector<4x512xbf16>, vector<512x512xbf16>, vector<4x512xf32> -> vector<4x512xf32>
      %c0_17 = arith.constant 0 : index
      %c0_18 = arith.constant 0 : index
      %22 = vector.load %arg5[%c0_17, %c0_18] : memref<1x512xf32, #tpu.memory_space<vmem>>, vector<1x512xf32>
      %23 = vector.broadcast %22 : vector<1x512xf32> to vector<4x512xf32>
      %24 = arith.addf %21, %23 : vector<4x512xf32>
      %cst_19 = arith.constant 0.000000e+00 : f32
      %25 = vector.broadcast %cst_19 : f32 to vector<4x512xf32>
      %26 = arith.maximumf %24, %25 : vector<4x512xf32>
      %27 = arith.truncf %26 : vector<4x512xf32> to vector<4x512xbf16>
      %c0_20 = arith.constant 0 : index
      %c0_21 = arith.constant 0 : index
      %28 = vector.load %arg6[%c0_20, %c0_21] : memref<512x256xbf16, #tpu.memory_space<vmem>>, vector<512x256xbf16>
      %cst_22 = arith.constant dense<0.000000e+00> : vector<4x256xf32>
      %29 = tpu.matmul %27, %28, %cst_22 {dimension_numbers = #tpu.dot_dimension_numbers<[1], [0], [0], [1], [0, 0, 1, 1], [], []>} : vector<4x512xbf16>, vector<512x256xbf16>, vector<4x256xf32> -> vector<4x256xf32>
      %c0_23 = arith.constant 0 : index
      %c0_24 = arith.constant 0 : index
      %30 = vector.load %arg7[%c0_23, %c0_24] : memref<1x256xf32, #tpu.memory_space<vmem>>, vector<1x256xf32>
      %31 = vector.broadcast %30 : vector<1x256xf32> to vector<4x256xf32>
      %32 = arith.addf %29, %31 : vector<4x256xf32>
      %cst_25 = arith.constant 0.000000e+00 : f32
      %33 = vector.broadcast %cst_25 : f32 to vector<4x256xf32>
      %34 = arith.maximumf %32, %33 : vector<4x256xf32>
      %35 = arith.truncf %34 : vector<4x256xf32> to vector<4x256xbf16>
      %c0_26 = arith.constant 0 : index
      %c0_27 = arith.constant 0 : index
      %36 = vector.load %arg8[%c0_26, %c0_27] : memref<256x128xbf16, #tpu.memory_space<vmem>>, vector<256x128xbf16>
      %cst_28 = arith.constant dense<0.000000e+00> : vector<4x128xf32>
      %37 = tpu.matmul %35, %36, %cst_28 {dimension_numbers = #tpu.dot_dimension_numbers<[1], [0], [0], [1], [0, 0, 1, 1], [], []>} : vector<4x256xbf16>, vector<256x128xbf16>, vector<4x128xf32> -> vector<4x128xf32>
      %c0_29 = arith.constant 0 : index
      %c0_30 = arith.constant 0 : index
      %38 = vector.load %arg9[%c0_29, %c0_30] : memref<1x128xf32, #tpu.memory_space<vmem>>, vector<1x128xf32>
      %39 = vector.broadcast %38 : vector<1x128xf32> to vector<4x128xf32>
      %40 = arith.addf %37, %39 : vector<4x128xf32>
      %41 = arith.mulf %40, %40 : vector<4x128xf32>
      %cst_31 = arith.constant dense<0.000000e+00> : vector<4xf32>
      %42 = vector.multi_reduction <add>, %41, %cst_31 [1] : vector<4x128xf32> to vector<4xf32>
      %43 = vector.shape_cast %42 : vector<4xf32> to vector<4x1xf32>
      %cst_32 = arith.constant 1.000000e-24 : f32
      %44 = vector.broadcast %cst_32 : f32 to vector<4x1xf32>
      %45 = arith.maximumf %43, %44 : vector<4x1xf32>
      %46 = math.rsqrt %45 : vector<4x1xf32>
      %47 = vector.broadcast %46 : vector<4x1xf32> to vector<4x128xf32>
      %48 = arith.mulf %40, %47 : vector<4x128xf32>
      %c0_33 = arith.constant 0 : index
      %c0_34 = arith.constant 0 : index
      %49 = vector.load %arg10[%c0_33, %c0_34] : memref<4x128xf32, #tpu.memory_space<vmem>>, vector<4x128xf32>
      tpu.vector_store %arg10[%c0_33, %c0_34], %48 {strides = array<i32>} : memref<4x128xf32, #tpu.memory_space<vmem>>, vector<4x128xf32>,
    } else {
    }
    return
  }
  func.func @transform_0(%arg0: i32) -> (i32, i32) {
    %c0_i32 = arith.constant 0 : i32
    %c0_i32_0 = arith.constant 0 : i32
    return %c0_i32, %arg0 : i32, i32
  }
  func.func @transform_1(%arg0: i32) -> (i32, i32) {
    %c0_i32 = arith.constant 0 : i32
    %c0_i32_0 = arith.constant 0 : i32
    return %arg0, %c0_i32 : i32, i32
  }
  func.func @transform_2(%arg0: i32) -> (i32, i32) {
    %c0_i32 = arith.constant 0 : i32
    %c0_i32_0 = arith.constant 0 : i32
    %c0_i32_1 = arith.constant 0 : i32
    return %c0_i32, %c0_i32_0 : i32, i32
  }
  func.func @transform_3(%arg0: i32) -> (i32, i32) {
    %c0_i32 = arith.constant 0 : i32
    %c0_i32_0 = arith.constant 0 : i32
    %c0_i32_1 = arith.constant 0 : i32
    return %c0_i32, %c0_i32_0 : i32, i32
  }
  func.func @transform_4(%arg0: i32) -> (i32, i32) {
    %c0_i32 = arith.constant 0 : i32
    %c0_i32_0 = arith.constant 0 : i32
    %c0_i32_1 = arith.constant 0 : i32
    return %c0_i32, %c0_i32_0 : i32, i32
  }
  func.func @transform_5(%arg0: i32) -> (i32, i32) {
    %c0_i32 = arith.constant 0 : i32
    %c0_i32_0 = arith.constant 0 : i32
    %c0_i32_1 = arith.constant 0 : i32
    return %c0_i32, %c0_i32_0 : i32, i32
  }
  func.func @transform_6(%arg0: i32) -> (i32, i32) {
    %c0_i32 = arith.constant 0 : i32
    %c0_i32_0 = arith.constant 0 : i32
    %c0_i32_1 = arith.constant 0 : i32
    return %c0_i32, %c0_i32_0 : i32, i32
  }
  func.func @transform_7(%arg0: i32) -> (i32, i32) {
    %c0_i32 = arith.constant 0 : i32
    %c0_i32_0 = arith.constant 0 : i32
    %c0_i32_1 = arith.constant 0 : i32
    return %c0_i32, %c0_i32_0 : i32, i32
  }
  func.func @transform_8(%arg0: i32) -> (i32, i32) {
    %c0_i32 = arith.constant 0 : i32
    %c0_i32_0 = arith.constant 0 : i32
    %c0_i32_1 = arith.constant 0 : i32
    return %c0_i32, %c0_i32_0 : i32, i32
  }
  func.func @transform_9(%arg0: i32) -> (i32, i32) {
    %c0_i32 = arith.constant 0 : i32
    %c0_i32_0 = arith.constant 0 : i32
    %c0_i32_1 = arith.constant 0 : i32
    return %c0_i32, %c0_i32_0 : i32, i32
  }
}

</mosaic_0001>

<llo_original>
// kernel: siamese_forward.5
$region0: #{siamese_forward.5}
  #allocation0 [shape = 'u32[]', space=smem, size = 0x4, offset = 0x4, fixed_abs, tag = 'smem constant byte address 0x4 - core index']
  #allocation1 [shape = 'u32[144,128]{1,0:T(1,128)}', space=vmem, size = 0x12000, scoped, tag = 'internal scratch']
  %s0 = inlined_call_operand.vmem [shape: f32[2,4,25], index: 0, kind: input, shape index: {}]
  %s1 = inlined_call_operand.vmem [shape: f32[2,25,968], index: 1, kind: input, shape index: {}]
  %s2 = inlined_call_operand.vmem [shape: f32[2,4,1], index: 2, kind: input, shape index: {}]
  %s3 = inlined_call_operand.vmem [shape: f32[2,4,1], index: 3, kind: input, shape index: {}]
  %s4 = inlined_call_operand.vmem [shape: f32[2,4,1], index: 4, kind: input, shape index: {}]
  %s5 = inlined_call_operand.vmem [shape: f32[2,4,968], index: 5, kind: output, shape index: {}]
  %s6 = sld [smem:[#allocation0]]
  $region53: #{siamese_forward.5} parent=0
    _
  %s8 = ssub.s32 1, %s6
  %s9 = scalar_select 0, %s8, %s6
  loop: start=0, step=1, limit=4
  $region2: #{siamese_forward.5} parent=0 // loop_pre_header
    _
  $region3: #{siamese_forward.5} parent=0 // loop_header
    %s11 = sphi 0, %s15
    %p12 = scmp.ge.s32.totalorder %s11, 4
    %s21 = sphi 0, %s23
    %s24 = sphi 0, %s21
    %s25 = sphi 0, %s24
    %s41 = sphi 0, %s25
    %s47 = sphi 0, %s49
    %s50 = sphi 0, %s47
    %s51 = sphi 0, %s50
    %s67 = sphi 0, %s51
    %s73 = sphi 0, %s75
    %s76 = sphi 0, %s73
    %s77 = sphi 0, %s76
    %s93 = sphi 0, %s77
    %s99 = sphi 0, %s101
    %s102 = sphi 0, %s99
    %s103 = sphi 0, %s102
    %s119 = sphi 0, %s103
    %s125 = sphi 0, %s127
    %s128 = sphi 0, %s125
    %s129 = sphi 0, %s128
    %s145 = sphi 0, %s129
    %s151 = sphi 0, %s153
    %s154 = sphi 0, %s151
    %s155 = sphi 0, %s154
    %s171 = sphi 0, %s155
  $region4: #{siamese_forward.5} parent=0 // loop_header_branch
    %14 = sbr.rel (%p12) target = $region8
  $region5: #{siamese_forward.5} parent=0 // loop_body
    %s16 = ssub.s32 %s11, 1
    %s17 = ssub.s32 %s11, 2
    %s18 = sadd.s32 %s11, 1
    %s19 = ssub.s32 %s11, %s18
    %p20 = scmp.eq.s32.totalorder %s19, 0
    %s22 = sadd.s32 %s21, 1
    %s23 = scalar_select %p20, %s21, %s22
    %p26 = pneg %p20
    %p27 = scmp.eq.s32.totalorder %s11, 1
    %p28 = por %p26, %p27
    %p29 = scmp.ne.s32.totalorder %s21, %s24
    %p30 = scmp.eq.s32.totalorder %s11, 0
    %p31 = por %p29, %p30
    %p32 = scmp.ne.s32.totalorder %s21, %s24
    %p33 = scmp.eq.s32.totalorder %s16, 1
    %p34 = por %p32, %p33
    %p35 = scmp.ne.s32.totalorder %s24, %s25
    %p36 = scmp.eq.s32.totalorder %s16, 0
    %p37 = por %p35, %p36
    %p38 = scmp.ne.s32.totalorder %s24, %s25
    %p39 = scmp.eq.s32.totalorder %s17, 1
    %p40 = por %p38, %p39
    %p42 = scmp.ne.s32.totalorder %s25, %s41
    %p43 = scmp.eq.s32.totalorder %s17, 0
    %p44 = por %p42, %p43
    %s45 = ssub.s32 %s11, %s18
    %p46 = scmp.eq.s32.totalorder %s45, 0
    %s48 = sadd.s32 %s47, 1
    %s49 = scalar_select %p46, %s47, %s48
    %p52 = pneg %p46
    %p53 = scmp.eq.s32.totalorder %s11, 1
    %p54 = por %p52, %p53
    %p55 = scmp.ne.s32.totalorder %s47, %s50
    %p56 = scmp.eq.s32.totalorder %s11, 0
    %p57 = por %p55, %p56
    %p58 = scmp.ne.s32.totalorder %s47, %s50
    %p59 = scmp.eq.s32.totalorder %s16, 1
    %p60 = por %p58, %p59
    %p61 = scmp.ne.s32.totalorder %s50, %s51
    %p62 = scmp.eq.s32.totalorder %s16, 0
    %p63 = por %p61, %p62
    %p64 = scmp.ne.s32.totalorder %s50, %s51
    %p65 = scmp.eq.s32.totalorder %s17, 1
    %p66 = por %p64, %p65
    %p68 = scmp.ne.s32.totalorder %s51, %s67
    %p69 = scmp.eq.s32.totalorder %s17, 0
    %p70 = por %p68, %p69
    %s71 = ssub.s32 %s11, %s18
    %p72 = scmp.eq.s32.totalorder %s71, 0
    %s74 = sadd.s32 %s73, 1
    %s75 = scalar_select %p72, %s73, %s74
    %p78 = pneg %p72
    %p79 = scmp.eq.s32.totalorder %s11, 1
    %p80 = por %p78, %p79
    %p81 = scmp.ne.s32.totalorder %s73, %s76
    %p82 = scmp.eq.s32.totalorder %s11, 0
    %p83 = por %p81, %p82
    %p84 = scmp.ne.s32.totalorder %s73, %s76
    %p85 = scmp.eq.s32.totalorder %s16, 1
    %p86 = por %p84, %p85
    %p87 = scmp.ne.s32.totalorder %s76, %s77
    %p88 = scmp.eq.s32.totalorder %s16, 0
    %p89 = por %p87, %p88
    %p90 = scmp.ne.s32.totalorder %s76, %s77
    %p91 = scmp.eq.s32.totalorder %s17, 1
    %p92 = por %p90, %p91
    %p94 = scmp.ne.s32.totalorder %s77, %s93
    %p95 = scmp.eq.s32.totalorder %s17, 0
    %p96 = por %p94, %p95
    %s97 = ssub.s32 %s11, %s18
    %p98 = scmp.eq.s32.totalorder %s97, 0
    %s100 = sadd.s32 %s99, 1
    %s101 = scalar_select %p98, %s99, %s100
    %p104 = pneg %p98
    %p105 = scmp.eq.s32.totalorder %s11, 1
    %p106 = por %p104, %p105
    %p107 = scmp.ne.s32.totalorder %s99, %s102
    %p108 = scmp.eq.s32.totalorder %s11, 0
    %p109 = por %p107, %p108
    %p110 = scmp.ne.s32.totalorder %s99, %s102
    %p111 = scmp.eq.s32.totalorder %s16, 1
    %p112 = por %p110, %p111
    %p113 = scmp.ne.s32.totalorder %s102, %s103
    %p114 = scmp.eq.s32.totalorder %s16, 0
    %p115 = por %p113, %p114
    %p116 = scmp.ne.s32.totalorder %s102, %s103
    %p117 = scmp.eq.s32.totalorder %s17, 1
    %p118 = por %p116, %p117
    %p120 = scmp.ne.s32.totalorder %s103, %s119
    %p121 = scmp.eq.s32.totalorder %s17, 0
    %p122 = por %p120, %p121
    %s123 = ssub.s32 %s11, %s18
    %p124 = scmp.eq.s32.totalorder %s123, 0
    %s126 = sadd.s32 %s125, 1
    %s127 = scalar_select %p124, %s125, %s126
    %p130 = pneg %p124
    %p131 = scmp.eq.s32.totalorder %s11, 1
    %p132 = por %p130, %p131
    %p133 = scmp.ne.s32.totalorder %s125, %s128
    %p134 = scmp.eq.s32.totalorder %s11, 0
    %p135 = por %p133, %p134
    %p136 = scmp.ne.s32.totalorder %s125, %s128
    %p137 = scmp.eq.s32.totalorder %s16, 1
    %p138 = por %p136, %p137
    %p139 = scmp.ne.s32.totalorder %s128, %s129
    %p140 = scmp.eq.s32.totalorder %s16, 0
    %p141 = por %p139, %p140
    %p142 = scmp.ne.s32.totalorder %s128, %s129
    %p143 = scmp.eq.s32.totalorder %s17, 1
    %p144 = por %p142, %p143
    %p146 = scmp.ne.s32.totalorder %s129, %s145
    %p147 = scmp.eq.s32.totalorder %s17, 0
    %p148 = por %p146, %p147
    %s149 = ssub.s32 %s11, %s18
    %p150 = scmp.eq.s32.totalorder %s149, 0
    %s152 = sadd.s32 %s151, 1
    %s153 = scalar_select %p150, %s151, %s152
    %p156 = pneg %p150
    %p157 = scmp.eq.s32.totalorder %s11, 1
    %p158 = por %p156, %p157
    %p159 = scmp.ne.s32.totalorder %s151, %s154
    %p160 = scmp.eq.s32.totalorder %s11, 0
    %p161 = por %p159, %p160
    %p162 = scmp.ne.s32.totalorder %s151, %s154
    %p163 = scmp.eq.s32.totalorder %s16, 1
    %p164 = por %p162, %p163
    %p165 = scmp.ne.s32.totalorder %s154, %s155
    %p166 = scmp.eq.s32.totalorder %s16, 0
    %p167 = por %p165, %p166
    %p168 = scmp.ne.s32.totalorder %s154, %s155
    %p169 = scmp.eq.s32.totalorder %s17, 1
    %p170 = por %p168, %p169
    %p172 = scmp.ne.s32.totalorder %s155, %s171
    %p173 = scmp.eq.s32.totalorder %s17, 0
    %p174 = por %p172, %p173
    %p175 = scmp.le.s32.totalorder 1, %s11
    %p176 = scmp.lt.s32.totalorder %s11, 3
    %p177 = pnand %p175, %p176
    %p178 = pneg %p177
    // Predicated region
    $region9: #{siamese_forward.5} parent=5 // pred_check
      _
    $region10: #{siamese_forward.5} parent=5 // pred_check_branch
      %180 = sbr.rel (%p177) target = $region12
    $region11: #{siamese_forward.5} parent=5 // pred_region
      %s181 = ssub.s32 %s11, 1
    $region12: #{siamese_forward.5} parent=5 // pred_fallthru
      _
    %p182 = scmp.lt.s32.totalorder %s11, 2
    // Predicated region
    $region13: #{siamese_forward.5} parent=5 // pred_check
      %p183 = pneg %p182
    $region14: #{siamese_forward.5} parent=5 // pred_check_branch
      %185 = sbr.rel (%p183) target = $region16
    $region15: #{siamese_forward.5} parent=5 // pred_region
      // Predicated region
      $region17: #{siamese_forward.5} parent=15 // pred_check
        %p186 = pneg %p31
      $region18: #{siamese_forward.5} parent=15 // pred_check_branch
        %188 = sbr.rel (%p186) target = $region20
      $region19: #{siamese_forward.5} parent=15 // pred_region
        %p189 = scmp.lt.s32.totalorder %s11, 1
        %s190 = scalar_select %p189, %s11, 1
        %s191 = smul.addr %s190, 4
        %s192 = scalar_lea.vmem %s0, %s191
      $region20: #{siamese_forward.5} parent=15 // pred_fallthru
        _
      // Predicated region
      $region21: #{siamese_forward.5} parent=15 // pred_check
        %p193 = pneg %p57
      $region22: #{siamese_forward.5} parent=15 // pred_check_branch
        %195 = sbr.rel (%p193) target = $region24
      $region23: #{siamese_forward.5} parent=15 // pred_region
        %p196 = scmp.lt.s32.totalorder %s11, 1
        %s197 = scalar_select %p196, %s11, 1
        %s198 = smul.addr %s197, 32
        %s199 = smul.addr %s198, 8
        %s200 = scalar_lea.vmem %s1, %s199
      $region24: #{siamese_forward.5} parent=15 // pred_fallthru
        _
      // Predicated region
      $region25: #{siamese_forward.5} parent=15 // pred_check
        %p201 = pneg %p83
      $region26: #{siamese_forward.5} parent=15 // pred_check_branch
        %203 = sbr.rel (%p201) target = $region28
      $region27: #{siamese_forward.5} parent=15 // pred_region
        %p204 = scmp.lt.s32.totalorder %s11, 1
        %s205 = scalar_select %p204, %s11, 1
        %s206 = smul.addr %s205, 4
        %s207 = scalar_lea.vmem %s2, %s206
      $region28: #{siamese_forward.5} parent=15 // pred_fallthru
        _
      // Predicated region
      $region29: #{siamese_forward.5} parent=15 // pred_check
        %p208 = pneg %p109
      $region30: #{siamese_forward.5} parent=15 // pred_check_branch
        %210 = sbr.rel (%p208) target = $region32
      $region31: #{siamese_forward.5} parent=15 // pred_region
        %p211 = scmp.lt.s32.totalorder %s11, 1
        %s212 = scalar_select %p211, %s11, 1
        %s213 = smul.addr %s212, 4
        %s214 = scalar_lea.vmem %s3, %s213
      $region32: #{siamese_forward.5} parent=15 // pred_fallthru
        _
      // Predicated region
      $region33: #{siamese_forward.5} parent=15 // pred_check
        %p215 = pneg %p135
      $region34: #{siamese_forward.5} parent=15 // pred_check_branch
        %217 = sbr.rel (%p215) target = $region36
      $region35: #{siamese_forward.5} parent=15 // pred_region
        %p218 = scmp.lt.s32.totalorder %s11, 1
        %s219 = scalar_select %p218, %s11, 1
        %s220 = smul.addr %s219, 4
        %s221 = scalar_lea.vmem %s4, %s220
      $region36: #{siamese_forward.5} parent=15 // pred_fallthru
        _
    $region16: #{siamese_forward.5} parent=5 // pred_fallthru
      _
    %p222 = scmp.le.s32.totalorder 1, %s11
    %p223 = scmp.lt.s32.totalorder %s11, 3
    %p224 = pnand %p222, %p223
    %p225 = pneg %p224
    // Predicated region
    $region37: #{siamese_forward.5} parent=5 // pred_check
      _
    $region38: #{siamese_forward.5} parent=5 // pred_check_branch
      %227 = sbr.rel (%p224) target = $region40
    $region39: #{siamese_forward.5} parent=5 // pred_region
      %s228 = ssub.s32 %s11, 1
      %p229 = scmp.lt.s32.totalorder %s16, 1
      %s230 = scalar_select %p229, %s16, 1
      %s231 = smul.addr %s230, 4
      %s232 = scalar_lea.vmem %s0, %s231
      %p233 = pneg %p37
      %p234 = pneg %p34
      %p235 = scmp.lt.s32.totalorder %s16, 1
      %s236 = scalar_select %p235, %s16, 1
      %s237 = smul.addr %s236, 32
      %s238 = smul.addr %s237, 8
      %s239 = scalar_lea.vmem %s1, %s238
      %p240 = pneg %p63
      %p241 = pneg %p60
      %p242 = scmp.lt.s32.totalorder %s16, 1
      %s243 = scalar_select %p242, %s16, 1
      %s244 = smul.addr %s243, 4
      %s245 = scalar_lea.vmem %s2, %s244
      %p246 = pneg %p89
      %p247 = pneg %p86
      %p248 = scmp.lt.s32.totalorder %s16, 1
      %s249 = scalar_select %p248, %s16, 1
      %s250 = smul.addr %s249, 4
      %s251 = scalar_lea.vmem %s3, %s250
      %p252 = pneg %p115
      %p253 = pneg %p112
      %p254 = scmp.lt.s32.totalorder %s16, 1
      %s255 = scalar_select %p254, %s16, 1
      %s256 = smul.addr %s255, 4
      %s257 = scalar_lea.vmem %s4, %s256
      %p258 = pneg %p141
      %p259 = pneg %p138
      %p260 = pneg %p167
      %p261 = pneg %p164
      %p262 = scmp.lt.s32.totalorder %s16, 1
      %s263 = scalar_select %p262, %s16, 1
      %s264 = smul.addr %s263, 8
      %s265 = smul.addr %s264, 4
      %s266 = scalar_lea.vmem %s5, %s265
      %p267 = scmp.lt.s32.totalorder %s16, 1
      %s268 = scalar_select %p267, %s16, 1
      %s269 = smul.addr %s268, 4
      %s270 = scalar_lea.vmem %s0, %s269
      %p271 = scmp.lt.s32.totalorder %s16, 1
      %s272 = scalar_select %p271, %s16, 1
      %s273 = smul.addr %s272, 32
      %s274 = smul.addr %s273, 8
      %s275 = scalar_lea.vmem %s1, %s274
      %p276 = scmp.lt.s32.totalorder %s16, 1
      %s277 = scalar_select %p276, %s16, 1
      %s278 = smul.addr %s277, 4
      %s279 = scalar_lea.vmem %s2, %s278
      %p280 = scmp.lt.s32.totalorder %s16, 1
      %s281 = scalar_select %p280, %s16, 1
      %s282 = smul.addr %s281, 4
      %s283 = scalar_lea.vmem %s3, %s282
      %p284 = scmp.lt.s32.totalorder %s16, 1
      %s285 = scalar_select %p284, %s16, 1
      %s286 = smul.addr %s285, 4
      %s287 = scalar_lea.vmem %s4, %s286
      %p288 = scmp.lt.s32.totalorder %s16, 1
      %s289 = scalar_select %p288, %s16, 1
      %s290 = smul.addr %s289, 8
      %s291 = smul.addr %s290, 4
      %s292 = scalar_lea.vmem %s5, %s291
      %v293 = vld [vmem:[%s270] sm:$0xf]
      %v294 = vld [vmem:[%s275] sm:$0xff]
      %v295 = vld [vmem:[%s275 + $0x8] sm:$0xff]
      %v296 = vld [vmem:[%s275 + $0x10] sm:$0xff]
      %v297 = vld [vmem:[%s275 + $0x18] sm:$0xff]
      %v298 = vld [vmem:[%s275 + $0x20] sm:$0xff]
      %v299 = vld [vmem:[%s275 + $0x28] sm:$0xff]
      %v300 = vld [vmem:[%s275 + $0x30] sm:$0xff]
      %v301 = vld [vmem:[%s275 + $0x38] sm:$0xff]
      %v302 = vld [vmem:[%s275 + $0x40] sm:$0xff]
      %v303 = vld [vmem:[%s275 + $0x48] sm:$0xff]
      %v304 = vld [vmem:[%s275 + $0x50] sm:$0xff]
      %v305 = vld [vmem:[%s275 + $0x58] sm:$0xff]
      %v306 = vld [vmem:[%s275 + $0x60] sm:$0xff]
      %v307 = vld [vmem:[%s275 + $0x68] sm:$0xff]
      %v308 = vld [vmem:[%s275 + $0x70] sm:$0xff]
      %v309 = vld [vmem:[%s275 + $0x78] sm:$0xff]
      %v310 = vld [vmem:[%s275 + $0x80] sm:$0xff]
      %v311 = vld [vmem:[%s275 + $0x88] sm:$0xff]
      %v312 = vld [vmem:[%s275 + $0x90] sm:$0xff]
      %v313 = vld [vmem:[%s275 + $0x98] sm:$0xff]
      %v314 = vld [vmem:[%s275 + $0xa0] sm:$0xff]
      %v315 = vld [vmem:[%s275 + $0xa8] sm:$0xff]
      %v316 = vld [vmem:[%s275 + $0xb0] sm:$0xff]
      %v317 = vld [vmem:[%s275 + $0xb8] sm:$0xff]
      %v318 = vld [vmem:[%s275 + $0xc0] sm:$0x1]
      %v319 = vld [vmem:[%s275 + $0xc8] sm:$0x1]
      %v320 = vld [vmem:[%s275 + $0xd0] sm:$0x1]
      %v321 = vld [vmem:[%s275 + $0xd8] sm:$0x1]
      %v322 = vld [vmem:[%s275 + $0xe0] sm:$0x1]
      %v323 = vld [vmem:[%s275 + $0xe8] sm:$0x1]
      %v324 = vld [vmem:[%s275 + $0xf0] sm:$0x1]
      %v325 = vld [vmem:[%s275 + $0xf8] sm:$0x1]
      %v326 = vld [vmem:[%s279] sm:$0xf]
      %328 = vset.pattern.permute.xlu0 0
      %329 = vperm.xlu0 %328, %v326
      %v330 = vpop.permute.xlu0 %329
      %vm332 = vcmask 203776
      %v334 = vsel %vm332, %v293, 0
      %vm336 = vcmask 1040384
      %v338 = vsel %vm336, %v318, 0
      %v341 = vsel %vm336, %v319, 0
      %v344 = vsel %vm336, %v320, 0
      %v347 = vsel %vm336, %v321, 0
      %v350 = vsel %vm336, %v322, 0
      %v353 = vsel %vm336, %v323, 0
      %v356 = vsel %vm336, %v324, 0
      %v359 = vsel %vm336, %v325, 0
      %361 = vmatprep.subr.mxu0 0.0
      %362 = vmatpush1.msra.mxu0 0.0
      %363 = vmatprep.subr.mxu0 0.0
      %364 = vmatpush1.msra.mxu0 0.0
      %365 = vmatprep.subr.mxu0 0.0
      %366 = vmatpush1.msra.mxu0 0.0
      %367 = vmatprep.subr.mxu0 0.0
      %368 = vmatpush1.msra.mxu0 0.0
      %369 = vmatprep.subr.mxu0 0.0
      %370 = vmatpush1.msra.mxu0 0.0
      %371 = vmatprep.subr.mxu0 0.0
      %372 = vmatpush1.msra.mxu0 0.0
      %373 = vmatprep.subr.mxu0 0.0
      %374 = vmatpush1.msra.mxu0 0.0
      %375 = vmatprep.subr.mxu0 0.0
      %376 = vmatpush1.msra.mxu0 0.0
      %377 = vmatprep.subr.mxu0 0.0
      %378 = vmatpush1.msra.mxu0 0.0
      %379 = vmatprep.subr.mxu0 0.0
      %380 = vmatpush1.msra.mxu0 0.0
      %381 = vmatprep.subr.mxu0 0.0
      %382 = vmatpush1.msra.mxu0 0.0
      %383 = vmatprep.subr.mxu0 0.0
      %384 = vmatpush1.msra.mxu0 0.0
      %385 = vmatprep.subr.mxu0 %v341
      %386 = vmatpush1.msra.mxu0 %v338
      %387 = vmatprep.subr.mxu0 %v311
      %388 = vmatpush1.msra.mxu0 %v310
      %389 = vmatprep.subr.mxu0 %v303
      %390 = vmatpush1.msra.mxu0 %v302
      %391 = vmatprep.subr.mxu0 %v295
      %392 = vmatpush1.msra.mxu0 %v294
      %393 = vmatprep.subr.mxu0 0.0
      %394 = vmatpush2.msra.mxu0 0.0
      %395 = vmatprep.subr.mxu0 0.0
      %396 = vmatpush2.msra.mxu0 0.0
      %397 = vmatprep.subr.mxu0 0.0
      %398 = vmatpush2.msra.mxu0 0.0
      %399 = vmatprep.subr.mxu0 0.0
      %400 = vmatpush2.msra.mxu0 0.0
      %401 = vmatprep.subr.mxu0 0.0
      %402 = vmatpush2.msra.mxu0 0.0
      %403 = vmatprep.subr.mxu0 0.0
      %404 = vmatpush2.msra.mxu0 0.0
      %405 = vmatprep.subr.mxu0 0.0
      %406 = vmatpush2.msra.mxu0 0.0
      %407 = vmatprep.subr.mxu0 0.0
      %408 = vmatpush2.msra.mxu0 0.0
      %409 = vmatprep.subr.mxu0 0.0
      %410 = vmatpush2.msra.mxu0 0.0
      %411 = vmatprep.subr.mxu0 0.0
      %412 = vmatpush2.msra.mxu0 0.0
      %413 = vmatprep.subr.mxu0 0.0
      %414 = vmatpush2.msra.mxu0 0.0
      %415 = vmatprep.subr.mxu0 0.0
      %416 = vmatpush2.msra.mxu0 0.0
      %417 = vmatprep.subr.mxu0 0.0
      %418 = vmatpush2.msra.mxu0 0.0
      %419 = vmatprep.subr.mxu0 0.0
      %420 = vmatpush2.msra.mxu0 0.0
      %421 = vmatprep.subr.mxu0 0.0
      %422 = vmatpush2.msra.mxu0 0.0
      %423 = vmatprep.subr.mxu0 0.0
      %424 = vmatpush2.msra.mxu0 0.0
      %425 = vmatprep.mubr.f32.mxu0 0.0
      %426 = vmatmul.mubr.f32.gmra.mxu0 %v334
      %v427 = vpop.f32.mrf.mxu0
      %v428 = vadd.f32 %v330, %v427
      %v429 = vpop.f32.mrf.mxu0
      %v430 = vadd.f32 %v330, %v429
      %431 = vdwg.mxu0
      %432 = vmatprep.subr.mxu0 0.0
      %433 = vmatpush1.msra.mxu0 0.0
      %434 = vmatprep.subr.mxu0 0.0
      %435 = vmatpush1.msra.mxu0 0.0
      %436 = vmatprep.subr.mxu0 0.0
      %437 = vmatpush1.msra.mxu0 0.0
      %438 = vmatprep.subr.mxu0 0.0
      %439 = vmatpush1.msra.mxu0 0.0
      %440 = vmatprep.subr.mxu0 0.0
      %441 = vmatpush1.msra.mxu0 0.0
      %442 = vmatprep.subr.mxu0 0.0
      %443 = vmatpush1.msra.mxu0 0.0
      %444 = vmatprep.subr.mxu0 0.0
      %445 = vmatpush1.msra.mxu0 0.0
      %446 = vmatprep.subr.mxu0 0.0
      %447 = vmatpush1.msra.mxu0 0.0
      %448 = vmatprep.subr.mxu0 0.0
      %449 = vmatpush1.msra.mxu0 0.0
      %450 = vmatprep.subr.mxu0 0.0
      %451 = vmatpush1.msra.mxu0 0.0
      %452 = vmatprep.subr.mxu0 0.0
      %453 = vmatpush1.msra.mxu0 0.0
      %454 = vmatprep.subr.mxu0 0.0
      %455 = vmatpush1.msra.mxu0 0.0
      %456 = vmatprep.subr.mxu0 %v347
      %457 = vmatpush1.msra.mxu0 %v344
      %458 = vmatprep.subr.mxu0 %v313
      %459 = vmatpush1.msra.mxu0 %v312
      %460 = vmatprep.subr.mxu0 %v305
      %461 = vmatpush1.msra.mxu0 %v304
      %462 = vmatprep.subr.mxu0 %v297
      %463 = vmatpush1.msra.mxu0 %v296
      %464 = vmatprep.subr.mxu0 0.0
      %465 = vmatpush2.msra.mxu0 0.0
      %466 = vmatprep.subr.mxu0 0.0
      %467 = vmatpush2.msra.mxu0 0.0
      %468 = vmatprep.subr.mxu0 0.0
      %469 = vmatpush2.msra.mxu0 0.0
      %470 = vmatprep.subr.mxu0 0.0
      %471 = vmatpush2.msra.mxu0 0.0
      %472 = vmatprep.subr.mxu0 0.0
      %473 = vmatpush2.msra.mxu0 0.0
      %474 = vmatprep.subr.mxu0 0.0
      %475 = vmatpush2.msra.mxu0 0.0
      %476 = vmatprep.subr.mxu0 0.0
      %477 = vmatpush2.msra.mxu0 0.0
      %478 = vmatprep.subr.mxu0 0.0
      %479 = vmatpush2.msra.mxu0 0.0
      %480 = vmatprep.subr.mxu0 0.0
      %481 = vmatpush2.msra.mxu0 0.0
      %482 = vmatprep.subr.mxu0 0.0
      %483 = vmatpush2.msra.mxu0 0.0
      %484 = vmatprep.subr.mxu0 0.0
      %485 = vmatpush2.msra.mxu0 0.0
      %486 = vmatprep.subr.mxu0 0.0
      %487 = vmatpush2.msra.mxu0 0.0
      %488 = vmatprep.subr.mxu0 0.0
      %489 = vmatpush2.msra.mxu0 0.0
      %490 = vmatprep.subr.mxu0 0.0
      %491 = vmatpush2.msra.mxu0 0.0
      %492 = vmatprep.subr.mxu0 0.0
      %493 = vmatpush2.msra.mxu0 0.0
      %494 = vmatprep.subr.mxu0 0.0
      %495 = vmatpush2.msra.mxu0 0.0
      %496 = vmatprep.mubr.f32.mxu0 0.0
      %497 = vmatmul.mubr.f32.gmra.mxu0 %v334
      %v498 = vpop.f32.mrf.mxu0
      %v499 = vadd.f32 %v330, %v498
      %v500 = vpop.f32.mrf.mxu0
      %v501 = vadd.f32 %v330, %v500
      %502 = vdwg.mxu0
      %503 = vmatprep.subr.mxu0 0.0
      %504 = vmatpush1.msra.mxu0 0.0
      %505 = vmatprep.subr.mxu0 0.0
      %506 = vmatpush1.msra.mxu0 0.0
      %507 = vmatprep.subr.mxu0 0.0
      %508 = vmatpush1.msra.mxu0 0.0
      %509 = vmatprep.subr.mxu0 0.0
      %510 = vmatpush1.msra.mxu0 0.0
      %511 = vmatprep.subr.mxu0 0.0
      %512 = vmatpush1.msra.mxu0 0.0
      %513 = vmatprep.subr.mxu0 0.0
      %514 = vmatpush1.msra.mxu0 0.0
      %515 = vmatprep.subr.mxu0 0.0
      %516 = vmatpush1.msra.mxu0 0.0
      %517 = vmatprep.subr.mxu0 0.0
      %518 = vmatpush1.msra.mxu0 0.0
      %519 = vmatprep.subr.mxu0 0.0
      %520 = vmatpush1.msra.mxu0 0.0
      %521 = vmatprep.subr.mxu0 0.0
      %522 = vmatpush1.msra.mxu0 0.0
      %523 = vmatprep.subr.mxu0 0.0
      %524 = vmatpush1.msra.mxu0 0.0
      %525 = vmatprep.subr.mxu0 0.0
      %526 = vmatpush1.msra.mxu0 0.0
      %527 = vmatprep.subr.mxu0 %v353
      %528 = vmatpush1.msra.mxu0 %v350
      %529 = vmatprep.subr.mxu0 %v315
      %530 = vmatpush1.msra.mxu0 %v314
      %531 = vmatprep.subr.mxu0 %v307
      %532 = vmatpush1.msra.mxu0 %v306
      %533 = vmatprep.subr.mxu0 %v299
      %534 = vmatpush1.msra.mxu0 %v298
      %535 = vmatprep.subr.mxu0 0.0
      %536 = vmatpush2.msra.mxu0 0.0
      %537 = vmatprep.subr.mxu0 0.0
      %538 = vmatpush2.msra.mxu0 0.0
      %539 = vmatprep.subr.mxu0 0.0
      %540 = vmatpush2.msra.mxu0 0.0
      %541 = vmatprep.subr.mxu0 0.0
      %542 = vmatpush2.msra.mxu0 0.0
      %543 = vmatprep.subr.mxu0 0.0
      %544 = vmatpush2.msra.mxu0 0.0
      %545 = vmatprep.subr.mxu0 0.0
      %546 = vmatpush2.msra.mxu0 0.0
      %547 = vmatprep.subr.mxu0 0.0
      %548 = vmatpush2.msra.mxu0 0.0
      %549 = vmatprep.subr.mxu0 0.0
      %550 = vmatpush2.msra.mxu0 0.0
      %551 = vmatprep.subr.mxu0 0.0
      %552 = vmatpush2.msra.mxu0 0.0
      %553 = vmatprep.subr.mxu0 0.0
      %554 = vmatpush2.msra.mxu0 0.0
      %555 = vmatprep.subr.mxu0 0.0
      %556 = vmatpush2.msra.mxu0 0.0
      %557 = vmatprep.subr.mxu0 0.0
      %558 = vmatpush2.msra.mxu0 0.0
      %559 = vmatprep.subr.mxu0 0.0
      %560 = vmatpush2.msra.mxu0 0.0
      %561 = vmatprep.subr.mxu0 0.0
      %562 = vmatpush2.msra.mxu0 0.0
      %563 = vmatprep.subr.mxu0 0.0
      %564 = vmatpush2.msra.mxu0 0.0
      %565 = vmatprep.subr.mxu0 0.0
      %566 = vmatpush2.msra.mxu0 0.0
      %567 = vmatprep.mubr.f32.mxu0 0.0
      %568 = vmatmul.mubr.f32.gmra.mxu0 %v334
      %v569 = vpop.f32.mrf.mxu0
      %v570 = vadd.f32 %v330, %v569
      %v571 = vpop.f32.mrf.mxu0
      %v572 = vadd.f32 %v330, %v571
      %573 = vdwg.mxu0
      %574 = vmatprep.subr.mxu0 0.0
      %575 = vmatpush1.msra.mxu0 0.0
      %576 = vmatprep.subr.mxu0 0.0
      %577 = vmatpush1.msra.mxu0 0.0
      %578 = vmatprep.subr.mxu0 0.0
      %579 = vmatpush1.msra.mxu0 0.0
      %580 = vmatprep.subr.mxu0 0.0
      %581 = vmatpush1.msra.mxu0 0.0
      %582 = vmatprep.subr.mxu0 0.0
      %583 = vmatpush1.msra.mxu0 0.0
      %584 = vmatprep.subr.mxu0 0.0
      %585 = vmatpush1.msra.mxu0 0.0
      %586 = vmatprep.subr.mxu0 0.0
      %587 = vmatpush1.msra.mxu0 0.0
      %588 = vmatprep.subr.mxu0 0.0
      %589 = vmatpush1.msra.mxu0 0.0
      %590 = vmatprep.subr.mxu0 0.0
      %591 = vmatpush1.msra.mxu0 0.0
      %592 = vmatprep.subr.mxu0 0.0
      %593 = vmatpush1.msra.mxu0 0.0
      %594 = vmatprep.subr.mxu0 0.0
      %595 = vmatpush1.msra.mxu0 0.0
      %596 = vmatprep.subr.mxu0 0.0
      %597 = vmatpush1.msra.mxu0 0.0
      %598 = vmatprep.subr.mxu0 %v359
      %599 = vmatpush1.msra.mxu0 %v356
      %600 = vmatprep.subr.mxu0 %v317
      %601 = vmatpush1.msra.mxu0 %v316
      %602 = vmatprep.subr.mxu0 %v309
      %603 = vmatpush1.msra.mxu0 %v308
      %604 = vmatprep.subr.mxu0 %v301
      %605 = vmatpush1.msra.mxu0 %v300
      %606 = vmatprep.subr.mxu0 0.0
      %607 = vmatpush2.msra.mxu0 0.0
      %608 = vmatprep.subr.mxu0 0.0
      %609 = vmatpush2.msra.mxu0 0.0
      %610 = vmatprep.subr.mxu0 0.0
      %611 = vmatpush2.msra.mxu0 0.0
      %612 = vmatprep.subr.mxu0 0.0
      %613 = vmatpush2.msra.mxu0 0.0
      %614 = vmatprep.subr.mxu0 0.0
      %615 = vmatpush2.msra.mxu0 0.0
      %616 = vmatprep.subr.mxu0 0.0
      %617 = vmatpush2.msra.mxu0 0.0
      %618 = vmatprep.subr.mxu0 0.0
      %619 = vmatpush2.msra.mxu0 0.0
      %620 = vmatprep.subr.mxu0 0.0
      %621 = vmatpush2.msra.mxu0 0.0
      %622 = vmatprep.subr.mxu0 0.0
      %623 = vmatpush2.msra.mxu0 0.0
      %624 = vmatprep.subr.mxu0 0.0
      %625 = vmatpush2.msra.mxu0 0.0
      %626 = vmatprep.subr.mxu0 0.0
      %627 = vmatpush2.msra.mxu0 0.0
      %628 = vmatprep.subr.mxu0 0.0
      %629 = vmatpush2.msra.mxu0 0.0
      %630 = vmatprep.subr.mxu0 0.0
      %631 = vmatpush2.msra.mxu0 0.0
      %632 = vmatprep.subr.mxu0 0.0
      %633 = vmatpush2.msra.mxu0 0.0
      %634 = vmatprep.subr.mxu0 0.0
      %635 = vmatpush2.msra.mxu0 0.0
      %636 = vmatprep.subr.mxu0 0.0
      %637 = vmatpush2.msra.mxu0 0.0
      %638 = vmatprep.mubr.f32.mxu0 0.0
      %639 = vmatmul.mubr.f32.gmra.mxu0 %v334
      %v640 = vpop.f32.mrf.mxu0
      %v641 = vadd.f32 %v330, %v640
      %v642 = vpop.f32.mrf.mxu0
      %v643 = vadd.f32 %v330, %v642
      %644 = vdwg.mxu0
      %v645 = vmax.f32 %v428, 0.0
      %v646 = vmax.f32 %v430, 0.0
      %v647 = vmax.f32 %v499, 0.0
      %v648 = vmax.f32 %v501, 0.0
      %v649 = vmax.f32 %v570, 0.0
      %v650 = vmax.f32 %v572, 0.0
      %v651 = vmax.f32 %v641, 0.0
      %v652 = vmax.f32 %v643, 0.0
      %v653 = vld [vmem:[%s283] sm:$0xf]
      %655 = vset.pattern.permute.xlu0 0
      %656 = vperm.xlu0 %655, %v653
      %v657 = vpop.permute.xlu0 %656
      %v659 = vmul.f32 %v645, %v657
      %v660 = vmul.f32 %v646, %v657
      %v661 = vmul.f32 %v647, %v657
      %v662 = vmul.f32 %v648, %v657
      %v663 = vmul.f32 %v649, %v657
      %v664 = vmul.f32 %v650, %v657
      %v665 = vmul.f32 %v651, %v657
      %v666 = vmul.f32 %v652, %v657
      %v667 = vld [vmem:[%s287] sm:$0xf]
      %669 = vset.pattern.permute.xlu0 0
      %670 = vperm.xlu0 %669, %v667
      %v671 = vpop.permute.xlu0 %670
      %v673 = vadd.f32 %v659, %v671
      %v674 = vadd.f32 %v660, %v671
      %v675 = vadd.f32 %v661, %v671
      %v676 = vadd.f32 %v662, %v671
      %v677 = vadd.f32 %v663, %v671
      %v678 = vadd.f32 %v664, %v671
      %v679 = vadd.f32 %v665, %v671
      %v680 = vadd.f32 %v666, %v671
      %v689 = vcombine.low %v673, %v674
      %v690 = vcombine.low %v675, %v676
      %v691 = vcombine.low %v677, %v678
      %v692 = vcombine.low %v679, %v680
      %697 = vst [vmem:[%s292] sm:$0xff] %v689
      %698 = vst [vmem:[%s292 + $0x8] sm:$0xff] %v690
      %699 = vst [vmem:[%s292 + $0x10] sm:$0xff] %v691
      %vm700 = vcmask 1043456
      %vm701 = vcmask 588804
      %vm702 = vmor %vm701, %vm700
      %703 = vst.msk [vmem:[%s292 + $0x18] sm:$0xff] %vm702, %v692
      %p704 = scmp.lt.s32.totalorder %s16, 1
      %s705 = scalar_select %p704, %s16, 1
      %s706 = smul.addr %s705, 8
      %s707 = smul.addr %s706, 4
      %s708 = scalar_lea.vmem %s5, %s707
      // Predicated region
      $region41: #{siamese_forward.5} parent=39 // pred_check
        %p709 = pneg %p164
      $region42: #{siamese_forward.5} parent=39 // pred_check_branch
        %711 = sbr.rel (%p709) target = $region44
      $region43: #{siamese_forward.5} parent=39 // pred_region
        _
      $region44: #{siamese_forward.5} parent=39 // pred_fallthru
        _
    $region40: #{siamese_forward.5} parent=5 // pred_fallthru
      _
    %p712 = scmp.le.s32.totalorder 2, %s11
    // Predicated region
    $region45: #{siamese_forward.5} parent=5 // pred_check
      %p713 = pneg %p712
    $region46: #{siamese_forward.5} parent=5 // pred_check_branch
      %715 = sbr.rel (%p713) target = $region48
    $region47: #{siamese_forward.5} parent=5 // pred_region
      %s716 = ssub.s32 %s11, 2
      // Predicated region
      $region49: #{siamese_forward.5} parent=47 // pred_check
        %p717 = pneg %p170
      $region50: #{siamese_forward.5} parent=47 // pred_check_branch
        %719 = sbr.rel (%p717) target = $region52
      $region51: #{siamese_forward.5} parent=47 // pred_region
        %p720 = scmp.lt.s32.totalorder %s17, 1
        %s721 = scalar_select %p720, %s17, 1
        %s722 = smul.addr %s721, 8
        %s723 = smul.addr %s722, 4
        %s724 = scalar_lea.vmem %s5, %s723
      $region52: #{siamese_forward.5} parent=47 // pred_fallthru
        _
    $region48: #{siamese_forward.5} parent=5 // pred_fallthru
      _
  $region6: #{siamese_forward.5} parent=0 // loop_footer
    %s15 = sadd.s32 1, %s11
  $region7: #{siamese_forward.5} parent=0 // loop_footer_branch
    %10 = sbr.rel target = $region3
  $region8: #{siamese_forward.5} parent=0 // loop_exit
    _

// kernel: siamese_forward.6
$region0: #{siamese_forward.6}
  #allocation0 [shape = 'u32[]', space=smem, size = 0x4, offset = 0x4, fixed_abs, tag = 'smem constant byte address 0x4 - core index']
  #allocation1 [shape = 'u32[144,128]{1,0:T(1,128)}', space=vmem, size = 0x12000, scoped, tag = 'internal scratch']
  %s0 = inlined_call_operand.vmem [shape: f32[2,8,100], index: 0, kind: input, shape index: {}]
  %s1 = inlined_call_operand.vmem [shape: f32[2,100,800], index: 1, kind: input, shape index: {}]
  %s2 = inlined_call_operand.vmem [shape: f32[2,8,1], index: 2, kind: input, shape index: {}]
  %s3 = inlined_call_operand.vmem [shape: f32[2,8,1], index: 3, kind: input, shape index: {}]
  %s4 = inlined_call_operand.vmem [shape: f32[2,8,1], index: 4, kind: input, shape index: {}]
  %s5 = inlined_call_operand.vmem [shape: f32[2,8,800], index: 5, kind: output, shape index: {}]
  %s6 = sld [smem:[#allocation0]]
  $region53: #{siamese_forward.6} parent=0
    _
  %s8 = ssub.s32 1, %s6
  %s9 = scalar_select 0, %s8, %s6
  loop: start=0, step=1, limit=4
  $region2: #{siamese_forward.6} parent=0 // loop_pre_header
    _
  $region3: #{siamese_forward.6} parent=0 // loop_header
    %s11 = sphi 0, %s15
    %p12 = scmp.ge.s32.totalorder %s11, 4
    %s21 = sphi 0, %s23
    %s24 = sphi 0, %s21
    %s25 = sphi 0, %s24
    %s41 = sphi 0, %s25
    %s47 = sphi 0, %s49
    %s50 = sphi 0, %s47
    %s51 = sphi 0, %s50
    %s67 = sphi 0, %s51
    %s73 = sphi 0, %s75
    %s76 = sphi 0, %s73
    %s77 = sphi 0, %s76
    %s93 = sphi 0, %s77
    %s99 = sphi 0, %s101
    %s102 = sphi 0, %s99
    %s103 = sphi 0, %s102
    %s119 = sphi 0, %s103
    %s125 = sphi 0, %s127
    %s128 = sphi 0, %s125
    %s129 = sphi 0, %s128
    %s145 = sphi 0, %s129
    %s151 = sphi 0, %s153
    %s154 = sphi 0, %s151
    %s155 = sphi 0, %s154
    %s171 = sphi 0, %s155
  $region4: #{siamese_forward.6} parent=0 // loop_header_branch
    %14 = sbr.rel (%p12) target = $region8
  $region5: #{siamese_forward.6} parent=0 // loop_body
    %s16 = ssub.s32 %s11, 1
    %s17 = ssub.s32 %s11, 2
    %s18 = sadd.s32 %s11, 1
    %s19 = ssub.s32 %s11, %s18
    %p20 = scmp.eq.s32.totalorder %s19, 0
    %s22 = sadd.s32 %s21, 1
    %s23 = scalar_select %p20, %s21, %s22
    %p26 = pneg %p20
    %p27 = scmp.eq.s32.totalorder %s11, 1
    %p28 = por %p26, %p27
    %p29 = scmp.ne.s32.totalorder %s21, %s24
    %p30 = scmp.eq.s32.totalorder %s11, 0
    %p31 = por %p29, %p30
    %p32 = scmp.ne.s32.totalorder %s21, %s24
    %p33 = scmp.eq.s32.totalorder %s16, 1
    %p34 = por %p32, %p33
    %p35 = scmp.ne.s32.totalorder %s24, %s25
    %p36 = scmp.eq.s32.totalorder %s16, 0
    %p37 = por %p35, %p36
    %p38 = scmp.ne.s32.totalorder %s24, %s25
    %p39 = scmp.eq.s32.totalorder %s17, 1
    %p40 = por %p38, %p39
    %p42 = scmp.ne.s32.totalorder %s25, %s41
    %p43 = scmp.eq.s32.totalorder %s17, 0
    %p44 = por %p42, %p43
    %s45 = ssub.s32 %s11, %s18
    %p46 = scmp.eq.s32.totalorder %s45, 0
    %s48 = sadd.s32 %s47, 1
    %s49 = scalar_select %p46, %s47, %s48
    %p52 = pneg %p46
    %p53 = scmp.eq.s32.totalorder %s11, 1
    %p54 = por %p52, %p53
    %p55 = scmp.ne.s32.totalorder %s47, %s50
    %p56 = scmp.eq.s32.totalorder %s11, 0
    %p57 = por %p55, %p56
    %p58 = scmp.ne.s32.totalorder %s47, %s50
    %p59 = scmp.eq.s32.totalorder %s16, 1
    %p60 = por %p58, %p59
    %p61 = scmp.ne.s32.totalorder %s50, %s51
    %p62 = scmp.eq.s32.totalorder %s16, 0
    %p63 = por %p61, %p62
    %p64 = scmp.ne.s32.totalorder %s50, %s51
    %p65 = scmp.eq.s32.totalorder %s17, 1
    %p66 = por %p64, %p65
    %p68 = scmp.ne.s32.totalorder %s51, %s67
    %p69 = scmp.eq.s32.totalorder %s17, 0
    %p70 = por %p68, %p69
    %s71 = ssub.s32 %s11, %s18
    %p72 = scmp.eq.s32.totalorder %s71, 0
    %s74 = sadd.s32 %s73, 1
    %s75 = scalar_select %p72, %s73, %s74
    %p78 = pneg %p72
    %p79 = scmp.eq.s32.totalorder %s11, 1
    %p80 = por %p78, %p79
    %p81 = scmp.ne.s32.totalorder %s73, %s76
    %p82 = scmp.eq.s32.totalorder %s11, 0
    %p83 = por %p81, %p82
    %p84 = scmp.ne.s32.totalorder %s73, %s76
    %p85 = scmp.eq.s32.totalorder %s16, 1
    %p86 = por %p84, %p85
    %p87 = scmp.ne.s32.totalorder %s76, %s77
    %p88 = scmp.eq.s32.totalorder %s16, 0
    %p89 = por %p87, %p88
    %p90 = scmp.ne.s32.totalorder %s76, %s77
    %p91 = scmp.eq.s32.totalorder %s17, 1
    %p92 = por %p90, %p91
    %p94 = scmp.ne.s32.totalorder %s77, %s93
    %p95 = scmp.eq.s32.totalorder %s17, 0
    %p96 = por %p94, %p95
    %s97 = ssub.s32 %s11, %s18
    %p98 = scmp.eq.s32.totalorder %s97, 0
    %s100 = sadd.s32 %s99, 1
    %s101 = scalar_select %p98, %s99, %s100
    %p104 = pneg %p98
    %p105 = scmp.eq.s32.totalorder %s11, 1
    %p106 = por %p104, %p105
    %p107 = scmp.ne.s32.totalorder %s99, %s102
    %p108 = scmp.eq.s32.totalorder %s11, 0
    %p109 = por %p107, %p108
    %p110 = scmp.ne.s32.totalorder %s99, %s102
    %p111 = scmp.eq.s32.totalorder %s16, 1
    %p112 = por %p110, %p111
    %p113 = scmp.ne.s32.totalorder %s102, %s103
    %p114 = scmp.eq.s32.totalorder %s16, 0
    %p115 = por %p113, %p114
    %p116 = scmp.ne.s32.totalorder %s102, %s103
    %p117 = scmp.eq.s32.totalorder %s17, 1
    %p118 = por %p116, %p117
    %p120 = scmp.ne.s32.totalorder %s103, %s119
    %p121 = scmp.eq.s32.totalorder %s17, 0
    %p122 = por %p120, %p121
    %s123 = ssub.s32 %s11, %s18
    %p124 = scmp.eq.s32.totalorder %s123, 0
    %s126 = sadd.s32 %s125, 1
    %s127 = scalar_select %p124, %s125, %s126
    %p130 = pneg %p124
    %p131 = scmp.eq.s32.totalorder %s11, 1
    %p132 = por %p130, %p131
    %p133 = scmp.ne.s32.totalorder %s125, %s128
    %p134 = scmp.eq.s32.totalorder %s11, 0
    %p135 = por %p133, %p134
    %p136 = scmp.ne.s32.totalorder %s125, %s128
    %p137 = scmp.eq.s32.totalorder %s16, 1
    %p138 = por %p136, %p137
    %p139 = scmp.ne.s32.totalorder %s128, %s129
    %p140 = scmp.eq.s32.totalorder %s16, 0
    %p141 = por %p139, %p140
    %p142 = scmp.ne.s32.totalorder %s128, %s129
    %p143 = scmp.eq.s32.totalorder %s17, 1
    %p144 = por %p142, %p143
    %p146 = scmp.ne.s32.totalorder %s129, %s145
    %p147 = scmp.eq.s32.totalorder %s17, 0
    %p148 = por %p146, %p147
    %s149 = ssub.s32 %s11, %s18
    %p150 = scmp.eq.s32.totalorder %s149, 0
    %s152 = sadd.s32 %s151, 1
    %s153 = scalar_select %p150, %s151, %s152
    %p156 = pneg %p150
    %p157 = scmp.eq.s32.totalorder %s11, 1
    %p158 = por %p156, %p157
    %p159 = scmp.ne.s32.totalorder %s151, %s154
    %p160 = scmp.eq.s32.totalorder %s11, 0
    %p161 = por %p159, %p160
    %p162 = scmp.ne.s32.totalorder %s151, %s154
    %p163 = scmp.eq.s32.totalorder %s16, 1
    %p164 = por %p162, %p163
    %p165 = scmp.ne.s32.totalorder %s154, %s155
    %p166 = scmp.eq.s32.totalorder %s16, 0
    %p167 = por %p165, %p166
    %p168 = scmp.ne.s32.totalorder %s154, %s155
    %p169 = scmp.eq.s32.totalorder %s17, 1
    %p170 = por %p168, %p169
    %p172 = scmp.ne.s32.totalorder %s155, %s171
    %p173 = scmp.eq.s32.totalorder %s17, 0
    %p174 = por %p172, %p173
    %p175 = scmp.le.s32.totalorder 1, %s11
    %p176 = scmp.lt.s32.totalorder %s11, 3
    %p177 = pnand %p175, %p176
    %p178 = pneg %p177
    // Predicated region
    $region9: #{siamese_forward.6} parent=5 // pred_check
      _
    $region10: #{siamese_forward.6} parent=5 // pred_check_branch
      %180 = sbr.rel (%p177) target = $region12
    $region11: #{siamese_forward.6} parent=5 // pred_region
      %s181 = ssub.s32 %s11, 1
    $region12: #{siamese_forward.6} parent=5 // pred_fallthru
      _
    %p182 = scmp.lt.s32.totalorder %s11, 2
    // Predicated region
    $region13: #{siamese_forward.6} parent=5 // pred_check
      %p183 = pneg %p182
    $region14: #{siamese_forward.6} parent=5 // pred_check_branch
      %185 = sbr.rel (%p183) target = $region16
    $region15: #{siamese_forward.6} parent=5 // pred_region
      // Predicated region
      $region17: #{siamese_forward.6} parent=15 // pred_check
        %p186 = pneg %p31
      $region18: #{siamese_forward.6} parent=15 // pred_check_branch
        %188 = sbr.rel (%p186) target = $region20
      $region19: #{siamese_forward.6} parent=15 // pred_region
        %p189 = scmp.lt.s32.totalorder %s11, 1
        %s190 = scalar_select %p189, %s11, 1
        %s191 = smul.addr %s190, 8
        %s192 = scalar_lea.vmem %s0, %s191
      $region20: #{siamese_forward.6} parent=15 // pred_fallthru
        _
      // Predicated region
      $region21: #{siamese_forward.6} parent=15 // pred_check
        %p193 = pneg %p57
      $region22: #{siamese_forward.6} parent=15 // pred_check_branch
        %195 = sbr.rel (%p193) target = $region24
      $region23: #{siamese_forward.6} parent=15 // pred_region
        %p196 = scmp.lt.s32.totalorder %s11, 1
        %s197 = scalar_select %p196, %s11, 1
        %s198 = smul.addr %s197, 91
        %s199 = smul.addr %s198, 8
        %s200 = scalar_lea.vmem %s1, %s199
      $region24: #{siamese_forward.6} parent=15 // pred_fallthru
        _
      // Predicated region
      $region25: #{siamese_forward.6} parent=15 // pred_check
        %p201 = pneg %p83
      $region26: #{siamese_forward.6} parent=15 // pred_check_branch
        %203 = sbr.rel (%p201) target = $region28
      $region27: #{siamese_forward.6} parent=15 // pred_region
        %p204 = scmp.lt.s32.totalorder %s11, 1
        %s205 = scalar_select %p204, %s11, 1
        %s206 = smul.addr %s205, 8
        %s207 = scalar_lea.vmem %s2, %s206
      $region28: #{siamese_forward.6} parent=15 // pred_fallthru
        _
      // Predicated region
      $region29: #{siamese_forward.6} parent=15 // pred_check
        %p208 = pneg %p109
      $region30: #{siamese_forward.6} parent=15 // pred_check_branch
        %210 = sbr.rel (%p208) target = $region32
      $region31: #{siamese_forward.6} parent=15 // pred_region
        %p211 = scmp.lt.s32.totalorder %s11, 1
        %s212 = scalar_select %p211, %s11, 1
        %s213 = smul.addr %s212, 8
        %s214 = scalar_lea.vmem %s3, %s213
      $region32: #{siamese_forward.6} parent=15 // pred_fallthru
        _
      // Predicated region
      $region33: #{siamese_forward.6} parent=15 // pred_check
        %p215 = pneg %p135
      $region34: #{siamese_forward.6} parent=15 // pred_check_branch
        %217 = sbr.rel (%p215) target = $region36
      $region35: #{siamese_forward.6} parent=15 // pred_region
        %p218 = scmp.lt.s32.totalorder %s11, 1
        %s219 = scalar_select %p218, %s11, 1
        %s220 = smul.addr %s219, 8
        %s221 = scalar_lea.vmem %s4, %s220
      $region36: #{siamese_forward.6} parent=15 // pred_fallthru
        _
    $region16: #{siamese_forward.6} parent=5 // pred_fallthru
      _
    %p222 = scmp.le.s32.totalorder 1, %s11
    %p223 = scmp.lt.s32.totalorder %s11, 3
    %p224 = pnand %p222, %p223
    %p225 = pneg %p224
    // Predicated region
    $region37: #{siamese_forward.6} parent=5 // pred_check
      _
    $region38: #{siamese_forward.6} parent=5 // pred_check_branch
      %227 = sbr.rel (%p224) target = $region40
    $region39: #{siamese_forward.6} parent=5 // pred_region
      %s228 = ssub.s32 %s11, 1
      %p229 = scmp.lt.s32.totalorder %s16, 1
      %s230 = scalar_select %p229, %s16, 1
      %s231 = smul.addr %s230, 8
      %s232 = scalar_lea.vmem %s0, %s231
      %p233 = pneg %p37
      %p234 = pneg %p34
      %p235 = scmp.lt.s32.totalorder %s16, 1
      %s236 = scalar_select %p235, %s16, 1
      %s237 = smul.addr %s236, 91
      %s238 = smul.addr %s237, 8
      %s239 = scalar_lea.vmem %s1, %s238
      %p240 = pneg %p63
      %p241 = pneg %p60
      %p242 = scmp.lt.s32.totalorder %s16, 1
      %s243 = scalar_select %p242, %s16, 1
      %s244 = smul.addr %s243, 8
      %s245 = scalar_lea.vmem %s2, %s244
      %p246 = pneg %p89
      %p247 = pneg %p86
      %p248 = scmp.lt.s32.totalorder %s16, 1
      %s249 = scalar_select %p248, %s16, 1
      %s250 = smul.addr %s249, 8
      %s251 = scalar_lea.vmem %s3, %s250
      %p252 = pneg %p115
      %p253 = pneg %p112
      %p254 = scmp.lt.s32.totalorder %s16, 1
      %s255 = scalar_select %p254, %s16, 1
      %s256 = smul.addr %s255, 8
      %s257 = scalar_lea.vmem %s4, %s256
      %p258 = pneg %p141
      %p259 = pneg %p138
      %p260 = pneg %p167
      %p261 = pneg %p164
      %p262 = scmp.lt.s32.totalorder %s16, 1
      %s263 = scalar_select %p262, %s16, 1
      %s264 = smul.addr %s263, 7
      %s265 = smul.addr %s264, 8
      %s266 = scalar_lea.vmem %s5, %s265
      %p267 = scmp.lt.s32.totalorder %s16, 1
      %s268 = scalar_select %p267, %s16, 1
      %s269 = smul.addr %s268, 8
      %s270 = scalar_lea.vmem %s0, %s269
      %p271 = scmp.lt.s32.totalorder %s16, 1
      %s272 = scalar_select %p271, %s16, 1
      %s273 = smul.addr %s272, 91
      %s274 = smul.addr %s273, 8
      %s275 = scalar_lea.vmem %s1, %s274
      %p276 = scmp.lt.s32.totalorder %s16, 1
      %s277 = scalar_select %p276, %s16, 1
      %s278 = smul.addr %s277, 8
      %s279 = scalar_lea.vmem %s2, %s278
      %p280 = scmp.lt.s32.totalorder %s16, 1
      %s281 = scalar_select %p280, %s16, 1
      %s282 = smul.addr %s281, 8
      %s283 = scalar_lea.vmem %s3, %s282
      %p284 = scmp.lt.s32.totalorder %s16, 1
      %s285 = scalar_select %p284, %s16, 1
      %s286 = smul.addr %s285, 8
      %s287 = scalar_lea.vmem %s4, %s286
      %p288 = scmp.lt.s32.totalorder %s16, 1
      %s289 = scalar_select %p288, %s16, 1
      %s290 = smul.addr %s289, 7
      %s291 = smul.addr %s290, 8
      %s292 = scalar_lea.vmem %s5, %s291
      %v293 = vld [vmem:[%s270] sm:$0xff]
      %v294 = vld [vmem:[%s275] sm:$0xff]
      %v295 = vld [vmem:[%s275 + $0x8] sm:$0xff]
      %v296 = vld [vmem:[%s275 + $0x10] sm:$0xff]
      %v297 = vld [vmem:[%s275 + $0x18] sm:$0xff]
      %v298 = vld [vmem:[%s275 + $0x20] sm:$0xff]
      %v299 = vld [vmem:[%s275 + $0x28] sm:$0xff]
      %v300 = vld [vmem:[%s275 + $0x30] sm:$0xff]
      %v301 = vld [vmem:[%s275 + $0x38] sm:$0xff]
      %v302 = vld [vmem:[%s275 + $0x40] sm:$0xff]
      %v303 = vld [vmem:[%s275 + $0x48] sm:$0xff]
      %v304 = vld [vmem:[%s275 + $0x50] sm:$0xff]
      %v305 = vld [vmem:[%s275 + $0x58] sm:$0xff]
      %v306 = vld [vmem:[%s275 + $0x60] sm:$0xff]
      %v307 = vld [vmem:[%s275 + $0x68] sm:$0xff]
      %v308 = vld [vmem:[%s275 + $0x70] sm:$0xff]
      %v309 = vld [vmem:[%s275 + $0x78] sm:$0xff]
      %v310 = vld [vmem:[%s275 + $0x80] sm:$0xff]
      %v311 = vld [vmem:[%s275 + $0x88] sm:$0xff]
      %v312 = vld [vmem:[%s275 + $0x90] sm:$0xff]
      %v313 = vld [vmem:[%s275 + $0x98] sm:$0xff]
      %v314 = vld [vmem:[%s275 + $0xa0] sm:$0xff]
      %v315 = vld [vmem:[%s275 + $0xa8] sm:$0xff]
      %v316 = vld [vmem:[%s275 + $0xb0] sm:$0xff]
      %v317 = vld [vmem:[%s275 + $0xb8] sm:$0xff]
      %v318 = vld [vmem:[%s275 + $0xc0] sm:$0xff]
      %v319 = vld [vmem:[%s275 + $0xc8] sm:$0xff]
      %v320 = vld [vmem:[%s275 + $0xd0] sm:$0xff]
      %v321 = vld [vmem:[%s275 + $0xd8] sm:$0xff]
      %v322 = vld [vmem:[%s275 + $0xe0] sm:$0xff]
      %v323 = vld [vmem:[%s275 + $0xe8] sm:$0xff]
      %v324 = vld [vmem:[%s275 + $0xf0] sm:$0xff]
      %v325 = vld [vmem:[%s275 + $0xf8] sm:$0xff]
      %v326 = vld [vmem:[%s275 + $0x100] sm:$0xff]
      %v327 = vld [vmem:[%s275 + $0x108] sm:$0xff]
      %v328 = vld [vmem:[%s275 + $0x110] sm:$0xff]
      %v329 = vld [vmem:[%s275 + $0x118] sm:$0xff]
      %v330 = vld [vmem:[%s275 + $0x120] sm:$0xff]
      %v331 = vld [vmem:[%s275 + $0x128] sm:$0xff]
      %v332 = vld [vmem:[%s275 + $0x130] sm:$0xff]
      %v333 = vld [vmem:[%s275 + $0x138] sm:$0xff]
      %v334 = vld [vmem:[%s275 + $0x140] sm:$0xff]
      %v335 = vld [vmem:[%s275 + $0x148] sm:$0xff]
      %v336 = vld [vmem:[%s275 + $0x150] sm:$0xff]
      %v337 = vld [vmem:[%s275 + $0x158] sm:$0xff]
      %v338 = vld [vmem:[%s275 + $0x160] sm:$0xff]
      %v339 = vld [vmem:[%s275 + $0x168] sm:$0xff]
      %v340 = vld [vmem:[%s275 + $0x170] sm:$0xff]
      %v341 = vld [vmem:[%s275 + $0x178] sm:$0xff]
      %v342 = vld [vmem:[%s275 + $0x180] sm:$0xff]
      %v343 = vld [vmem:[%s275 + $0x188] sm:$0xff]
      %v344 = vld [vmem:[%s275 + $0x190] sm:$0xff]
      %v345 = vld [vmem:[%s275 + $0x198] sm:$0xff]
      %v346 = vld [vmem:[%s275 + $0x1a0] sm:$0xff]
      %v347 = vld [vmem:[%s275 + $0x1a8] sm:$0xff]
      %v348 = vld [vmem:[%s275 + $0x1b0] sm:$0xff]
      %v349 = vld [vmem:[%s275 + $0x1b8] sm:$0xff]
      %v350 = vld [vmem:[%s275 + $0x1c0] sm:$0xff]
      %v351 = vld [vmem:[%s275 + $0x1c8] sm:$0xff]
      %v352 = vld [vmem:[%s275 + $0x1d0] sm:$0xff]
      %v353 = vld [vmem:[%s275 + $0x1d8] sm:$0xff]
      %v354 = vld [vmem:[%s275 + $0x1e0] sm:$0xff]
      %v355 = vld [vmem:[%s275 + $0x1e8] sm:$0xff]
      %v356 = vld [vmem:[%s275 + $0x1f0] sm:$0xff]
      %v357 = vld [vmem:[%s275 + $0x1f8] sm:$0xff]
      %v358 = vld [vmem:[%s275 + $0x200] sm:$0xff]
      %v359 = vld [vmem:[%s275 + $0x208] sm:$0xff]
      %v360 = vld [vmem:[%s275 + $0x210] sm:$0xff]
      %v361 = vld [vmem:[%s275 + $0x218] sm:$0xff]
      %v362 = vld [vmem:[%s275 + $0x220] sm:$0xff]
      %v363 = vld [vmem:[%s275 + $0x228] sm:$0xff]
      %v364 = vld [vmem:[%s275 + $0x230] sm:$0xff]
      %v365 = vld [vmem:[%s275 + $0x238] sm:$0xff]
      %v366 = vld [vmem:[%s275 + $0x240] sm:$0xff]
      %v367 = vld [vmem:[%s275 + $0x248] sm:$0xff]
      %v368 = vld [vmem:[%s275 + $0x250] sm:$0xff]
      %v369 = vld [vmem:[%s275 + $0x258] sm:$0xff]
      %v370 = vld [vmem:[%s275 + $0x260] sm:$0xff]
      %v371 = vld [vmem:[%s275 + $0x268] sm:$0xff]
      %v372 = vld [vmem:[%s275 + $0x270] sm:$0xff]
      %v373 = vld [vmem:[%s275 + $0x278] sm:$0xff]
      %v374 = vld [vmem:[%s275 + $0x280] sm:$0xff]
      %v375 = vld [vmem:[%s275 + $0x288] sm:$0xff]
      %v376 = vld [vmem:[%s275 + $0x290] sm:$0xff]
      %v377 = vld [vmem:[%s275 + $0x298] sm:$0xff]
      %v378 = vld [vmem:[%s275 + $0x2a0] sm:$0xf]
      %v379 = vld [vmem:[%s275 + $0x2a8] sm:$0xf]
      %v380 = vld [vmem:[%s275 + $0x2b0] sm:$0xf]
      %v381 = vld [vmem:[%s275 + $0x2b8] sm:$0xf]
      %v382 = vld [vmem:[%s275 + $0x2c0] sm:$0xf]
      %v383 = vld [vmem:[%s275 + $0x2c8] sm:$0xf]
      %v384 = vld [vmem:[%s275 + $0x2d0] sm:$0xf]
      %v385 = vld [vmem:[%s279] sm:$0xff]
      %387 = vset.pattern.permute.xlu0 0
      %388 = vperm.xlu0 %387, %v385
      %v389 = vpop.permute.xlu0 %388
      %vm391 = vcmask 818176
      %v393 = vsel %vm391, %v293, 0
      %vm395 = vcmask 1043456
      %v397 = vsel %vm395, %v378, 0
      %v400 = vsel %vm395, %v379, 0
      %v403 = vsel %vm395, %v380, 0
      %v406 = vsel %vm395, %v381, 0
      %v409 = vsel %vm395, %v382, 0
      %v412 = vsel %vm395, %v383, 0
      %v415 = vsel %vm395, %v384, 0
      %417 = vmatprep.subr.mxu0 0.0
      %418 = vmatpush1.msra.mxu0 0.0
      %419 = vmatprep.subr.mxu0 0.0
      %420 = vmatpush1.msra.mxu0 0.0
      %421 = vmatprep.subr.mxu0 0.0
      %422 = vmatpush1.msra.mxu0 0.0
      %423 = vmatprep.subr.mxu0 %v400
      %424 = vmatpush1.msra.mxu0 %v397
      %425 = vmatprep.subr.mxu0 %v372
      %426 = vmatpush1.msra.mxu0 %v371
      %427 = vmatprep.subr.mxu0 %v365
      %428 = vmatpush1.msra.mxu0 %v364
      %429 = vmatprep.subr.mxu0 %v358
      %430 = vmatpush1.msra.mxu0 %v357
      %431 = vmatprep.subr.mxu0 %v351
      %432 = vmatpush1.msra.mxu0 %v350
      %433 = vmatprep.subr.mxu0 %v344
      %434 = vmatpush1.msra.mxu0 %v343
      %435 = vmatprep.subr.mxu0 %v337
      %436 = vmatpush1.msra.mxu0 %v336
      %437 = vmatprep.subr.mxu0 %v330
      %438 = vmatpush1.msra.mxu0 %v329
      %439 = vmatprep.subr.mxu0 %v323
      %440 = vmatpush1.msra.mxu0 %v322
      %441 = vmatprep.subr.mxu0 %v316
      %442 = vmatpush1.msra.mxu0 %v315
      %443 = vmatprep.subr.mxu0 %v309
      %444 = vmatpush1.msra.mxu0 %v308
      %445 = vmatprep.subr.mxu0 %v302
      %446 = vmatpush1.msra.mxu0 %v301
      %447 = vmatprep.subr.mxu0 %v295
      %448 = vmatpush1.msra.mxu0 %v294
      %449 = vmatprep.subr.mxu0 0.0
      %450 = vmatpush2.msra.mxu0 0.0
      %451 = vmatprep.subr.mxu0 0.0
      %452 = vmatpush2.msra.mxu0 0.0
      %453 = vmatprep.subr.mxu0 0.0
      %454 = vmatpush2.msra.mxu0 0.0
      %455 = vmatprep.subr.mxu0 0.0
      %456 = vmatpush2.msra.mxu0 0.0
      %457 = vmatprep.subr.mxu0 0.0
      %458 = vmatpush2.msra.mxu0 0.0
      %459 = vmatprep.subr.mxu0 0.0
      %460 = vmatpush2.msra.mxu0 0.0
      %461 = vmatprep.subr.mxu0 0.0
      %462 = vmatpush2.msra.mxu0 0.0
      %463 = vmatprep.subr.mxu0 0.0
      %464 = vmatpush2.msra.mxu0 0.0
      %465 = vmatprep.subr.mxu0 0.0
      %466 = vmatpush2.msra.mxu0 0.0
      %467 = vmatprep.subr.mxu0 0.0
      %468 = vmatpush2.msra.mxu0 0.0
      %469 = vmatprep.subr.mxu0 0.0
      %470 = vmatpush2.msra.mxu0 0.0
      %471 = vmatprep.subr.mxu0 0.0
      %472 = vmatpush2.msra.mxu0 0.0
      %473 = vmatprep.subr.mxu0 0.0
      %474 = vmatpush2.msra.mxu0 0.0
      %475 = vmatprep.subr.mxu0 0.0
      %476 = vmatpush2.msra.mxu0 0.0
      %477 = vmatprep.subr.mxu0 0.0
      %478 = vmatpush2.msra.mxu0 0.0
      %479 = vmatprep.subr.mxu0 0.0
      %480 = vmatpush2.msra.mxu0 0.0
      %481 = vmatprep.mubr.f32.mxu0 0.0
      %482 = vmatmul.mubr.f32.gmra.mxu0 %v393
      %v483 = vpop.f32.mrf.mxu0
      %v484 = vadd.f32 %v389, %v483
      %v485 = vpop.f32.mrf.mxu0
      %v486 = vadd.f32 %v389, %v485
      %487 = vdwg.mxu0
      %488 = vmatprep.subr.mxu0 0.0
      %489 = vmatpush1.msra.mxu0 0.0
      %490 = vmatprep.subr.mxu0 0.0
      %491 = vmatpush1.msra.mxu0 0.0
      %492 = vmatprep.subr.mxu0 0.0
      %493 = vmatpush1.msra.mxu0 0.0
      %494 = vmatprep.subr.mxu0 %v406
      %495 = vmatpush1.msra.mxu0 %v403
      %496 = vmatprep.subr.mxu0 %v374
      %497 = vmatpush1.msra.mxu0 %v373
      %498 = vmatprep.subr.mxu0 %v367
      %499 = vmatpush1.msra.mxu0 %v366
      %500 = vmatprep.subr.mxu0 %v360
      %501 = vmatpush1.msra.mxu0 %v359
      %502 = vmatprep.subr.mxu0 %v353
      %503 = vmatpush1.msra.mxu0 %v352
      %504 = vmatprep.subr.mxu0 %v346
      %505 = vmatpush1.msra.mxu0 %v345
      %506 = vmatprep.subr.mxu0 %v339
      %507 = vmatpush1.msra.mxu0 %v338
      %508 = vmatprep.subr.mxu0 %v332
      %509 = vmatpush1.msra.mxu0 %v331
      %510 = vmatprep.subr.mxu0 %v325
      %511 = vmatpush1.msra.mxu0 %v324
      %512 = vmatprep.subr.mxu0 %v318
      %513 = vmatpush1.msra.mxu0 %v317
      %514 = vmatprep.subr.mxu0 %v311
      %515 = vmatpush1.msra.mxu0 %v310
      %516 = vmatprep.subr.mxu0 %v304
      %517 = vmatpush1.msra.mxu0 %v303
      %518 = vmatprep.subr.mxu0 %v297
      %519 = vmatpush1.msra.mxu0 %v296
      %520 = vmatprep.subr.mxu0 0.0
      %521 = vmatpush2.msra.mxu0 0.0
      %522 = vmatprep.subr.mxu0 0.0
      %523 = vmatpush2.msra.mxu0 0.0
      %524 = vmatprep.subr.mxu0 0.0
      %525 = vmatpush2.msra.mxu0 0.0
      %526 = vmatprep.subr.mxu0 0.0
      %527 = vmatpush2.msra.mxu0 0.0
      %528 = vmatprep.subr.mxu0 0.0
      %529 = vmatpush2.msra.mxu0 0.0
      %530 = vmatprep.subr.mxu0 0.0
      %531 = vmatpush2.msra.mxu0 0.0
      %532 = vmatprep.subr.mxu0 0.0
      %533 = vmatpush2.msra.mxu0 0.0
      %534 = vmatprep.subr.mxu0 0.0
      %535 = vmatpush2.msra.mxu0 0.0
      %536 = vmatprep.subr.mxu0 0.0
      %537 = vmatpush2.msra.mxu0 0.0
      %538 = vmatprep.subr.mxu0 0.0
      %539 = vmatpush2.msra.mxu0 0.0
      %540 = vmatprep.subr.mxu0 0.0
      %541 = vmatpush2.msra.mxu0 0.0
      %542 = vmatprep.subr.mxu0 0.0
      %543 = vmatpush2.msra.mxu0 0.0
      %544 = vmatprep.subr.mxu0 0.0
      %545 = vmatpush2.msra.mxu0 0.0
      %546 = vmatprep.subr.mxu0 0.0
      %547 = vmatpush2.msra.mxu0 0.0
      %548 = vmatprep.subr.mxu0 0.0
      %549 = vmatpush2.msra.mxu0 0.0
      %550 = vmatprep.subr.mxu0 0.0
      %551 = vmatpush2.msra.mxu0 0.0
      %552 = vmatprep.mubr.f32.mxu0 0.0
      %553 = vmatmul.mubr.f32.gmra.mxu0 %v393
      %v554 = vpop.f32.mrf.mxu0
      %v555 = vadd.f32 %v389, %v554
      %v556 = vpop.f32.mrf.mxu0
      %v557 = vadd.f32 %v389, %v556
      %558 = vdwg.mxu0
      %559 = vmatprep.subr.mxu0 0.0
      %560 = vmatpush1.msra.mxu0 0.0
      %561 = vmatprep.subr.mxu0 0.0
      %562 = vmatpush1.msra.mxu0 0.0
      %563 = vmatprep.subr.mxu0 0.0
      %564 = vmatpush1.msra.mxu0 0.0
      %565 = vmatprep.subr.mxu0 %v412
      %566 = vmatpush1.msra.mxu0 %v409
      %567 = vmatprep.subr.mxu0 %v376
      %568 = vmatpush1.msra.mxu0 %v375
      %569 = vmatprep.subr.mxu0 %v369
      %570 = vmatpush1.msra.mxu0 %v368
      %571 = vmatprep.subr.mxu0 %v362
      %572 = vmatpush1.msra.mxu0 %v361
      %573 = vmatprep.subr.mxu0 %v355
      %574 = vmatpush1.msra.mxu0 %v354
      %575 = vmatprep.subr.mxu0 %v348
      %576 = vmatpush1.msra.mxu0 %v347
      %577 = vmatprep.subr.mxu0 %v341
      %578 = vmatpush1.msra.mxu0 %v340
      %579 = vmatprep.subr.mxu0 %v334
      %580 = vmatpush1.msra.mxu0 %v333
      %581 = vmatprep.subr.mxu0 %v327
      %582 = vmatpush1.msra.mxu0 %v326
      %583 = vmatprep.subr.mxu0 %v320
      %584 = vmatpush1.msra.mxu0 %v319
      %585 = vmatprep.subr.mxu0 %v313
      %586 = vmatpush1.msra.mxu0 %v312
      %587 = vmatprep.subr.mxu0 %v306
      %588 = vmatpush1.msra.mxu0 %v305
      %589 = vmatprep.subr.mxu0 %v299
      %590 = vmatpush1.msra.mxu0 %v298
      %591 = vmatprep.subr.mxu0 0.0
      %592 = vmatpush2.msra.mxu0 0.0
      %593 = vmatprep.subr.mxu0 0.0
      %594 = vmatpush2.msra.mxu0 0.0
      %595 = vmatprep.subr.mxu0 0.0
      %596 = vmatpush2.msra.mxu0 0.0
      %597 = vmatprep.subr.mxu0 0.0
      %598 = vmatpush2.msra.mxu0 0.0
      %599 = vmatprep.subr.mxu0 0.0
      %600 = vmatpush2.msra.mxu0 0.0
      %601 = vmatprep.subr.mxu0 0.0
      %602 = vmatpush2.msra.mxu0 0.0
      %603 = vmatprep.subr.mxu0 0.0
      %604 = vmatpush2.msra.mxu0 0.0
      %605 = vmatprep.subr.mxu0 0.0
      %606 = vmatpush2.msra.mxu0 0.0
      %607 = vmatprep.subr.mxu0 0.0
      %608 = vmatpush2.msra.mxu0 0.0
      %609 = vmatprep.subr.mxu0 0.0
      %610 = vmatpush2.msra.mxu0 0.0
      %611 = vmatprep.subr.mxu0 0.0
      %612 = vmatpush2.msra.mxu0 0.0
      %613 = vmatprep.subr.mxu0 0.0
      %614 = vmatpush2.msra.mxu0 0.0
      %615 = vmatprep.subr.mxu0 0.0
      %616 = vmatpush2.msra.mxu0 0.0
      %617 = vmatprep.subr.mxu0 0.0
      %618 = vmatpush2.msra.mxu0 0.0
      %619 = vmatprep.subr.mxu0 0.0
      %620 = vmatpush2.msra.mxu0 0.0
      %621 = vmatprep.subr.mxu0 0.0
      %622 = vmatpush2.msra.mxu0 0.0
      %623 = vmatprep.mubr.f32.mxu0 0.0
      %624 = vmatmul.mubr.f32.gmra.mxu0 %v393
      %v625 = vpop.f32.mrf.mxu0
      %v626 = vadd.f32 %v389, %v625
      %v627 = vpop.f32.mrf.mxu0
      %v628 = vadd.f32 %v389, %v627
      %629 = vdwg.mxu0
      %630 = vmatprep.subr.mxu0 0.0
      %631 = vmatpush1.msra.mxu0 0.0
      %632 = vmatprep.subr.mxu0 0.0
      %633 = vmatpush1.msra.mxu0 0.0
      %634 = vmatprep.subr.mxu0 0.0
      %635 = vmatpush1.msra.mxu0 0.0
      %636 = vmatprep.subr.mxu0 0.0
      %637 = vmatpush1.msra.mxu0 %v415
      %638 = vmatprep.subr.mxu0 0.0
      %639 = vmatpush1.msra.mxu0 %v377
      %640 = vmatprep.subr.mxu0 0.0
      %641 = vmatpush1.msra.mxu0 %v370
      %642 = vmatprep.subr.mxu0 0.0
      %643 = vmatpush1.msra.mxu0 %v363
      %644 = vmatprep.subr.mxu0 0.0
      %645 = vmatpush1.msra.mxu0 %v356
      %646 = vmatprep.subr.mxu0 0.0
      %647 = vmatpush1.msra.mxu0 %v349
      %648 = vmatprep.subr.mxu0 0.0
      %649 = vmatpush1.msra.mxu0 %v342
      %650 = vmatprep.subr.mxu0 0.0
      %651 = vmatpush1.msra.mxu0 %v335
      %652 = vmatprep.subr.mxu0 0.0
      %653 = vmatpush1.msra.mxu0 %v328
      %654 = vmatprep.subr.mxu0 0.0
      %655 = vmatpush1.msra.mxu0 %v321
      %656 = vmatprep.subr.mxu0 0.0
      %657 = vmatpush1.msra.mxu0 %v314
      %658 = vmatprep.subr.mxu0 0.0
      %659 = vmatpush1.msra.mxu0 %v307
      %660 = vmatprep.subr.mxu0 0.0
      %661 = vmatpush1.msra.mxu0 %v300
      %662 = vmatprep.subr.mxu0 0.0
      %663 = vmatpush2.msra.mxu0 0.0
      %664 = vmatprep.subr.mxu0 0.0
      %665 = vmatpush2.msra.mxu0 0.0
      %666 = vmatprep.subr.mxu0 0.0
      %667 = vmatpush2.msra.mxu0 0.0
      %668 = vmatprep.subr.mxu0 0.0
      %669 = vmatpush2.msra.mxu0 0.0
      %670 = vmatprep.subr.mxu0 0.0
      %671 = vmatpush2.msra.mxu0 0.0
      %672 = vmatprep.subr.mxu0 0.0
      %673 = vmatpush2.msra.mxu0 0.0
      %674 = vmatprep.subr.mxu0 0.0
      %675 = vmatpush2.msra.mxu0 0.0
      %676 = vmatprep.subr.mxu0 0.0
      %677 = vmatpush2.msra.mxu0 0.0
      %678 = vmatprep.subr.mxu0 0.0
      %679 = vmatpush2.msra.mxu0 0.0
      %680 = vmatprep.subr.mxu0 0.0
      %681 = vmatpush2.msra.mxu0 0.0
      %682 = vmatprep.subr.mxu0 0.0
      %683 = vmatpush2.msra.mxu0 0.0
      %684 = vmatprep.subr.mxu0 0.0
      %685 = vmatpush2.msra.mxu0 0.0
      %686 = vmatprep.subr.mxu0 0.0
      %687 = vmatpush2.msra.mxu0 0.0
      %688 = vmatprep.subr.mxu0 0.0
      %689 = vmatpush2.msra.mxu0 0.0
      %690 = vmatprep.subr.mxu0 0.0
      %691 = vmatpush2.msra.mxu0 0.0
      %692 = vmatprep.subr.mxu0 0.0
      %693 = vmatpush2.msra.mxu0 0.0
      %694 = vmatprep.mubr.f32.mxu0 0.0
      %695 = vmatmul.mubr.f32.gmra.mxu0 %v393
      %v696 = vpop.f32.mrf.mxu0
      %v697 = vadd.f32 %v389, %v696
      %v698 = vpop.f32.mrf.mxu0
      %699 = vdwg.mxu0
      %v700 = vmax.f32 %v484, 0.0
      %v701 = vmax.f32 %v486, 0.0
      %v702 = vmax.f32 %v555, 0.0
      %v703 = vmax.f32 %v557, 0.0
      %v704 = vmax.f32 %v626, 0.0
      %v705 = vmax.f32 %v628, 0.0
      %v706 = vmax.f32 %v697, 0.0
      %v707 = vld [vmem:[%s283] sm:$0xff]
      %709 = vset.pattern.permute.xlu0 0
      %710 = vperm.xlu0 %709, %v707
      %v711 = vpop.permute.xlu0 %710
      %v713 = vmul.f32 %v700, %v711
      %v714 = vmul.f32 %v701, %v711
      %v715 = vmul.f32 %v702, %v711
      %v716 = vmul.f32 %v703, %v711
      %v717 = vmul.f32 %v704, %v711
      %v718 = vmul.f32 %v705, %v711
      %v719 = vmul.f32 %v706, %v711
      %v720 = vld [vmem:[%s287] sm:$0xff]
      %722 = vset.pattern.permute.xlu0 0
      %723 = vperm.xlu0 %722, %v720
      %v724 = vpop.permute.xlu0 %723
      %v726 = vadd.f32 %v713, %v724
      %v727 = vadd.f32 %v714, %v724
      %v728 = vadd.f32 %v715, %v724
      %v729 = vadd.f32 %v716, %v724
      %v730 = vadd.f32 %v717, %v724
      %v731 = vadd.f32 %v718, %v724
      %v732 = vadd.f32 %v719, %v724
      %733 = vst [vmem:[%s292] sm:$0xff] %v726
      %734 = vst [vmem:[%s292 + $0x8] sm:$0xff] %v727
      %735 = vst [vmem:[%s292 + $0x10] sm:$0xff] %v728
      %736 = vst [vmem:[%s292 + $0x18] sm:$0xff] %v729
      %737 = vst [vmem:[%s292 + $0x20] sm:$0xff] %v730
      %738 = vst [vmem:[%s292 + $0x28] sm:$0xff] %v731
      %vm739 = vcmask 261120
      %740 = vst.msk [vmem:[%s292 + $0x30] sm:$0xff] %vm739, %v732
      %p741 = scmp.lt.s32.totalorder %s16, 1
      %s742 = scalar_select %p741, %s16, 1
      %s743 = smul.addr %s742, 7
      %s744 = smul.addr %s743, 8
      %s745 = scalar_lea.vmem %s5, %s744
      // Predicated region
      $region41: #{siamese_forward.6} parent=39 // pred_check
        %p746 = pneg %p164
      $region42: #{siamese_forward.6} parent=39 // pred_check_branch
        %748 = sbr.rel (%p746) target = $region44
      $region43: #{siamese_forward.6} parent=39 // pred_region
        _
      $region44: #{siamese_forward.6} parent=39 // pred_fallthru
        _
    $region40: #{siamese_forward.6} parent=5 // pred_fallthru
      _
    %p749 = scmp.le.s32.totalorder 2, %s11
    // Predicated region
    $region45: #{siamese_forward.6} parent=5 // pred_check
      %p750 = pneg %p749
    $region46: #{siamese_forward.6} parent=5 // pred_check_branch
      %752 = sbr.rel (%p750) target = $region48
    $region47: #{siamese_forward.6} parent=5 // pred_region
      %s753 = ssub.s32 %s11, 2
      // Predicated region
      $region49: #{siamese_forward.6} parent=47 // pred_check
        %p754 = pneg %p170
      $region50: #{siamese_forward.6} parent=47 // pred_check_branch
        %756 = sbr.rel (%p754) target = $region52
      $region51: #{siamese_forward.6} parent=47 // pred_region
        %p757 = scmp.lt.s32.totalorder %s17, 1
        %s758 = scalar_select %p757, %s17, 1
        %s759 = smul.addr %s758, 7
        %s760 = smul.addr %s759, 8
        %s761 = scalar_lea.vmem %s5, %s760
      $region52: #{siamese_forward.6} parent=47 // pred_fallthru
        _
    $region48: #{siamese_forward.6} parent=5 // pred_fallthru
      _
  $region6: #{siamese_forward.6} parent=0 // loop_footer
    %s15 = sadd.s32 1, %s11
  $region7: #{siamese_forward.6} parent=0 // loop_footer_branch
    %10 = sbr.rel target = $region3
  $region8: #{siamese_forward.6} parent=0 // loop_exit
    _

// kernel: siamese_forward.7
$region0: #{siamese_forward.7}
  #allocation0 [shape = 'u32[]', space=smem, size = 0x4, offset = 0x4, fixed_abs, tag = 'smem constant byte address 0x4 - core index']
  #allocation1 [shape = 'u32[144,128]{1,0:T(1,128)}', space=vmem, size = 0x12000, scoped, tag = 'internal scratch']
  %s0 = inlined_call_operand.vmem [shape: f32[2,16,200], index: 0, kind: input, shape index: {}]
  %s1 = inlined_call_operand.vmem [shape: f32[2,200,648], index: 1, kind: input, shape index: {}]
  %s2 = inlined_call_operand.vmem [shape: f32[2,16,1], index: 2, kind: input, shape index: {}]
  %s3 = inlined_call_operand.vmem [shape: f32[2,16,1], index: 3, kind: input, shape index: {}]
  %s4 = inlined_call_operand.vmem [shape: f32[2,16,1], index: 4, kind: input, shape index: {}]
  %s5 = inlined_call_operand.vmem [shape: f32[2,16,648], index: 5, kind: output, shape index: {}]
  %s6 = sld [smem:[#allocation0]]
  $region53: #{siamese_forward.7} parent=0
    _
  %s8 = ssub.s32 1, %s6
  %s9 = scalar_select 0, %s8, %s6
  loop: start=0, step=1, limit=4
  $region2: #{siamese_forward.7} parent=0 // loop_pre_header
    _
  $region3: #{siamese_forward.7} parent=0 // loop_header
    %s11 = sphi 0, %s15
    %p12 = scmp.ge.s32.totalorder %s11, 4
    %s21 = sphi 0, %s23
    %s24 = sphi 0, %s21
    %s25 = sphi 0, %s24
    %s41 = sphi 0, %s25
    %s47 = sphi 0, %s49
    %s50 = sphi 0, %s47
    %s51 = sphi 0, %s50
    %s67 = sphi 0, %s51
    %s73 = sphi 0, %s75
    %s76 = sphi 0, %s73
    %s77 = sphi 0, %s76
    %s93 = sphi 0, %s77
    %s99 = sphi 0, %s101
    %s102 = sphi 0, %s99
    %s103 = sphi 0, %s102
    %s119 = sphi 0, %s103
    %s125 = sphi 0, %s127
    %s128 = sphi 0, %s125
    %s129 = sphi 0, %s128
    %s145 = sphi 0, %s129
    %s151 = sphi 0, %s153
    %s154 = sphi 0, %s151
    %s155 = sphi 0, %s154
    %s171 = sphi 0, %s155
  $region4: #{siamese_forward.7} parent=0 // loop_header_branch
    %14 = sbr.rel (%p12) target = $region8
  $region5: #{siamese_forward.7} parent=0 // loop_body
    %s16 = ssub.s32 %s11, 1
    %s17 = ssub.s32 %s11, 2
    %s18 = sadd.s32 %s11, 1
    %s19 = ssub.s32 %s11, %s18
    %p20 = scmp.eq.s32.totalorder %s19, 0
    %s22 = sadd.s32 %s21, 1
    %s23 = scalar_select %p20, %s21, %s22
    %p26 = pneg %p20
    %p27 = scmp.eq.s32.totalorder %s11, 1
    %p28 = por %p26, %p27
    %p29 = scmp.ne.s32.totalorder %s21, %s24
    %p30 = scmp.eq.s32.totalorder %s11, 0
    %p31 = por %p29, %p30
    %p32 = scmp.ne.s32.totalorder %s21, %s24
    %p33 = scmp.eq.s32.totalorder %s16, 1
    %p34 = por %p32, %p33
    %p35 = scmp.ne.s32.totalorder %s24, %s25
    %p36 = scmp.eq.s32.totalorder %s16, 0
    %p37 = por %p35, %p36
    %p38 = scmp.ne.s32.totalorder %s24, %s25
    %p39 = scmp.eq.s32.totalorder %s17, 1
    %p40 = por %p38, %p39
    %p42 = scmp.ne.s32.totalorder %s25, %s41
    %p43 = scmp.eq.s32.totalorder %s17, 0
    %p44 = por %p42, %p43
    %s45 = ssub.s32 %s11, %s18
    %p46 = scmp.eq.s32.totalorder %s45, 0
    %s48 = sadd.s32 %s47, 1
    %s49 = scalar_select %p46, %s47, %s48
    %p52 = pneg %p46
    %p53 = scmp.eq.s32.totalorder %s11, 1
    %p54 = por %p52, %p53
    %p55 = scmp.ne.s32.totalorder %s47, %s50
    %p56 = scmp.eq.s32.totalorder %s11, 0
    %p57 = por %p55, %p56
    %p58 = scmp.ne.s32.totalorder %s47, %s50
    %p59 = scmp.eq.s32.totalorder %s16, 1
    %p60 = por %p58, %p59
    %p61 = scmp.ne.s32.totalorder %s50, %s51
    %p62 = scmp.eq.s32.totalorder %s16, 0
    %p63 = por %p61, %p62
    %p64 = scmp.ne.s32.totalorder %s50, %s51
    %p65 = scmp.eq.s32.totalorder %s17, 1
    %p66 = por %p64, %p65
    %p68 = scmp.ne.s32.totalorder %s51, %s67
    %p69 = scmp.eq.s32.totalorder %s17, 0
    %p70 = por %p68, %p69
    %s71 = ssub.s32 %s11, %s18
    %p72 = scmp.eq.s32.totalorder %s71, 0
    %s74 = sadd.s32 %s73, 1
    %s75 = scalar_select %p72, %s73, %s74
    %p78 = pneg %p72
    %p79 = scmp.eq.s32.totalorder %s11, 1
    %p80 = por %p78, %p79
    %p81 = scmp.ne.s32.totalorder %s73, %s76
    %p82 = scmp.eq.s32.totalorder %s11, 0
    %p83 = por %p81, %p82
    %p84 = scmp.ne.s32.totalorder %s73, %s76
    %p85 = scmp.eq.s32.totalorder %s16, 1
    %p86 = por %p84, %p85
    %p87 = scmp.ne.s32.totalorder %s76, %s77
    %p88 = scmp.eq.s32.totalorder %s16, 0
    %p89 = por %p87, %p88
    %p90 = scmp.ne.s32.totalorder %s76, %s77
    %p91 = scmp.eq.s32.totalorder %s17, 1
    %p92 = por %p90, %p91
    %p94 = scmp.ne.s32.totalorder %s77, %s93
    %p95 = scmp.eq.s32.totalorder %s17, 0
    %p96 = por %p94, %p95
    %s97 = ssub.s32 %s11, %s18
    %p98 = scmp.eq.s32.totalorder %s97, 0
    %s100 = sadd.s32 %s99, 1
    %s101 = scalar_select %p98, %s99, %s100
    %p104 = pneg %p98
    %p105 = scmp.eq.s32.totalorder %s11, 1
    %p106 = por %p104, %p105
    %p107 = scmp.ne.s32.totalorder %s99, %s102
    %p108 = scmp.eq.s32.totalorder %s11, 0
    %p109 = por %p107, %p108
    %p110 = scmp.ne.s32.totalorder %s99, %s102
    %p111 = scmp.eq.s32.totalorder %s16, 1
    %p112 = por %p110, %p111
    %p113 = scmp.ne.s32.totalorder %s102, %s103
    %p114 = scmp.eq.s32.totalorder %s16, 0
    %p115 = por %p113, %p114
    %p116 = scmp.ne.s32.totalorder %s102, %s103
    %p117 = scmp.eq.s32.totalorder %s17, 1
    %p118 = por %p116, %p117
    %p120 = scmp.ne.s32.totalorder %s103, %s119
    %p121 = scmp.eq.s32.totalorder %s17, 0
    %p122 = por %p120, %p121
    %s123 = ssub.s32 %s11, %s18
    %p124 = scmp.eq.s32.totalorder %s123, 0
    %s126 = sadd.s32 %s125, 1
    %s127 = scalar_select %p124, %s125, %s126
    %p130 = pneg %p124
    %p131 = scmp.eq.s32.totalorder %s11, 1
    %p132 = por %p130, %p131
    %p133 = scmp.ne.s32.totalorder %s125, %s128
    %p134 = scmp.eq.s32.totalorder %s11, 0
    %p135 = por %p133, %p134
    %p136 = scmp.ne.s32.totalorder %s125, %s128
    %p137 = scmp.eq.s32.totalorder %s16, 1
    %p138 = por %p136, %p137
    %p139 = scmp.ne.s32.totalorder %s128, %s129
    %p140 = scmp.eq.s32.totalorder %s16, 0
    %p141 = por %p139, %p140
    %p142 = scmp.ne.s32.totalorder %s128, %s129
    %p143 = scmp.eq.s32.totalorder %s17, 1
    %p144 = por %p142, %p143
    %p146 = scmp.ne.s32.totalorder %s129, %s145
    %p147 = scmp.eq.s32.totalorder %s17, 0
    %p148 = por %p146, %p147
    %s149 = ssub.s32 %s11, %s18
    %p150 = scmp.eq.s32.totalorder %s149, 0
    %s152 = sadd.s32 %s151, 1
    %s153 = scalar_select %p150, %s151, %s152
    %p156 = pneg %p150
    %p157 = scmp.eq.s32.totalorder %s11, 1
    %p158 = por %p156, %p157
    %p159 = scmp.ne.s32.totalorder %s151, %s154
    %p160 = scmp.eq.s32.totalorder %s11, 0
    %p161 = por %p159, %p160
    %p162 = scmp.ne.s32.totalorder %s151, %s154
    %p163 = scmp.eq.s32.totalorder %s16, 1
    %p164 = por %p162, %p163
    %p165 = scmp.ne.s32.totalorder %s154, %s155
    %p166 = scmp.eq.s32.totalorder %s16, 0
    %p167 = por %p165, %p166
    %p168 = scmp.ne.s32.totalorder %s154, %s155
    %p169 = scmp.eq.s32.totalorder %s17, 1
    %p170 = por %p168, %p169
    %p172 = scmp.ne.s32.totalorder %s155, %s171
    %p173 = scmp.eq.s32.totalorder %s17, 0
    %p174 = por %p172, %p173
    %p175 = scmp.le.s32.totalorder 1, %s11
    %p176 = scmp.lt.s32.totalorder %s11, 3
    %p177 = pnand %p175, %p176
    %p178 = pneg %p177
    // Predicated region
    $region9: #{siamese_forward.7} parent=5 // pred_check
      _
    $region10: #{siamese_forward.7} parent=5 // pred_check_branch
      %180 = sbr.rel (%p177) target = $region12
    $region11: #{siamese_forward.7} parent=5 // pred_region
      %s181 = ssub.s32 %s11, 1
    $region12: #{siamese_forward.7} parent=5 // pred_fallthru
      _
    %p182 = scmp.lt.s32.totalorder %s11, 2
    // Predicated region
    $region13: #{siamese_forward.7} parent=5 // pred_check
      %p183 = pneg %p182
    $region14: #{siamese_forward.7} parent=5 // pred_check_branch
      %185 = sbr.rel (%p183) target = $region16
    $region15: #{siamese_forward.7} parent=5 // pred_region
      // Predicated region
      $region17: #{siamese_forward.7} parent=15 // pred_check
        %p186 = pneg %p31
      $region18: #{siamese_forward.7} parent=15 // pred_check_branch
        %188 = sbr.rel (%p186) target = $region20
      $region19: #{siamese_forward.7} parent=15 // pred_region
        %p189 = scmp.lt.s32.totalorder %s11, 1
        %s190 = scalar_select %p189, %s11, 1
        %s191 = smul.addr %s190, 4
        %s192 = smul.addr %s191, 8
        %s193 = scalar_lea.vmem %s0, %s192
      $region20: #{siamese_forward.7} parent=15 // pred_fallthru
        _
      // Predicated region
      $region21: #{siamese_forward.7} parent=15 // pred_check
        %p194 = pneg %p57
      $region22: #{siamese_forward.7} parent=15 // pred_check_branch
        %196 = sbr.rel (%p194) target = $region24
      $region23: #{siamese_forward.7} parent=15 // pred_region
        %p197 = scmp.lt.s32.totalorder %s11, 1
        %s198 = scalar_select %p197, %s11, 1
        %s199 = smul.addr %s198, 150
        %s200 = smul.addr %s199, 8
        %s201 = scalar_lea.vmem %s1, %s200
      $region24: #{siamese_forward.7} parent=15 // pred_fallthru
        _
      // Predicated region
      $region25: #{siamese_forward.7} parent=15 // pred_check
        %p202 = pneg %p83
      $region26: #{siamese_forward.7} parent=15 // pred_check_branch
        %204 = sbr.rel (%p202) target = $region28
      $region27: #{siamese_forward.7} parent=15 // pred_region
        %p205 = scmp.lt.s32.totalorder %s11, 1
        %s206 = scalar_select %p205, %s11, 1
        %s207 = smul.addr %s206, 2
        %s208 = smul.addr %s207, 8
        %s209 = scalar_lea.vmem %s2, %s208
      $region28: #{siamese_forward.7} parent=15 // pred_fallthru
        _
      // Predicated region
      $region29: #{siamese_forward.7} parent=15 // pred_check
        %p210 = pneg %p109
      $region30: #{siamese_forward.7} parent=15 // pred_check_branch
        %212 = sbr.rel (%p210) target = $region32
      $region31: #{siamese_forward.7} parent=15 // pred_region
        %p213 = scmp.lt.s32.totalorder %s11, 1
        %s214 = scalar_select %p213, %s11, 1
        %s215 = smul.addr %s214, 2
        %s216 = smul.addr %s215, 8
        %s217 = scalar_lea.vmem %s3, %s216
      $region32: #{siamese_forward.7} parent=15 // pred_fallthru
        _
      // Predicated region
      $region33: #{siamese_forward.7} parent=15 // pred_check
        %p218 = pneg %p135
      $region34: #{siamese_forward.7} parent=15 // pred_check_branch
        %220 = sbr.rel (%p218) target = $region36
      $region35: #{siamese_forward.7} parent=15 // pred_region
        %p221 = scmp.lt.s32.totalorder %s11, 1
        %s222 = scalar_select %p221, %s11, 1
        %s223 = smul.addr %s222, 2
        %s224 = smul.addr %s223, 8
        %s225 = scalar_lea.vmem %s4, %s224
      $region36: #{siamese_forward.7} parent=15 // pred_fallthru
        _
    $region16: #{siamese_forward.7} parent=5 // pred_fallthru
      _
    %p226 = scmp.le.s32.totalorder 1, %s11
    %p227 = scmp.lt.s32.totalorder %s11, 3
    %p228 = pnand %p226, %p227
    %p229 = pneg %p228
    // Predicated region
    $region37: #{siamese_forward.7} parent=5 // pred_check
      _
    $region38: #{siamese_forward.7} parent=5 // pred_check_branch
      %231 = sbr.rel (%p228) target = $region40
    $region39: #{siamese_forward.7} parent=5 // pred_region
      %s232 = ssub.s32 %s11, 1
      %p233 = scmp.lt.s32.totalorder %s16, 1
      %s234 = scalar_select %p233, %s16, 1
      %s235 = smul.addr %s234, 4
      %s236 = smul.addr %s235, 8
      %s237 = scalar_lea.vmem %s0, %s236
      %p238 = pneg %p37
      %p239 = pneg %p34
      %p240 = scmp.lt.s32.totalorder %s16, 1
      %s241 = scalar_select %p240, %s16, 1
      %s242 = smul.addr %s241, 150
      %s243 = smul.addr %s242, 8
      %s244 = scalar_lea.vmem %s1, %s243
      %p245 = pneg %p63
      %p246 = pneg %p60
      %p247 = scmp.lt.s32.totalorder %s16, 1
      %s248 = scalar_select %p247, %s16, 1
      %s249 = smul.addr %s248, 2
      %s250 = smul.addr %s249, 8
      %s251 = scalar_lea.vmem %s2, %s250
      %p252 = pneg %p89
      %p253 = pneg %p86
      %p254 = scmp.lt.s32.totalorder %s16, 1
      %s255 = scalar_select %p254, %s16, 1
      %s256 = smul.addr %s255, 2
      %s257 = smul.addr %s256, 8
      %s258 = scalar_lea.vmem %s3, %s257
      %p259 = pneg %p115
      %p260 = pneg %p112
      %p261 = scmp.lt.s32.totalorder %s16, 1
      %s262 = scalar_select %p261, %s16, 1
      %s263 = smul.addr %s262, 2
      %s264 = smul.addr %s263, 8
      %s265 = scalar_lea.vmem %s4, %s264
      %p266 = pneg %p141
      %p267 = pneg %p138
      %p268 = pneg %p167
      %p269 = pneg %p164
      %p270 = scmp.lt.s32.totalorder %s16, 1
      %s271 = scalar_select %p270, %s16, 1
      %s272 = smul.addr %s271, 12
      %s273 = smul.addr %s272, 8
      %s274 = scalar_lea.vmem %s5, %s273
      %p275 = scmp.lt.s32.totalorder %s16, 1
      %s276 = scalar_select %p275, %s16, 1
      %s277 = smul.addr %s276, 4
      %s278 = smul.addr %s277, 8
      %s279 = scalar_lea.vmem %s0, %s278
      %p280 = scmp.lt.s32.totalorder %s16, 1
      %s281 = scalar_select %p280, %s16, 1
      %s282 = smul.addr %s281, 150
      %s283 = smul.addr %s282, 8
      %s284 = scalar_lea.vmem %s1, %s283
      %p285 = scmp.lt.s32.totalorder %s16, 1
      %s286 = scalar_select %p285, %s16, 1
      %s287 = smul.addr %s286, 2
      %s288 = smul.addr %s287, 8
      %s289 = scalar_lea.vmem %s2, %s288
      %p290 = scmp.lt.s32.totalorder %s16, 1
      %s291 = scalar_select %p290, %s16, 1
      %s292 = smul.addr %s291, 2
      %s293 = smul.addr %s292, 8
      %s294 = scalar_lea.vmem %s3, %s293
      %p295 = scmp.lt.s32.totalorder %s16, 1
      %s296 = scalar_select %p295, %s16, 1
      %s297 = smul.addr %s296, 2
      %s298 = smul.addr %s297, 8
      %s299 = scalar_lea.vmem %s4, %s298
      %p300 = scmp.lt.s32.totalorder %s16, 1
      %s301 = scalar_select %p300, %s16, 1
      %s302 = smul.addr %s301, 12
      %s303 = smul.addr %s302, 8
      %s304 = scalar_lea.vmem %s5, %s303
      %v305 = vld [vmem:[%s279] sm:$0xff]
      %v306 = vld [vmem:[%s279 + $0x8] sm:$0xff]
      %v307 = vld [vmem:[%s279 + $0x10] sm:$0xff]
      %v308 = vld [vmem:[%s279 + $0x18] sm:$0xff]
      %v309 = vld [vmem:[%s284] sm:$0xff]
      %v310 = vld [vmem:[%s284 + $0x8] sm:$0xff]
      %v311 = vld [vmem:[%s284 + $0x10] sm:$0xff]
      %v312 = vld [vmem:[%s284 + $0x18] sm:$0xff]
      %v313 = vld [vmem:[%s284 + $0x20] sm:$0xff]
      %v314 = vld [vmem:[%s284 + $0x28] sm:$0xff]
      %v315 = vld [vmem:[%s284 + $0x30] sm:$0xff]
      %v316 = vld [vmem:[%s284 + $0x38] sm:$0xff]
      %v317 = vld [vmem:[%s284 + $0x40] sm:$0xff]
      %v318 = vld [vmem:[%s284 + $0x48] sm:$0xff]
      %v319 = vld [vmem:[%s284 + $0x50] sm:$0xff]
      %v320 = vld [vmem:[%s284 + $0x58] sm:$0xff]
      %v321 = vld [vmem:[%s284 + $0x60] sm:$0xff]
      %v322 = vld [vmem:[%s284 + $0x68] sm:$0xff]
      %v323 = vld [vmem:[%s284 + $0x70] sm:$0xff]
      %v324 = vld [vmem:[%s284 + $0x78] sm:$0xff]
      %v325 = vld [vmem:[%s284 + $0x80] sm:$0xff]
      %v326 = vld [vmem:[%s284 + $0x88] sm:$0xff]
      %v327 = vld [vmem:[%s284 + $0x90] sm:$0xff]
      %v328 = vld [vmem:[%s284 + $0x98] sm:$0xff]
      %v329 = vld [vmem:[%s284 + $0xa0] sm:$0xff]
      %v330 = vld [vmem:[%s284 + $0xa8] sm:$0xff]
      %v331 = vld [vmem:[%s284 + $0xb0] sm:$0xff]
      %v332 = vld [vmem:[%s284 + $0xb8] sm:$0xff]
      %v333 = vld [vmem:[%s284 + $0xc0] sm:$0xff]
      %v334 = vld [vmem:[%s284 + $0xc8] sm:$0xff]
      %v335 = vld [vmem:[%s284 + $0xd0] sm:$0xff]
      %v336 = vld [vmem:[%s284 + $0xd8] sm:$0xff]
      %v337 = vld [vmem:[%s284 + $0xe0] sm:$0xff]
      %v338 = vld [vmem:[%s284 + $0xe8] sm:$0xff]
      %v339 = vld [vmem:[%s284 + $0xf0] sm:$0xff]
      %v340 = vld [vmem:[%s284 + $0xf8] sm:$0xff]
      %v341 = vld [vmem:[%s284 + $0x100] sm:$0xff]
      %v342 = vld [vmem:[%s284 + $0x108] sm:$0xff]
      %v343 = vld [vmem:[%s284 + $0x110] sm:$0xff]
      %v344 = vld [vmem:[%s284 + $0x118] sm:$0xff]
      %v345 = vld [vmem:[%s284 + $0x120] sm:$0xff]
      %v346 = vld [vmem:[%s284 + $0x128] sm:$0xff]
      %v347 = vld [vmem:[%s284 + $0x130] sm:$0xff]
      %v348 = vld [vmem:[%s284 + $0x138] sm:$0xff]
      %v349 = vld [vmem:[%s284 + $0x140] sm:$0xff]
      %v350 = vld [vmem:[%s284 + $0x148] sm:$0xff]
      %v351 = vld [vmem:[%s284 + $0x150] sm:$0xff]
      %v352 = vld [vmem:[%s284 + $0x158] sm:$0xff]
      %v353 = vld [vmem:[%s284 + $0x160] sm:$0xff]
      %v354 = vld [vmem:[%s284 + $0x168] sm:$0xff]
      %v355 = vld [vmem:[%s284 + $0x170] sm:$0xff]
      %v356 = vld [vmem:[%s284 + $0x178] sm:$0xff]
      %v357 = vld [vmem:[%s284 + $0x180] sm:$0xff]
      %v358 = vld [vmem:[%s284 + $0x188] sm:$0xff]
      %v359 = vld [vmem:[%s284 + $0x190] sm:$0xff]
      %v360 = vld [vmem:[%s284 + $0x198] sm:$0xff]
      %v361 = vld [vmem:[%s284 + $0x1a0] sm:$0xff]
      %v362 = vld [vmem:[%s284 + $0x1a8] sm:$0xff]
      %v363 = vld [vmem:[%s284 + $0x1b0] sm:$0xff]
      %v364 = vld [vmem:[%s284 + $0x1b8] sm:$0xff]
      %v365 = vld [vmem:[%s284 + $0x1c0] sm:$0xff]
      %v366 = vld [vmem:[%s284 + $0x1c8] sm:$0xff]
      %v367 = vld [vmem:[%s284 + $0x1d0] sm:$0xff]
      %v368 = vld [vmem:[%s284 + $0x1d8] sm:$0xff]
      %v369 = vld [vmem:[%s284 + $0x1e0] sm:$0xff]
      %v370 = vld [vmem:[%s284 + $0x1e8] sm:$0xff]
      %v371 = vld [vmem:[%s284 + $0x1f0] sm:$0xff]
      %v372 = vld [vmem:[%s284 + $0x1f8] sm:$0xff]
      %v373 = vld [vmem:[%s284 + $0x200] sm:$0xff]
      %v374 = vld [vmem:[%s284 + $0x208] sm:$0xff]
      %v375 = vld [vmem:[%s284 + $0x210] sm:$0xff]
      %v376 = vld [vmem:[%s284 + $0x218] sm:$0xff]
      %v377 = vld [vmem:[%s284 + $0x220] sm:$0xff]
      %v378 = vld [vmem:[%s284 + $0x228] sm:$0xff]
      %v379 = vld [vmem:[%s284 + $0x230] sm:$0xff]
      %v380 = vld [vmem:[%s284 + $0x238] sm:$0xff]
      %v381 = vld [vmem:[%s284 + $0x240] sm:$0xff]
      %v382 = vld [vmem:[%s284 + $0x248] sm:$0xff]
      %v383 = vld [vmem:[%s284 + $0x250] sm:$0xff]
      %v384 = vld [vmem:[%s284 + $0x258] sm:$0xff]
      %v385 = vld [vmem:[%s284 + $0x260] sm:$0xff]
      %v386 = vld [vmem:[%s284 + $0x268] sm:$0xff]
      %v387 = vld [vmem:[%s284 + $0x270] sm:$0xff]
      %v388 = vld [vmem:[%s284 + $0x278] sm:$0xff]
      %v389 = vld [vmem:[%s284 + $0x280] sm:$0xff]
      %v390 = vld [vmem:[%s284 + $0x288] sm:$0xff]
      %v391 = vld [vmem:[%s284 + $0x290] sm:$0xff]
      %v392 = vld [vmem:[%s284 + $0x298] sm:$0xff]
      %v393 = vld [vmem:[%s284 + $0x2a0] sm:$0xff]
      %v394 = vld [vmem:[%s284 + $0x2a8] sm:$0xff]
      %v395 = vld [vmem:[%s284 + $0x2b0] sm:$0xff]
      %v396 = vld [vmem:[%s284 + $0x2b8] sm:$0xff]
      %v397 = vld [vmem:[%s284 + $0x2c0] sm:$0xff]
      %v398 = vld [vmem:[%s284 + $0x2c8] sm:$0xff]
      %v399 = vld [vmem:[%s284 + $0x2d0] sm:$0xff]
      %v400 = vld [vmem:[%s284 + $0x2d8] sm:$0xff]
      %v401 = vld [vmem:[%s284 + $0x2e0] sm:$0xff]
      %v402 = vld [vmem:[%s284 + $0x2e8] sm:$0xff]
      %v403 = vld [vmem:[%s284 + $0x2f0] sm:$0xff]
      %v404 = vld [vmem:[%s284 + $0x2f8] sm:$0xff]
      %v405 = vld [vmem:[%s284 + $0x300] sm:$0xff]
      %v406 = vld [vmem:[%s284 + $0x308] sm:$0xff]
      %v407 = vld [vmem:[%s284 + $0x310] sm:$0xff]
      %v408 = vld [vmem:[%s284 + $0x318] sm:$0xff]
      %v409 = vld [vmem:[%s284 + $0x320] sm:$0xff]
      %v410 = vld [vmem:[%s284 + $0x328] sm:$0xff]
      %v411 = vld [vmem:[%s284 + $0x330] sm:$0xff]
      %v412 = vld [vmem:[%s284 + $0x338] sm:$0xff]
      %v413 = vld [vmem:[%s284 + $0x340] sm:$0xff]
      %v414 = vld [vmem:[%s284 + $0x348] sm:$0xff]
      %v415 = vld [vmem:[%s284 + $0x350] sm:$0xff]
      %v416 = vld [vmem:[%s284 + $0x358] sm:$0xff]
      %v417 = vld [vmem:[%s284 + $0x360] sm:$0xff]
      %v418 = vld [vmem:[%s284 + $0x368] sm:$0xff]
      %v419 = vld [vmem:[%s284 + $0x370] sm:$0xff]
      %v420 = vld [vmem:[%s284 + $0x378] sm:$0xff]
      %v421 = vld [vmem:[%s284 + $0x380] sm:$0xff]
      %v422 = vld [vmem:[%s284 + $0x388] sm:$0xff]
      %v423 = vld [vmem:[%s284 + $0x390] sm:$0xff]
      %v424 = vld [vmem:[%s284 + $0x398] sm:$0xff]
      %v425 = vld [vmem:[%s284 + $0x3a0] sm:$0xff]
      %v426 = vld [vmem:[%s284 + $0x3a8] sm:$0xff]
      %v427 = vld [vmem:[%s284 + $0x3b0] sm:$0xff]
      %v428 = vld [vmem:[%s284 + $0x3b8] sm:$0xff]
      %v429 = vld [vmem:[%s284 + $0x3c0] sm:$0xff]
      %v430 = vld [vmem:[%s284 + $0x3c8] sm:$0xff]
      %v431 = vld [vmem:[%s284 + $0x3d0] sm:$0xff]
      %v432 = vld [vmem:[%s284 + $0x3d8] sm:$0xff]
      %v433 = vld [vmem:[%s284 + $0x3e0] sm:$0xff]
      %v434 = vld [vmem:[%s284 + $0x3e8] sm:$0xff]
      %v435 = vld [vmem:[%s284 + $0x3f0] sm:$0xff]
      %v436 = vld [vmem:[%s284 + $0x3f8] sm:$0xff]
      %v437 = vld [vmem:[%s284 + $0x400] sm:$0xff]
      %v438 = vld [vmem:[%s284 + $0x408] sm:$0xff]
      %v439 = vld [vmem:[%s284 + $0x410] sm:$0xff]
      %v440 = vld [vmem:[%s284 + $0x418] sm:$0xff]
      %v441 = vld [vmem:[%s284 + $0x420] sm:$0xff]
      %v442 = vld [vmem:[%s284 + $0x428] sm:$0xff]
      %v443 = vld [vmem:[%s284 + $0x430] sm:$0xff]
      %v444 = vld [vmem:[%s284 + $0x438] sm:$0xff]
      %v445 = vld [vmem:[%s284 + $0x440] sm:$0xff]
      %v446 = vld [vmem:[%s284 + $0x448] sm:$0xff]
      %v447 = vld [vmem:[%s284 + $0x450] sm:$0xff]
      %v448 = vld [vmem:[%s284 + $0x458] sm:$0xff]
      %v449 = vld [vmem:[%s284 + $0x460] sm:$0xff]
      %v450 = vld [vmem:[%s284 + $0x468] sm:$0xff]
      %v451 = vld [vmem:[%s284 + $0x470] sm:$0xff]
      %v452 = vld [vmem:[%s284 + $0x478] sm:$0xff]
      %v453 = vld [vmem:[%s284 + $0x480] sm:$0xff]
      %v454 = vld [vmem:[%s284 + $0x488] sm:$0xff]
      %v455 = vld [vmem:[%s284 + $0x490] sm:$0xff]
      %v456 = vld [vmem:[%s284 + $0x498] sm:$0xff]
      %v457 = vld [vmem:[%s284 + $0x4a0] sm:$0xff]
      %v458 = vld [vmem:[%s284 + $0x4a8] sm:$0xff]
      %v459 = vld [vmem:[%s289] sm:$0xff]
      %v460 = vld [vmem:[%s289 + $0x8] sm:$0xff]
      %462 = vset.pattern.permute.xlu0 0
      %463 = vperm.xlu0 %462, %v459
      %v464 = vpop.permute.xlu0 %463
      %467 = vset.pattern.permute.xlu0 0
      %468 = vperm.xlu0 %467, %v460
      %v469 = vpop.permute.xlu0 %468
      %vm471 = vcmask 588800
      %v473 = vsel %vm471, %v306, 0
      %v476 = vsel %vm471, %v308, 0
      %478 = vmatprep.subr.mxu0 %v400
      %479 = vmatpush1.msra.mxu0 %v399
      %480 = vmatprep.subr.mxu0 %v394
      %481 = vmatpush1.msra.mxu0 %v393
      %482 = vmatprep.subr.mxu0 %v388
      %483 = vmatpush1.msra.mxu0 %v387
      %484 = vmatprep.subr.mxu0 %v382
      %485 = vmatpush1.msra.mxu0 %v381
      %486 = vmatprep.subr.mxu0 %v376
      %487 = vmatpush1.msra.mxu0 %v375
      %488 = vmatprep.subr.mxu0 %v370
      %489 = vmatpush1.msra.mxu0 %v369
      %490 = vmatprep.subr.mxu0 %v364
      %491 = vmatpush1.msra.mxu0 %v363
      %492 = vmatprep.subr.mxu0 %v358
      %493 = vmatpush1.msra.mxu0 %v357
      %494 = vmatprep.subr.mxu0 %v352
      %495 = vmatpush1.msra.mxu0 %v351
      %496 = vmatprep.subr.mxu0 %v346
      %497 = vmatpush1.msra.mxu0 %v345
      %498 = vmatprep.subr.mxu0 %v340
      %499 = vmatpush1.msra.mxu0 %v339
      %500 = vmatprep.subr.mxu0 %v334
      %501 = vmatpush1.msra.mxu0 %v333
      %502 = vmatprep.subr.mxu0 %v328
      %503 = vmatpush1.msra.mxu0 %v327
      %504 = vmatprep.subr.mxu0 %v322
      %505 = vmatpush1.msra.mxu0 %v321
      %506 = vmatprep.subr.mxu0 %v316
      %507 = vmatpush1.msra.mxu0 %v315
      %508 = vmatprep.subr.mxu0 %v310
      %509 = vmatpush1.msra.mxu0 %v309
      %510 = vmatprep.subr.mxu0 0.0
      %511 = vmatpush2.msra.mxu0 0.0
      %512 = vmatprep.subr.mxu0 0.0
      %513 = vmatpush2.msra.mxu0 0.0
      %514 = vmatprep.subr.mxu0 0.0
      %515 = vmatpush2.msra.mxu0 0.0
      %516 = vmatprep.subr.mxu0 0.0
      %517 = vmatpush2.msra.mxu0 0.0
      %518 = vmatprep.subr.mxu0 0.0
      %519 = vmatpush2.msra.mxu0 0.0
      %520 = vmatprep.subr.mxu0 0.0
      %521 = vmatpush2.msra.mxu0 0.0
      %522 = vmatprep.subr.mxu0 0.0
      %523 = vmatpush2.msra.mxu0 0.0
      %524 = vmatprep.subr.mxu0 %v454
      %525 = vmatpush2.msra.mxu0 %v453
      %526 = vmatprep.subr.mxu0 %v448
      %527 = vmatpush2.msra.mxu0 %v447
      %528 = vmatprep.subr.mxu0 %v442
      %529 = vmatpush2.msra.mxu0 %v441
      %530 = vmatprep.subr.mxu0 %v436
      %531 = vmatpush2.msra.mxu0 %v435
      %532 = vmatprep.subr.mxu0 %v430
      %533 = vmatpush2.msra.mxu0 %v429
      %534 = vmatprep.subr.mxu0 %v424
      %535 = vmatpush2.msra.mxu0 %v423
      %536 = vmatprep.subr.mxu0 %v418
      %537 = vmatpush2.msra.mxu0 %v417
      %538 = vmatprep.subr.mxu0 %v412
      %539 = vmatpush2.msra.mxu0 %v411
      %540 = vmatprep.subr.mxu0 %v406
      %541 = vmatpush2.msra.mxu0 %v405
      %542 = vmatprep.mubr.f32.mxu0 %v473
      %543 = vmatmul.mubr.f32.gmra.mxu0 %v305
      %v544 = vpop.f32.mrf.mxu0
      %v545 = vadd.f32 %v464, %v544
      %v546 = vpop.f32.mrf.mxu0
      %v547 = vadd.f32 %v464, %v546
      %548 = vmatprep.mubr.f32.mxu0 %v476
      %549 = vmatmul.mubr.f32.gmra.mxu0 %v307
      %v550 = vpop.f32.mrf.mxu0
      %v551 = vadd.f32 %v469, %v550
      %v552 = vpop.f32.mrf.mxu0
      %v553 = vadd.f32 %v469, %v552
      %554 = vdwg.mxu0
      %555 = vmatprep.subr.mxu0 %v402
      %556 = vmatpush1.msra.mxu0 %v401
      %557 = vmatprep.subr.mxu0 %v396
      %558 = vmatpush1.msra.mxu0 %v395
      %559 = vmatprep.subr.mxu0 %v390
      %560 = vmatpush1.msra.mxu0 %v389
      %561 = vmatprep.subr.mxu0 %v384
      %562 = vmatpush1.msra.mxu0 %v383
      %563 = vmatprep.subr.mxu0 %v378
      %564 = vmatpush1.msra.mxu0 %v377
      %565 = vmatprep.subr.mxu0 %v372
      %566 = vmatpush1.msra.mxu0 %v371
      %567 = vmatprep.subr.mxu0 %v366
      %568 = vmatpush1.msra.mxu0 %v365
      %569 = vmatprep.subr.mxu0 %v360
      %570 = vmatpush1.msra.mxu0 %v359
      %571 = vmatprep.subr.mxu0 %v354
      %572 = vmatpush1.msra.mxu0 %v353
      %573 = vmatprep.subr.mxu0 %v348
      %574 = vmatpush1.msra.mxu0 %v347
      %575 = vmatprep.subr.mxu0 %v342
      %576 = vmatpush1.msra.mxu0 %v341
      %577 = vmatprep.subr.mxu0 %v336
      %578 = vmatpush1.msra.mxu0 %v335
      %579 = vmatprep.subr.mxu0 %v330
      %580 = vmatpush1.msra.mxu0 %v329
      %581 = vmatprep.subr.mxu0 %v324
      %582 = vmatpush1.msra.mxu0 %v323
      %583 = vmatprep.subr.mxu0 %v318
      %584 = vmatpush1.msra.mxu0 %v317
      %585 = vmatprep.subr.mxu0 %v312
      %586 = vmatpush1.msra.mxu0 %v311
      %587 = vmatprep.subr.mxu0 0.0
      %588 = vmatpush2.msra.mxu0 0.0
      %589 = vmatprep.subr.mxu0 0.0
      %590 = vmatpush2.msra.mxu0 0.0
      %591 = vmatprep.subr.mxu0 0.0
      %592 = vmatpush2.msra.mxu0 0.0
      %593 = vmatprep.subr.mxu0 0.0
      %594 = vmatpush2.msra.mxu0 0.0
      %595 = vmatprep.subr.mxu0 0.0
      %596 = vmatpush2.msra.mxu0 0.0
      %597 = vmatprep.subr.mxu0 0.0
      %598 = vmatpush2.msra.mxu0 0.0
      %599 = vmatprep.subr.mxu0 0.0
      %600 = vmatpush2.msra.mxu0 0.0
      %601 = vmatprep.subr.mxu0 %v456
      %602 = vmatpush2.msra.mxu0 %v455
      %603 = vmatprep.subr.mxu0 %v450
      %604 = vmatpush2.msra.mxu0 %v449
      %605 = vmatprep.subr.mxu0 %v444
      %606 = vmatpush2.msra.mxu0 %v443
      %607 = vmatprep.subr.mxu0 %v438
      %608 = vmatpush2.msra.mxu0 %v437
      %609 = vmatprep.subr.mxu0 %v432
      %610 = vmatpush2.msra.mxu0 %v431
      %611 = vmatprep.subr.mxu0 %v426
      %612 = vmatpush2.msra.mxu0 %v425
      %613 = vmatprep.subr.mxu0 %v420
      %614 = vmatpush2.msra.mxu0 %v419
      %615 = vmatprep.subr.mxu0 %v414
      %616 = vmatpush2.msra.mxu0 %v413
      %617 = vmatprep.subr.mxu0 %v408
      %618 = vmatpush2.msra.mxu0 %v407
      %619 = vmatprep.mubr.f32.mxu0 %v473
      %620 = vmatmul.mubr.f32.gmra.mxu0 %v305
      %v621 = vpop.f32.mrf.mxu0
      %v622 = vadd.f32 %v464, %v621
      %v623 = vpop.f32.mrf.mxu0
      %v624 = vadd.f32 %v464, %v623
      %625 = vmatprep.mubr.f32.mxu0 %v476
      %626 = vmatmul.mubr.f32.gmra.mxu0 %v307
      %v627 = vpop.f32.mrf.mxu0
      %v628 = vadd.f32 %v469, %v627
      %v629 = vpop.f32.mrf.mxu0
      %v630 = vadd.f32 %v469, %v629
      %631 = vdwg.mxu0
      %632 = vmatprep.subr.mxu0 %v404
      %633 = vmatpush1.msra.mxu0 %v403
      %634 = vmatprep.subr.mxu0 %v398
      %635 = vmatpush1.msra.mxu0 %v397
      %636 = vmatprep.subr.mxu0 %v392
      %637 = vmatpush1.msra.mxu0 %v391
      %638 = vmatprep.subr.mxu0 %v386
      %639 = vmatpush1.msra.mxu0 %v385
      %640 = vmatprep.subr.mxu0 %v380
      %641 = vmatpush1.msra.mxu0 %v379
      %642 = vmatprep.subr.mxu0 %v374
      %643 = vmatpush1.msra.mxu0 %v373
      %644 = vmatprep.subr.mxu0 %v368
      %645 = vmatpush1.msra.mxu0 %v367
      %646 = vmatprep.subr.mxu0 %v362
      %647 = vmatpush1.msra.mxu0 %v361
      %648 = vmatprep.subr.mxu0 %v356
      %649 = vmatpush1.msra.mxu0 %v355
      %650 = vmatprep.subr.mxu0 %v350
      %651 = vmatpush1.msra.mxu0 %v349
      %652 = vmatprep.subr.mxu0 %v344
      %653 = vmatpush1.msra.mxu0 %v343
      %654 = vmatprep.subr.mxu0 %v338
      %655 = vmatpush1.msra.mxu0 %v337
      %656 = vmatprep.subr.mxu0 %v332
      %657 = vmatpush1.msra.mxu0 %v331
      %658 = vmatprep.subr.mxu0 %v326
      %659 = vmatpush1.msra.mxu0 %v325
      %660 = vmatprep.subr.mxu0 %v320
      %661 = vmatpush1.msra.mxu0 %v319
      %662 = vmatprep.subr.mxu0 %v314
      %663 = vmatpush1.msra.mxu0 %v313
      %664 = vmatprep.subr.mxu0 0.0
      %665 = vmatpush2.msra.mxu0 0.0
      %666 = vmatprep.subr.mxu0 0.0
      %667 = vmatpush2.msra.mxu0 0.0
      %668 = vmatprep.subr.mxu0 0.0
      %669 = vmatpush2.msra.mxu0 0.0
      %670 = vmatprep.subr.mxu0 0.0
      %671 = vmatpush2.msra.mxu0 0.0
      %672 = vmatprep.subr.mxu0 0.0
      %673 = vmatpush2.msra.mxu0 0.0
      %674 = vmatprep.subr.mxu0 0.0
      %675 = vmatpush2.msra.mxu0 0.0
      %676 = vmatprep.subr.mxu0 0.0
      %677 = vmatpush2.msra.mxu0 0.0
      %678 = vmatprep.subr.mxu0 %v458
      %679 = vmatpush2.msra.mxu0 %v457
      %680 = vmatprep.subr.mxu0 %v452
      %681 = vmatpush2.msra.mxu0 %v451
      %682 = vmatprep.subr.mxu0 %v446
      %683 = vmatpush2.msra.mxu0 %v445
      %684 = vmatprep.subr.mxu0 %v440
      %685 = vmatpush2.msra.mxu0 %v439
      %686 = vmatprep.subr.mxu0 %v434
      %687 = vmatpush2.msra.mxu0 %v433
      %688 = vmatprep.subr.mxu0 %v428
      %689 = vmatpush2.msra.mxu0 %v427
      %690 = vmatprep.subr.mxu0 %v422
      %691 = vmatpush2.msra.mxu0 %v421
      %692 = vmatprep.subr.mxu0 %v416
      %693 = vmatpush2.msra.mxu0 %v415
      %694 = vmatprep.subr.mxu0 %v410
      %695 = vmatpush2.msra.mxu0 %v409
      %696 = vmatprep.mubr.f32.mxu0 %v473
      %697 = vmatmul.mubr.f32.gmra.mxu0 %v305
      %v698 = vpop.f32.mrf.mxu0
      %v699 = vadd.f32 %v464, %v698
      %v700 = vpop.f32.mrf.mxu0
      %v701 = vadd.f32 %v464, %v700
      %702 = vmatprep.mubr.f32.mxu0 %v476
      %703 = vmatmul.mubr.f32.gmra.mxu0 %v307
      %v704 = vpop.f32.mrf.mxu0
      %v705 = vadd.f32 %v469, %v704
      %v706 = vpop.f32.mrf.mxu0
      %v707 = vadd.f32 %v469, %v706
      %708 = vdwg.mxu0
      %v709 = vmax.f32 %v545, 0.0
      %v710 = vmax.f32 %v547, 0.0
      %v711 = vmax.f32 %v622, 0.0
      %v712 = vmax.f32 %v624, 0.0
      %v713 = vmax.f32 %v699, 0.0
      %v714 = vmax.f32 %v701, 0.0
      %v715 = vmax.f32 %v551, 0.0
      %v716 = vmax.f32 %v553, 0.0
      %v717 = vmax.f32 %v628, 0.0
      %v718 = vmax.f32 %v630, 0.0
      %v719 = vmax.f32 %v705, 0.0
      %v720 = vmax.f32 %v707, 0.0
      %v721 = vld [vmem:[%s294] sm:$0xff]
      %v722 = vld [vmem:[%s294 + $0x8] sm:$0xff]
      %724 = vset.pattern.permute.xlu0 0
      %725 = vperm.xlu0 %724, %v721
      %v726 = vpop.permute.xlu0 %725
      %729 = vset.pattern.permute.xlu0 0
      %730 = vperm.xlu0 %729, %v722
      %v731 = vpop.permute.xlu0 %730
      %v733 = vmul.f32 %v709, %v726
      %v734 = vmul.f32 %v710, %v726
      %v735 = vmul.f32 %v711, %v726
      %v736 = vmul.f32 %v712, %v726
      %v737 = vmul.f32 %v713, %v726
      %v738 = vmul.f32 %v714, %v726
      %v739 = vmul.f32 %v715, %v731
      %v740 = vmul.f32 %v716, %v731
      %v741 = vmul.f32 %v717, %v731
      %v742 = vmul.f32 %v718, %v731
      %v743 = vmul.f32 %v719, %v731
      %v744 = vmul.f32 %v720, %v731
      %v745 = vld [vmem:[%s299] sm:$0xff]
      %v746 = vld [vmem:[%s299 + $0x8] sm:$0xff]
      %748 = vset.pattern.permute.xlu0 0
      %749 = vperm.xlu0 %748, %v745
      %v750 = vpop.permute.xlu0 %749
      %753 = vset.pattern.permute.xlu0 0
      %754 = vperm.xlu0 %753, %v746
      %v755 = vpop.permute.xlu0 %754
      %v757 = vadd.f32 %v733, %v750
      %v758 = vadd.f32 %v734, %v750
      %v759 = vadd.f32 %v735, %v750
      %v760 = vadd.f32 %v736, %v750
      %v761 = vadd.f32 %v737, %v750
      %v762 = vadd.f32 %v738, %v750
      %v763 = vadd.f32 %v739, %v755
      %v764 = vadd.f32 %v740, %v755
      %v765 = vadd.f32 %v741, %v755
      %v766 = vadd.f32 %v742, %v755
      %v767 = vadd.f32 %v743, %v755
      %v768 = vadd.f32 %v744, %v755
      %769 = vst [vmem:[%s304] sm:$0xff] %v757
      %770 = vst [vmem:[%s304 + $0x8] sm:$0xff] %v758
      %771 = vst [vmem:[%s304 + $0x10] sm:$0xff] %v759
      %772 = vst [vmem:[%s304 + $0x18] sm:$0xff] %v760
      %773 = vst [vmem:[%s304 + $0x20] sm:$0xff] %v761
      %vm774 = vcmask 64512
      %775 = vst.msk [vmem:[%s304 + $0x28] sm:$0xff] %vm774, %v762
      %776 = vst [vmem:[%s304 + $0x30] sm:$0xff] %v763
      %777 = vst [vmem:[%s304 + $0x38] sm:$0xff] %v764
      %778 = vst [vmem:[%s304 + $0x40] sm:$0xff] %v765
      %779 = vst [vmem:[%s304 + $0x48] sm:$0xff] %v766
      %780 = vst [vmem:[%s304 + $0x50] sm:$0xff] %v767
      %781 = vst.msk [vmem:[%s304 + $0x58] sm:$0xff] %vm774, %v768
      %p782 = scmp.lt.s32.totalorder %s16, 1
      %s783 = scalar_select %p782, %s16, 1
      %s784 = smul.addr %s783, 12
      %s785 = smul.addr %s784, 8
      %s786 = scalar_lea.vmem %s5, %s785
      // Predicated region
      $region41: #{siamese_forward.7} parent=39 // pred_check
        %p787 = pneg %p164
      $region42: #{siamese_forward.7} parent=39 // pred_check_branch
        %789 = sbr.rel (%p787) target = $region44
      $region43: #{siamese_forward.7} parent=39 // pred_region
        _
      $region44: #{siamese_forward.7} parent=39 // pred_fallthru
        _
    $region40: #{siamese_forward.7} parent=5 // pred_fallthru
      _
    %p790 = scmp.le.s32.totalorder 2, %s11
    // Predicated region
    $region45: #{siamese_forward.7} parent=5 // pred_check
      %p791 = pneg %p790
    $region46: #{siamese_forward.7} parent=5 // pred_check_branch
      %793 = sbr.rel (%p791) target = $region48
    $region47: #{siamese_forward.7} parent=5 // pred_region
      %s794 = ssub.s32 %s11, 2
      // Predicated region
      $region49: #{siamese_forward.7} parent=47 // pred_check
        %p795 = pneg %p170
      $region50: #{siamese_forward.7} parent=47 // pred_check_branch
        %797 = sbr.rel (%p795) target = $region52
      $region51: #{siamese_forward.7} parent=47 // pred_region
        %p798 = scmp.lt.s32.totalorder %s17, 1
        %s799 = scalar_select %p798, %s17, 1
        %s800 = smul.addr %s799, 12
        %s801 = smul.addr %s800, 8
        %s802 = scalar_lea.vmem %s5, %s801
      $region52: #{siamese_forward.7} parent=47 // pred_fallthru
        _
    $region48: #{siamese_forward.7} parent=5 // pred_fallthru
      _
  $region6: #{siamese_forward.7} parent=0 // loop_footer
    %s15 = sadd.s32 1, %s11
  $region7: #{siamese_forward.7} parent=0 // loop_footer_branch
    %10 = sbr.rel target = $region3
  $region8: #{siamese_forward.7} parent=0 // loop_exit
    _

// kernel: siamese_forward.8
$region0: #{siamese_forward.8}
  #allocation0 [shape = 'u32[]', space=smem, size = 0x4, offset = 0x4, fixed_abs, tag = 'smem constant byte address 0x4 - core index']
  #allocation1 [shape = 'u32[144,128]{1,0:T(1,128)}', space=vmem, size = 0x12000, scoped, tag = 'internal scratch']
  %s0 = inlined_call_operand.vmem [shape: f32[2,32,400], index: 0, kind: input, shape index: {}]
  %s1 = inlined_call_operand.vmem [shape: f32[2,400,512], index: 1, kind: input, shape index: {}]
  %s2 = inlined_call_operand.vmem [shape: f32[2,32,1], index: 2, kind: input, shape index: {}]
  %s3 = inlined_call_operand.vmem [shape: f32[2,32,1], index: 3, kind: input, shape index: {}]
  %s4 = inlined_call_operand.vmem [shape: f32[2,32,1], index: 4, kind: input, shape index: {}]
  %s5 = inlined_call_operand.vmem [shape: f32[2,32,512], index: 5, kind: output, shape index: {}]
  %s6 = sld [smem:[#allocation0]]
  $region53: #{siamese_forward.8} parent=0
    _
  %s8 = ssub.s32 1, %s6
  %s9 = scalar_select 0, %s8, %s6
  loop: start=0, step=1, limit=4
  $region2: #{siamese_forward.8} parent=0 // loop_pre_header
    _
  $region3: #{siamese_forward.8} parent=0 // loop_header
    %s11 = sphi 0, %s15
    %p12 = scmp.ge.s32.totalorder %s11, 4
    %s21 = sphi 0, %s23
    %s24 = sphi 0, %s21
    %s25 = sphi 0, %s24
    %s41 = sphi 0, %s25
    %s47 = sphi 0, %s49
    %s50 = sphi 0, %s47
    %s51 = sphi 0, %s50
    %s67 = sphi 0, %s51
    %s73 = sphi 0, %s75
    %s76 = sphi 0, %s73
    %s77 = sphi 0, %s76
    %s93 = sphi 0, %s77
    %s99 = sphi 0, %s101
    %s102 = sphi 0, %s99
    %s103 = sphi 0, %s102
    %s119 = sphi 0, %s103
    %s125 = sphi 0, %s127
    %s128 = sphi 0, %s125
    %s129 = sphi 0, %s128
    %s145 = sphi 0, %s129
    %s151 = sphi 0, %s153
    %s154 = sphi 0, %s151
    %s155 = sphi 0, %s154
    %s171 = sphi 0, %s155
  $region4: #{siamese_forward.8} parent=0 // loop_header_branch
    %14 = sbr.rel (%p12) target = $region8
  $region5: #{siamese_forward.8} parent=0 // loop_body
    %s16 = ssub.s32 %s11, 1
    %s17 = ssub.s32 %s11, 2
    %s18 = sadd.s32 %s11, 1
    %s19 = ssub.s32 %s11, %s18
    %p20 = scmp.eq.s32.totalorder %s19, 0
    %s22 = sadd.s32 %s21, 1
    %s23 = scalar_select %p20, %s21, %s22
    %p26 = pneg %p20
    %p27 = scmp.eq.s32.totalorder %s11, 1
    %p28 = por %p26, %p27
    %p29 = scmp.ne.s32.totalorder %s21, %s24
    %p30 = scmp.eq.s32.totalorder %s11, 0
    %p31 = por %p29, %p30
    %p32 = scmp.ne.s32.totalorder %s21, %s24
    %p33 = scmp.eq.s32.totalorder %s16, 1
    %p34 = por %p32, %p33
    %p35 = scmp.ne.s32.totalorder %s24, %s25
    %p36 = scmp.eq.s32.totalorder %s16, 0
    %p37 = por %p35, %p36
    %p38 = scmp.ne.s32.totalorder %s24, %s25
    %p39 = scmp.eq.s32.totalorder %s17, 1
    %p40 = por %p38, %p39
    %p42 = scmp.ne.s32.totalorder %s25, %s41
    %p43 = scmp.eq.s32.totalorder %s17, 0
    %p44 = por %p42, %p43
    %s45 = ssub.s32 %s11, %s18
    %p46 = scmp.eq.s32.totalorder %s45, 0
    %s48 = sadd.s32 %s47, 1
    %s49 = scalar_select %p46, %s47, %s48
    %p52 = pneg %p46
    %p53 = scmp.eq.s32.totalorder %s11, 1
    %p54 = por %p52, %p53
    %p55 = scmp.ne.s32.totalorder %s47, %s50
    %p56 = scmp.eq.s32.totalorder %s11, 0
    %p57 = por %p55, %p56
    %p58 = scmp.ne.s32.totalorder %s47, %s50
    %p59 = scmp.eq.s32.totalorder %s16, 1
    %p60 = por %p58, %p59
    %p61 = scmp.ne.s32.totalorder %s50, %s51
    %p62 = scmp.eq.s32.totalorder %s16, 0
    %p63 = por %p61, %p62
    %p64 = scmp.ne.s32.totalorder %s50, %s51
    %p65 = scmp.eq.s32.totalorder %s17, 1
    %p66 = por %p64, %p65
    %p68 = scmp.ne.s32.totalorder %s51, %s67
    %p69 = scmp.eq.s32.totalorder %s17, 0
    %p70 = por %p68, %p69
    %s71 = ssub.s32 %s11, %s18
    %p72 = scmp.eq.s32.totalorder %s71, 0
    %s74 = sadd.s32 %s73, 1
    %s75 = scalar_select %p72, %s73, %s74
    %p78 = pneg %p72
    %p79 = scmp.eq.s32.totalorder %s11, 1
    %p80 = por %p78, %p79
    %p81 = scmp.ne.s32.totalorder %s73, %s76
    %p82 = scmp.eq.s32.totalorder %s11, 0
    %p83 = por %p81, %p82
    %p84 = scmp.ne.s32.totalorder %s73, %s76
    %p85 = scmp.eq.s32.totalorder %s16, 1
    %p86 = por %p84, %p85
    %p87 = scmp.ne.s32.totalorder %s76, %s77
    %p88 = scmp.eq.s32.totalorder %s16, 0
    %p89 = por %p87, %p88
    %p90 = scmp.ne.s32.totalorder %s76, %s77
    %p91 = scmp.eq.s32.totalorder %s17, 1
    %p92 = por %p90, %p91
    %p94 = scmp.ne.s32.totalorder %s77, %s93
    %p95 = scmp.eq.s32.totalorder %s17, 0
    %p96 = por %p94, %p95
    %s97 = ssub.s32 %s11, %s18
    %p98 = scmp.eq.s32.totalorder %s97, 0
    %s100 = sadd.s32 %s99, 1
    %s101 = scalar_select %p98, %s99, %s100
    %p104 = pneg %p98
    %p105 = scmp.eq.s32.totalorder %s11, 1
    %p106 = por %p104, %p105
    %p107 = scmp.ne.s32.totalorder %s99, %s102
    %p108 = scmp.eq.s32.totalorder %s11, 0
    %p109 = por %p107, %p108
    %p110 = scmp.ne.s32.totalorder %s99, %s102
    %p111 = scmp.eq.s32.totalorder %s16, 1
    %p112 = por %p110, %p111
    %p113 = scmp.ne.s32.totalorder %s102, %s103
    %p114 = scmp.eq.s32.totalorder %s16, 0
    %p115 = por %p113, %p114
    %p116 = scmp.ne.s32.totalorder %s102, %s103
    %p117 = scmp.eq.s32.totalorder %s17, 1
    %p118 = por %p116, %p117
    %p120 = scmp.ne.s32.totalorder %s103, %s119
    %p121 = scmp.eq.s32.totalorder %s17, 0
    %p122 = por %p120, %p121
    %s123 = ssub.s32 %s11, %s18
    %p124 = scmp.eq.s32.totalorder %s123, 0
    %s126 = sadd.s32 %s125, 1
    %s127 = scalar_select %p124, %s125, %s126
    %p130 = pneg %p124
    %p131 = scmp.eq.s32.totalorder %s11, 1
    %p132 = por %p130, %p131
    %p133 = scmp.ne.s32.totalorder %s125, %s128
    %p134 = scmp.eq.s32.totalorder %s11, 0
    %p135 = por %p133, %p134
    %p136 = scmp.ne.s32.totalorder %s125, %s128
    %p137 = scmp.eq.s32.totalorder %s16, 1
    %p138 = por %p136, %p137
    %p139 = scmp.ne.s32.totalorder %s128, %s129
    %p140 = scmp.eq.s32.totalorder %s16, 0
    %p141 = por %p139, %p140
    %p142 = scmp.ne.s32.totalorder %s128, %s129
    %p143 = scmp.eq.s32.totalorder %s17, 1
    %p144 = por %p142, %p143
    %p146 = scmp.ne.s32.totalorder %s129, %s145
    %p147 = scmp.eq.s32.totalorder %s17, 0
    %p148 = por %p146, %p147
    %s149 = ssub.s32 %s11, %s18
    %p150 = scmp.eq.s32.totalorder %s149, 0
    %s152 = sadd.s32 %s151, 1
    %s153 = scalar_select %p150, %s151, %s152
    %p156 = pneg %p150
    %p157 = scmp.eq.s32.totalorder %s11, 1
    %p158 = por %p156, %p157
    %p159 = scmp.ne.s32.totalorder %s151, %s154
    %p160 = scmp.eq.s32.totalorder %s11, 0
    %p161 = por %p159, %p160
    %p162 = scmp.ne.s32.totalorder %s151, %s154
    %p163 = scmp.eq.s32.totalorder %s16, 1
    %p164 = por %p162, %p163
    %p165 = scmp.ne.s32.totalorder %s154, %s155
    %p166 = scmp.eq.s32.totalorder %s16, 0
    %p167 = por %p165, %p166
    %p168 = scmp.ne.s32.totalorder %s154, %s155
    %p169 = scmp.eq.s32.totalorder %s17, 1
    %p170 = por %p168, %p169
    %p172 = scmp.ne.s32.totalorder %s155, %s171
    %p173 = scmp.eq.s32.totalorder %s17, 0
    %p174 = por %p172, %p173
    %p175 = scmp.le.s32.totalorder 1, %s11
    %p176 = scmp.lt.s32.totalorder %s11, 3
    %p177 = pnand %p175, %p176
    %p178 = pneg %p177
    // Predicated region
    $region9: #{siamese_forward.8} parent=5 // pred_check
      _
    $region10: #{siamese_forward.8} parent=5 // pred_check_branch
      %180 = sbr.rel (%p177) target = $region12
    $region11: #{siamese_forward.8} parent=5 // pred_region
      %s181 = ssub.s32 %s11, 1
    $region12: #{siamese_forward.8} parent=5 // pred_fallthru
      _
    %p182 = scmp.lt.s32.totalorder %s11, 2
    // Predicated region
    $region13: #{siamese_forward.8} parent=5 // pred_check
      %p183 = pneg %p182
    $region14: #{siamese_forward.8} parent=5 // pred_check_branch
      %185 = sbr.rel (%p183) target = $region16
    $region15: #{siamese_forward.8} parent=5 // pred_region
      // Predicated region
      $region17: #{siamese_forward.8} parent=15 // pred_check
        %p186 = pneg %p31
      $region18: #{siamese_forward.8} parent=15 // pred_check_branch
        %188 = sbr.rel (%p186) target = $region20
      $region19: #{siamese_forward.8} parent=15 // pred_region
        %p189 = scmp.lt.s32.totalorder %s11, 1
        %s190 = scalar_select %p189, %s11, 1
        %s191 = smul.addr %s190, 16
        %s192 = smul.addr %s191, 8
        %s193 = scalar_lea.vmem %s0, %s192
      $region20: #{siamese_forward.8} parent=15 // pred_fallthru
        _
      // Predicated region
      $region21: #{siamese_forward.8} parent=15 // pred_check
        %p194 = pneg %p57
      $region22: #{siamese_forward.8} parent=15 // pred_check_branch
        %196 = sbr.rel (%p194) target = $region24
      $region23: #{siamese_forward.8} parent=15 // pred_region
        %p197 = scmp.lt.s32.totalorder %s11, 1
        %s198 = scalar_select %p197, %s11, 1
        %s199 = smul.addr %s198, 200
        %s200 = smul.addr %s199, 8
        %s201 = scalar_lea.vmem %s1, %s200
      $region24: #{siamese_forward.8} parent=15 // pred_fallthru
        _
      // Predicated region
      $region25: #{siamese_forward.8} parent=15 // pred_check
        %p202 = pneg %p83
      $region26: #{siamese_forward.8} parent=15 // pred_check_branch
        %204 = sbr.rel (%p202) target = $region28
      $region27: #{siamese_forward.8} parent=15 // pred_region
        %p205 = scmp.lt.s32.totalorder %s11, 1
        %s206 = scalar_select %p205, %s11, 1
        %s207 = smul.addr %s206, 4
        %s208 = smul.addr %s207, 8
        %s209 = scalar_lea.vmem %s2, %s208
      $region28: #{siamese_forward.8} parent=15 // pred_fallthru
        _
      // Predicated region
      $region29: #{siamese_forward.8} parent=15 // pred_check
        %p210 = pneg %p109
      $region30: #{siamese_forward.8} parent=15 // pred_check_branch
        %212 = sbr.rel (%p210) target = $region32
      $region31: #{siamese_forward.8} parent=15 // pred_region
        %p213 = scmp.lt.s32.totalorder %s11, 1
        %s214 = scalar_select %p213, %s11, 1
        %s215 = smul.addr %s214, 4
        %s216 = smul.addr %s215, 8
        %s217 = scalar_lea.vmem %s3, %s216
      $region32: #{siamese_forward.8} parent=15 // pred_fallthru
        _
      // Predicated region
      $region33: #{siamese_forward.8} parent=15 // pred_check
        %p218 = pneg %p135
      $region34: #{siamese_forward.8} parent=15 // pred_check_branch
        %220 = sbr.rel (%p218) target = $region36
      $region35: #{siamese_forward.8} parent=15 // pred_region
        %p221 = scmp.lt.s32.totalorder %s11, 1
        %s222 = scalar_select %p221, %s11, 1
        %s223 = smul.addr %s222, 4
        %s224 = smul.addr %s223, 8
        %s225 = scalar_lea.vmem %s4, %s224
      $region36: #{siamese_forward.8} parent=15 // pred_fallthru
        _
    $region16: #{siamese_forward.8} parent=5 // pred_fallthru
      _
    %p226 = scmp.le.s32.totalorder 1, %s11
    %p227 = scmp.lt.s32.totalorder %s11, 3
    %p228 = pnand %p226, %p227
    %p229 = pneg %p228
    // Predicated region
    $region37: #{siamese_forward.8} parent=5 // pred_check
      _
    $region38: #{siamese_forward.8} parent=5 // pred_check_branch
      %231 = sbr.rel (%p228) target = $region40
    $region39: #{siamese_forward.8} parent=5 // pred_region
      %s232 = ssub.s32 %s11, 1
      %p233 = scmp.lt.s32.totalorder %s16, 1
      %s234 = scalar_select %p233, %s16, 1
      %s235 = smul.addr %s234, 16
      %s236 = smul.addr %s235, 8
      %s237 = scalar_lea.vmem %s0, %s236
      %p238 = pneg %p37
      %p239 = pneg %p34
      %p240 = scmp.lt.s32.totalorder %s16, 1
      %s241 = scalar_select %p240, %s16, 1
      %s242 = smul.addr %s241, 200
      %s243 = smul.addr %s242, 8
      %s244 = scalar_lea.vmem %s1, %s243
      %p245 = pneg %p63
      %p246 = pneg %p60
      %p247 = scmp.lt.s32.totalorder %s16, 1
      %s248 = scalar_select %p247, %s16, 1
      %s249 = smul.addr %s248, 4
      %s250 = smul.addr %s249, 8
      %s251 = scalar_lea.vmem %s2, %s250
      %p252 = pneg %p89
      %p253 = pneg %p86
      %p254 = scmp.lt.s32.totalorder %s16, 1
      %s255 = scalar_select %p254, %s16, 1
      %s256 = smul.addr %s255, 4
      %s257 = smul.addr %s256, 8
      %s258 = scalar_lea.vmem %s3, %s257
      %p259 = pneg %p115
      %p260 = pneg %p112
      %p261 = scmp.lt.s32.totalorder %s16, 1
      %s262 = scalar_select %p261, %s16, 1
      %s263 = smul.addr %s262, 4
      %s264 = smul.addr %s263, 8
      %s265 = scalar_lea.vmem %s4, %s264
      %p266 = pneg %p141
      %p267 = pneg %p138
      %p268 = pneg %p167
      %p269 = pneg %p164
      %p270 = scmp.lt.s32.totalorder %s16, 1
      %s271 = scalar_select %p270, %s16, 1
      %s272 = smul.addr %s271, 16
      %s273 = smul.addr %s272, 8
      %s274 = scalar_lea.vmem %s5, %s273
      %p275 = scmp.lt.s32.totalorder %s16, 1
      %s276 = scalar_select %p275, %s16, 1
      %s277 = smul.addr %s276, 16
      %s278 = smul.addr %s277, 8
      %s279 = scalar_lea.vmem %s0, %s278
      %p280 = scmp.lt.s32.totalorder %s16, 1
      %s281 = scalar_select %p280, %s16, 1
      %s282 = smul.addr %s281, 200
      %s283 = smul.addr %s282, 8
      %s284 = scalar_lea.vmem %s1, %s283
      %p285 = scmp.lt.s32.totalorder %s16, 1
      %s286 = scalar_select %p285, %s16, 1
      %s287 = smul.addr %s286, 4
      %s288 = smul.addr %s287, 8
      %s289 = scalar_lea.vmem %s2, %s288
      %p290 = scmp.lt.s32.totalorder %s16, 1
      %s291 = scalar_select %p290, %s16, 1
      %s292 = smul.addr %s291, 4
      %s293 = smul.addr %s292, 8
      %s294 = scalar_lea.vmem %s3, %s293
      %p295 = scmp.lt.s32.totalorder %s16, 1
      %s296 = scalar_select %p295, %s16, 1
      %s297 = smul.addr %s296, 4
      %s298 = smul.addr %s297, 8
      %s299 = scalar_lea.vmem %s4, %s298
      %p300 = scmp.lt.s32.totalorder %s16, 1
      %s301 = scalar_select %p300, %s16, 1
      %s302 = smul.addr %s301, 16
      %s303 = smul.addr %s302, 8
      %s304 = scalar_lea.vmem %s5, %s303
      %v305 = vld [vmem:[%s279] sm:$0xff]
      %v306 = vld [vmem:[%s279 + $0x8] sm:$0xff]
      %v307 = vld [vmem:[%s279 + $0x10] sm:$0xff]
      %v308 = vld [vmem:[%s279 + $0x18] sm:$0xff]
      %v309 = vld [vmem:[%s279 + $0x20] sm:$0xff]
      %v310 = vld [vmem:[%s279 + $0x28] sm:$0xff]
      %v311 = vld [vmem:[%s279 + $0x30] sm:$0xff]
      %v312 = vld [vmem:[%s279 + $0x38] sm:$0xff]
      %v313 = vld [vmem:[%s279 + $0x40] sm:$0xff]
      %v314 = vld [vmem:[%s279 + $0x48] sm:$0xff]
      %v315 = vld [vmem:[%s279 + $0x50] sm:$0xff]
      %v316 = vld [vmem:[%s279 + $0x58] sm:$0xff]
      %v317 = vld [vmem:[%s279 + $0x60] sm:$0xff]
      %v318 = vld [vmem:[%s279 + $0x68] sm:$0xff]
      %v319 = vld [vmem:[%s279 + $0x70] sm:$0xff]
      %v320 = vld [vmem:[%s279 + $0x78] sm:$0xff]
      %v321 = vld [vmem:[%s284] sm:$0xff]
      %v322 = vld [vmem:[%s284 + $0x8] sm:$0xff]
      %v323 = vld [vmem:[%s284 + $0x10] sm:$0xff]
      %v324 = vld [vmem:[%s284 + $0x18] sm:$0xff]
      %v325 = vld [vmem:[%s284 + $0x20] sm:$0xff]
      %v326 = vld [vmem:[%s284 + $0x28] sm:$0xff]
      %v327 = vld [vmem:[%s284 + $0x30] sm:$0xff]
      %v328 = vld [vmem:[%s284 + $0x38] sm:$0xff]
      %v329 = vld [vmem:[%s284 + $0x40] sm:$0xff]
      %v330 = vld [vmem:[%s284 + $0x48] sm:$0xff]
      %v331 = vld [vmem:[%s284 + $0x50] sm:$0xff]
      %v332 = vld [vmem:[%s284 + $0x58] sm:$0xff]
      %v333 = vld [vmem:[%s284 + $0x60] sm:$0xff]
      %v334 = vld [vmem:[%s284 + $0x68] sm:$0xff]
      %v335 = vld [vmem:[%s284 + $0x70] sm:$0xff]
      %v336 = vld [vmem:[%s284 + $0x78] sm:$0xff]
      %v337 = vld [vmem:[%s284 + $0x80] sm:$0xff]
      %v338 = vld [vmem:[%s284 + $0x88] sm:$0xff]
      %v339 = vld [vmem:[%s284 + $0x90] sm:$0xff]
      %v340 = vld [vmem:[%s284 + $0x98] sm:$0xff]
      %v341 = vld [vmem:[%s284 + $0xa0] sm:$0xff]
      %v342 = vld [vmem:[%s284 + $0xa8] sm:$0xff]
      %v343 = vld [vmem:[%s284 + $0xb0] sm:$0xff]
      %v344 = vld [vmem:[%s284 + $0xb8] sm:$0xff]
      %v345 = vld [vmem:[%s284 + $0xc0] sm:$0xff]
      %v346 = vld [vmem:[%s284 + $0xc8] sm:$0xff]
      %v347 = vld [vmem:[%s284 + $0xd0] sm:$0xff]
      %v348 = vld [vmem:[%s284 + $0xd8] sm:$0xff]
      %v349 = vld [vmem:[%s284 + $0xe0] sm:$0xff]
      %v350 = vld [vmem:[%s284 + $0xe8] sm:$0xff]
      %v351 = vld [vmem:[%s284 + $0xf0] sm:$0xff]
      %v352 = vld [vmem:[%s284 + $0xf8] sm:$0xff]
      %v353 = vld [vmem:[%s284 + $0x100] sm:$0xff]
      %v354 = vld [vmem:[%s284 + $0x108] sm:$0xff]
      %v355 = vld [vmem:[%s284 + $0x110] sm:$0xff]
      %v356 = vld [vmem:[%s284 + $0x118] sm:$0xff]
      %v357 = vld [vmem:[%s284 + $0x120] sm:$0xff]
      %v358 = vld [vmem:[%s284 + $0x128] sm:$0xff]
      %v359 = vld [vmem:[%s284 + $0x130] sm:$0xff]
      %v360 = vld [vmem:[%s284 + $0x138] sm:$0xff]
      %v361 = vld [vmem:[%s284 + $0x140] sm:$0xff]
      %v362 = vld [vmem:[%s284 + $0x148] sm:$0xff]
      %v363 = vld [vmem:[%s284 + $0x150] sm:$0xff]
      %v364 = vld [vmem:[%s284 + $0x158] sm:$0xff]
      %v365 = vld [vmem:[%s284 + $0x160] sm:$0xff]
      %v366 = vld [vmem:[%s284 + $0x168] sm:$0xff]
      %v367 = vld [vmem:[%s284 + $0x170] sm:$0xff]
      %v368 = vld [vmem:[%s284 + $0x178] sm:$0xff]
      %v369 = vld [vmem:[%s284 + $0x180] sm:$0xff]
      %v370 = vld [vmem:[%s284 + $0x188] sm:$0xff]
      %v371 = vld [vmem:[%s284 + $0x190] sm:$0xff]
      %v372 = vld [vmem:[%s284 + $0x198] sm:$0xff]
      %v373 = vld [vmem:[%s284 + $0x1a0] sm:$0xff]
      %v374 = vld [vmem:[%s284 + $0x1a8] sm:$0xff]
      %v375 = vld [vmem:[%s284 + $0x1b0] sm:$0xff]
      %v376 = vld [vmem:[%s284 + $0x1b8] sm:$0xff]
      %v377 = vld [vmem:[%s284 + $0x1c0] sm:$0xff]
      %v378 = vld [vmem:[%s284 + $0x1c8] sm:$0xff]
      %v379 = vld [vmem:[%s284 + $0x1d0] sm:$0xff]
      %v380 = vld [vmem:[%s284 + $0x1d8] sm:$0xff]
      %v381 = vld [vmem:[%s284 + $0x1e0] sm:$0xff]
      %v382 = vld [vmem:[%s284 + $0x1e8] sm:$0xff]
      %v383 = vld [vmem:[%s284 + $0x1f0] sm:$0xff]
      %v384 = vld [vmem:[%s284 + $0x1f8] sm:$0xff]
      %v385 = vld [vmem:[%s284 + $0x200] sm:$0xff]
      %v386 = vld [vmem:[%s284 + $0x208] sm:$0xff]
      %v387 = vld [vmem:[%s284 + $0x210] sm:$0xff]
      %v388 = vld [vmem:[%s284 + $0x218] sm:$0xff]
      %v389 = vld [vmem:[%s284 + $0x220] sm:$0xff]
      %v390 = vld [vmem:[%s284 + $0x228] sm:$0xff]
      %v391 = vld [vmem:[%s284 + $0x230] sm:$0xff]
      %v392 = vld [vmem:[%s284 + $0x238] sm:$0xff]
      %v393 = vld [vmem:[%s284 + $0x240] sm:$0xff]
      %v394 = vld [vmem:[%s284 + $0x248] sm:$0xff]
      %v395 = vld [vmem:[%s284 + $0x250] sm:$0xff]
      %v396 = vld [vmem:[%s284 + $0x258] sm:$0xff]
      %v397 = vld [vmem:[%s284 + $0x260] sm:$0xff]
      %v398 = vld [vmem:[%s284 + $0x268] sm:$0xff]
      %v399 = vld [vmem:[%s284 + $0x270] sm:$0xff]
      %v400 = vld [vmem:[%s284 + $0x278] sm:$0xff]
      %v401 = vld [vmem:[%s284 + $0x280] sm:$0xff]
      %v402 = vld [vmem:[%s284 + $0x288] sm:$0xff]
      %v403 = vld [vmem:[%s284 + $0x290] sm:$0xff]
      %v404 = vld [vmem:[%s284 + $0x298] sm:$0xff]
      %v405 = vld [vmem:[%s284 + $0x2a0] sm:$0xff]
      %v406 = vld [vmem:[%s284 + $0x2a8] sm:$0xff]
      %v407 = vld [vmem:[%s284 + $0x2b0] sm:$0xff]
      %v408 = vld [vmem:[%s284 + $0x2b8] sm:$0xff]
      %v409 = vld [vmem:[%s284 + $0x2c0] sm:$0xff]
      %v410 = vld [vmem:[%s284 + $0x2c8] sm:$0xff]
      %v411 = vld [vmem:[%s284 + $0x2d0] sm:$0xff]
      %v412 = vld [vmem:[%s284 + $0x2d8] sm:$0xff]
      %v413 = vld [vmem:[%s284 + $0x2e0] sm:$0xff]
      %v414 = vld [vmem:[%s284 + $0x2e8] sm:$0xff]
      %v415 = vld [vmem:[%s284 + $0x2f0] sm:$0xff]
      %v416 = vld [vmem:[%s284 + $0x2f8] sm:$0xff]
      %v417 = vld [vmem:[%s284 + $0x300] sm:$0xff]
      %v418 = vld [vmem:[%s284 + $0x308] sm:$0xff]
      %v419 = vld [vmem:[%s284 + $0x310] sm:$0xff]
      %v420 = vld [vmem:[%s284 + $0x318] sm:$0xff]
      %v421 = vld [vmem:[%s284 + $0x320] sm:$0xff]
      %v422 = vld [vmem:[%s284 + $0x328] sm:$0xff]
      %v423 = vld [vmem:[%s284 + $0x330] sm:$0xff]
      %v424 = vld [vmem:[%s284 + $0x338] sm:$0xff]
      %v425 = vld [vmem:[%s284 + $0x340] sm:$0xff]
      %v426 = vld [vmem:[%s284 + $0x348] sm:$0xff]
      %v427 = vld [vmem:[%s284 + $0x350] sm:$0xff]
      %v428 = vld [vmem:[%s284 + $0x358] sm:$0xff]
      %v429 = vld [vmem:[%s284 + $0x360] sm:$0xff]
      %v430 = vld [vmem:[%s284 + $0x368] sm:$0xff]
      %v431 = vld [vmem:[%s284 + $0x370] sm:$0xff]
      %v432 = vld [vmem:[%s284 + $0x378] sm:$0xff]
      %v433 = vld [vmem:[%s284 + $0x380] sm:$0xff]
      %v434 = vld [vmem:[%s284 + $0x388] sm:$0xff]
      %v435 = vld [vmem:[%s284 + $0x390] sm:$0xff]
      %v436 = vld [vmem:[%s284 + $0x398] sm:$0xff]
      %v437 = vld [vmem:[%s284 + $0x3a0] sm:$0xff]
      %v438 = vld [vmem:[%s284 + $0x3a8] sm:$0xff]
      %v439 = vld [vmem:[%s284 + $0x3b0] sm:$0xff]
      %v440 = vld [vmem:[%s284 + $0x3b8] sm:$0xff]
      %v441 = vld [vmem:[%s284 + $0x3c0] sm:$0xff]
      %v442 = vld [vmem:[%s284 + $0x3c8] sm:$0xff]
      %v443 = vld [vmem:[%s284 + $0x3d0] sm:$0xff]
      %v444 = vld [vmem:[%s284 + $0x3d8] sm:$0xff]
      %v445 = vld [vmem:[%s284 + $0x3e0] sm:$0xff]
      %v446 = vld [vmem:[%s284 + $0x3e8] sm:$0xff]
      %v447 = vld [vmem:[%s284 + $0x3f0] sm:$0xff]
      %v448 = vld [vmem:[%s284 + $0x3f8] sm:$0xff]
      %v449 = vld [vmem:[%s284 + $0x400] sm:$0xff]
      %v450 = vld [vmem:[%s284 + $0x408] sm:$0xff]
      %v451 = vld [vmem:[%s284 + $0x410] sm:$0xff]
      %v452 = vld [vmem:[%s284 + $0x418] sm:$0xff]
      %v453 = vld [vmem:[%s284 + $0x420] sm:$0xff]
      %v454 = vld [vmem:[%s284 + $0x428] sm:$0xff]
      %v455 = vld [vmem:[%s284 + $0x430] sm:$0xff]
      %v456 = vld [vmem:[%s284 + $0x438] sm:$0xff]
      %v457 = vld [vmem:[%s284 + $0x440] sm:$0xff]
      %v458 = vld [vmem:[%s284 + $0x448] sm:$0xff]
      %v459 = vld [vmem:[%s284 + $0x450] sm:$0xff]
      %v460 = vld [vmem:[%s284 + $0x458] sm:$0xff]
      %v461 = vld [vmem:[%s284 + $0x460] sm:$0xff]
      %v462 = vld [vmem:[%s284 + $0x468] sm:$0xff]
      %v463 = vld [vmem:[%s284 + $0x470] sm:$0xff]
      %v464 = vld [vmem:[%s284 + $0x478] sm:$0xff]
      %v465 = vld [vmem:[%s284 + $0x480] sm:$0xff]
      %v466 = vld [vmem:[%s284 + $0x488] sm:$0xff]
      %v467 = vld [vmem:[%s284 + $0x490] sm:$0xff]
      %v468 = vld [vmem:[%s284 + $0x498] sm:$0xff]
      %v469 = vld [vmem:[%s284 + $0x4a0] sm:$0xff]
      %v470 = vld [vmem:[%s284 + $0x4a8] sm:$0xff]
      %v471 = vld [vmem:[%s284 + $0x4b0] sm:$0xff]
      %v472 = vld [vmem:[%s284 + $0x4b8] sm:$0xff]
      %v473 = vld [vmem:[%s284 + $0x4c0] sm:$0xff]
      %v474 = vld [vmem:[%s284 + $0x4c8] sm:$0xff]
      %v475 = vld [vmem:[%s284 + $0x4d0] sm:$0xff]
      %v476 = vld [vmem:[%s284 + $0x4d8] sm:$0xff]
      %v477 = vld [vmem:[%s284 + $0x4e0] sm:$0xff]
      %v478 = vld [vmem:[%s284 + $0x4e8] sm:$0xff]
      %v479 = vld [vmem:[%s284 + $0x4f0] sm:$0xff]
      %v480 = vld [vmem:[%s284 + $0x4f8] sm:$0xff]
      %v481 = vld [vmem:[%s284 + $0x500] sm:$0xff]
      %v482 = vld [vmem:[%s284 + $0x508] sm:$0xff]
      %v483 = vld [vmem:[%s284 + $0x510] sm:$0xff]
      %v484 = vld [vmem:[%s284 + $0x518] sm:$0xff]
      %v485 = vld [vmem:[%s284 + $0x520] sm:$0xff]
      %v486 = vld [vmem:[%s284 + $0x528] sm:$0xff]
      %v487 = vld [vmem:[%s284 + $0x530] sm:$0xff]
      %v488 = vld [vmem:[%s284 + $0x538] sm:$0xff]
      %v489 = vld [vmem:[%s284 + $0x540] sm:$0xff]
      %v490 = vld [vmem:[%s284 + $0x548] sm:$0xff]
      %v491 = vld [vmem:[%s284 + $0x550] sm:$0xff]
      %v492 = vld [vmem:[%s284 + $0x558] sm:$0xff]
      %v493 = vld [vmem:[%s284 + $0x560] sm:$0xff]
      %v494 = vld [vmem:[%s284 + $0x568] sm:$0xff]
      %v495 = vld [vmem:[%s284 + $0x570] sm:$0xff]
      %v496 = vld [vmem:[%s284 + $0x578] sm:$0xff]
      %v497 = vld [vmem:[%s284 + $0x580] sm:$0xff]
      %v498 = vld [vmem:[%s284 + $0x588] sm:$0xff]
      %v499 = vld [vmem:[%s284 + $0x590] sm:$0xff]
      %v500 = vld [vmem:[%s284 + $0x598] sm:$0xff]
      %v501 = vld [vmem:[%s284 + $0x5a0] sm:$0xff]
      %v502 = vld [vmem:[%s284 + $0x5a8] sm:$0xff]
      %v503 = vld [vmem:[%s284 + $0x5b0] sm:$0xff]
      %v504 = vld [vmem:[%s284 + $0x5b8] sm:$0xff]
      %v505 = vld [vmem:[%s284 + $0x5c0] sm:$0xff]
      %v506 = vld [vmem:[%s284 + $0x5c8] sm:$0xff]
      %v507 = vld [vmem:[%s284 + $0x5d0] sm:$0xff]
      %v508 = vld [vmem:[%s284 + $0x5d8] sm:$0xff]
      %v509 = vld [vmem:[%s284 + $0x5e0] sm:$0xff]
      %v510 = vld [vmem:[%s284 + $0x5e8] sm:$0xff]
      %v511 = vld [vmem:[%s284 + $0x5f0] sm:$0xff]
      %v512 = vld [vmem:[%s284 + $0x5f8] sm:$0xff]
      %v513 = vld [vmem:[%s284 + $0x600] sm:$0xff]
      %v514 = vld [vmem:[%s284 + $0x608] sm:$0xff]
      %v515 = vld [vmem:[%s284 + $0x610] sm:$0xff]
      %v516 = vld [vmem:[%s284 + $0x618] sm:$0xff]
      %v517 = vld [vmem:[%s284 + $0x620] sm:$0xff]
      %v518 = vld [vmem:[%s284 + $0x628] sm:$0xff]
      %v519 = vld [vmem:[%s284 + $0x630] sm:$0xff]
      %v520 = vld [vmem:[%s284 + $0x638] sm:$0xff]
      %v521 = vld [vmem:[%s289] sm:$0xff]
      %v522 = vld [vmem:[%s289 + $0x8] sm:$0xff]
      %v523 = vld [vmem:[%s289 + $0x10] sm:$0xff]
      %v524 = vld [vmem:[%s289 + $0x18] sm:$0xff]
      %526 = vset.pattern.permute.xlu0 0
      %527 = vperm.xlu0 %526, %v521
      %v528 = vpop.permute.xlu0 %527
      %531 = vset.pattern.permute.xlu0 0
      %532 = vperm.xlu0 %531, %v522
      %v533 = vpop.permute.xlu0 %532
      %536 = vset.pattern.permute.xlu0 0
      %537 = vperm.xlu0 %536, %v523
      %v538 = vpop.permute.xlu0 %537
      %541 = vset.pattern.permute.xlu0 0
      %542 = vperm.xlu0 %541, %v524
      %v543 = vpop.permute.xlu0 %542
      %vm545 = vcmask 130048
      %v547 = vsel %vm545, %v308, 0
      %v550 = vsel %vm545, %v312, 0
      %v553 = vsel %vm545, %v316, 0
      %v556 = vsel %vm545, %v320, 0
      %558 = vmatprep.subr.mxu0 %v382
      %559 = vmatpush1.msra.mxu0 %v381
      %560 = vmatprep.subr.mxu0 %v378
      %561 = vmatpush1.msra.mxu0 %v377
      %562 = vmatprep.subr.mxu0 %v374
      %563 = vmatpush1.msra.mxu0 %v373
      %564 = vmatprep.subr.mxu0 %v370
      %565 = vmatpush1.msra.mxu0 %v369
      %566 = vmatprep.subr.mxu0 %v366
      %567 = vmatpush1.msra.mxu0 %v365
      %568 = vmatprep.subr.mxu0 %v362
      %569 = vmatpush1.msra.mxu0 %v361
      %570 = vmatprep.subr.mxu0 %v358
      %571 = vmatpush1.msra.mxu0 %v357
      %572 = vmatprep.subr.mxu0 %v354
      %573 = vmatpush1.msra.mxu0 %v353
      %574 = vmatprep.subr.mxu0 %v350
      %575 = vmatpush1.msra.mxu0 %v349
      %576 = vmatprep.subr.mxu0 %v346
      %577 = vmatpush1.msra.mxu0 %v345
      %578 = vmatprep.subr.mxu0 %v342
      %579 = vmatpush1.msra.mxu0 %v341
      %580 = vmatprep.subr.mxu0 %v338
      %581 = vmatpush1.msra.mxu0 %v337
      %582 = vmatprep.subr.mxu0 %v334
      %583 = vmatpush1.msra.mxu0 %v333
      %584 = vmatprep.subr.mxu0 %v330
      %585 = vmatpush1.msra.mxu0 %v329
      %586 = vmatprep.subr.mxu0 %v326
      %587 = vmatpush1.msra.mxu0 %v325
      %588 = vmatprep.subr.mxu0 %v322
      %589 = vmatpush1.msra.mxu0 %v321
      %590 = vmatprep.subr.mxu0 %v446
      %591 = vmatpush2.msra.mxu0 %v445
      %592 = vmatprep.subr.mxu0 %v442
      %593 = vmatpush2.msra.mxu0 %v441
      %594 = vmatprep.subr.mxu0 %v438
      %595 = vmatpush2.msra.mxu0 %v437
      %596 = vmatprep.subr.mxu0 %v434
      %597 = vmatpush2.msra.mxu0 %v433
      %598 = vmatprep.subr.mxu0 %v430
      %599 = vmatpush2.msra.mxu0 %v429
      %600 = vmatprep.subr.mxu0 %v426
      %601 = vmatpush2.msra.mxu0 %v425
      %602 = vmatprep.subr.mxu0 %v422
      %603 = vmatpush2.msra.mxu0 %v421
      %604 = vmatprep.subr.mxu0 %v418
      %605 = vmatpush2.msra.mxu0 %v417
      %606 = vmatprep.subr.mxu0 %v414
      %607 = vmatpush2.msra.mxu0 %v413
      %608 = vmatprep.subr.mxu0 %v410
      %609 = vmatpush2.msra.mxu0 %v409
      %610 = vmatprep.subr.mxu0 %v406
      %611 = vmatpush2.msra.mxu0 %v405
      %612 = vmatprep.subr.mxu0 %v402
      %613 = vmatpush2.msra.mxu0 %v401
      %614 = vmatprep.subr.mxu0 %v398
      %615 = vmatpush2.msra.mxu0 %v397
      %616 = vmatprep.subr.mxu0 %v394
      %617 = vmatpush2.msra.mxu0 %v393
      %618 = vmatprep.subr.mxu0 %v390
      %619 = vmatpush2.msra.mxu0 %v389
      %620 = vmatprep.subr.mxu0 %v386
      %621 = vmatpush2.msra.mxu0 %v385
      %622 = vmatprep.mubr.f32.mxu0 %v306
      %623 = vmatmul.mubr.f32.gmra.mxu0 %v305
      %v624 = vpop.f32.mrf.mxu0
      %v625 = vadd.f32 %v528, %v624
      %v626 = vpop.f32.mrf.mxu0
      %v627 = vadd.f32 %v528, %v626
      %628 = vmatprep.mubr.f32.mxu0 %v310
      %629 = vmatmul.mubr.f32.gmra.mxu0 %v309
      %v630 = vpop.f32.mrf.mxu0
      %v631 = vadd.f32 %v533, %v630
      %v632 = vpop.f32.mrf.mxu0
      %v633 = vadd.f32 %v533, %v632
      %634 = vmatprep.mubr.f32.mxu0 %v314
      %635 = vmatmul.mubr.f32.gmra.mxu0 %v313
      %v636 = vpop.f32.mrf.mxu0
      %v637 = vadd.f32 %v538, %v636
      %v638 = vpop.f32.mrf.mxu0
      %v639 = vadd.f32 %v538, %v638
      %640 = vmatprep.mubr.f32.mxu0 %v318
      %641 = vmatmul.mubr.f32.gmra.mxu0 %v317
      %v642 = vpop.f32.mrf.mxu0
      %v643 = vadd.f32 %v543, %v642
      %v644 = vpop.f32.mrf.mxu0
      %v645 = vadd.f32 %v543, %v644
      %646 = vdwg.mxu0
      %647 = vmatprep.subr.mxu0 %v510
      %648 = vmatpush1.msra.mxu0 %v509
      %649 = vmatprep.subr.mxu0 %v506
      %650 = vmatpush1.msra.mxu0 %v505
      %651 = vmatprep.subr.mxu0 %v502
      %652 = vmatpush1.msra.mxu0 %v501
      %653 = vmatprep.subr.mxu0 %v498
      %654 = vmatpush1.msra.mxu0 %v497
      %655 = vmatprep.subr.mxu0 %v494
      %656 = vmatpush1.msra.mxu0 %v493
      %657 = vmatprep.subr.mxu0 %v490
      %658 = vmatpush1.msra.mxu0 %v489
      %659 = vmatprep.subr.mxu0 %v486
      %660 = vmatpush1.msra.mxu0 %v485
      %661 = vmatprep.subr.mxu0 %v482
      %662 = vmatpush1.msra.mxu0 %v481
      %663 = vmatprep.subr.mxu0 %v478
      %664 = vmatpush1.msra.mxu0 %v477
      %665 = vmatprep.subr.mxu0 %v474
      %666 = vmatpush1.msra.mxu0 %v473
      %667 = vmatprep.subr.mxu0 %v470
      %668 = vmatpush1.msra.mxu0 %v469
      %669 = vmatprep.subr.mxu0 %v466
      %670 = vmatpush1.msra.mxu0 %v465
      %671 = vmatprep.subr.mxu0 %v462
      %672 = vmatpush1.msra.mxu0 %v461
      %673 = vmatprep.subr.mxu0 %v458
      %674 = vmatpush1.msra.mxu0 %v457
      %675 = vmatprep.subr.mxu0 %v454
      %676 = vmatpush1.msra.mxu0 %v453
      %677 = vmatprep.subr.mxu0 %v450
      %678 = vmatpush1.msra.mxu0 %v449
      %679 = vmatprep.subr.mxu0 0.0
      %680 = vmatpush2.msra.mxu0 0.0
      %681 = vmatprep.subr.mxu0 0.0
      %682 = vmatpush2.msra.mxu0 0.0
      %683 = vmatprep.subr.mxu0 0.0
      %684 = vmatpush2.msra.mxu0 0.0
      %685 = vmatprep.subr.mxu0 0.0
      %686 = vmatpush2.msra.mxu0 0.0
      %687 = vmatprep.subr.mxu0 0.0
      %688 = vmatpush2.msra.mxu0 0.0
      %689 = vmatprep.subr.mxu0 0.0
      %690 = vmatpush2.msra.mxu0 0.0
      %691 = vmatprep.subr.mxu0 0.0
      %692 = vmatpush2.msra.mxu0 0.0
      %693 = vmatprep.subr.mxu0 0.0
      %694 = vmatpush2.msra.mxu0 0.0
      %695 = vmatprep.subr.mxu0 0.0
      %696 = vmatpush2.msra.mxu0 0.0
      %697 = vmatprep.subr.mxu0 0.0
      %698 = vmatpush2.msra.mxu0 0.0
      %699 = vmatprep.subr.mxu0 0.0
      %700 = vmatpush2.msra.mxu0 0.0
      %701 = vmatprep.subr.mxu0 0.0
      %702 = vmatpush2.msra.mxu0 0.0
      %703 = vmatprep.subr.mxu0 0.0
      %704 = vmatpush2.msra.mxu0 0.0
      %705 = vmatprep.subr.mxu0 0.0
      %706 = vmatpush2.msra.mxu0 0.0
      %707 = vmatprep.subr.mxu0 %v518
      %708 = vmatpush2.msra.mxu0 %v517
      %709 = vmatprep.subr.mxu0 %v514
      %710 = vmatpush2.msra.mxu0 %v513
      %711 = vmatprep.mubr.f32.mxu0 %v547
      %712 = vmatmul.mubr.f32.gmra.mxu0 %v307
      %v713 = vpop.f32.mrf.mxu0
      %v714 = vadd.f32 %v625, %v713
      %v715 = vpop.f32.mrf.mxu0
      %v716 = vadd.f32 %v627, %v715
      %717 = vmatprep.mubr.f32.mxu0 %v550
      %718 = vmatmul.mubr.f32.gmra.mxu0 %v311
      %v719 = vpop.f32.mrf.mxu0
      %v720 = vadd.f32 %v631, %v719
      %v721 = vpop.f32.mrf.mxu0
      %v722 = vadd.f32 %v633, %v721
      %723 = vmatprep.mubr.f32.mxu0 %v553
      %724 = vmatmul.mubr.f32.gmra.mxu0 %v315
      %v725 = vpop.f32.mrf.mxu0
      %v726 = vadd.f32 %v637, %v725
      %v727 = vpop.f32.mrf.mxu0
      %v728 = vadd.f32 %v639, %v727
      %729 = vmatprep.mubr.f32.mxu0 %v556
      %730 = vmatmul.mubr.f32.gmra.mxu0 %v319
      %v731 = vpop.f32.mrf.mxu0
      %v732 = vadd.f32 %v643, %v731
      %v733 = vpop.f32.mrf.mxu0
      %v734 = vadd.f32 %v645, %v733
      %735 = vdwg.mxu0
      %736 = vmatprep.subr.mxu0 %v384
      %737 = vmatpush1.msra.mxu0 %v383
      %738 = vmatprep.subr.mxu0 %v380
      %739 = vmatpush1.msra.mxu0 %v379
      %740 = vmatprep.subr.mxu0 %v376
      %741 = vmatpush1.msra.mxu0 %v375
      %742 = vmatprep.subr.mxu0 %v372
      %743 = vmatpush1.msra.mxu0 %v371
      %744 = vmatprep.subr.mxu0 %v368
      %745 = vmatpush1.msra.mxu0 %v367
      %746 = vmatprep.subr.mxu0 %v364
      %747 = vmatpush1.msra.mxu0 %v363
      %748 = vmatprep.subr.mxu0 %v360
      %749 = vmatpush1.msra.mxu0 %v359
      %750 = vmatprep.subr.mxu0 %v356
      %751 = vmatpush1.msra.mxu0 %v355
      %752 = vmatprep.subr.mxu0 %v352
      %753 = vmatpush1.msra.mxu0 %v351
      %754 = vmatprep.subr.mxu0 %v348
      %755 = vmatpush1.msra.mxu0 %v347
      %756 = vmatprep.subr.mxu0 %v344
      %757 = vmatpush1.msra.mxu0 %v343
      %758 = vmatprep.subr.mxu0 %v340
      %759 = vmatpush1.msra.mxu0 %v339
      %760 = vmatprep.subr.mxu0 %v336
      %761 = vmatpush1.msra.mxu0 %v335
      %762 = vmatprep.subr.mxu0 %v332
      %763 = vmatpush1.msra.mxu0 %v331
      %764 = vmatprep.subr.mxu0 %v328
      %765 = vmatpush1.msra.mxu0 %v327
      %766 = vmatprep.subr.mxu0 %v324
      %767 = vmatpush1.msra.mxu0 %v323
      %768 = vmatprep.subr.mxu0 %v448
      %769 = vmatpush2.msra.mxu0 %v447
      %770 = vmatprep.subr.mxu0 %v444
      %771 = vmatpush2.msra.mxu0 %v443
      %772 = vmatprep.subr.mxu0 %v440
      %773 = vmatpush2.msra.mxu0 %v439
      %774 = vmatprep.subr.mxu0 %v436
      %775 = vmatpush2.msra.mxu0 %v435
      %776 = vmatprep.subr.mxu0 %v432
      %777 = vmatpush2.msra.mxu0 %v431
      %778 = vmatprep.subr.mxu0 %v428
      %779 = vmatpush2.msra.mxu0 %v427
      %780 = vmatprep.subr.mxu0 %v424
      %781 = vmatpush2.msra.mxu0 %v423
      %782 = vmatprep.subr.mxu0 %v420
      %783 = vmatpush2.msra.mxu0 %v419
      %784 = vmatprep.subr.mxu0 %v416
      %785 = vmatpush2.msra.mxu0 %v415
      %786 = vmatprep.subr.mxu0 %v412
      %787 = vmatpush2.msra.mxu0 %v411
      %788 = vmatprep.subr.mxu0 %v408
      %789 = vmatpush2.msra.mxu0 %v407
      %790 = vmatprep.subr.mxu0 %v404
      %791 = vmatpush2.msra.mxu0 %v403
      %792 = vmatprep.subr.mxu0 %v400
      %793 = vmatpush2.msra.mxu0 %v399
      %794 = vmatprep.subr.mxu0 %v396
      %795 = vmatpush2.msra.mxu0 %v395
      %796 = vmatprep.subr.mxu0 %v392
      %797 = vmatpush2.msra.mxu0 %v391
      %798 = vmatprep.subr.mxu0 %v388
      %799 = vmatpush2.msra.mxu0 %v387
      %800 = vmatprep.mubr.f32.mxu0 %v306
      %801 = vmatmul.mubr.f32.gmra.mxu0 %v305
      %v802 = vpop.f32.mrf.mxu0
      %v803 = vadd.f32 %v528, %v802
      %v804 = vpop.f32.mrf.mxu0
      %v805 = vadd.f32 %v528, %v804
      %806 = vmatprep.mubr.f32.mxu0 %v310
      %807 = vmatmul.mubr.f32.gmra.mxu0 %v309
      %v808 = vpop.f32.mrf.mxu0
      %v809 = vadd.f32 %v533, %v808
      %v810 = vpop.f32.mrf.mxu0
      %v811 = vadd.f32 %v533, %v810
      %812 = vmatprep.mubr.f32.mxu0 %v314
      %813 = vmatmul.mubr.f32.gmra.mxu0 %v313
      %v814 = vpop.f32.mrf.mxu0
      %v815 = vadd.f32 %v538, %v814
      %v816 = vpop.f32.mrf.mxu0
      %v817 = vadd.f32 %v538, %v816
      %818 = vmatprep.mubr.f32.mxu0 %v318
      %819 = vmatmul.mubr.f32.gmra.mxu0 %v317
      %v820 = vpop.f32.mrf.mxu0
      %v821 = vadd.f32 %v543, %v820
      %v822 = vpop.f32.mrf.mxu0
      %v823 = vadd.f32 %v543, %v822
      %824 = vdwg.mxu0
      %825 = vmatprep.subr.mxu0 %v512
      %826 = vmatpush1.msra.mxu0 %v511
      %827 = vmatprep.subr.mxu0 %v508
      %828 = vmatpush1.msra.mxu0 %v507
      %829 = vmatprep.subr.mxu0 %v504
      %830 = vmatpush1.msra.mxu0 %v503
      %831 = vmatprep.subr.mxu0 %v500
      %832 = vmatpush1.msra.mxu0 %v499
      %833 = vmatprep.subr.mxu0 %v496
      %834 = vmatpush1.msra.mxu0 %v495
      %835 = vmatprep.subr.mxu0 %v492
      %836 = vmatpush1.msra.mxu0 %v491
      %837 = vmatprep.subr.mxu0 %v488
      %838 = vmatpush1.msra.mxu0 %v487
      %839 = vmatprep.subr.mxu0 %v484
      %840 = vmatpush1.msra.mxu0 %v483
      %841 = vmatprep.subr.mxu0 %v480
      %842 = vmatpush1.msra.mxu0 %v479
      %843 = vmatprep.subr.mxu0 %v476
      %844 = vmatpush1.msra.mxu0 %v475
      %845 = vmatprep.subr.mxu0 %v472
      %846 = vmatpush1.msra.mxu0 %v471
      %847 = vmatprep.subr.mxu0 %v468
      %848 = vmatpush1.msra.mxu0 %v467
      %849 = vmatprep.subr.mxu0 %v464
      %850 = vmatpush1.msra.mxu0 %v463
      %851 = vmatprep.subr.mxu0 %v460
      %852 = vmatpush1.msra.mxu0 %v459
      %853 = vmatprep.subr.mxu0 %v456
      %854 = vmatpush1.msra.mxu0 %v455
      %855 = vmatprep.subr.mxu0 %v452
      %856 = vmatpush1.msra.mxu0 %v451
      %857 = vmatprep.subr.mxu0 0.0
      %858 = vmatpush2.msra.mxu0 0.0
      %859 = vmatprep.subr.mxu0 0.0
      %860 = vmatpush2.msra.mxu0 0.0
      %861 = vmatprep.subr.mxu0 0.0
      %862 = vmatpush2.msra.mxu0 0.0
      %863 = vmatprep.subr.mxu0 0.0
      %864 = vmatpush2.msra.mxu0 0.0
      %865 = vmatprep.subr.mxu0 0.0
      %866 = vmatpush2.msra.mxu0 0.0
      %867 = vmatprep.subr.mxu0 0.0
      %868 = vmatpush2.msra.mxu0 0.0
      %869 = vmatprep.subr.mxu0 0.0
      %870 = vmatpush2.msra.mxu0 0.0
      %871 = vmatprep.subr.mxu0 0.0
      %872 = vmatpush2.msra.mxu0 0.0
      %873 = vmatprep.subr.mxu0 0.0
      %874 = vmatpush2.msra.mxu0 0.0
      %875 = vmatprep.subr.mxu0 0.0
      %876 = vmatpush2.msra.mxu0 0.0
      %877 = vmatprep.subr.mxu0 0.0
      %878 = vmatpush2.msra.mxu0 0.0
      %879 = vmatprep.subr.mxu0 0.0
      %880 = vmatpush2.msra.mxu0 0.0
      %881 = vmatprep.subr.mxu0 0.0
      %882 = vmatpush2.msra.mxu0 0.0
      %883 = vmatprep.subr.mxu0 0.0
      %884 = vmatpush2.msra.mxu0 0.0
      %885 = vmatprep.subr.mxu0 %v520
      %886 = vmatpush2.msra.mxu0 %v519
      %887 = vmatprep.subr.mxu0 %v516
      %888 = vmatpush2.msra.mxu0 %v515
      %889 = vmatprep.mubr.f32.mxu0 %v547
      %890 = vmatmul.mubr.f32.gmra.mxu0 %v307
      %v891 = vpop.f32.mrf.mxu0
      %v892 = vadd.f32 %v803, %v891
      %v893 = vpop.f32.mrf.mxu0
      %v894 = vadd.f32 %v805, %v893
      %895 = vmatprep.mubr.f32.mxu0 %v550
      %896 = vmatmul.mubr.f32.gmra.mxu0 %v311
      %v897 = vpop.f32.mrf.mxu0
      %v898 = vadd.f32 %v809, %v897
      %v899 = vpop.f32.mrf.mxu0
      %v900 = vadd.f32 %v811, %v899
      %901 = vmatprep.mubr.f32.mxu0 %v553
      %902 = vmatmul.mubr.f32.gmra.mxu0 %v315
      %v903 = vpop.f32.mrf.mxu0
      %v904 = vadd.f32 %v815, %v903
      %v905 = vpop.f32.mrf.mxu0
      %v906 = vadd.f32 %v817, %v905
      %907 = vmatprep.mubr.f32.mxu0 %v556
      %908 = vmatmul.mubr.f32.gmra.mxu0 %v319
      %v909 = vpop.f32.mrf.mxu0
      %v910 = vadd.f32 %v821, %v909
      %v911 = vpop.f32.mrf.mxu0
      %v912 = vadd.f32 %v823, %v911
      %913 = vdwg.mxu0
      %v914 = vmax.f32 %v714, 0.0
      %v915 = vmax.f32 %v716, 0.0
      %v916 = vmax.f32 %v892, 0.0
      %v917 = vmax.f32 %v894, 0.0
      %v918 = vmax.f32 %v720, 0.0
      %v919 = vmax.f32 %v722, 0.0
      %v920 = vmax.f32 %v898, 0.0
      %v921 = vmax.f32 %v900, 0.0
      %v922 = vmax.f32 %v726, 0.0
      %v923 = vmax.f32 %v728, 0.0
      %v924 = vmax.f32 %v904, 0.0
      %v925 = vmax.f32 %v906, 0.0
      %v926 = vmax.f32 %v732, 0.0
      %v927 = vmax.f32 %v734, 0.0
      %v928 = vmax.f32 %v910, 0.0
      %v929 = vmax.f32 %v912, 0.0
      %v930 = vld [vmem:[%s294] sm:$0xff]
      %v931 = vld [vmem:[%s294 + $0x8] sm:$0xff]
      %v932 = vld [vmem:[%s294 + $0x10] sm:$0xff]
      %v933 = vld [vmem:[%s294 + $0x18] sm:$0xff]
      %935 = vset.pattern.permute.xlu0 0
      %936 = vperm.xlu0 %935, %v930
      %v937 = vpop.permute.xlu0 %936
      %940 = vset.pattern.permute.xlu0 0
      %941 = vperm.xlu0 %940, %v931
      %v942 = vpop.permute.xlu0 %941
      %945 = vset.pattern.permute.xlu0 0
      %946 = vperm.xlu0 %945, %v932
      %v947 = vpop.permute.xlu0 %946
      %950 = vset.pattern.permute.xlu0 0
      %951 = vperm.xlu0 %950, %v933
      %v952 = vpop.permute.xlu0 %951
      %v954 = vmul.f32 %v914, %v937
      %v955 = vmul.f32 %v915, %v937
      %v956 = vmul.f32 %v916, %v937
      %v957 = vmul.f32 %v917, %v937
      %v958 = vmul.f32 %v918, %v942
      %v959 = vmul.f32 %v919, %v942
      %v960 = vmul.f32 %v920, %v942
      %v961 = vmul.f32 %v921, %v942
      %v962 = vmul.f32 %v922, %v947
      %v963 = vmul.f32 %v923, %v947
      %v964 = vmul.f32 %v924, %v947
      %v965 = vmul.f32 %v925, %v947
      %v966 = vmul.f32 %v926, %v952
      %v967 = vmul.f32 %v927, %v952
      %v968 = vmul.f32 %v928, %v952
      %v969 = vmul.f32 %v929, %v952
      %v970 = vld [vmem:[%s299] sm:$0xff]
      %v971 = vld [vmem:[%s299 + $0x8] sm:$0xff]
      %v972 = vld [vmem:[%s299 + $0x10] sm:$0xff]
      %v973 = vld [vmem:[%s299 + $0x18] sm:$0xff]
      %975 = vset.pattern.permute.xlu0 0
      %976 = vperm.xlu0 %975, %v970
      %v977 = vpop.permute.xlu0 %976
      %980 = vset.pattern.permute.xlu0 0
      %981 = vperm.xlu0 %980, %v971
      %v982 = vpop.permute.xlu0 %981
      %985 = vset.pattern.permute.xlu0 0
      %986 = vperm.xlu0 %985, %v972
      %v987 = vpop.permute.xlu0 %986
      %990 = vset.pattern.permute.xlu0 0
      %991 = vperm.xlu0 %990, %v973
      %v992 = vpop.permute.xlu0 %991
      %v994 = vadd.f32 %v954, %v977
      %v995 = vadd.f32 %v955, %v977
      %v996 = vadd.f32 %v956, %v977
      %v997 = vadd.f32 %v957, %v977
      %v998 = vadd.f32 %v958, %v982
      %v999 = vadd.f32 %v959, %v982
      %v1000 = vadd.f32 %v960, %v982
      %v1001 = vadd.f32 %v961, %v982
      %v1002 = vadd.f32 %v962, %v987
      %v1003 = vadd.f32 %v963, %v987
      %v1004 = vadd.f32 %v964, %v987
      %v1005 = vadd.f32 %v965, %v987
      %v1006 = vadd.f32 %v966, %v992
      %v1007 = vadd.f32 %v967, %v992
      %v1008 = vadd.f32 %v968, %v992
      %v1009 = vadd.f32 %v969, %v992
      %1010 = vst [vmem:[%s304] sm:$0xff] %v994
      %1011 = vst [vmem:[%s304 + $0x8] sm:$0xff] %v995
      %1012 = vst [vmem:[%s304 + $0x10] sm:$0xff] %v996
      %1013 = vst [vmem:[%s304 + $0x18] sm:$0xff] %v997
      %1014 = vst [vmem:[%s304 + $0x20] sm:$0xff] %v998
      %1015 = vst [vmem:[%s304 + $0x28] sm:$0xff] %v999
      %1016 = vst [vmem:[%s304 + $0x30] sm:$0xff] %v1000
      %1017 = vst [vmem:[%s304 + $0x38] sm:$0xff] %v1001
      %1018 = vst [vmem:[%s304 + $0x40] sm:$0xff] %v1002
      %1019 = vst [vmem:[%s304 + $0x48] sm:$0xff] %v1003
      %1020 = vst [vmem:[%s304 + $0x50] sm:$0xff] %v1004
      %1021 = vst [vmem:[%s304 + $0x58] sm:$0xff] %v1005
      %1022 = vst [vmem:[%s304 + $0x60] sm:$0xff] %v1006
      %1023 = vst [vmem:[%s304 + $0x68] sm:$0xff] %v1007
      %1024 = vst [vmem:[%s304 + $0x70] sm:$0xff] %v1008
      %1025 = vst [vmem:[%s304 + $0x78] sm:$0xff] %v1009
      %p1026 = scmp.lt.s32.totalorder %s16, 1
      %s1027 = scalar_select %p1026, %s16, 1
      %s1028 = smul.addr %s1027, 16
      %s1029 = smul.addr %s1028, 8
      %s1030 = scalar_lea.vmem %s5, %s1029
      // Predicated region
      $region41: #{siamese_forward.8} parent=39 // pred_check
        %p1031 = pneg %p164
      $region42: #{siamese_forward.8} parent=39 // pred_check_branch
        %1033 = sbr.rel (%p1031) target = $region44
      $region43: #{siamese_forward.8} parent=39 // pred_region
        _
      $region44: #{siamese_forward.8} parent=39 // pred_fallthru
        _
    $region40: #{siamese_forward.8} parent=5 // pred_fallthru
      _
    %p1034 = scmp.le.s32.totalorder 2, %s11
    // Predicated region
    $region45: #{siamese_forward.8} parent=5 // pred_check
      %p1035 = pneg %p1034
    $region46: #{siamese_forward.8} parent=5 // pred_check_branch
      %1037 = sbr.rel (%p1035) target = $region48
    $region47: #{siamese_forward.8} parent=5 // pred_region
      %s1038 = ssub.s32 %s11, 2
      // Predicated region
      $region49: #{siamese_forward.8} parent=47 // pred_check
        %p1039 = pneg %p170
      $region50: #{siamese_forward.8} parent=47 // pred_check_branch
        %1041 = sbr.rel (%p1039) target = $region52
      $region51: #{siamese_forward.8} parent=47 // pred_region
        %p1042 = scmp.lt.s32.totalorder %s17, 1
        %s1043 = scalar_select %p1042, %s17, 1
        %s1044 = smul.addr %s1043, 16
        %s1045 = smul.addr %s1044, 8
        %s1046 = scalar_lea.vmem %s5, %s1045
      $region52: #{siamese_forward.8} parent=47 // pred_fallthru
        _
    $region48: #{siamese_forward.8} parent=5 // pred_fallthru
      _
  $region6: #{siamese_forward.8} parent=0 // loop_footer
    %s15 = sadd.s32 1, %s11
  $region7: #{siamese_forward.8} parent=0 // loop_footer_branch
    %10 = sbr.rel target = $region3
  $region8: #{siamese_forward.8} parent=0 // loop_exit
    _

// kernel: siamese_forward.9
$region0: #{siamese_forward.9}
  #allocation0 [shape = 'u32[]', space=smem, size = 0x4, offset = 0x4, fixed_abs, tag = 'smem constant byte address 0x4 - core index']
  #allocation1 [shape = 'u32[144,128]{1,0:T(1,128)}', space=vmem, size = 0x12000, scoped, tag = 'internal scratch']
  #allocation2 [shape = 'f32[4,512]{1,0:T(4,128)}', space=vmem, size = 0x2000, scoped, tag = 'scratch operand']
  %s0 = inlined_call_operand.vmem [shape: f32[4,8192], index: 0, kind: input, shape index: {}]
  %s1 = inlined_call_operand.vmem [shape: bf16[8192,512], index: 1, kind: input, shape index: {}]
  %s2 = inlined_call_operand.vmem [shape: f32[1,512], index: 2, kind: input, shape index: {}]
  %s3 = inlined_call_operand.vmem [shape: bf16[512,512], index: 3, kind: input, shape index: {}]
  %s4 = inlined_call_operand.vmem [shape: f32[1,512], index: 4, kind: input, shape index: {}]
  %s5 = inlined_call_operand.vmem [shape: bf16[512,256], index: 5, kind: input, shape index: {}]
  %s6 = inlined_call_operand.vmem [shape: f32[1,256], index: 6, kind: input, shape index: {}]
  %s7 = inlined_call_operand.vmem [shape: bf16[256,128], index: 7, kind: input, shape index: {}]
  %s8 = inlined_call_operand.vmem [shape: f32[1,128], index: 8, kind: input, shape index: {}]
  %s9 = inlined_call_operand.vmem [shape: f32[4,128], index: 9, kind: output, shape index: {}]
  %s10 = sld [smem:[#allocation0]]
  $region77: #{siamese_forward.9} parent=0
    _
  %s12 = ssub.s32 1, %s10
  %s13 = scalar_select 0, %s12, %s10
  loop: start=0, step=1, limit=6
  $region2: #{siamese_forward.9} parent=0 // loop_pre_header
    _
  $region3: #{siamese_forward.9} parent=0 // loop_header
    %s15 = sphi 0, %s19
    %p16 = scmp.ge.s32.totalorder %s15, 6
    %s25 = sphi 0, %s27
    %s28 = sphi 0, %s25
    %s29 = sphi 0, %s28
    %s45 = sphi 0, %s29
    %s51 = sphi 0, %s53
    %s54 = sphi 0, %s51
    %s55 = sphi 0, %s54
    %s71 = sphi 0, %s55
    %s75 = sphi 0, %s75
    %s77 = sphi 0, %s75
    %s78 = sphi 0, %s77
    %s92 = sphi 0, %s78
    %s96 = sphi 0, %s96
    %s98 = sphi 0, %s96
    %s99 = sphi 0, %s98
    %s113 = sphi 0, %s99
    %s117 = sphi 0, %s117
    %s119 = sphi 0, %s117
    %s120 = sphi 0, %s119
    %s134 = sphi 0, %s120
    %s138 = sphi 0, %s138
    %s140 = sphi 0, %s138
    %s141 = sphi 0, %s140
    %s155 = sphi 0, %s141
    %s159 = sphi 0, %s159
    %s161 = sphi 0, %s159
    %s162 = sphi 0, %s161
    %s176 = sphi 0, %s162
    %s180 = sphi 0, %s180
    %s182 = sphi 0, %s180
    %s183 = sphi 0, %s182
    %s197 = sphi 0, %s183
    %s201 = sphi 0, %s201
    %s203 = sphi 0, %s201
    %s204 = sphi 0, %s203
    %s218 = sphi 0, %s204
    %s222 = sphi 0, %s222
    %s224 = sphi 0, %s222
    %s225 = sphi 0, %s224
    %s239 = sphi 0, %s225
  $region4: #{siamese_forward.9} parent=0 // loop_header_branch
    %18 = sbr.rel (%p16) target = $region8
  $region5: #{siamese_forward.9} parent=0 // loop_body
    %s20 = ssub.s32 %s15, 1
    %s21 = ssub.s32 %s15, 2
    %s22 = sadd.s32 %s15, 1
    %s23 = ssub.s32 %s15, %s22
    %p24 = scmp.eq.s32.totalorder %s23, 0
    %s26 = sadd.s32 %s25, 1
    %s27 = scalar_select %p24, %s25, %s26
    %p30 = pneg %p24
    %p31 = scmp.eq.s32.totalorder %s15, 3
    %p32 = por %p30, %p31
    %p33 = scmp.ne.s32.totalorder %s25, %s28
    %p34 = scmp.eq.s32.totalorder %s15, 0
    %p35 = por %p33, %p34
    %p36 = scmp.ne.s32.totalorder %s25, %s28
    %p37 = scmp.eq.s32.totalorder %s20, 3
    %p38 = por %p36, %p37
    %p39 = scmp.ne.s32.totalorder %s28, %s29
    %p40 = scmp.eq.s32.totalorder %s20, 0
    %p41 = por %p39, %p40
    %p42 = scmp.ne.s32.totalorder %s28, %s29
    %p43 = scmp.eq.s32.totalorder %s21, 3
    %p44 = por %p42, %p43
    %p46 = scmp.ne.s32.totalorder %s29, %s45
    %p47 = scmp.eq.s32.totalorder %s21, 0
    %p48 = por %p46, %p47
    %s49 = ssub.s32 %s15, %s22
    %p50 = scmp.eq.s32.totalorder %s49, 0
    %s52 = sadd.s32 %s51, 1
    %s53 = scalar_select %p50, %s51, %s52
    %p56 = pneg %p50
    %p57 = scmp.eq.s32.totalorder %s15, 3
    %p58 = por %p56, %p57
    %p59 = scmp.ne.s32.totalorder %s51, %s54
    %p60 = scmp.eq.s32.totalorder %s15, 0
    %p61 = por %p59, %p60
    %p62 = scmp.ne.s32.totalorder %s51, %s54
    %p63 = scmp.eq.s32.totalorder %s20, 3
    %p64 = por %p62, %p63
    %p65 = scmp.ne.s32.totalorder %s54, %s55
    %p66 = scmp.eq.s32.totalorder %s20, 0
    %p67 = por %p65, %p66
    %p68 = scmp.ne.s32.totalorder %s54, %s55
    %p69 = scmp.eq.s32.totalorder %s21, 3
    %p70 = por %p68, %p69
    %p72 = scmp.ne.s32.totalorder %s55, %s71
    %p73 = scmp.eq.s32.totalorder %s21, 0
    %p74 = por %p72, %p73
    %s76 = sadd.s32 %s75, 1
    %p79 = scmp.eq.s32.totalorder %s15, 3
    %p80 = scmp.ne.s32.totalorder %s75, %s77
    %p81 = scmp.eq.s32.totalorder %s15, 0
    %p82 = por %p80, %p81
    %p83 = scmp.ne.s32.totalorder %s75, %s77
    %p84 = scmp.eq.s32.totalorder %s20, 3
    %p85 = por %p83, %p84
    %p86 = scmp.ne.s32.totalorder %s77, %s78
    %p87 = scmp.eq.s32.totalorder %s20, 0
    %p88 = por %p86, %p87
    %p89 = scmp.ne.s32.totalorder %s77, %s78
    %p90 = scmp.eq.s32.totalorder %s21, 3
    %p91 = por %p89, %p90
    %p93 = scmp.ne.s32.totalorder %s78, %s92
    %p94 = scmp.eq.s32.totalorder %s21, 0
    %p95 = por %p93, %p94
    %s97 = sadd.s32 %s96, 1
    %p100 = scmp.eq.s32.totalorder %s15, 3
    %p101 = scmp.ne.s32.totalorder %s96, %s98
    %p102 = scmp.eq.s32.totalorder %s15, 0
    %p103 = por %p101, %p102
    %p104 = scmp.ne.s32.totalorder %s96, %s98
    %p105 = scmp.eq.s32.totalorder %s20, 3
    %p106 = por %p104, %p105
    %p107 = scmp.ne.s32.totalorder %s98, %s99
    %p108 = scmp.eq.s32.totalorder %s20, 0
    %p109 = por %p107, %p108
    %p110 = scmp.ne.s32.totalorder %s98, %s99
    %p111 = scmp.eq.s32.totalorder %s21, 3
    %p112 = por %p110, %p111
    %p114 = scmp.ne.s32.totalorder %s99, %s113
    %p115 = scmp.eq.s32.totalorder %s21, 0
    %p116 = por %p114, %p115
    %s118 = sadd.s32 %s117, 1
    %p121 = scmp.eq.s32.totalorder %s15, 3
    %p122 = scmp.ne.s32.totalorder %s117, %s119
    %p123 = scmp.eq.s32.totalorder %s15, 0
    %p124 = por %p122, %p123
    %p125 = scmp.ne.s32.totalorder %s117, %s119
    %p126 = scmp.eq.s32.totalorder %s20, 3
    %p127 = por %p125, %p126
    %p128 = scmp.ne.s32.totalorder %s119, %s120
    %p129 = scmp.eq.s32.totalorder %s20, 0
    %p130 = por %p128, %p129
    %p131 = scmp.ne.s32.totalorder %s119, %s120
    %p132 = scmp.eq.s32.totalorder %s21, 3
    %p133 = por %p131, %p132
    %p135 = scmp.ne.s32.totalorder %s120, %s134
    %p136 = scmp.eq.s32.totalorder %s21, 0
    %p137 = por %p135, %p136
    %s139 = sadd.s32 %s138, 1
    %p142 = scmp.eq.s32.totalorder %s15, 3
    %p143 = scmp.ne.s32.totalorder %s138, %s140
    %p144 = scmp.eq.s32.totalorder %s15, 0
    %p145 = por %p143, %p144
    %p146 = scmp.ne.s32.totalorder %s138, %s140
    %p147 = scmp.eq.s32.totalorder %s20, 3
    %p148 = por %p146, %p147
    %p149 = scmp.ne.s32.totalorder %s140, %s141
    %p150 = scmp.eq.s32.totalorder %s20, 0
    %p151 = por %p149, %p150
    %p152 = scmp.ne.s32.totalorder %s140, %s141
    %p153 = scmp.eq.s32.totalorder %s21, 3
    %p154 = por %p152, %p153
    %p156 = scmp.ne.s32.totalorder %s141, %s155
    %p157 = scmp.eq.s32.totalorder %s21, 0
    %p158 = por %p156, %p157
    %s160 = sadd.s32 %s159, 1
    %p163 = scmp.eq.s32.totalorder %s15, 3
    %p164 = scmp.ne.s32.totalorder %s159, %s161
    %p165 = scmp.eq.s32.totalorder %s15, 0
    %p166 = por %p164, %p165
    %p167 = scmp.ne.s32.totalorder %s159, %s161
    %p168 = scmp.eq.s32.totalorder %s20, 3
    %p169 = por %p167, %p168
    %p170 = scmp.ne.s32.totalorder %s161, %s162
    %p171 = scmp.eq.s32.totalorder %s20, 0
    %p172 = por %p170, %p171
    %p173 = scmp.ne.s32.totalorder %s161, %s162
    %p174 = scmp.eq.s32.totalorder %s21, 3
    %p175 = por %p173, %p174
    %p177 = scmp.ne.s32.totalorder %s162, %s176
    %p178 = scmp.eq.s32.totalorder %s21, 0
    %p179 = por %p177, %p178
    %s181 = sadd.s32 %s180, 1
    %p184 = scmp.eq.s32.totalorder %s15, 3
    %p185 = scmp.ne.s32.totalorder %s180, %s182
    %p186 = scmp.eq.s32.totalorder %s15, 0
    %p187 = por %p185, %p186
    %p188 = scmp.ne.s32.totalorder %s180, %s182
    %p189 = scmp.eq.s32.totalorder %s20, 3
    %p190 = por %p188, %p189
    %p191 = scmp.ne.s32.totalorder %s182, %s183
    %p192 = scmp.eq.s32.totalorder %s20, 0
    %p193 = por %p191, %p192
    %p194 = scmp.ne.s32.totalorder %s182, %s183
    %p195 = scmp.eq.s32.totalorder %s21, 3
    %p196 = por %p194, %p195
    %p198 = scmp.ne.s32.totalorder %s183, %s197
    %p199 = scmp.eq.s32.totalorder %s21, 0
    %p200 = por %p198, %p199
    %s202 = sadd.s32 %s201, 1
    %p205 = scmp.eq.s32.totalorder %s15, 3
    %p206 = scmp.ne.s32.totalorder %s201, %s203
    %p207 = scmp.eq.s32.totalorder %s15, 0
    %p208 = por %p206, %p207
    %p209 = scmp.ne.s32.totalorder %s201, %s203
    %p210 = scmp.eq.s32.totalorder %s20, 3
    %p211 = por %p209, %p210
    %p212 = scmp.ne.s32.totalorder %s203, %s204
    %p213 = scmp.eq.s32.totalorder %s20, 0
    %p214 = por %p212, %p213
    %p215 = scmp.ne.s32.totalorder %s203, %s204
    %p216 = scmp.eq.s32.totalorder %s21, 3
    %p217 = por %p215, %p216
    %p219 = scmp.ne.s32.totalorder %s204, %s218
    %p220 = scmp.eq.s32.totalorder %s21, 0
    %p221 = por %p219, %p220
    %s223 = sadd.s32 %s222, 1
    %p226 = scmp.eq.s32.totalorder %s15, 3
    %p227 = scmp.ne.s32.totalorder %s222, %s224
    %p228 = scmp.eq.s32.totalorder %s15, 0
    %p229 = por %p227, %p228
    %p230 = scmp.ne.s32.totalorder %s222, %s224
    %p231 = scmp.eq.s32.totalorder %s20, 3
    %p232 = por %p230, %p231
    %p233 = scmp.ne.s32.totalorder %s224, %s225
    %p234 = scmp.eq.s32.totalorder %s20, 0
    %p235 = por %p233, %p234
    %p236 = scmp.ne.s32.totalorder %s224, %s225
    %p237 = scmp.eq.s32.totalorder %s21, 3
    %p238 = por %p236, %p237
    %p240 = scmp.ne.s32.totalorder %s225, %s239
    %p241 = scmp.eq.s32.totalorder %s21, 0
    %p242 = por %p240, %p241
    %p243 = scmp.le.s32.totalorder 1, %s15
    %p244 = scmp.lt.s32.totalorder %s15, 5
    %p245 = pnand %p243, %p244
    %p246 = pneg %p245
    // Predicated region
    $region9: #{siamese_forward.9} parent=5 // pred_check
      _
    $region10: #{siamese_forward.9} parent=5 // pred_check_branch
      %248 = sbr.rel (%p245) target = $region12
    $region11: #{siamese_forward.9} parent=5 // pred_region
      %s249 = ssub.s32 %s15, 1
      // Predicated region
      $region13: #{siamese_forward.9} parent=11 // pred_check
        %p250 = pneg %p88
      $region14: #{siamese_forward.9} parent=11 // pred_check_branch
        %252 = sbr.rel (%p250) target = $region16
      $region15: #{siamese_forward.9} parent=11 // pred_region
        _
      $region16: #{siamese_forward.9} parent=11 // pred_fallthru
        _
      // Predicated region
      $region17: #{siamese_forward.9} parent=11 // pred_check
        %p253 = pneg %p109
      $region18: #{siamese_forward.9} parent=11 // pred_check_branch
        %255 = sbr.rel (%p253) target = $region20
      $region19: #{siamese_forward.9} parent=11 // pred_region
        _
      $region20: #{siamese_forward.9} parent=11 // pred_fallthru
        _
      // Predicated region
      $region21: #{siamese_forward.9} parent=11 // pred_check
        %p256 = pneg %p130
      $region22: #{siamese_forward.9} parent=11 // pred_check_branch
        %258 = sbr.rel (%p256) target = $region24
      $region23: #{siamese_forward.9} parent=11 // pred_region
        _
      $region24: #{siamese_forward.9} parent=11 // pred_fallthru
        _
      // Predicated region
      $region25: #{siamese_forward.9} parent=11 // pred_check
        %p259 = pneg %p151
      $region26: #{siamese_forward.9} parent=11 // pred_check_branch
        %261 = sbr.rel (%p259) target = $region28
      $region27: #{siamese_forward.9} parent=11 // pred_region
        _
      $region28: #{siamese_forward.9} parent=11 // pred_fallthru
        _
      // Predicated region
      $region29: #{siamese_forward.9} parent=11 // pred_check
        %p262 = pneg %p172
      $region30: #{siamese_forward.9} parent=11 // pred_check_branch
        %264 = sbr.rel (%p262) target = $region32
      $region31: #{siamese_forward.9} parent=11 // pred_region
        _
      $region32: #{siamese_forward.9} parent=11 // pred_fallthru
        _
      // Predicated region
      $region33: #{siamese_forward.9} parent=11 // pred_check
        %p265 = pneg %p193
      $region34: #{siamese_forward.9} parent=11 // pred_check_branch
        %267 = sbr.rel (%p265) target = $region36
      $region35: #{siamese_forward.9} parent=11 // pred_region
        _
      $region36: #{siamese_forward.9} parent=11 // pred_fallthru
        _
      // Predicated region
      $region37: #{siamese_forward.9} parent=11 // pred_check
        %p268 = pneg %p214
      $region38: #{siamese_forward.9} parent=11 // pred_check_branch
        %270 = sbr.rel (%p268) target = $region40
      $region39: #{siamese_forward.9} parent=11 // pred_region
        _
      $region40: #{siamese_forward.9} parent=11 // pred_fallthru
        _
    $region12: #{siamese_forward.9} parent=5 // pred_fallthru
      _
    %p271 = scmp.lt.s32.totalorder %s15, 4
    // Predicated region
    $region41: #{siamese_forward.9} parent=5 // pred_check
      %p272 = pneg %p271
    $region42: #{siamese_forward.9} parent=5 // pred_check_branch
      %274 = sbr.rel (%p272) target = $region44
    $region43: #{siamese_forward.9} parent=5 // pred_region
      // Predicated region
      $region45: #{siamese_forward.9} parent=43 // pred_check
        %p275 = pneg %p35
      $region46: #{siamese_forward.9} parent=43 // pred_check_branch
        %277 = sbr.rel (%p275) target = $region48
      $region47: #{siamese_forward.9} parent=43 // pred_region
        %s278 = smul.u32 16, %s15
        %p279 = scmp.lt.s32.totalorder %s278, 63
        %s280 = scalar_select %p279, %s278, 63
        %s281 = smul.addr %s280, 4
        %s282 = scalar_lea.vmem %s0, %s281
        %s283 = smul.u32 16, %s15
      $region48: #{siamese_forward.9} parent=43 // pred_fallthru
        _
      // Predicated region
      $region49: #{siamese_forward.9} parent=43 // pred_check
        %p284 = pneg %p61
      $region50: #{siamese_forward.9} parent=43 // pred_check_branch
        %286 = sbr.rel (%p284) target = $region52
      $region51: #{siamese_forward.9} parent=43 // pred_region
        %s287 = smul.u32 256, %s15
        %p288 = scmp.lt.s32.totalorder %s287, 1023
        %s289 = scalar_select %p288, %s287, 1023
        %s290 = smul.addr %s289, 4
        %s291 = smul.addr %s290, 4
        %s292 = scalar_lea.vmem %s1, %s291
        %s293 = smul.u32 256, %s15
      $region52: #{siamese_forward.9} parent=43 // pred_fallthru
        _
    $region44: #{siamese_forward.9} parent=5 // pred_fallthru
      _
    %p294 = scmp.le.s32.totalorder 1, %s15
    %p295 = scmp.lt.s32.totalorder %s15, 5
    %p296 = pnand %p294, %p295
    %p297 = pneg %p296
    // Predicated region
    $region53: #{siamese_forward.9} parent=5 // pred_check
      _
    $region54: #{siamese_forward.9} parent=5 // pred_check_branch
      %299 = sbr.rel (%p296) target = $region56
    $region55: #{siamese_forward.9} parent=5 // pred_region
      %s300 = ssub.s32 %s15, 1
      %s301 = smul.u32 16, %s20
      %p302 = scmp.lt.s32.totalorder %s301, 63
      %s303 = scalar_select %p302, %s301, 63
      %s304 = smul.addr %s303, 4
      %s305 = scalar_lea.vmem %s0, %s304
      %p306 = pneg %p41
      %p307 = pneg %p38
      %s308 = smul.u32 256, %s20
      %p309 = scmp.lt.s32.totalorder %s308, 1023
      %s310 = scalar_select %p309, %s308, 1023
      %s311 = smul.addr %s310, 4
      %s312 = smul.addr %s311, 4
      %s313 = scalar_lea.vmem %s1, %s312
      %p314 = pneg %p67
      %p315 = pneg %p64
      %p316 = pneg %p88
      %p317 = pneg %p85
      %p318 = pneg %p109
      %p319 = pneg %p106
      %p320 = pneg %p130
      %p321 = pneg %p127
      %p322 = pneg %p151
      %p323 = pneg %p148
      %p324 = pneg %p172
      %p325 = pneg %p169
      %p326 = pneg %p193
      %p327 = pneg %p190
      %p328 = pneg %p214
      %p329 = pneg %p211
      %p330 = pneg %p235
      %p331 = pneg %p232
      %s332 = smul.u32 16, %s20
      %p333 = scmp.lt.s32.totalorder %s332, 63
      %s334 = scalar_select %p333, %s332, 63
      %s335 = smul.addr %s334, 4
      %s336 = scalar_lea.vmem %s0, %s335
      %s337 = smul.u32 16, %s20
      %s338 = smul.u32 256, %s20
      %p339 = scmp.lt.s32.totalorder %s338, 1023
      %s340 = scalar_select %p339, %s338, 1023
      %s341 = smul.addr %s340, 4
      %s342 = smul.addr %s341, 4
      %s343 = scalar_lea.vmem %s1, %s342
      %s344 = smul.u32 256, %s20
      %p346 = scmp.eq.s32.totalorder %s20, 0
      // Predicated region
      $region57: #{siamese_forward.9} parent=55 // pred_check
        %p347 = pneg %p346
      $region58: #{siamese_forward.9} parent=55 // pred_check_branch
        %349 = sbr.rel (%p347) target = $region60
      $region59: #{siamese_forward.9} parent=55 // pred_region
        %350 = vst [vmem:[#allocation2] sm:$0xff] 0.0
        %351 = vst [vmem:[#allocation2 + $0x8] sm:$0xff] 0.0
      $region60: #{siamese_forward.9} parent=55 // pred_fallthru
        _
      %v352 = vld [vmem:[#allocation2] sm:$0xff]
      %v353 = vld [vmem:[#allocation2 + $0x8] sm:$0xff]
      %v354 = vld [vmem:[%s336] sm:$0xff]
      %v355 = vld [vmem:[%s336 + $0x8] sm:$0xff]
      %v356 = vld [vmem:[%s336 + $0x10] sm:$0xff]
      %v357 = vld [vmem:[%s336 + $0x18] sm:$0xff]
      %v358 = vld [vmem:[%s336 + $0x20] sm:$0xff]
      %v359 = vld [vmem:[%s336 + $0x28] sm:$0xff]
      %v360 = vld [vmem:[%s336 + $0x30] sm:$0xff]
      %v361 = vld [vmem:[%s336 + $0x38] sm:$0xff]
      %v370 = vcombine.high %v354, %v354
      %v371 = vcombine.high %v355, %v355
      %v372 = vcombine.high %v356, %v356
      %v373 = vcombine.high %v357, %v357
      %v374 = vcombine.high %v358, %v358
      %v375 = vcombine.high %v359, %v359
      %v376 = vcombine.high %v360, %v360
      %v377 = vcombine.high %v361, %v361
      %v386 = vpack.c.bf16 %v354, %v354
      %v387 = vpack.c.bf16 %v370, %v370
      %v388 = vpack.c.bf16 %v355, %v355
      %v389 = vpack.c.bf16 %v371, %v371
      %v390 = vpack.c.bf16 %v356, %v356
      %v391 = vpack.c.bf16 %v372, %v372
      %v392 = vpack.c.bf16 %v357, %v357
      %v393 = vpack.c.bf16 %v373, %v373
      %v394 = vpack.c.bf16 %v358, %v358
      %v395 = vpack.c.bf16 %v374, %v374
      %v396 = vpack.c.bf16 %v359, %v359
      %v397 = vpack.c.bf16 %v375, %v375
      %v398 = vpack.c.bf16 %v360, %v360
      %v399 = vpack.c.bf16 %v376, %v376
      %v400 = vpack.c.bf16 %v361, %v361
      %v401 = vpack.c.bf16 %v377, %v377
      %v402 = vld [vmem:[%s343] sm:$0xff]
      %v403 = vld [vmem:[%s343 + $0x8] sm:$0xff]
      %v404 = vld [vmem:[%s343 + $0x10] sm:$0xff]
      %v405 = vld [vmem:[%s343 + $0x18] sm:$0xff]
      %v406 = vld [vmem:[%s343 + $0x20] sm:$0xff]
      %v407 = vld [vmem:[%s343 + $0x28] sm:$0xff]
      %v408 = vld [vmem:[%s343 + $0x30] sm:$0xff]
      %v409 = vld [vmem:[%s343 + $0x38] sm:$0xff]
      %v410 = vld [vmem:[%s343 + $0x40] sm:$0xff]
      %v411 = vld [vmem:[%s343 + $0x48] sm:$0xff]
      %v412 = vld [vmem:[%s343 + $0x50] sm:$0xff]
      %v413 = vld [vmem:[%s343 + $0x58] sm:$0xff]
      %v414 = vld [vmem:[%s343 + $0x60] sm:$0xff]
      %v415 = vld [vmem:[%s343 + $0x68] sm:$0xff]
      %v416 = vld [vmem:[%s343 + $0x70] sm:$0xff]
      %v417 = vld [vmem:[%s343 + $0x78] sm:$0xff]
      %v418 = vld [vmem:[%s343 + $0x80] sm:$0xff]
      %v419 = vld [vmem:[%s343 + $0x88] sm:$0xff]
      %v420 = vld [vmem:[%s343 + $0x90] sm:$0xff]
      %v421 = vld [vmem:[%s343 + $0x98] sm:$0xff]
      %v422 = vld [vmem:[%s343 + $0xa0] sm:$0xff]
      %v423 = vld [vmem:[%s343 + $0xa8] sm:$0xff]
      %v424 = vld [vmem:[%s343 + $0xb0] sm:$0xff]
      %v425 = vld [vmem:[%s343 + $0xb8] sm:$0xff]
      %v426 = vld [vmem:[%s343 + $0xc0] sm:$0xff]
      %v427 = vld [vmem:[%s343 + $0xc8] sm:$0xff]
      %v428 = vld [vmem:[%s343 + $0xd0] sm:$0xff]
      %v429 = vld [vmem:[%s343 + $0xd8] sm:$0xff]
      %v430 = vld [vmem:[%s343 + $0xe0] sm:$0xff]
      %v431 = vld [vmem:[%s343 + $0xe8] sm:$0xff]
      %v432 = vld [vmem:[%s343 + $0xf0] sm:$0xff]
      %v433 = vld [vmem:[%s343 + $0xf8] sm:$0xff]
      %v434 = vld [vmem:[%s343 + $0x100] sm:$0xff]
      %v435 = vld [vmem:[%s343 + $0x108] sm:$0xff]
      %v436 = vld [vmem:[%s343 + $0x110] sm:$0xff]
      %v437 = vld [vmem:[%s343 + $0x118] sm:$0xff]
      %v438 = vld [vmem:[%s343 + $0x120] sm:$0xff]
      %v439 = vld [vmem:[%s343 + $0x128] sm:$0xff]
      %v440 = vld [vmem:[%s343 + $0x130] sm:$0xff]
      %v441 = vld [vmem:[%s343 + $0x138] sm:$0xff]
      %v442 = vld [vmem:[%s343 + $0x140] sm:$0xff]
      %v443 = vld [vmem:[%s343 + $0x148] sm:$0xff]
      %v444 = vld [vmem:[%s343 + $0x150] sm:$0xff]
      %v445 = vld [vmem:[%s343 + $0x158] sm:$0xff]
      %v446 = vld [vmem:[%s343 + $0x160] sm:$0xff]
      %v447 = vld [vmem:[%s343 + $0x168] sm:$0xff]
      %v448 = vld [vmem:[%s343 + $0x170] sm:$0xff]
      %v449 = vld [vmem:[%s343 + $0x178] sm:$0xff]
      %v450 = vld [vmem:[%s343 + $0x180] sm:$0xff]
      %v451 = vld [vmem:[%s343 + $0x188] sm:$0xff]
      %v452 = vld [vmem:[%s343 + $0x190] sm:$0xff]
      %v453 = vld [vmem:[%s343 + $0x198] sm:$0xff]
      %v454 = vld [vmem:[%s343 + $0x1a0] sm:$0xff]
      %v455 = vld [vmem:[%s343 + $0x1a8] sm:$0xff]
      %v456 = vld [vmem:[%s343 + $0x1b0] sm:$0xff]
      %v457 = vld [vmem:[%s343 + $0x1b8] sm:$0xff]
      %v458 = vld [vmem:[%s343 + $0x1c0] sm:$0xff]
      %v459 = vld [vmem:[%s343 + $0x1c8] sm:$0xff]
      %v460 = vld [vmem:[%s343 + $0x1d0] sm:$0xff]
      %v461 = vld [vmem:[%s343 + $0x1d8] sm:$0xff]
      %v462 = vld [vmem:[%s343 + $0x1e0] sm:$0xff]
      %v463 = vld [vmem:[%s343 + $0x1e8] sm:$0xff]
      %v464 = vld [vmem:[%s343 + $0x1f0] sm:$0xff]
      %v465 = vld [vmem:[%s343 + $0x1f8] sm:$0xff]
      %v466 = vld [vmem:[%s343 + $0x200] sm:$0xff]
      %v467 = vld [vmem:[%s343 + $0x208] sm:$0xff]
      %v468 = vld [vmem:[%s343 + $0x210] sm:$0xff]
      %v469 = vld [vmem:[%s343 + $0x218] sm:$0xff]
      %v470 = vld [vmem:[%s343 + $0x220] sm:$0xff]
      %v471 = vld [vmem:[%s343 + $0x228] sm:$0xff]
      %v472 = vld [vmem:[%s343 + $0x230] sm:$0xff]
      %v473 = vld [vmem:[%s343 + $0x238] sm:$0xff]
      %v474 = vld [vmem:[%s343 + $0x240] sm:$0xff]
      %v475 = vld [vmem:[%s343 + $0x248] sm:$0xff]
      %v476 = vld [vmem:[%s343 + $0x250] sm:$0xff]
      %v477 = vld [vmem:[%s343 + $0x258] sm:$0xff]
      %v478 = vld [vmem:[%s343 + $0x260] sm:$0xff]
      %v479 = vld [vmem:[%s343 + $0x268] sm:$0xff]
      %v480 = vld [vmem:[%s343 + $0x270] sm:$0xff]
      %v481 = vld [vmem:[%s343 + $0x278] sm:$0xff]
      %v482 = vld [vmem:[%s343 + $0x280] sm:$0xff]
      %v483 = vld [vmem:[%s343 + $0x288] sm:$0xff]
      %v484 = vld [vmem:[%s343 + $0x290] sm:$0xff]
      %v485 = vld [vmem:[%s343 + $0x298] sm:$0xff]
      %v486 = vld [vmem:[%s343 + $0x2a0] sm:$0xff]
      %v487 = vld [vmem:[%s343 + $0x2a8] sm:$0xff]
      %v488 = vld [vmem:[%s343 + $0x2b0] sm:$0xff]
      %v489 = vld [vmem:[%s343 + $0x2b8] sm:$0xff]
      %v490 = vld [vmem:[%s343 + $0x2c0] sm:$0xff]
      %v491 = vld [vmem:[%s343 + $0x2c8] sm:$0xff]
      %v492 = vld [vmem:[%s343 + $0x2d0] sm:$0xff]
      %v493 = vld [vmem:[%s343 + $0x2d8] sm:$0xff]
      %v494 = vld [vmem:[%s343 + $0x2e0] sm:$0xff]
      %v495 = vld [vmem:[%s343 + $0x2e8] sm:$0xff]
      %v496 = vld [vmem:[%s343 + $0x2f0] sm:$0xff]
      %v497 = vld [vmem:[%s343 + $0x2f8] sm:$0xff]
      %v498 = vld [vmem:[%s343 + $0x300] sm:$0xff]
      %v499 = vld [vmem:[%s343 + $0x308] sm:$0xff]
      %v500 = vld [vmem:[%s343 + $0x310] sm:$0xff]
      %v501 = vld [vmem:[%s343 + $0x318] sm:$0xff]
      %v502 = vld [vmem:[%s343 + $0x320] sm:$0xff]
      %v503 = vld [vmem:[%s343 + $0x328] sm:$0xff]
      %v504 = vld [vmem:[%s343 + $0x330] sm:$0xff]
      %v505 = vld [vmem:[%s343 + $0x338] sm:$0xff]
      %v506 = vld [vmem:[%s343 + $0x340] sm:$0xff]
      %v507 = vld [vmem:[%s343 + $0x348] sm:$0xff]
      %v508 = vld [vmem:[%s343 + $0x350] sm:$0xff]
      %v509 = vld [vmem:[%s343 + $0x358] sm:$0xff]
      %v510 = vld [vmem:[%s343 + $0x360] sm:$0xff]
      %v511 = vld [vmem:[%s343 + $0x368] sm:$0xff]
      %v512 = vld [vmem:[%s343 + $0x370] sm:$0xff]
      %v513 = vld [vmem:[%s343 + $0x378] sm:$0xff]
      %v514 = vld [vmem:[%s343 + $0x380] sm:$0xff]
      %v515 = vld [vmem:[%s343 + $0x388] sm:$0xff]
      %v516 = vld [vmem:[%s343 + $0x390] sm:$0xff]
      %v517 = vld [vmem:[%s343 + $0x398] sm:$0xff]
      %v518 = vld [vmem:[%s343 + $0x3a0] sm:$0xff]
      %v519 = vld [vmem:[%s343 + $0x3a8] sm:$0xff]
      %v520 = vld [vmem:[%s343 + $0x3b0] sm:$0xff]
      %v521 = vld [vmem:[%s343 + $0x3b8] sm:$0xff]
      %v522 = vld [vmem:[%s343 + $0x3c0] sm:$0xff]
      %v523 = vld [vmem:[%s343 + $0x3c8] sm:$0xff]
      %v524 = vld [vmem:[%s343 + $0x3d0] sm:$0xff]
      %v525 = vld [vmem:[%s343 + $0x3d8] sm:$0xff]
      %v526 = vld [vmem:[%s343 + $0x3e0] sm:$0xff]
      %v527 = vld [vmem:[%s343 + $0x3e8] sm:$0xff]
      %v528 = vld [vmem:[%s343 + $0x3f0] sm:$0xff]
      %v529 = vld [vmem:[%s343 + $0x3f8] sm:$0xff]
      %v530 = vld [vmem:[%s343 + $0x400] sm:$0xff]
      %v531 = vld [vmem:[%s343 + $0x408] sm:$0xff]
      %v532 = vld [vmem:[%s343 + $0x410] sm:$0xff]
      %v533 = vld [vmem:[%s343 + $0x418] sm:$0xff]
      %v534 = vld [vmem:[%s343 + $0x420] sm:$0xff]
      %v535 = vld [vmem:[%s343 + $0x428] sm:$0xff]
      %v536 = vld [vmem:[%s343 + $0x430] sm:$0xff]
      %v537 = vld [vmem:[%s343 + $0x438] sm:$0xff]
      %v538 = vld [vmem:[%s343 + $0x440] sm:$0xff]
      %v539 = vld [vmem:[%s343 + $0x448] sm:$0xff]
      %v540 = vld [vmem:[%s343 + $0x450] sm:$0xff]
      %v541 = vld [vmem:[%s343 + $0x458] sm:$0xff]
      %v542 = vld [vmem:[%s343 + $0x460] sm:$0xff]
      %v543 = vld [vmem:[%s343 + $0x468] sm:$0xff]
      %v544 = vld [vmem:[%s343 + $0x470] sm:$0xff]
      %v545 = vld [vmem:[%s343 + $0x478] sm:$0xff]
      %v546 = vld [vmem:[%s343 + $0x480] sm:$0xff]
      %v547 = vld [vmem:[%s343 + $0x488] sm:$0xff]
      %v548 = vld [vmem:[%s343 + $0x490] sm:$0xff]
      %v549 = vld [vmem:[%s343 + $0x498] sm:$0xff]
      %v550 = vld [vmem:[%s343 + $0x4a0] sm:$0xff]
      %v551 = vld [vmem:[%s343 + $0x4a8] sm:$0xff]
      %v552 = vld [vmem:[%s343 + $0x4b0] sm:$0xff]
      %v553 = vld [vmem:[%s343 + $0x4b8] sm:$0xff]
      %v554 = vld [vmem:[%s343 + $0x4c0] sm:$0xff]
      %v555 = vld [vmem:[%s343 + $0x4c8] sm:$0xff]
      %v556 = vld [vmem:[%s343 + $0x4d0] sm:$0xff]
      %v557 = vld [vmem:[%s343 + $0x4d8] sm:$0xff]
      %v558 = vld [vmem:[%s343 + $0x4e0] sm:$0xff]
      %v559 = vld [vmem:[%s343 + $0x4e8] sm:$0xff]
      %v560 = vld [vmem:[%s343 + $0x4f0] sm:$0xff]
      %v561 = vld [vmem:[%s343 + $0x4f8] sm:$0xff]
      %v562 = vld [vmem:[%s343 + $0x500] sm:$0xff]
      %v563 = vld [vmem:[%s343 + $0x508] sm:$0xff]
      %v564 = vld [vmem:[%s343 + $0x510] sm:$0xff]
      %v565 = vld [vmem:[%s343 + $0x518] sm:$0xff]
      %v566 = vld [vmem:[%s343 + $0x520] sm:$0xff]
      %v567 = vld [vmem:[%s343 + $0x528] sm:$0xff]
      %v568 = vld [vmem:[%s343 + $0x530] sm:$0xff]
      %v569 = vld [vmem:[%s343 + $0x538] sm:$0xff]
      %v570 = vld [vmem:[%s343 + $0x540] sm:$0xff]
      %v571 = vld [vmem:[%s343 + $0x548] sm:$0xff]
      %v572 = vld [vmem:[%s343 + $0x550] sm:$0xff]
      %v573 = vld [vmem:[%s343 + $0x558] sm:$0xff]
      %v574 = vld [vmem:[%s343 + $0x560] sm:$0xff]
      %v575 = vld [vmem:[%s343 + $0x568] sm:$0xff]
      %v576 = vld [vmem:[%s343 + $0x570] sm:$0xff]
      %v577 = vld [vmem:[%s343 + $0x578] sm:$0xff]
      %v578 = vld [vmem:[%s343 + $0x580] sm:$0xff]
      %v579 = vld [vmem:[%s343 + $0x588] sm:$0xff]
      %v580 = vld [vmem:[%s343 + $0x590] sm:$0xff]
      %v581 = vld [vmem:[%s343 + $0x598] sm:$0xff]
      %v582 = vld [vmem:[%s343 + $0x5a0] sm:$0xff]
      %v583 = vld [vmem:[%s343 + $0x5a8] sm:$0xff]
      %v584 = vld [vmem:[%s343 + $0x5b0] sm:$0xff]
      %v585 = vld [vmem:[%s343 + $0x5b8] sm:$0xff]
      %v586 = vld [vmem:[%s343 + $0x5c0] sm:$0xff]
      %v587 = vld [vmem:[%s343 + $0x5c8] sm:$0xff]
      %v588 = vld [vmem:[%s343 + $0x5d0] sm:$0xff]
      %v589 = vld [vmem:[%s343 + $0x5d8] sm:$0xff]
      %v590 = vld [vmem:[%s343 + $0x5e0] sm:$0xff]
      %v591 = vld [vmem:[%s343 + $0x5e8] sm:$0xff]
      %v592 = vld [vmem:[%s343 + $0x5f0] sm:$0xff]
      %v593 = vld [vmem:[%s343 + $0x5f8] sm:$0xff]
      %v594 = vld [vmem:[%s343 + $0x600] sm:$0xff]
      %v595 = vld [vmem:[%s343 + $0x608] sm:$0xff]
      %v596 = vld [vmem:[%s343 + $0x610] sm:$0xff]
      %v597 = vld [vmem:[%s343 + $0x618] sm:$0xff]
      %v598 = vld [vmem:[%s343 + $0x620] sm:$0xff]
      %v599 = vld [vmem:[%s343 + $0x628] sm:$0xff]
      %v600 = vld [vmem:[%s343 + $0x630] sm:$0xff]
      %v601 = vld [vmem:[%s343 + $0x638] sm:$0xff]
      %v602 = vld [vmem:[%s343 + $0x640] sm:$0xff]
      %v603 = vld [vmem:[%s343 + $0x648] sm:$0xff]
      %v604 = vld [vmem:[%s343 + $0x650] sm:$0xff]
      %v605 = vld [vmem:[%s343 + $0x658] sm:$0xff]
      %v606 = vld [vmem:[%s343 + $0x660] sm:$0xff]
      %v607 = vld [vmem:[%s343 + $0x668] sm:$0xff]
      %v608 = vld [vmem:[%s343 + $0x670] sm:$0xff]
      %v609 = vld [vmem:[%s343 + $0x678] sm:$0xff]
      %v610 = vld [vmem:[%s343 + $0x680] sm:$0xff]
      %v611 = vld [vmem:[%s343 + $0x688] sm:$0xff]
      %v612 = vld [vmem:[%s343 + $0x690] sm:$0xff]
      %v613 = vld [vmem:[%s343 + $0x698] sm:$0xff]
      %v614 = vld [vmem:[%s343 + $0x6a0] sm:$0xff]
      %v615 = vld [vmem:[%s343 + $0x6a8] sm:$0xff]
      %v616 = vld [vmem:[%s343 + $0x6b0] sm:$0xff]
      %v617 = vld [vmem:[%s343 + $0x6b8] sm:$0xff]
      %v618 = vld [vmem:[%s343 + $0x6c0] sm:$0xff]
      %v619 = vld [vmem:[%s343 + $0x6c8] sm:$0xff]
      %v620 = vld [vmem:[%s343 + $0x6d0] sm:$0xff]
      %v621 = vld [vmem:[%s343 + $0x6d8] sm:$0xff]
      %v622 = vld [vmem:[%s343 + $0x6e0] sm:$0xff]
      %v623 = vld [vmem:[%s343 + $0x6e8] sm:$0xff]
      %v624 = vld [vmem:[%s343 + $0x6f0] sm:$0xff]
      %v625 = vld [vmem:[%s343 + $0x6f8] sm:$0xff]
      %v626 = vld [vmem:[%s343 + $0x700] sm:$0xff]
      %v627 = vld [vmem:[%s343 + $0x708] sm:$0xff]
      %v628 = vld [vmem:[%s343 + $0x710] sm:$0xff]
      %v629 = vld [vmem:[%s343 + $0x718] sm:$0xff]
      %v630 = vld [vmem:[%s343 + $0x720] sm:$0xff]
      %v631 = vld [vmem:[%s343 + $0x728] sm:$0xff]
      %v632 = vld [vmem:[%s343 + $0x730] sm:$0xff]
      %v633 = vld [vmem:[%s343 + $0x738] sm:$0xff]
      %v634 = vld [vmem:[%s343 + $0x740] sm:$0xff]
      %v635 = vld [vmem:[%s343 + $0x748] sm:$0xff]
      %v636 = vld [vmem:[%s343 + $0x750] sm:$0xff]
      %v637 = vld [vmem:[%s343 + $0x758] sm:$0xff]
      %v638 = vld [vmem:[%s343 + $0x760] sm:$0xff]
      %v639 = vld [vmem:[%s343 + $0x768] sm:$0xff]
      %v640 = vld [vmem:[%s343 + $0x770] sm:$0xff]
      %v641 = vld [vmem:[%s343 + $0x778] sm:$0xff]
      %v642 = vld [vmem:[%s343 + $0x780] sm:$0xff]
      %v643 = vld [vmem:[%s343 + $0x788] sm:$0xff]
      %v644 = vld [vmem:[%s343 + $0x790] sm:$0xff]
      %v645 = vld [vmem:[%s343 + $0x798] sm:$0xff]
      %v646 = vld [vmem:[%s343 + $0x7a0] sm:$0xff]
      %v647 = vld [vmem:[%s343 + $0x7a8] sm:$0xff]
      %v648 = vld [vmem:[%s343 + $0x7b0] sm:$0xff]
      %v649 = vld [vmem:[%s343 + $0x7b8] sm:$0xff]
      %v650 = vld [vmem:[%s343 + $0x7c0] sm:$0xff]
      %v651 = vld [vmem:[%s343 + $0x7c8] sm:$0xff]
      %v652 = vld [vmem:[%s343 + $0x7d0] sm:$0xff]
      %v653 = vld [vmem:[%s343 + $0x7d8] sm:$0xff]
      %v654 = vld [vmem:[%s343 + $0x7e0] sm:$0xff]
      %v655 = vld [vmem:[%s343 + $0x7e8] sm:$0xff]
      %v656 = vld [vmem:[%s343 + $0x7f0] sm:$0xff]
      %v657 = vld [vmem:[%s343 + $0x7f8] sm:$0xff]
      %v658 = vld [vmem:[%s343 + $0x800] sm:$0xff]
      %v659 = vld [vmem:[%s343 + $0x808] sm:$0xff]
      %v660 = vld [vmem:[%s343 + $0x810] sm:$0xff]
      %v661 = vld [vmem:[%s343 + $0x818] sm:$0xff]
      %v662 = vld [vmem:[%s343 + $0x820] sm:$0xff]
      %v663 = vld [vmem:[%s343 + $0x828] sm:$0xff]
      %v664 = vld [vmem:[%s343 + $0x830] sm:$0xff]
      %v665 = vld [vmem:[%s343 + $0x838] sm:$0xff]
      %v666 = vld [vmem:[%s343 + $0x840] sm:$0xff]
      %v667 = vld [vmem:[%s343 + $0x848] sm:$0xff]
      %v668 = vld [vmem:[%s343 + $0x850] sm:$0xff]
      %v669 = vld [vmem:[%s343 + $0x858] sm:$0xff]
      %v670 = vld [vmem:[%s343 + $0x860] sm:$0xff]
      %v671 = vld [vmem:[%s343 + $0x868] sm:$0xff]
      %v672 = vld [vmem:[%s343 + $0x870] sm:$0xff]
      %v673 = vld [vmem:[%s343 + $0x878] sm:$0xff]
      %v674 = vld [vmem:[%s343 + $0x880] sm:$0xff]
      %v675 = vld [vmem:[%s343 + $0x888] sm:$0xff]
      %v676 = vld [vmem:[%s343 + $0x890] sm:$0xff]
      %v677 = vld [vmem:[%s343 + $0x898] sm:$0xff]
      %v678 = vld [vmem:[%s343 + $0x8a0] sm:$0xff]
      %v679 = vld [vmem:[%s343 + $0x8a8] sm:$0xff]
      %v680 = vld [vmem:[%s343 + $0x8b0] sm:$0xff]
      %v681 = vld [vmem:[%s343 + $0x8b8] sm:$0xff]
      %v682 = vld [vmem:[%s343 + $0x8c0] sm:$0xff]
      %v683 = vld [vmem:[%s343 + $0x8c8] sm:$0xff]
      %v684 = vld [vmem:[%s343 + $0x8d0] sm:$0xff]
      %v685 = vld [vmem:[%s343 + $0x8d8] sm:$0xff]
      %v686 = vld [vmem:[%s343 + $0x8e0] sm:$0xff]
      %v687 = vld [vmem:[%s343 + $0x8e8] sm:$0xff]
      %v688 = vld [vmem:[%s343 + $0x8f0] sm:$0xff]
      %v689 = vld [vmem:[%s343 + $0x8f8] sm:$0xff]
      %v690 = vld [vmem:[%s343 + $0x900] sm:$0xff]
      %v691 = vld [vmem:[%s343 + $0x908] sm:$0xff]
      %v692 = vld [vmem:[%s343 + $0x910] sm:$0xff]
      %v693 = vld [vmem:[%s343 + $0x918] sm:$0xff]
      %v694 = vld [vmem:[%s343 + $0x920] sm:$0xff]
      %v695 = vld [vmem:[%s343 + $0x928] sm:$0xff]
      %v696 = vld [vmem:[%s343 + $0x930] sm:$0xff]
      %v697 = vld [vmem:[%s343 + $0x938] sm:$0xff]
      %v698 = vld [vmem:[%s343 + $0x940] sm:$0xff]
      %v699 = vld [vmem:[%s343 + $0x948] sm:$0xff]
      %v700 = vld [vmem:[%s343 + $0x950] sm:$0xff]
      %v701 = vld [vmem:[%s343 + $0x958] sm:$0xff]
      %v702 = vld [vmem:[%s343 + $0x960] sm:$0xff]
      %v703 = vld [vmem:[%s343 + $0x968] sm:$0xff]
      %v704 = vld [vmem:[%s343 + $0x970] sm:$0xff]
      %v705 = vld [vmem:[%s343 + $0x978] sm:$0xff]
      %v706 = vld [vmem:[%s343 + $0x980] sm:$0xff]
      %v707 = vld [vmem:[%s343 + $0x988] sm:$0xff]
      %v708 = vld [vmem:[%s343 + $0x990] sm:$0xff]
      %v709 = vld [vmem:[%s343 + $0x998] sm:$0xff]
      %v710 = vld [vmem:[%s343 + $0x9a0] sm:$0xff]
      %v711 = vld [vmem:[%s343 + $0x9a8] sm:$0xff]
      %v712 = vld [vmem:[%s343 + $0x9b0] sm:$0xff]
      %v713 = vld [vmem:[%s343 + $0x9b8] sm:$0xff]
      %v714 = vld [vmem:[%s343 + $0x9c0] sm:$0xff]
      %v715 = vld [vmem:[%s343 + $0x9c8] sm:$0xff]
      %v716 = vld [vmem:[%s343 + $0x9d0] sm:$0xff]
      %v717 = vld [vmem:[%s343 + $0x9d8] sm:$0xff]
      %v718 = vld [vmem:[%s343 + $0x9e0] sm:$0xff]
      %v719 = vld [vmem:[%s343 + $0x9e8] sm:$0xff]
      %v720 = vld [vmem:[%s343 + $0x9f0] sm:$0xff]
      %v721 = vld [vmem:[%s343 + $0x9f8] sm:$0xff]
      %v722 = vld [vmem:[%s343 + $0xa00] sm:$0xff]
      %v723 = vld [vmem:[%s343 + $0xa08] sm:$0xff]
      %v724 = vld [vmem:[%s343 + $0xa10] sm:$0xff]
      %v725 = vld [vmem:[%s343 + $0xa18] sm:$0xff]
      %v726 = vld [vmem:[%s343 + $0xa20] sm:$0xff]
      %v727 = vld [vmem:[%s343 + $0xa28] sm:$0xff]
      %v728 = vld [vmem:[%s343 + $0xa30] sm:$0xff]
      %v729 = vld [vmem:[%s343 + $0xa38] sm:$0xff]
      %v730 = vld [vmem:[%s343 + $0xa40] sm:$0xff]
      %v731 = vld [vmem:[%s343 + $0xa48] sm:$0xff]
      %v732 = vld [vmem:[%s343 + $0xa50] sm:$0xff]
      %v733 = vld [vmem:[%s343 + $0xa58] sm:$0xff]
      %v734 = vld [vmem:[%s343 + $0xa60] sm:$0xff]
      %v735 = vld [vmem:[%s343 + $0xa68] sm:$0xff]
      %v736 = vld [vmem:[%s343 + $0xa70] sm:$0xff]
      %v737 = vld [vmem:[%s343 + $0xa78] sm:$0xff]
      %v738 = vld [vmem:[%s343 + $0xa80] sm:$0xff]
      %v739 = vld [vmem:[%s343 + $0xa88] sm:$0xff]
      %v740 = vld [vmem:[%s343 + $0xa90] sm:$0xff]
      %v741 = vld [vmem:[%s343 + $0xa98] sm:$0xff]
      %v742 = vld [vmem:[%s343 + $0xaa0] sm:$0xff]
      %v743 = vld [vmem:[%s343 + $0xaa8] sm:$0xff]
      %v744 = vld [vmem:[%s343 + $0xab0] sm:$0xff]
      %v745 = vld [vmem:[%s343 + $0xab8] sm:$0xff]
      %v746 = vld [vmem:[%s343 + $0xac0] sm:$0xff]
      %v747 = vld [vmem:[%s343 + $0xac8] sm:$0xff]
      %v748 = vld [vmem:[%s343 + $0xad0] sm:$0xff]
      %v749 = vld [vmem:[%s343 + $0xad8] sm:$0xff]
      %v750 = vld [vmem:[%s343 + $0xae0] sm:$0xff]
      %v751 = vld [vmem:[%s343 + $0xae8] sm:$0xff]
      %v752 = vld [vmem:[%s343 + $0xaf0] sm:$0xff]
      %v753 = vld [vmem:[%s343 + $0xaf8] sm:$0xff]
      %v754 = vld [vmem:[%s343 + $0xb00] sm:$0xff]
      %v755 = vld [vmem:[%s343 + $0xb08] sm:$0xff]
      %v756 = vld [vmem:[%s343 + $0xb10] sm:$0xff]
      %v757 = vld [vmem:[%s343 + $0xb18] sm:$0xff]
      %v758 = vld [vmem:[%s343 + $0xb20] sm:$0xff]
      %v759 = vld [vmem:[%s343 + $0xb28] sm:$0xff]
      %v760 = vld [vmem:[%s343 + $0xb30] sm:$0xff]
      %v761 = vld [vmem:[%s343 + $0xb38] sm:$0xff]
      %v762 = vld [vmem:[%s343 + $0xb40] sm:$0xff]
      %v763 = vld [vmem:[%s343 + $0xb48] sm:$0xff]
      %v764 = vld [vmem:[%s343 + $0xb50] sm:$0xff]
      %v765 = vld [vmem:[%s343 + $0xb58] sm:$0xff]
      %v766 = vld [vmem:[%s343 + $0xb60] sm:$0xff]
      %v767 = vld [vmem:[%s343 + $0xb68] sm:$0xff]
      %v768 = vld [vmem:[%s343 + $0xb70] sm:$0xff]
      %v769 = vld [vmem:[%s343 + $0xb78] sm:$0xff]
      %v770 = vld [vmem:[%s343 + $0xb80] sm:$0xff]
      %v771 = vld [vmem:[%s343 + $0xb88] sm:$0xff]
      %v772 = vld [vmem:[%s343 + $0xb90] sm:$0xff]
      %v773 = vld [vmem:[%s343 + $0xb98] sm:$0xff]
      %v774 = vld [vmem:[%s343 + $0xba0] sm:$0xff]
      %v775 = vld [vmem:[%s343 + $0xba8] sm:$0xff]
      %v776 = vld [vmem:[%s343 + $0xbb0] sm:$0xff]
      %v777 = vld [vmem:[%s343 + $0xbb8] sm:$0xff]
      %v778 = vld [vmem:[%s343 + $0xbc0] sm:$0xff]
      %v779 = vld [vmem:[%s343 + $0xbc8] sm:$0xff]
      %v780 = vld [vmem:[%s343 + $0xbd0] sm:$0xff]
      %v781 = vld [vmem:[%s343 + $0xbd8] sm:$0xff]
      %v782 = vld [vmem:[%s343 + $0xbe0] sm:$0xff]
      %v783 = vld [vmem:[%s343 + $0xbe8] sm:$0xff]
      %v784 = vld [vmem:[%s343 + $0xbf0] sm:$0xff]
      %v785 = vld [vmem:[%s343 + $0xbf8] sm:$0xff]
      %v786 = vld [vmem:[%s343 + $0xc00] sm:$0xff]
      %v787 = vld [vmem:[%s343 + $0xc08] sm:$0xff]
      %v788 = vld [vmem:[%s343 + $0xc10] sm:$0xff]
      %v789 = vld [vmem:[%s343 + $0xc18] sm:$0xff]
      %v790 = vld [vmem:[%s343 + $0xc20] sm:$0xff]
      %v791 = vld [vmem:[%s343 + $0xc28] sm:$0xff]
      %v792 = vld [vmem:[%s343 + $0xc30] sm:$0xff]
      %v793 = vld [vmem:[%s343 + $0xc38] sm:$0xff]
      %v794 = vld [vmem:[%s343 + $0xc40] sm:$0xff]
      %v795 = vld [vmem:[%s343 + $0xc48] sm:$0xff]
      %v796 = vld [vmem:[%s343 + $0xc50] sm:$0xff]
      %v797 = vld [vmem:[%s343 + $0xc58] sm:$0xff]
      %v798 = vld [vmem:[%s343 + $0xc60] sm:$0xff]
      %v799 = vld [vmem:[%s343 + $0xc68] sm:$0xff]
      %v800 = vld [vmem:[%s343 + $0xc70] sm:$0xff]
      %v801 = vld [vmem:[%s343 + $0xc78] sm:$0xff]
      %v802 = vld [vmem:[%s343 + $0xc80] sm:$0xff]
      %v803 = vld [vmem:[%s343 + $0xc88] sm:$0xff]
      %v804 = vld [vmem:[%s343 + $0xc90] sm:$0xff]
      %v805 = vld [vmem:[%s343 + $0xc98] sm:$0xff]
      %v806 = vld [vmem:[%s343 + $0xca0] sm:$0xff]
      %v807 = vld [vmem:[%s343 + $0xca8] sm:$0xff]
      %v808 = vld [vmem:[%s343 + $0xcb0] sm:$0xff]
      %v809 = vld [vmem:[%s343 + $0xcb8] sm:$0xff]
      %v810 = vld [vmem:[%s343 + $0xcc0] sm:$0xff]
      %v811 = vld [vmem:[%s343 + $0xcc8] sm:$0xff]
      %v812 = vld [vmem:[%s343 + $0xcd0] sm:$0xff]
      %v813 = vld [vmem:[%s343 + $0xcd8] sm:$0xff]
      %v814 = vld [vmem:[%s343 + $0xce0] sm:$0xff]
      %v815 = vld [vmem:[%s343 + $0xce8] sm:$0xff]
      %v816 = vld [vmem:[%s343 + $0xcf0] sm:$0xff]
      %v817 = vld [vmem:[%s343 + $0xcf8] sm:$0xff]
      %v818 = vld [vmem:[%s343 + $0xd00] sm:$0xff]
      %v819 = vld [vmem:[%s343 + $0xd08] sm:$0xff]
      %v820 = vld [vmem:[%s343 + $0xd10] sm:$0xff]
      %v821 = vld [vmem:[%s343 + $0xd18] sm:$0xff]
      %v822 = vld [vmem:[%s343 + $0xd20] sm:$0xff]
      %v823 = vld [vmem:[%s343 + $0xd28] sm:$0xff]
      %v824 = vld [vmem:[%s343 + $0xd30] sm:$0xff]
      %v825 = vld [vmem:[%s343 + $0xd38] sm:$0xff]
      %v826 = vld [vmem:[%s343 + $0xd40] sm:$0xff]
      %v827 = vld [vmem:[%s343 + $0xd48] sm:$0xff]
      %v828 = vld [vmem:[%s343 + $0xd50] sm:$0xff]
      %v829 = vld [vmem:[%s343 + $0xd58] sm:$0xff]
      %v830 = vld [vmem:[%s343 + $0xd60] sm:$0xff]
      %v831 = vld [vmem:[%s343 + $0xd68] sm:$0xff]
      %v832 = vld [vmem:[%s343 + $0xd70] sm:$0xff]
      %v833 = vld [vmem:[%s343 + $0xd78] sm:$0xff]
      %v834 = vld [vmem:[%s343 + $0xd80] sm:$0xff]
      %v835 = vld [vmem:[%s343 + $0xd88] sm:$0xff]
      %v836 = vld [vmem:[%s343 + $0xd90] sm:$0xff]
      %v837 = vld [vmem:[%s343 + $0xd98] sm:$0xff]
      %v838 = vld [vmem:[%s343 + $0xda0] sm:$0xff]
      %v839 = vld [vmem:[%s343 + $0xda8] sm:$0xff]
      %v840 = vld [vmem:[%s343 + $0xdb0] sm:$0xff]
      %v841 = vld [vmem:[%s343 + $0xdb8] sm:$0xff]
      %v842 = vld [vmem:[%s343 + $0xdc0] sm:$0xff]
      %v843 = vld [vmem:[%s343 + $0xdc8] sm:$0xff]
      %v844 = vld [vmem:[%s343 + $0xdd0] sm:$0xff]
      %v845 = vld [vmem:[%s343 + $0xdd8] sm:$0xff]
      %v846 = vld [vmem:[%s343 + $0xde0] sm:$0xff]
      %v847 = vld [vmem:[%s343 + $0xde8] sm:$0xff]
      %v848 = vld [vmem:[%s343 + $0xdf0] sm:$0xff]
      %v849 = vld [vmem:[%s343 + $0xdf8] sm:$0xff]
      %v850 = vld [vmem:[%s343 + $0xe00] sm:$0xff]
      %v851 = vld [vmem:[%s343 + $0xe08] sm:$0xff]
      %v852 = vld [vmem:[%s343 + $0xe10] sm:$0xff]
      %v853 = vld [vmem:[%s343 + $0xe18] sm:$0xff]
      %v854 = vld [vmem:[%s343 + $0xe20] sm:$0xff]
      %v855 = vld [vmem:[%s343 + $0xe28] sm:$0xff]
      %v856 = vld [vmem:[%s343 + $0xe30] sm:$0xff]
      %v857 = vld [vmem:[%s343 + $0xe38] sm:$0xff]
      %v858 = vld [vmem:[%s343 + $0xe40] sm:$0xff]
      %v859 = vld [vmem:[%s343 + $0xe48] sm:$0xff]
      %v860 = vld [vmem:[%s343 + $0xe50] sm:$0xff]
      %v861 = vld [vmem:[%s343 + $0xe58] sm:$0xff]
      %v862 = vld [vmem:[%s343 + $0xe60] sm:$0xff]
      %v863 = vld [vmem:[%s343 + $0xe68] sm:$0xff]
      %v864 = vld [vmem:[%s343 + $0xe70] sm:$0xff]
      %v865 = vld [vmem:[%s343 + $0xe78] sm:$0xff]
      %v866 = vld [vmem:[%s343 + $0xe80] sm:$0xff]
      %v867 = vld [vmem:[%s343 + $0xe88] sm:$0xff]
      %v868 = vld [vmem:[%s343 + $0xe90] sm:$0xff]
      %v869 = vld [vmem:[%s343 + $0xe98] sm:$0xff]
      %v870 = vld [vmem:[%s343 + $0xea0] sm:$0xff]
      %v871 = vld [vmem:[%s343 + $0xea8] sm:$0xff]
      %v872 = vld [vmem:[%s343 + $0xeb0] sm:$0xff]
      %v873 = vld [vmem:[%s343 + $0xeb8] sm:$0xff]
      %v874 = vld [vmem:[%s343 + $0xec0] sm:$0xff]
      %v875 = vld [vmem:[%s343 + $0xec8] sm:$0xff]
      %v876 = vld [vmem:[%s343 + $0xed0] sm:$0xff]
      %v877 = vld [vmem:[%s343 + $0xed8] sm:$0xff]
      %v878 = vld [vmem:[%s343 + $0xee0] sm:$0xff]
      %v879 = vld [vmem:[%s343 + $0xee8] sm:$0xff]
      %v880 = vld [vmem:[%s343 + $0xef0] sm:$0xff]
      %v881 = vld [vmem:[%s343 + $0xef8] sm:$0xff]
      %v882 = vld [vmem:[%s343 + $0xf00] sm:$0xff]
      %v883 = vld [vmem:[%s343 + $0xf08] sm:$0xff]
      %v884 = vld [vmem:[%s343 + $0xf10] sm:$0xff]
      %v885 = vld [vmem:[%s343 + $0xf18] sm:$0xff]
      %v886 = vld [vmem:[%s343 + $0xf20] sm:$0xff]
      %v887 = vld [vmem:[%s343 + $0xf28] sm:$0xff]
      %v888 = vld [vmem:[%s343 + $0xf30] sm:$0xff]
      %v889 = vld [vmem:[%s343 + $0xf38] sm:$0xff]
      %v890 = vld [vmem:[%s343 + $0xf40] sm:$0xff]
      %v891 = vld [vmem:[%s343 + $0xf48] sm:$0xff]
      %v892 = vld [vmem:[%s343 + $0xf50] sm:$0xff]
      %v893 = vld [vmem:[%s343 + $0xf58] sm:$0xff]
      %v894 = vld [vmem:[%s343 + $0xf60] sm:$0xff]
      %v895 = vld [vmem:[%s343 + $0xf68] sm:$0xff]
      %v896 = vld [vmem:[%s343 + $0xf70] sm:$0xff]
      %v897 = vld [vmem:[%s343 + $0xf78] sm:$0xff]
      %v898 = vld [vmem:[%s343 + $0xf80] sm:$0xff]
      %v899 = vld [vmem:[%s343 + $0xf88] sm:$0xff]
      %v900 = vld [vmem:[%s343 + $0xf90] sm:$0xff]
      %v901 = vld [vmem:[%s343 + $0xf98] sm:$0xff]
      %v902 = vld [vmem:[%s343 + $0xfa0] sm:$0xff]
      %v903 = vld [vmem:[%s343 + $0xfa8] sm:$0xff]
      %v904 = vld [vmem:[%s343 + $0xfb0] sm:$0xff]
      %v905 = vld [vmem:[%s343 + $0xfb8] sm:$0xff]
      %v906 = vld [vmem:[%s343 + $0xfc0] sm:$0xff]
      %v907 = vld [vmem:[%s343 + $0xfc8] sm:$0xff]
      %v908 = vld [vmem:[%s343 + $0xfd0] sm:$0xff]
      %v909 = vld [vmem:[%s343 + $0xfd8] sm:$0xff]
      %v910 = vld [vmem:[%s343 + $0xfe0] sm:$0xff]
      %v911 = vld [vmem:[%s343 + $0xfe8] sm:$0xff]
      %v912 = vld [vmem:[%s343 + $0xff0] sm:$0xff]
      %v913 = vld [vmem:[%s343 + $0xff8] sm:$0xff]
      %v1426 = vunpack.c.l.b16 %v402
      %v1427 = vunpack.c.h.b16 %v402
      %v1428 = vunpack.c.l.b16 %v403
      %v1429 = vunpack.c.h.b16 %v403
      %v1430 = vunpack.c.l.b16 %v404
      %v1431 = vunpack.c.h.b16 %v404
      %v1432 = vunpack.c.l.b16 %v405
      %v1433 = vunpack.c.h.b16 %v405
      %v1434 = vunpack.c.l.b16 %v406
      %v1435 = vunpack.c.h.b16 %v406
      %v1436 = vunpack.c.l.b16 %v407
      %v1437 = vunpack.c.h.b16 %v407
      %v1438 = vunpack.c.l.b16 %v408
      %v1439 = vunpack.c.h.b16 %v408
      %v1440 = vunpack.c.l.b16 %v409
      %v1441 = vunpack.c.h.b16 %v409
      %v1442 = vunpack.c.l.b16 %v410
      %v1443 = vunpack.c.h.b16 %v410
      %v1444 = vunpack.c.l.b16 %v411
      %v1445 = vunpack.c.h.b16 %v411
      %v1446 = vunpack.c.l.b16 %v412
      %v1447 = vunpack.c.h.b16 %v412
      %v1448 = vunpack.c.l.b16 %v413
      %v1449 = vunpack.c.h.b16 %v413
      %v1450 = vunpack.c.l.b16 %v414
      %v1451 = vunpack.c.h.b16 %v414
      %v1452 = vunpack.c.l.b16 %v415
      %v1453 = vunpack.c.h.b16 %v415
      %v1454 = vunpack.c.l.b16 %v416
      %v1455 = vunpack.c.h.b16 %v416
      %v1456 = vunpack.c.l.b16 %v417
      %v1457 = vunpack.c.h.b16 %v417
      %v1458 = vunpack.c.l.b16 %v418
      %v1459 = vunpack.c.h.b16 %v418
      %v1460 = vunpack.c.l.b16 %v419
      %v1461 = vunpack.c.h.b16 %v419
      %v1462 = vunpack.c.l.b16 %v420
      %v1463 = vunpack.c.h.b16 %v420
      %v1464 = vunpack.c.l.b16 %v421
      %v1465 = vunpack.c.h.b16 %v421
      %v1466 = vunpack.c.l.b16 %v422
      %v1467 = vunpack.c.h.b16 %v422
      %v1468 = vunpack.c.l.b16 %v423
      %v1469 = vunpack.c.h.b16 %v423
      %v1470 = vunpack.c.l.b16 %v424
      %v1471 = vunpack.c.h.b16 %v424
      %v1472 = vunpack.c.l.b16 %v425
      %v1473 = vunpack.c.h.b16 %v425
      %v1474 = vunpack.c.l.b16 %v426
      %v1475 = vunpack.c.h.b16 %v426
      %v1476 = vunpack.c.l.b16 %v427
      %v1477 = vunpack.c.h.b16 %v427
      %v1478 = vunpack.c.l.b16 %v428
      %v1479 = vunpack.c.h.b16 %v428
      %v1480 = vunpack.c.l.b16 %v429
      %v1481 = vunpack.c.h.b16 %v429
      %v1482 = vunpack.c.l.b16 %v430
      %v1483 = vunpack.c.h.b16 %v430
      %v1484 = vunpack.c.l.b16 %v431
      %v1485 = vunpack.c.h.b16 %v431
      %v1486 = vunpack.c.l.b16 %v432
      %v1487 = vunpack.c.h.b16 %v432
      %v1488 = vunpack.c.l.b16 %v433
      %v1489 = vunpack.c.h.b16 %v433
      %v1490 = vunpack.c.l.b16 %v434
      %v1491 = vunpack.c.h.b16 %v434
      %v1492 = vunpack.c.l.b16 %v435
      %v1493 = vunpack.c.h.b16 %v435
      %v1494 = vunpack.c.l.b16 %v436
      %v1495 = vunpack.c.h.b16 %v436
      %v1496 = vunpack.c.l.b16 %v437
      %v1497 = vunpack.c.h.b16 %v437
      %v1498 = vunpack.c.l.b16 %v438
      %v1499 = vunpack.c.h.b16 %v438
      %v1500 = vunpack.c.l.b16 %v439
      %v1501 = vunpack.c.h.b16 %v439
      %v1502 = vunpack.c.l.b16 %v440
      %v1503 = vunpack.c.h.b16 %v440
      %v1504 = vunpack.c.l.b16 %v441
      %v1505 = vunpack.c.h.b16 %v441
      %v1506 = vunpack.c.l.b16 %v442
      %v1507 = vunpack.c.h.b16 %v442
      %v1508 = vunpack.c.l.b16 %v443
      %v1509 = vunpack.c.h.b16 %v443
      %v1510 = vunpack.c.l.b16 %v444
      %v1511 = vunpack.c.h.b16 %v444
      %v1512 = vunpack.c.l.b16 %v445
      %v1513 = vunpack.c.h.b16 %v445
      %v1514 = vunpack.c.l.b16 %v446
      %v1515 = vunpack.c.h.b16 %v446
      %v1516 = vunpack.c.l.b16 %v447
      %v1517 = vunpack.c.h.b16 %v447
      %v1518 = vunpack.c.l.b16 %v448
      %v1519 = vunpack.c.h.b16 %v448
      %v1520 = vunpack.c.l.b16 %v449
      %v1521 = vunpack.c.h.b16 %v449
      %v1522 = vunpack.c.l.b16 %v450
      %v1523 = vunpack.c.h.b16 %v450
      %v1524 = vunpack.c.l.b16 %v451
      %v1525 = vunpack.c.h.b16 %v451
      %v1526 = vunpack.c.l.b16 %v452
      %v1527 = vunpack.c.h.b16 %v452
      %v1528 = vunpack.c.l.b16 %v453
      %v1529 = vunpack.c.h.b16 %v453
      %v1530 = vunpack.c.l.b16 %v454
      %v1531 = vunpack.c.h.b16 %v454
      %v1532 = vunpack.c.l.b16 %v455
      %v1533 = vunpack.c.h.b16 %v455
      %v1534 = vunpack.c.l.b16 %v456
      %v1535 = vunpack.c.h.b16 %v456
      %v1536 = vunpack.c.l.b16 %v457
      %v1537 = vunpack.c.h.b16 %v457
      %v1538 = vunpack.c.l.b16 %v458
      %v1539 = vunpack.c.h.b16 %v458
      %v1540 = vunpack.c.l.b16 %v459
      %v1541 = vunpack.c.h.b16 %v459
      %v1542 = vunpack.c.l.b16 %v460
      %v1543 = vunpack.c.h.b16 %v460
      %v1544 = vunpack.c.l.b16 %v461
      %v1545 = vunpack.c.h.b16 %v461
      %v1546 = vunpack.c.l.b16 %v462
      %v1547 = vunpack.c.h.b16 %v462
      %v1548 = vunpack.c.l.b16 %v463
      %v1549 = vunpack.c.h.b16 %v463
      %v1550 = vunpack.c.l.b16 %v464
      %v1551 = vunpack.c.h.b16 %v464
      %v1552 = vunpack.c.l.b16 %v465
      %v1553 = vunpack.c.h.b16 %v465
      %v1554 = vunpack.c.l.b16 %v466
      %v1555 = vunpack.c.h.b16 %v466
      %v1556 = vunpack.c.l.b16 %v467
      %v1557 = vunpack.c.h.b16 %v467
      %v1558 = vunpack.c.l.b16 %v468
      %v1559 = vunpack.c.h.b16 %v468
      %v1560 = vunpack.c.l.b16 %v469
      %v1561 = vunpack.c.h.b16 %v469
      %v1562 = vunpack.c.l.b16 %v470
      %v1563 = vunpack.c.h.b16 %v470
      %v1564 = vunpack.c.l.b16 %v471
      %v1565 = vunpack.c.h.b16 %v471
      %v1566 = vunpack.c.l.b16 %v472
      %v1567 = vunpack.c.h.b16 %v472
      %v1568 = vunpack.c.l.b16 %v473
      %v1569 = vunpack.c.h.b16 %v473
      %v1570 = vunpack.c.l.b16 %v474
      %v1571 = vunpack.c.h.b16 %v474
      %v1572 = vunpack.c.l.b16 %v475
      %v1573 = vunpack.c.h.b16 %v475
      %v1574 = vunpack.c.l.b16 %v476
      %v1575 = vunpack.c.h.b16 %v476
      %v1576 = vunpack.c.l.b16 %v477
      %v1577 = vunpack.c.h.b16 %v477
      %v1578 = vunpack.c.l.b16 %v478
      %v1579 = vunpack.c.h.b16 %v478
      %v1580 = vunpack.c.l.b16 %v479
      %v1581 = vunpack.c.h.b16 %v479
      %v1582 = vunpack.c.l.b16 %v480
      %v1583 = vunpack.c.h.b16 %v480
      %v1584 = vunpack.c.l.b16 %v481
      %v1585 = vunpack.c.h.b16 %v481
      %v1586 = vunpack.c.l.b16 %v482
      %v1587 = vunpack.c.h.b16 %v482
      %v1588 = vunpack.c.l.b16 %v483
      %v1589 = vunpack.c.h.b16 %v483
      %v1590 = vunpack.c.l.b16 %v484
      %v1591 = vunpack.c.h.b16 %v484
      %v1592 = vunpack.c.l.b16 %v485
      %v1593 = vunpack.c.h.b16 %v485
      %v1594 = vunpack.c.l.b16 %v486
      %v1595 = vunpack.c.h.b16 %v486
      %v1596 = vunpack.c.l.b16 %v487
      %v1597 = vunpack.c.h.b16 %v487
      %v1598 = vunpack.c.l.b16 %v488
      %v1599 = vunpack.c.h.b16 %v488
      %v1600 = vunpack.c.l.b16 %v489
      %v1601 = vunpack.c.h.b16 %v489
      %v1602 = vunpack.c.l.b16 %v490
      %v1603 = vunpack.c.h.b16 %v490
      %v1604 = vunpack.c.l.b16 %v491
      %v1605 = vunpack.c.h.b16 %v491
      %v1606 = vunpack.c.l.b16 %v492
      %v1607 = vunpack.c.h.b16 %v492
      %v1608 = vunpack.c.l.b16 %v493
      %v1609 = vunpack.c.h.b16 %v493
      %v1610 = vunpack.c.l.b16 %v494
      %v1611 = vunpack.c.h.b16 %v494
      %v1612 = vunpack.c.l.b16 %v495
      %v1613 = vunpack.c.h.b16 %v495
      %v1614 = vunpack.c.l.b16 %v496
      %v1615 = vunpack.c.h.b16 %v496
      %v1616 = vunpack.c.l.b16 %v497
      %v1617 = vunpack.c.h.b16 %v497
      %v1618 = vunpack.c.l.b16 %v498
      %v1619 = vunpack.c.h.b16 %v498
      %v1620 = vunpack.c.l.b16 %v499
      %v1621 = vunpack.c.h.b16 %v499
      %v1622 = vunpack.c.l.b16 %v500
      %v1623 = vunpack.c.h.b16 %v500
      %v1624 = vunpack.c.l.b16 %v501
      %v1625 = vunpack.c.h.b16 %v501
      %v1626 = vunpack.c.l.b16 %v502
      %v1627 = vunpack.c.h.b16 %v502
      %v1628 = vunpack.c.l.b16 %v503
      %v1629 = vunpack.c.h.b16 %v503
      %v1630 = vunpack.c.l.b16 %v504
      %v1631 = vunpack.c.h.b16 %v504
      %v1632 = vunpack.c.l.b16 %v505
      %v1633 = vunpack.c.h.b16 %v505
      %v1634 = vunpack.c.l.b16 %v506
      %v1635 = vunpack.c.h.b16 %v506
      %v1636 = vunpack.c.l.b16 %v507
      %v1637 = vunpack.c.h.b16 %v507
      %v1638 = vunpack.c.l.b16 %v508
      %v1639 = vunpack.c.h.b16 %v508
      %v1640 = vunpack.c.l.b16 %v509
      %v1641 = vunpack.c.h.b16 %v509
      %v1642 = vunpack.c.l.b16 %v510
      %v1643 = vunpack.c.h.b16 %v510
      %v1644 = vunpack.c.l.b16 %v511
      %v1645 = vunpack.c.h.b16 %v511
      %v1646 = vunpack.c.l.b16 %v512
      %v1647 = vunpack.c.h.b16 %v512
      %v1648 = vunpack.c.l.b16 %v513
      %v1649 = vunpack.c.h.b16 %v513
      %v1650 = vunpack.c.l.b16 %v514
      %v1651 = vunpack.c.h.b16 %v514
      %v1652 = vunpack.c.l.b16 %v515
      %v1653 = vunpack.c.h.b16 %v515
      %v1654 = vunpack.c.l.b16 %v516
      %v1655 = vunpack.c.h.b16 %v516
      %v1656 = vunpack.c.l.b16 %v517
      %v1657 = vunpack.c.h.b16 %v517
      %v1658 = vunpack.c.l.b16 %v518
      %v1659 = vunpack.c.h.b16 %v518
      %v1660 = vunpack.c.l.b16 %v519
      %v1661 = vunpack.c.h.b16 %v519
      %v1662 = vunpack.c.l.b16 %v520
      %v1663 = vunpack.c.h.b16 %v520
      %v1664 = vunpack.c.l.b16 %v521
      %v1665 = vunpack.c.h.b16 %v521
      %v1666 = vunpack.c.l.b16 %v522
      %v1667 = vunpack.c.h.b16 %v522
      %v1668 = vunpack.c.l.b16 %v523
      %v1669 = vunpack.c.h.b16 %v523
      %v1670 = vunpack.c.l.b16 %v524
      %v1671 = vunpack.c.h.b16 %v524
      %v1672 = vunpack.c.l.b16 %v525
      %v1673 = vunpack.c.h.b16 %v525
      %v1674 = vunpack.c.l.b16 %v526
      %v1675 = vunpack.c.h.b16 %v526
      %v1676 = vunpack.c.l.b16 %v527
      %v1677 = vunpack.c.h.b16 %v527
      %v1678 = vunpack.c.l.b16 %v528
      %v1679 = vunpack.c.h.b16 %v528
      %v1680 = vunpack.c.l.b16 %v529
      %v1681 = vunpack.c.h.b16 %v529
      %v1682 = vunpack.c.l.b16 %v530
      %v1683 = vunpack.c.h.b16 %v530
      %v1684 = vunpack.c.l.b16 %v531
      %v1685 = vunpack.c.h.b16 %v531
      %v1686 = vunpack.c.l.b16 %v532
      %v1687 = vunpack.c.h.b16 %v532
      %v1688 = vunpack.c.l.b16 %v533
      %v1689 = vunpack.c.h.b16 %v533
      %v1690 = vunpack.c.l.b16 %v534
      %v1691 = vunpack.c.h.b16 %v534
      %v1692 = vunpack.c.l.b16 %v535
      %v1693 = vunpack.c.h.b16 %v535
      %v1694 = vunpack.c.l.b16 %v536
      %v1695 = vunpack.c.h.b16 %v536
      %v1696 = vunpack.c.l.b16 %v537
      %v1697 = vunpack.c.h.b16 %v537
      %v1698 = vunpack.c.l.b16 %v538
      %v1699 = vunpack.c.h.b16 %v538
      %v1700 = vunpack.c.l.b16 %v539
      %v1701 = vunpack.c.h.b16 %v539
      %v1702 = vunpack.c.l.b16 %v540
      %v1703 = vunpack.c.h.b16 %v540
      %v1704 = vunpack.c.l.b16 %v541
      %v1705 = vunpack.c.h.b16 %v541
      %v1706 = vunpack.c.l.b16 %v542
      %v1707 = vunpack.c.h.b16 %v542
      %v1708 = vunpack.c.l.b16 %v543
      %v1709 = vunpack.c.h.b16 %v543
      %v1710 = vunpack.c.l.b16 %v544
      %v1711 = vunpack.c.h.b16 %v544
      %v1712 = vunpack.c.l.b16 %v545
      %v1713 = vunpack.c.h.b16 %v545
      %v1714 = vunpack.c.l.b16 %v546
      %v1715 = vunpack.c.h.b16 %v546
      %v1716 = vunpack.c.l.b16 %v547
      %v1717 = vunpack.c.h.b16 %v547
      %v1718 = vunpack.c.l.b16 %v548
      %v1719 = vunpack.c.h.b16 %v548
      %v1720 = vunpack.c.l.b16 %v549
      %v1721 = vunpack.c.h.b16 %v549
      %v1722 = vunpack.c.l.b16 %v550
      %v1723 = vunpack.c.h.b16 %v550
      %v1724 = vunpack.c.l.b16 %v551
      %v1725 = vunpack.c.h.b16 %v551
      %v1726 = vunpack.c.l.b16 %v552
      %v1727 = vunpack.c.h.b16 %v552
      %v1728 = vunpack.c.l.b16 %v553
      %v1729 = vunpack.c.h.b16 %v553
      %v1730 = vunpack.c.l.b16 %v554
      %v1731 = vunpack.c.h.b16 %v554
      %v1732 = vunpack.c.l.b16 %v555
      %v1733 = vunpack.c.h.b16 %v555
      %v1734 = vunpack.c.l.b16 %v556
      %v1735 = vunpack.c.h.b16 %v556
      %v1736 = vunpack.c.l.b16 %v557
      %v1737 = vunpack.c.h.b16 %v557
      %v1738 = vunpack.c.l.b16 %v558
      %v1739 = vunpack.c.h.b16 %v558
      %v1740 = vunpack.c.l.b16 %v559
      %v1741 = vunpack.c.h.b16 %v559
      %v1742 = vunpack.c.l.b16 %v560
      %v1743 = vunpack.c.h.b16 %v560
      %v1744 = vunpack.c.l.b16 %v561
      %v1745 = vunpack.c.h.b16 %v561
      %v1746 = vunpack.c.l.b16 %v562
      %v1747 = vunpack.c.h.b16 %v562
      %v1748 = vunpack.c.l.b16 %v563
      %v1749 = vunpack.c.h.b16 %v563
      %v1750 = vunpack.c.l.b16 %v564
      %v1751 = vunpack.c.h.b16 %v564
      %v1752 = vunpack.c.l.b16 %v565
      %v1753 = vunpack.c.h.b16 %v565
      %v1754 = vunpack.c.l.b16 %v566
      %v1755 = vunpack.c.h.b16 %v566
      %v1756 = vunpack.c.l.b16 %v567
      %v1757 = vunpack.c.h.b16 %v567
      %v1758 = vunpack.c.l.b16 %v568
      %v1759 = vunpack.c.h.b16 %v568
      %v1760 = vunpack.c.l.b16 %v569
      %v1761 = vunpack.c.h.b16 %v569
      %v1762 = vunpack.c.l.b16 %v570
      %v1763 = vunpack.c.h.b16 %v570
      %v1764 = vunpack.c.l.b16 %v571
      %v1765 = vunpack.c.h.b16 %v571
      %v1766 = vunpack.c.l.b16 %v572
      %v1767 = vunpack.c.h.b16 %v572
      %v1768 = vunpack.c.l.b16 %v573
      %v1769 = vunpack.c.h.b16 %v573
      %v1770 = vunpack.c.l.b16 %v574
      %v1771 = vunpack.c.h.b16 %v574
      %v1772 = vunpack.c.l.b16 %v575
      %v1773 = vunpack.c.h.b16 %v575
      %v1774 = vunpack.c.l.b16 %v576
      %v1775 = vunpack.c.h.b16 %v576
      %v1776 = vunpack.c.l.b16 %v577
      %v1777 = vunpack.c.h.b16 %v577
      %v1778 = vunpack.c.l.b16 %v578
      %v1779 = vunpack.c.h.b16 %v578
      %v1780 = vunpack.c.l.b16 %v579
      %v1781 = vunpack.c.h.b16 %v579
      %v1782 = vunpack.c.l.b16 %v580
      %v1783 = vunpack.c.h.b16 %v580
      %v1784 = vunpack.c.l.b16 %v581
      %v1785 = vunpack.c.h.b16 %v581
      %v1786 = vunpack.c.l.b16 %v582
      %v1787 = vunpack.c.h.b16 %v582
      %v1788 = vunpack.c.l.b16 %v583
      %v1789 = vunpack.c.h.b16 %v583
      %v1790 = vunpack.c.l.b16 %v584
      %v1791 = vunpack.c.h.b16 %v584
      %v1792 = vunpack.c.l.b16 %v585
      %v1793 = vunpack.c.h.b16 %v585
      %v1794 = vunpack.c.l.b16 %v586
      %v1795 = vunpack.c.h.b16 %v586
      %v1796 = vunpack.c.l.b16 %v587
      %v1797 = vunpack.c.h.b16 %v587
      %v1798 = vunpack.c.l.b16 %v588
      %v1799 = vunpack.c.h.b16 %v588
      %v1800 = vunpack.c.l.b16 %v589
      %v1801 = vunpack.c.h.b16 %v589
      %v1802 = vunpack.c.l.b16 %v590
      %v1803 = vunpack.c.h.b16 %v590
      %v1804 = vunpack.c.l.b16 %v591
      %v1805 = vunpack.c.h.b16 %v591
      %v1806 = vunpack.c.l.b16 %v592
      %v1807 = vunpack.c.h.b16 %v592
      %v1808 = vunpack.c.l.b16 %v593
      %v1809 = vunpack.c.h.b16 %v593
      %v1810 = vunpack.c.l.b16 %v594
      %v1811 = vunpack.c.h.b16 %v594
      %v1812 = vunpack.c.l.b16 %v595
      %v1813 = vunpack.c.h.b16 %v595
      %v1814 = vunpack.c.l.b16 %v596
      %v1815 = vunpack.c.h.b16 %v596
      %v1816 = vunpack.c.l.b16 %v597
      %v1817 = vunpack.c.h.b16 %v597
      %v1818 = vunpack.c.l.b16 %v598
      %v1819 = vunpack.c.h.b16 %v598
      %v1820 = vunpack.c.l.b16 %v599
      %v1821 = vunpack.c.h.b16 %v599
      %v1822 = vunpack.c.l.b16 %v600
      %v1823 = vunpack.c.h.b16 %v600
      %v1824 = vunpack.c.l.b16 %v601
      %v1825 = vunpack.c.h.b16 %v601
      %v1826 = vunpack.c.l.b16 %v602
      %v1827 = vunpack.c.h.b16 %v602
      %v1828 = vunpack.c.l.b16 %v603
      %v1829 = vunpack.c.h.b16 %v603
      %v1830 = vunpack.c.l.b16 %v604
      %v1831 = vunpack.c.h.b16 %v604
      %v1832 = vunpack.c.l.b16 %v605
      %v1833 = vunpack.c.h.b16 %v605
      %v1834 = vunpack.c.l.b16 %v606
      %v1835 = vunpack.c.h.b16 %v606
      %v1836 = vunpack.c.l.b16 %v607
      %v1837 = vunpack.c.h.b16 %v607
      %v1838 = vunpack.c.l.b16 %v608
      %v1839 = vunpack.c.h.b16 %v608
      %v1840 = vunpack.c.l.b16 %v609
      %v1841 = vunpack.c.h.b16 %v609
      %v1842 = vunpack.c.l.b16 %v610
      %v1843 = vunpack.c.h.b16 %v610
      %v1844 = vunpack.c.l.b16 %v611
      %v1845 = vunpack.c.h.b16 %v611
      %v1846 = vunpack.c.l.b16 %v612
      %v1847 = vunpack.c.h.b16 %v612
      %v1848 = vunpack.c.l.b16 %v613
      %v1849 = vunpack.c.h.b16 %v613
      %v1850 = vunpack.c.l.b16 %v614
      %v1851 = vunpack.c.h.b16 %v614
      %v1852 = vunpack.c.l.b16 %v615
      %v1853 = vunpack.c.h.b16 %v615
      %v1854 = vunpack.c.l.b16 %v616
      %v1855 = vunpack.c.h.b16 %v616
      %v1856 = vunpack.c.l.b16 %v617
      %v1857 = vunpack.c.h.b16 %v617
      %v1858 = vunpack.c.l.b16 %v618
      %v1859 = vunpack.c.h.b16 %v618
      %v1860 = vunpack.c.l.b16 %v619
      %v1861 = vunpack.c.h.b16 %v619
      %v1862 = vunpack.c.l.b16 %v620
      %v1863 = vunpack.c.h.b16 %v620
      %v1864 = vunpack.c.l.b16 %v621
      %v1865 = vunpack.c.h.b16 %v621
      %v1866 = vunpack.c.l.b16 %v622
      %v1867 = vunpack.c.h.b16 %v622
      %v1868 = vunpack.c.l.b16 %v623
      %v1869 = vunpack.c.h.b16 %v623
      %v1870 = vunpack.c.l.b16 %v624
      %v1871 = vunpack.c.h.b16 %v624
      %v1872 = vunpack.c.l.b16 %v625
      %v1873 = vunpack.c.h.b16 %v625
      %v1874 = vunpack.c.l.b16 %v626
      %v1875 = vunpack.c.h.b16 %v626
      %v1876 = vunpack.c.l.b16 %v627
      %v1877 = vunpack.c.h.b16 %v627
      %v1878 = vunpack.c.l.b16 %v628
      %v1879 = vunpack.c.h.b16 %v628
      %v1880 = vunpack.c.l.b16 %v629
      %v1881 = vunpack.c.h.b16 %v629
      %v1882 = vunpack.c.l.b16 %v630
      %v1883 = vunpack.c.h.b16 %v630
      %v1884 = vunpack.c.l.b16 %v631
      %v1885 = vunpack.c.h.b16 %v631
      %v1886 = vunpack.c.l.b16 %v632
      %v1887 = vunpack.c.h.b16 %v632
      %v1888 = vunpack.c.l.b16 %v633
      %v1889 = vunpack.c.h.b16 %v633
      %v1890 = vunpack.c.l.b16 %v634
      %v1891 = vunpack.c.h.b16 %v634
      %v1892 = vunpack.c.l.b16 %v635
      %v1893 = vunpack.c.h.b16 %v635
      %v1894 = vunpack.c.l.b16 %v636
      %v1895 = vunpack.c.h.b16 %v636
      %v1896 = vunpack.c.l.b16 %v637
      %v1897 = vunpack.c.h.b16 %v637
      %v1898 = vunpack.c.l.b16 %v638
      %v1899 = vunpack.c.h.b16 %v638
      %v1900 = vunpack.c.l.b16 %v639
      %v1901 = vunpack.c.h.b16 %v639
      %v1902 = vunpack.c.l.b16 %v640
      %v1903 = vunpack.c.h.b16 %v640
      %v1904 = vunpack.c.l.b16 %v641
      %v1905 = vunpack.c.h.b16 %v641
      %v1906 = vunpack.c.l.b16 %v642
      %v1907 = vunpack.c.h.b16 %v642
      %v1908 = vunpack.c.l.b16 %v643
      %v1909 = vunpack.c.h.b16 %v643
      %v1910 = vunpack.c.l.b16 %v644
      %v1911 = vunpack.c.h.b16 %v644
      %v1912 = vunpack.c.l.b16 %v645
      %v1913 = vunpack.c.h.b16 %v645
      %v1914 = vunpack.c.l.b16 %v646
      %v1915 = vunpack.c.h.b16 %v646
      %v1916 = vunpack.c.l.b16 %v647
      %v1917 = vunpack.c.h.b16 %v647
      %v1918 = vunpack.c.l.b16 %v648
      %v1919 = vunpack.c.h.b16 %v648
      %v1920 = vunpack.c.l.b16 %v649
      %v1921 = vunpack.c.h.b16 %v649
      %v1922 = vunpack.c.l.b16 %v650
      %v1923 = vunpack.c.h.b16 %v650
      %v1924 = vunpack.c.l.b16 %v651
      %v1925 = vunpack.c.h.b16 %v651
      %v1926 = vunpack.c.l.b16 %v652
      %v1927 = vunpack.c.h.b16 %v652
      %v1928 = vunpack.c.l.b16 %v653
      %v1929 = vunpack.c.h.b16 %v653
      %v1930 = vunpack.c.l.b16 %v654
      %v1931 = vunpack.c.h.b16 %v654
      %v1932 = vunpack.c.l.b16 %v655
      %v1933 = vunpack.c.h.b16 %v655
      %v1934 = vunpack.c.l.b16 %v656
      %v1935 = vunpack.c.h.b16 %v656
      %v1936 = vunpack.c.l.b16 %v657
      %v1937 = vunpack.c.h.b16 %v657
      %v1938 = vunpack.c.l.b16 %v658
      %v1939 = vunpack.c.h.b16 %v658
      %v1940 = vunpack.c.l.b16 %v659
      %v1941 = vunpack.c.h.b16 %v659
      %v1942 = vunpack.c.l.b16 %v660
      %v1943 = vunpack.c.h.b16 %v660
      %v1944 = vunpack.c.l.b16 %v661
      %v1945 = vunpack.c.h.b16 %v661
      %v1946 = vunpack.c.l.b16 %v662
      %v1947 = vunpack.c.h.b16 %v662
      %v1948 = vunpack.c.l.b16 %v663
      %v1949 = vunpack.c.h.b16 %v663
      %v1950 = vunpack.c.l.b16 %v664
      %v1951 = vunpack.c.h.b16 %v664
      %v1952 = vunpack.c.l.b16 %v665
      %v1953 = vunpack.c.h.b16 %v665
      %v1954 = vunpack.c.l.b16 %v666
      %v1955 = vunpack.c.h.b16 %v666
      %v1956 = vunpack.c.l.b16 %v667
      %v1957 = vunpack.c.h.b16 %v667
      %v1958 = vunpack.c.l.b16 %v668
      %v1959 = vunpack.c.h.b16 %v668
      %v1960 = vunpack.c.l.b16 %v669
      %v1961 = vunpack.c.h.b16 %v669
      %v1962 = vunpack.c.l.b16 %v670
      %v1963 = vunpack.c.h.b16 %v670
      %v1964 = vunpack.c.l.b16 %v671
      %v1965 = vunpack.c.h.b16 %v671
      %v1966 = vunpack.c.l.b16 %v672
      %v1967 = vunpack.c.h.b16 %v672
      %v1968 = vunpack.c.l.b16 %v673
      %v1969 = vunpack.c.h.b16 %v673
      %v1970 = vunpack.c.l.b16 %v674
      %v1971 = vunpack.c.h.b16 %v674
      %v1972 = vunpack.c.l.b16 %v675
      %v1973 = vunpack.c.h.b16 %v675
      %v1974 = vunpack.c.l.b16 %v676
      %v1975 = vunpack.c.h.b16 %v676
      %v1976 = vunpack.c.l.b16 %v677
      %v1977 = vunpack.c.h.b16 %v677
      %v1978 = vunpack.c.l.b16 %v678
      %v1979 = vunpack.c.h.b16 %v678
      %v1980 = vunpack.c.l.b16 %v679
      %v1981 = vunpack.c.h.b16 %v679
      %v1982 = vunpack.c.l.b16 %v680
      %v1983 = vunpack.c.h.b16 %v680
      %v1984 = vunpack.c.l.b16 %v681
      %v1985 = vunpack.c.h.b16 %v681
      %v1986 = vunpack.c.l.b16 %v682
      %v1987 = vunpack.c.h.b16 %v682
      %v1988 = vunpack.c.l.b16 %v683
      %v1989 = vunpack.c.h.b16 %v683
      %v1990 = vunpack.c.l.b16 %v684
      %v1991 = vunpack.c.h.b16 %v684
      %v1992 = vunpack.c.l.b16 %v685
      %v1993 = vunpack.c.h.b16 %v685
      %v1994 = vunpack.c.l.b16 %v686
      %v1995 = vunpack.c.h.b16 %v686
      %v1996 = vunpack.c.l.b16 %v687
      %v1997 = vunpack.c.h.b16 %v687
      %v1998 = vunpack.c.l.b16 %v688
      %v1999 = vunpack.c.h.b16 %v688
      %v2000 = vunpack.c.l.b16 %v689
      %v2001 = vunpack.c.h.b16 %v689
      %v2002 = vunpack.c.l.b16 %v690
      %v2003 = vunpack.c.h.b16 %v690
      %v2004 = vunpack.c.l.b16 %v691
      %v2005 = vunpack.c.h.b16 %v691
      %v2006 = vunpack.c.l.b16 %v692
      %v2007 = vunpack.c.h.b16 %v692
      %v2008 = vunpack.c.l.b16 %v693
      %v2009 = vunpack.c.h.b16 %v693
      %v2010 = vunpack.c.l.b16 %v694
      %v2011 = vunpack.c.h.b16 %v694
      %v2012 = vunpack.c.l.b16 %v695
      %v2013 = vunpack.c.h.b16 %v695
      %v2014 = vunpack.c.l.b16 %v696
      %v2015 = vunpack.c.h.b16 %v696
      %v2016 = vunpack.c.l.b16 %v697
      %v2017 = vunpack.c.h.b16 %v697
      %v2018 = vunpack.c.l.b16 %v698
      %v2019 = vunpack.c.h.b16 %v698
      %v2020 = vunpack.c.l.b16 %v699
      %v2021 = vunpack.c.h.b16 %v699
      %v2022 = vunpack.c.l.b16 %v700
      %v2023 = vunpack.c.h.b16 %v700
      %v2024 = vunpack.c.l.b16 %v701
      %v2025 = vunpack.c.h.b16 %v701
      %v2026 = vunpack.c.l.b16 %v702
      %v2027 = vunpack.c.h.b16 %v702
      %v2028 = vunpack.c.l.b16 %v703
      %v2029 = vunpack.c.h.b16 %v703
      %v2030 = vunpack.c.l.b16 %v704
      %v2031 = vunpack.c.h.b16 %v704
      %v2032 = vunpack.c.l.b16 %v705
      %v2033 = vunpack.c.h.b16 %v705
      %v2034 = vunpack.c.l.b16 %v706
      %v2035 = vunpack.c.h.b16 %v706
      %v2036 = vunpack.c.l.b16 %v707
      %v2037 = vunpack.c.h.b16 %v707
      %v2038 = vunpack.c.l.b16 %v708
      %v2039 = vunpack.c.h.b16 %v708
      %v2040 = vunpack.c.l.b16 %v709
      %v2041 = vunpack.c.h.b16 %v709
      %v2042 = vunpack.c.l.b16 %v710
      %v2043 = vunpack.c.h.b16 %v710
      %v2044 = vunpack.c.l.b16 %v711
      %v2045 = vunpack.c.h.b16 %v711
      %v2046 = vunpack.c.l.b16 %v712
      %v2047 = vunpack.c.h.b16 %v712
      %v2048 = vunpack.c.l.b16 %v713
      %v2049 = vunpack.c.h.b16 %v713
      %v2050 = vunpack.c.l.b16 %v714
      %v2051 = vunpack.c.h.b16 %v714
      %v2052 = vunpack.c.l.b16 %v715
      %v2053 = vunpack.c.h.b16 %v715
      %v2054 = vunpack.c.l.b16 %v716
      %v2055 = vunpack.c.h.b16 %v716
      %v2056 = vunpack.c.l.b16 %v717
      %v2057 = vunpack.c.h.b16 %v717
      %v2058 = vunpack.c.l.b16 %v718
      %v2059 = vunpack.c.h.b16 %v718
      %v2060 = vunpack.c.l.b16 %v719
      %v2061 = vunpack.c.h.b16 %v719
      %v2062 = vunpack.c.l.b16 %v720
      %v2063 = vunpack.c.h.b16 %v720
      %v2064 = vunpack.c.l.b16 %v721
      %v2065 = vunpack.c.h.b16 %v721
      %v2066 = vunpack.c.l.b16 %v722
      %v2067 = vunpack.c.h.b16 %v722
      %v2068 = vunpack.c.l.b16 %v723
      %v2069 = vunpack.c.h.b16 %v723
      %v2070 = vunpack.c.l.b16 %v724
      %v2071 = vunpack.c.h.b16 %v724
      %v2072 = vunpack.c.l.b16 %v725
      %v2073 = vunpack.c.h.b16 %v725
      %v2074 = vunpack.c.l.b16 %v726
      %v2075 = vunpack.c.h.b16 %v726
      %v2076 = vunpack.c.l.b16 %v727
      %v2077 = vunpack.c.h.b16 %v727
      %v2078 = vunpack.c.l.b16 %v728
      %v2079 = vunpack.c.h.b16 %v728
      %v2080 = vunpack.c.l.b16 %v729
      %v2081 = vunpack.c.h.b16 %v729
      %v2082 = vunpack.c.l.b16 %v730
      %v2083 = vunpack.c.h.b16 %v730
      %v2084 = vunpack.c.l.b16 %v731
      %v2085 = vunpack.c.h.b16 %v731
      %v2086 = vunpack.c.l.b16 %v732
      %v2087 = vunpack.c.h.b16 %v732
      %v2088 = vunpack.c.l.b16 %v733
      %v2089 = vunpack.c.h.b16 %v733
      %v2090 = vunpack.c.l.b16 %v734
      %v2091 = vunpack.c.h.b16 %v734
      %v2092 = vunpack.c.l.b16 %v735
      %v2093 = vunpack.c.h.b16 %v735
      %v2094 = vunpack.c.l.b16 %v736
      %v2095 = vunpack.c.h.b16 %v736
      %v2096 = vunpack.c.l.b16 %v737
      %v2097 = vunpack.c.h.b16 %v737
      %v2098 = vunpack.c.l.b16 %v738
      %v2099 = vunpack.c.h.b16 %v738
      %v2100 = vunpack.c.l.b16 %v739
      %v2101 = vunpack.c.h.b16 %v739
      %v2102 = vunpack.c.l.b16 %v740
      %v2103 = vunpack.c.h.b16 %v740
      %v2104 = vunpack.c.l.b16 %v741
      %v2105 = vunpack.c.h.b16 %v741
      %v2106 = vunpack.c.l.b16 %v742
      %v2107 = vunpack.c.h.b16 %v742
      %v2108 = vunpack.c.l.b16 %v743
      %v2109 = vunpack.c.h.b16 %v743
      %v2110 = vunpack.c.l.b16 %v744
      %v2111 = vunpack.c.h.b16 %v744
      %v2112 = vunpack.c.l.b16 %v745
      %v2113 = vunpack.c.h.b16 %v745
      %v2114 = vunpack.c.l.b16 %v746
      %v2115 = vunpack.c.h.b16 %v746
      %v2116 = vunpack.c.l.b16 %v747
      %v2117 = vunpack.c.h.b16 %v747
      %v2118 = vunpack.c.l.b16 %v748
      %v2119 = vunpack.c.h.b16 %v748
      %v2120 = vunpack.c.l.b16 %v749
      %v2121 = vunpack.c.h.b16 %v749
      %v2122 = vunpack.c.l.b16 %v750
      %v2123 = vunpack.c.h.b16 %v750
      %v2124 = vunpack.c.l.b16 %v751
      %v2125 = vunpack.c.h.b16 %v751
      %v2126 = vunpack.c.l.b16 %v752
      %v2127 = vunpack.c.h.b16 %v752
      %v2128 = vunpack.c.l.b16 %v753
      %v2129 = vunpack.c.h.b16 %v753
      %v2130 = vunpack.c.l.b16 %v754
      %v2131 = vunpack.c.h.b16 %v754
      %v2132 = vunpack.c.l.b16 %v755
      %v2133 = vunpack.c.h.b16 %v755
      %v2134 = vunpack.c.l.b16 %v756
      %v2135 = vunpack.c.h.b16 %v756
      %v2136 = vunpack.c.l.b16 %v757
      %v2137 = vunpack.c.h.b16 %v757
      %v2138 = vunpack.c.l.b16 %v758
      %v2139 = vunpack.c.h.b16 %v758
      %v2140 = vunpack.c.l.b16 %v759
      %v2141 = vunpack.c.h.b16 %v759
      %v2142 = vunpack.c.l.b16 %v760
      %v2143 = vunpack.c.h.b16 %v760
      %v2144 = vunpack.c.l.b16 %v761
      %v2145 = vunpack.c.h.b16 %v761
      %v2146 = vunpack.c.l.b16 %v762
      %v2147 = vunpack.c.h.b16 %v762
      %v2148 = vunpack.c.l.b16 %v763
      %v2149 = vunpack.c.h.b16 %v763
      %v2150 = vunpack.c.l.b16 %v764
      %v2151 = vunpack.c.h.b16 %v764
      %v2152 = vunpack.c.l.b16 %v765
      %v2153 = vunpack.c.h.b16 %v765
      %v2154 = vunpack.c.l.b16 %v766
      %v2155 = vunpack.c.h.b16 %v766
      %v2156 = vunpack.c.l.b16 %v767
      %v2157 = vunpack.c.h.b16 %v767
      %v2158 = vunpack.c.l.b16 %v768
      %v2159 = vunpack.c.h.b16 %v768
      %v2160 = vunpack.c.l.b16 %v769
      %v2161 = vunpack.c.h.b16 %v769
      %v2162 = vunpack.c.l.b16 %v770
      %v2163 = vunpack.c.h.b16 %v770
      %v2164 = vunpack.c.l.b16 %v771
      %v2165 = vunpack.c.h.b16 %v771
      %v2166 = vunpack.c.l.b16 %v772
      %v2167 = vunpack.c.h.b16 %v772
      %v2168 = vunpack.c.l.b16 %v773
      %v2169 = vunpack.c.h.b16 %v773
      %v2170 = vunpack.c.l.b16 %v774
      %v2171 = vunpack.c.h.b16 %v774
      %v2172 = vunpack.c.l.b16 %v775
      %v2173 = vunpack.c.h.b16 %v775
      %v2174 = vunpack.c.l.b16 %v776
      %v2175 = vunpack.c.h.b16 %v776
      %v2176 = vunpack.c.l.b16 %v777
      %v2177 = vunpack.c.h.b16 %v777
      %v2178 = vunpack.c.l.b16 %v778
      %v2179 = vunpack.c.h.b16 %v778
      %v2180 = vunpack.c.l.b16 %v779
      %v2181 = vunpack.c.h.b16 %v779
      %v2182 = vunpack.c.l.b16 %v780
      %v2183 = vunpack.c.h.b16 %v780
      %v2184 = vunpack.c.l.b16 %v781
      %v2185 = vunpack.c.h.b16 %v781
      %v2186 = vunpack.c.l.b16 %v782
      %v2187 = vunpack.c.h.b16 %v782
      %v2188 = vunpack.c.l.b16 %v783
      %v2189 = vunpack.c.h.b16 %v783
      %v2190 = vunpack.c.l.b16 %v784
      %v2191 = vunpack.c.h.b16 %v784
      %v2192 = vunpack.c.l.b16 %v785
      %v2193 = vunpack.c.h.b16 %v785
      %v2194 = vunpack.c.l.b16 %v786
      %v2195 = vunpack.c.h.b16 %v786
      %v2196 = vunpack.c.l.b16 %v787
      %v2197 = vunpack.c.h.b16 %v787
      %v2198 = vunpack.c.l.b16 %v788
      %v2199 = vunpack.c.h.b16 %v788
      %v2200 = vunpack.c.l.b16 %v789
      %v2201 = vunpack.c.h.b16 %v789
      %v2202 = vunpack.c.l.b16 %v790
      %v2203 = vunpack.c.h.b16 %v790
      %v2204 = vunpack.c.l.b16 %v791
      %v2205 = vunpack.c.h.b16 %v791
      %v2206 = vunpack.c.l.b16 %v792
      %v2207 = vunpack.c.h.b16 %v792
      %v2208 = vunpack.c.l.b16 %v793
      %v2209 = vunpack.c.h.b16 %v793
      %v2210 = vunpack.c.l.b16 %v794
      %v2211 = vunpack.c.h.b16 %v794
      %v2212 = vunpack.c.l.b16 %v795
      %v2213 = vunpack.c.h.b16 %v795
      %v2214 = vunpack.c.l.b16 %v796
      %v2215 = vunpack.c.h.b16 %v796
      %v2216 = vunpack.c.l.b16 %v797
      %v2217 = vunpack.c.h.b16 %v797
      %v2218 = vunpack.c.l.b16 %v798
      %v2219 = vunpack.c.h.b16 %v798
      %v2220 = vunpack.c.l.b16 %v799
      %v2221 = vunpack.c.h.b16 %v799
      %v2222 = vunpack.c.l.b16 %v800
      %v2223 = vunpack.c.h.b16 %v800
      %v2224 = vunpack.c.l.b16 %v801
      %v2225 = vunpack.c.h.b16 %v801
      %v2226 = vunpack.c.l.b16 %v802
      %v2227 = vunpack.c.h.b16 %v802
      %v2228 = vunpack.c.l.b16 %v803
      %v2229 = vunpack.c.h.b16 %v803
      %v2230 = vunpack.c.l.b16 %v804
      %v2231 = vunpack.c.h.b16 %v804
      %v2232 = vunpack.c.l.b16 %v805
      %v2233 = vunpack.c.h.b16 %v805
      %v2234 = vunpack.c.l.b16 %v806
      %v2235 = vunpack.c.h.b16 %v806
      %v2236 = vunpack.c.l.b16 %v807
      %v2237 = vunpack.c.h.b16 %v807
      %v2238 = vunpack.c.l.b16 %v808
      %v2239 = vunpack.c.h.b16 %v808
      %v2240 = vunpack.c.l.b16 %v809
      %v2241 = vunpack.c.h.b16 %v809
      %v2242 = vunpack.c.l.b16 %v810
      %v2243 = vunpack.c.h.b16 %v810
      %v2244 = vunpack.c.l.b16 %v811
      %v2245 = vunpack.c.h.b16 %v811
      %v2246 = vunpack.c.l.b16 %v812
      %v2247 = vunpack.c.h.b16 %v812
      %v2248 = vunpack.c.l.b16 %v813
      %v2249 = vunpack.c.h.b16 %v813
      %v2250 = vunpack.c.l.b16 %v814
      %v2251 = vunpack.c.h.b16 %v814
      %v2252 = vunpack.c.l.b16 %v815
      %v2253 = vunpack.c.h.b16 %v815
      %v2254 = vunpack.c.l.b16 %v816
      %v2255 = vunpack.c.h.b16 %v816
      %v2256 = vunpack.c.l.b16 %v817
      %v2257 = vunpack.c.h.b16 %v817
      %v2258 = vunpack.c.l.b16 %v818
      %v2259 = vunpack.c.h.b16 %v818
      %v2260 = vunpack.c.l.b16 %v819
      %v2261 = vunpack.c.h.b16 %v819
      %v2262 = vunpack.c.l.b16 %v820
      %v2263 = vunpack.c.h.b16 %v820
      %v2264 = vunpack.c.l.b16 %v821
      %v2265 = vunpack.c.h.b16 %v821
      %v2266 = vunpack.c.l.b16 %v822
      %v2267 = vunpack.c.h.b16 %v822
      %v2268 = vunpack.c.l.b16 %v823
      %v2269 = vunpack.c.h.b16 %v823
      %v2270 = vunpack.c.l.b16 %v824
      %v2271 = vunpack.c.h.b16 %v824
      %v2272 = vunpack.c.l.b16 %v825
      %v2273 = vunpack.c.h.b16 %v825
      %v2274 = vunpack.c.l.b16 %v826
      %v2275 = vunpack.c.h.b16 %v826
      %v2276 = vunpack.c.l.b16 %v827
      %v2277 = vunpack.c.h.b16 %v827
      %v2278 = vunpack.c.l.b16 %v828
      %v2279 = vunpack.c.h.b16 %v828
      %v2280 = vunpack.c.l.b16 %v829
      %v2281 = vunpack.c.h.b16 %v829
      %v2282 = vunpack.c.l.b16 %v830
      %v2283 = vunpack.c.h.b16 %v830
      %v2284 = vunpack.c.l.b16 %v831
      %v2285 = vunpack.c.h.b16 %v831
      %v2286 = vunpack.c.l.b16 %v832
      %v2287 = vunpack.c.h.b16 %v832
      %v2288 = vunpack.c.l.b16 %v833
      %v2289 = vunpack.c.h.b16 %v833
      %v2290 = vunpack.c.l.b16 %v834
      %v2291 = vunpack.c.h.b16 %v834
      %v2292 = vunpack.c.l.b16 %v835
      %v2293 = vunpack.c.h.b16 %v835
      %v2294 = vunpack.c.l.b16 %v836
      %v2295 = vunpack.c.h.b16 %v836
      %v2296 = vunpack.c.l.b16 %v837
      %v2297 = vunpack.c.h.b16 %v837
      %v2298 = vunpack.c.l.b16 %v838
      %v2299 = vunpack.c.h.b16 %v838
      %v2300 = vunpack.c.l.b16 %v839
      %v2301 = vunpack.c.h.b16 %v839
      %v2302 = vunpack.c.l.b16 %v840
      %v2303 = vunpack.c.h.b16 %v840
      %v2304 = vunpack.c.l.b16 %v841
      %v2305 = vunpack.c.h.b16 %v841
      %v2306 = vunpack.c.l.b16 %v842
      %v2307 = vunpack.c.h.b16 %v842
      %v2308 = vunpack.c.l.b16 %v843
      %v2309 = vunpack.c.h.b16 %v843
      %v2310 = vunpack.c.l.b16 %v844
      %v2311 = vunpack.c.h.b16 %v844
      %v2312 = vunpack.c.l.b16 %v845
      %v2313 = vunpack.c.h.b16 %v845
      %v2314 = vunpack.c.l.b16 %v846
      %v2315 = vunpack.c.h.b16 %v846
      %v2316 = vunpack.c.l.b16 %v847
      %v2317 = vunpack.c.h.b16 %v847
      %v2318 = vunpack.c.l.b16 %v848
      %v2319 = vunpack.c.h.b16 %v848
      %v2320 = vunpack.c.l.b16 %v849
      %v2321 = vunpack.c.h.b16 %v849
      %v2322 = vunpack.c.l.b16 %v850
      %v2323 = vunpack.c.h.b16 %v850
      %v2324 = vunpack.c.l.b16 %v851
      %v2325 = vunpack.c.h.b16 %v851
      %v2326 = vunpack.c.l.b16 %v852
      %v2327 = vunpack.c.h.b16 %v852
      %v2328 = vunpack.c.l.b16 %v853
      %v2329 = vunpack.c.h.b16 %v853
      %v2330 = vunpack.c.l.b16 %v854
      %v2331 = vunpack.c.h.b16 %v854
      %v2332 = vunpack.c.l.b16 %v855
      %v2333 = vunpack.c.h.b16 %v855
      %v2334 = vunpack.c.l.b16 %v856
      %v2335 = vunpack.c.h.b16 %v856
      %v2336 = vunpack.c.l.b16 %v857
      %v2337 = vunpack.c.h.b16 %v857
      %v2338 = vunpack.c.l.b16 %v858
      %v2339 = vunpack.c.h.b16 %v858
      %v2340 = vunpack.c.l.b16 %v859
      %v2341 = vunpack.c.h.b16 %v859
      %v2342 = vunpack.c.l.b16 %v860
      %v2343 = vunpack.c.h.b16 %v860
      %v2344 = vunpack.c.l.b16 %v861
      %v2345 = vunpack.c.h.b16 %v861
      %v2346 = vunpack.c.l.b16 %v862
      %v2347 = vunpack.c.h.b16 %v862
      %v2348 = vunpack.c.l.b16 %v863
      %v2349 = vunpack.c.h.b16 %v863
      %v2350 = vunpack.c.l.b16 %v864
      %v2351 = vunpack.c.h.b16 %v864
      %v2352 = vunpack.c.l.b16 %v865
      %v2353 = vunpack.c.h.b16 %v865
      %v2354 = vunpack.c.l.b16 %v866
      %v2355 = vunpack.c.h.b16 %v866
      %v2356 = vunpack.c.l.b16 %v867
      %v2357 = vunpack.c.h.b16 %v867
      %v2358 = vunpack.c.l.b16 %v868
      %v2359 = vunpack.c.h.b16 %v868
      %v2360 = vunpack.c.l.b16 %v869
      %v2361 = vunpack.c.h.b16 %v869
      %v2362 = vunpack.c.l.b16 %v870
      %v2363 = vunpack.c.h.b16 %v870
      %v2364 = vunpack.c.l.b16 %v871
      %v2365 = vunpack.c.h.b16 %v871
      %v2366 = vunpack.c.l.b16 %v872
      %v2367 = vunpack.c.h.b16 %v872
      %v2368 = vunpack.c.l.b16 %v873
      %v2369 = vunpack.c.h.b16 %v873
      %v2370 = vunpack.c.l.b16 %v874
      %v2371 = vunpack.c.h.b16 %v874
      %v2372 = vunpack.c.l.b16 %v875
      %v2373 = vunpack.c.h.b16 %v875
      %v2374 = vunpack.c.l.b16 %v876
      %v2375 = vunpack.c.h.b16 %v876
      %v2376 = vunpack.c.l.b16 %v877
      %v2377 = vunpack.c.h.b16 %v877
      %v2378 = vunpack.c.l.b16 %v878
      %v2379 = vunpack.c.h.b16 %v878
      %v2380 = vunpack.c.l.b16 %v879
      %v2381 = vunpack.c.h.b16 %v879
      %v2382 = vunpack.c.l.b16 %v880
      %v2383 = vunpack.c.h.b16 %v880
      %v2384 = vunpack.c.l.b16 %v881
      %v2385 = vunpack.c.h.b16 %v881
      %v2386 = vunpack.c.l.b16 %v882
      %v2387 = vunpack.c.h.b16 %v882
      %v2388 = vunpack.c.l.b16 %v883
      %v2389 = vunpack.c.h.b16 %v883
      %v2390 = vunpack.c.l.b16 %v884
      %v2391 = vunpack.c.h.b16 %v884
      %v2392 = vunpack.c.l.b16 %v885
      %v2393 = vunpack.c.h.b16 %v885
      %v2394 = vunpack.c.l.b16 %v886
      %v2395 = vunpack.c.h.b16 %v886
      %v2396 = vunpack.c.l.b16 %v887
      %v2397 = vunpack.c.h.b16 %v887
      %v2398 = vunpack.c.l.b16 %v888
      %v2399 = vunpack.c.h.b16 %v888
      %v2400 = vunpack.c.l.b16 %v889
      %v2401 = vunpack.c.h.b16 %v889
      %v2402 = vunpack.c.l.b16 %v890
      %v2403 = vunpack.c.h.b16 %v890
      %v2404 = vunpack.c.l.b16 %v891
      %v2405 = vunpack.c.h.b16 %v891
      %v2406 = vunpack.c.l.b16 %v892
      %v2407 = vunpack.c.h.b16 %v892
      %v2408 = vunpack.c.l.b16 %v893
      %v2409 = vunpack.c.h.b16 %v893
      %v2410 = vunpack.c.l.b16 %v894
      %v2411 = vunpack.c.h.b16 %v894
      %v2412 = vunpack.c.l.b16 %v895
      %v2413 = vunpack.c.h.b16 %v895
      %v2414 = vunpack.c.l.b16 %v896
      %v2415 = vunpack.c.h.b16 %v896
      %v2416 = vunpack.c.l.b16 %v897
      %v2417 = vunpack.c.h.b16 %v897
      %v2418 = vunpack.c.l.b16 %v898
      %v2419 = vunpack.c.h.b16 %v898
      %v2420 = vunpack.c.l.b16 %v899
      %v2421 = vunpack.c.h.b16 %v899
      %v2422 = vunpack.c.l.b16 %v900
      %v2423 = vunpack.c.h.b16 %v900
      %v2424 = vunpack.c.l.b16 %v901
      %v2425 = vunpack.c.h.b16 %v901
      %v2426 = vunpack.c.l.b16 %v902
      %v2427 = vunpack.c.h.b16 %v902
      %v2428 = vunpack.c.l.b16 %v903
      %v2429 = vunpack.c.h.b16 %v903
      %v2430 = vunpack.c.l.b16 %v904
      %v2431 = vunpack.c.h.b16 %v904
      %v2432 = vunpack.c.l.b16 %v905
      %v2433 = vunpack.c.h.b16 %v905
      %v2434 = vunpack.c.l.b16 %v906
      %v2435 = vunpack.c.h.b16 %v906
      %v2436 = vunpack.c.l.b16 %v907
      %v2437 = vunpack.c.h.b16 %v907
      %v2438 = vunpack.c.l.b16 %v908
      %v2439 = vunpack.c.h.b16 %v908
      %v2440 = vunpack.c.l.b16 %v909
      %v2441 = vunpack.c.h.b16 %v909
      %v2442 = vunpack.c.l.b16 %v910
      %v2443 = vunpack.c.h.b16 %v910
      %v2444 = vunpack.c.l.b16 %v911
      %v2445 = vunpack.c.h.b16 %v911
      %v2446 = vunpack.c.l.b16 %v912
      %v2447 = vunpack.c.h.b16 %v912
      %v2448 = vunpack.c.l.b16 %v913
      %v2449 = vunpack.c.h.b16 %v913
      %v2450 = vpack.c.b16 %v1430, %v1426
      %v2451 = vpack.c.b16 %v1431, %v1427
      %v2452 = vpack.c.b16 %v1432, %v1428
      %v2453 = vpack.c.b16 %v1433, %v1429
      %v2454 = vpack.c.b16 %v1438, %v1434
      %v2455 = vpack.c.b16 %v1439, %v1435
      %v2456 = vpack.c.b16 %v1440, %v1436
      %v2457 = vpack.c.b16 %v1441, %v1437
      %v2458 = vpack.c.b16 %v1446, %v1442
      %v2459 = vpack.c.b16 %v1447, %v1443
      %v2460 = vpack.c.b16 %v1448, %v1444
      %v2461 = vpack.c.b16 %v1449, %v1445
      %v2462 = vpack.c.b16 %v1454, %v1450
      %v2463 = vpack.c.b16 %v1455, %v1451
      %v2464 = vpack.c.b16 %v1456, %v1452
      %v2465 = vpack.c.b16 %v1457, %v1453
      %v2466 = vpack.c.b16 %v1462, %v1458
      %v2467 = vpack.c.b16 %v1463, %v1459
      %v2468 = vpack.c.b16 %v1464, %v1460
      %v2469 = vpack.c.b16 %v1465, %v1461
      %v2470 = vpack.c.b16 %v1470, %v1466
      %v2471 = vpack.c.b16 %v1471, %v1467
      %v2472 = vpack.c.b16 %v1472, %v1468
      %v2473 = vpack.c.b16 %v1473, %v1469
      %v2474 = vpack.c.b16 %v1478, %v1474
      %v2475 = vpack.c.b16 %v1479, %v1475
      %v2476 = vpack.c.b16 %v1480, %v1476
      %v2477 = vpack.c.b16 %v1481, %v1477
      %v2478 = vpack.c.b16 %v1486, %v1482
      %v2479 = vpack.c.b16 %v1487, %v1483
      %v2480 = vpack.c.b16 %v1488, %v1484
      %v2481 = vpack.c.b16 %v1489, %v1485
      %v2482 = vpack.c.b16 %v1494, %v1490
      %v2483 = vpack.c.b16 %v1495, %v1491
      %v2484 = vpack.c.b16 %v1496, %v1492
      %v2485 = vpack.c.b16 %v1497, %v1493
      %v2486 = vpack.c.b16 %v1502, %v1498
      %v2487 = vpack.c.b16 %v1503, %v1499
      %v2488 = vpack.c.b16 %v1504, %v1500
      %v2489 = vpack.c.b16 %v1505, %v1501
      %v2490 = vpack.c.b16 %v1510, %v1506
      %v2491 = vpack.c.b16 %v1511, %v1507
      %v2492 = vpack.c.b16 %v1512, %v1508
      %v2493 = vpack.c.b16 %v1513, %v1509
      %v2494 = vpack.c.b16 %v1518, %v1514
      %v2495 = vpack.c.b16 %v1519, %v1515
      %v2496 = vpack.c.b16 %v1520, %v1516
      %v2497 = vpack.c.b16 %v1521, %v1517
      %v2498 = vpack.c.b16 %v1526, %v1522
      %v2499 = vpack.c.b16 %v1527, %v1523
      %v2500 = vpack.c.b16 %v1528, %v1524
      %v2501 = vpack.c.b16 %v1529, %v1525
      %v2502 = vpack.c.b16 %v1534, %v1530
      %v2503 = vpack.c.b16 %v1535, %v1531
      %v2504 = vpack.c.b16 %v1536, %v1532
      %v2505 = vpack.c.b16 %v1537, %v1533
      %v2506 = vpack.c.b16 %v1542, %v1538
      %v2507 = vpack.c.b16 %v1543, %v1539
      %v2508 = vpack.c.b16 %v1544, %v1540
      %v2509 = vpack.c.b16 %v1545, %v1541
      %v2510 = vpack.c.b16 %v1550, %v1546
      %v2511 = vpack.c.b16 %v1551, %v1547
      %v2512 = vpack.c.b16 %v1552, %v1548
      %v2513 = vpack.c.b16 %v1553, %v1549
      %v2514 = vpack.c.b16 %v1558, %v1554
      %v2515 = vpack.c.b16 %v1559, %v1555
      %v2516 = vpack.c.b16 %v1560, %v1556
      %v2517 = vpack.c.b16 %v1561, %v1557
      %v2518 = vpack.c.b16 %v1566, %v1562
      %v2519 = vpack.c.b16 %v1567, %v1563
      %v2520 = vpack.c.b16 %v1568, %v1564
      %v2521 = vpack.c.b16 %v1569, %v1565
      %v2522 = vpack.c.b16 %v1574, %v1570
      %v2523 = vpack.c.b16 %v1575, %v1571
      %v2524 = vpack.c.b16 %v1576, %v1572
      %v2525 = vpack.c.b16 %v1577, %v1573
      %v2526 = vpack.c.b16 %v1582, %v1578
      %v2527 = vpack.c.b16 %v1583, %v1579
      %v2528 = vpack.c.b16 %v1584, %v1580
      %v2529 = vpack.c.b16 %v1585, %v1581
      %v2530 = vpack.c.b16 %v1590, %v1586
      %v2531 = vpack.c.b16 %v1591, %v1587
      %v2532 = vpack.c.b16 %v1592, %v1588
      %v2533 = vpack.c.b16 %v1593, %v1589
      %v2534 = vpack.c.b16 %v1598, %v1594
      %v2535 = vpack.c.b16 %v1599, %v1595
      %v2536 = vpack.c.b16 %v1600, %v1596
      %v2537 = vpack.c.b16 %v1601, %v1597
      %v2538 = vpack.c.b16 %v1606, %v1602
      %v2539 = vpack.c.b16 %v1607, %v1603
      %v2540 = vpack.c.b16 %v1608, %v1604
      %v2541 = vpack.c.b16 %v1609, %v1605
      %v2542 = vpack.c.b16 %v1614, %v1610
      %v2543 = vpack.c.b16 %v1615, %v1611
      %v2544 = vpack.c.b16 %v1616, %v1612
      %v2545 = vpack.c.b16 %v1617, %v1613
      %v2546 = vpack.c.b16 %v1622, %v1618
      %v2547 = vpack.c.b16 %v1623, %v1619
      %v2548 = vpack.c.b16 %v1624, %v1620
      %v2549 = vpack.c.b16 %v1625, %v1621
      %v2550 = vpack.c.b16 %v1630, %v1626
      %v2551 = vpack.c.b16 %v1631, %v1627
      %v2552 = vpack.c.b16 %v1632, %v1628
      %v2553 = vpack.c.b16 %v1633, %v1629
      %v2554 = vpack.c.b16 %v1638, %v1634
      %v2555 = vpack.c.b16 %v1639, %v1635
      %v2556 = vpack.c.b16 %v1640, %v1636
      %v2557 = vpack.c.b16 %v1641, %v1637
      %v2558 = vpack.c.b16 %v1646, %v1642
      %v2559 = vpack.c.b16 %v1647, %v1643
      %v2560 = vpack.c.b16 %v1648, %v1644
      %v2561 = vpack.c.b16 %v1649, %v1645
      %v2562 = vpack.c.b16 %v1654, %v1650
      %v2563 = vpack.c.b16 %v1655, %v1651
      %v2564 = vpack.c.b16 %v1656, %v1652
      %v2565 = vpack.c.b16 %v1657, %v1653
      %v2566 = vpack.c.b16 %v1662, %v1658
      %v2567 = vpack.c.b16 %v1663, %v1659
      %v2568 = vpack.c.b16 %v1664, %v1660
      %v2569 = vpack.c.b16 %v1665, %v1661
      %v2570 = vpack.c.b16 %v1670, %v1666
      %v2571 = vpack.c.b16 %v1671, %v1667
      %v2572 = vpack.c.b16 %v1672, %v1668
      %v2573 = vpack.c.b16 %v1673, %v1669
      %v2574 = vpack.c.b16 %v1678, %v1674
      %v2575 = vpack.c.b16 %v1679, %v1675
      %v2576 = vpack.c.b16 %v1680, %v1676
      %v2577 = vpack.c.b16 %v1681, %v1677
      %v2578 = vpack.c.b16 %v1686, %v1682
      %v2579 = vpack.c.b16 %v1687, %v1683
      %v2580 = vpack.c.b16 %v1688, %v1684
      %v2581 = vpack.c.b16 %v1689, %v1685
      %v2582 = vpack.c.b16 %v1694, %v1690
      %v2583 = vpack.c.b16 %v1695, %v1691
      %v2584 = vpack.c.b16 %v1696, %v1692
      %v2585 = vpack.c.b16 %v1697, %v1693
      %v2586 = vpack.c.b16 %v1702, %v1698
      %v2587 = vpack.c.b16 %v1703, %v1699
      %v2588 = vpack.c.b16 %v1704, %v1700
      %v2589 = vpack.c.b16 %v1705, %v1701
      %v2590 = vpack.c.b16 %v1710, %v1706
      %v2591 = vpack.c.b16 %v1711, %v1707
      %v2592 = vpack.c.b16 %v1712, %v1708
      %v2593 = vpack.c.b16 %v1713, %v1709
      %v2594 = vpack.c.b16 %v1718, %v1714
      %v2595 = vpack.c.b16 %v1719, %v1715
      %v2596 = vpack.c.b16 %v1720, %v1716
      %v2597 = vpack.c.b16 %v1721, %v1717
      %v2598 = vpack.c.b16 %v1726, %v1722
      %v2599 = vpack.c.b16 %v1727, %v1723
      %v2600 = vpack.c.b16 %v1728, %v1724
      %v2601 = vpack.c.b16 %v1729, %v1725
      %v2602 = vpack.c.b16 %v1734, %v1730
      %v2603 = vpack.c.b16 %v1735, %v1731
      %v2604 = vpack.c.b16 %v1736, %v1732
      %v2605 = vpack.c.b16 %v1737, %v1733
      %v2606 = vpack.c.b16 %v1742, %v1738
      %v2607 = vpack.c.b16 %v1743, %v1739
      %v2608 = vpack.c.b16 %v1744, %v1740
      %v2609 = vpack.c.b16 %v1745, %v1741
      %v2610 = vpack.c.b16 %v1750, %v1746
      %v2611 = vpack.c.b16 %v1751, %v1747
      %v2612 = vpack.c.b16 %v1752, %v1748
      %v2613 = vpack.c.b16 %v1753, %v1749
      %v2614 = vpack.c.b16 %v1758, %v1754
      %v2615 = vpack.c.b16 %v1759, %v1755
      %v2616 = vpack.c.b16 %v1760, %v1756
      %v2617 = vpack.c.b16 %v1761, %v1757
      %v2618 = vpack.c.b16 %v1766, %v1762
      %v2619 = vpack.c.b16 %v1767, %v1763
      %v2620 = vpack.c.b16 %v1768, %v1764
      %v2621 = vpack.c.b16 %v1769, %v1765
      %v2622 = vpack.c.b16 %v1774, %v1770
      %v2623 = vpack.c.b16 %v1775, %v1771
      %v2624 = vpack.c.b16 %v1776, %v1772
      %v2625 = vpack.c.b16 %v1777, %v1773
      %v2626 = vpack.c.b16 %v1782, %v1778
      %v2627 = vpack.c.b16 %v1783, %v1779
      %v2628 = vpack.c.b16 %v1784, %v1780
      %v2629 = vpack.c.b16 %v1785, %v1781
      %v2630 = vpack.c.b16 %v1790, %v1786
      %v2631 = vpack.c.b16 %v1791, %v1787
      %v2632 = vpack.c.b16 %v1792, %v1788
      %v2633 = vpack.c.b16 %v1793, %v1789
      %v2634 = vpack.c.b16 %v1798, %v1794
      %v2635 = vpack.c.b16 %v1799, %v1795
      %v2636 = vpack.c.b16 %v1800, %v1796
      %v2637 = vpack.c.b16 %v1801, %v1797
      %v2638 = vpack.c.b16 %v1806, %v1802
      %v2639 = vpack.c.b16 %v1807, %v1803
      %v2640 = vpack.c.b16 %v1808, %v1804
      %v2641 = vpack.c.b16 %v1809, %v1805
      %v2642 = vpack.c.b16 %v1814, %v1810
      %v2643 = vpack.c.b16 %v1815, %v1811
      %v2644 = vpack.c.b16 %v1816, %v1812
      %v2645 = vpack.c.b16 %v1817, %v1813
      %v2646 = vpack.c.b16 %v1822, %v1818
      %v2647 = vpack.c.b16 %v1823, %v1819
      %v2648 = vpack.c.b16 %v1824, %v1820
      %v2649 = vpack.c.b16 %v1825, %v1821
      %v2650 = vpack.c.b16 %v1830, %v1826
      %v2651 = vpack.c.b16 %v1831, %v1827
      %v2652 = vpack.c.b16 %v1832, %v1828
      %v2653 = vpack.c.b16 %v1833, %v1829
      %v2654 = vpack.c.b16 %v1838, %v1834
      %v2655 = vpack.c.b16 %v1839, %v1835
      %v2656 = vpack.c.b16 %v1840, %v1836
      %v2657 = vpack.c.b16 %v1841, %v1837
      %v2658 = vpack.c.b16 %v1846, %v1842
      %v2659 = vpack.c.b16 %v1847, %v1843
      %v2660 = vpack.c.b16 %v1848, %v1844
      %v2661 = vpack.c.b16 %v1849, %v1845
      %v2662 = vpack.c.b16 %v1854, %v1850
      %v2663 = vpack.c.b16 %v1855, %v1851
      %v2664 = vpack.c.b16 %v1856, %v1852
      %v2665 = vpack.c.b16 %v1857, %v1853
      %v2666 = vpack.c.b16 %v1862, %v1858
      %v2667 = vpack.c.b16 %v1863, %v1859
      %v2668 = vpack.c.b16 %v1864, %v1860
      %v2669 = vpack.c.b16 %v1865, %v1861
      %v2670 = vpack.c.b16 %v1870, %v1866
      %v2671 = vpack.c.b16 %v1871, %v1867
      %v2672 = vpack.c.b16 %v1872, %v1868
      %v2673 = vpack.c.b16 %v1873, %v1869
      %v2674 = vpack.c.b16 %v1878, %v1874
      %v2675 = vpack.c.b16 %v1879, %v1875
      %v2676 = vpack.c.b16 %v1880, %v1876
      %v2677 = vpack.c.b16 %v1881, %v1877
      %v2678 = vpack.c.b16 %v1886, %v1882
      %v2679 = vpack.c.b16 %v1887, %v1883
      %v2680 = vpack.c.b16 %v1888, %v1884
      %v2681 = vpack.c.b16 %v1889, %v1885
      %v2682 = vpack.c.b16 %v1894, %v1890
      %v2683 = vpack.c.b16 %v1895, %v1891
      %v2684 = vpack.c.b16 %v1896, %v1892
      %v2685 = vpack.c.b16 %v1897, %v1893
      %v2686 = vpack.c.b16 %v1902, %v1898
      %v2687 = vpack.c.b16 %v1903, %v1899
      %v2688 = vpack.c.b16 %v1904, %v1900
      %v2689 = vpack.c.b16 %v1905, %v1901
      %v2690 = vpack.c.b16 %v1910, %v1906
      %v2691 = vpack.c.b16 %v1911, %v1907
      %v2692 = vpack.c.b16 %v1912, %v1908
      %v2693 = vpack.c.b16 %v1913, %v1909
      %v2694 = vpack.c.b16 %v1918, %v1914
      %v2695 = vpack.c.b16 %v1919, %v1915
      %v2696 = vpack.c.b16 %v1920, %v1916
      %v2697 = vpack.c.b16 %v1921, %v1917
      %v2698 = vpack.c.b16 %v1926, %v1922
      %v2699 = vpack.c.b16 %v1927, %v1923
      %v2700 = vpack.c.b16 %v1928, %v1924
      %v2701 = vpack.c.b16 %v1929, %v1925
      %v2702 = vpack.c.b16 %v1934, %v1930
      %v2703 = vpack.c.b16 %v1935, %v1931
      %v2704 = vpack.c.b16 %v1936, %v1932
      %v2705 = vpack.c.b16 %v1937, %v1933
      %v2706 = vpack.c.b16 %v1942, %v1938
      %v2707 = vpack.c.b16 %v1943, %v1939
      %v2708 = vpack.c.b16 %v1944, %v1940
      %v2709 = vpack.c.b16 %v1945, %v1941
      %v2710 = vpack.c.b16 %v1950, %v1946
      %v2711 = vpack.c.b16 %v1951, %v1947
      %v2712 = vpack.c.b16 %v1952, %v1948
      %v2713 = vpack.c.b16 %v1953, %v1949
      %v2714 = vpack.c.b16 %v1958, %v1954
      %v2715 = vpack.c.b16 %v1959, %v1955
      %v2716 = vpack.c.b16 %v1960, %v1956
      %v2717 = vpack.c.b16 %v1961, %v1957
      %v2718 = vpack.c.b16 %v1966, %v1962
      %v2719 = vpack.c.b16 %v1967, %v1963
      %v2720 = vpack.c.b16 %v1968, %v1964
      %v2721 = vpack.c.b16 %v1969, %v1965
      %v2722 = vpack.c.b16 %v1974, %v1970
      %v2723 = vpack.c.b16 %v1975, %v1971
      %v2724 = vpack.c.b16 %v1976, %v1972
      %v2725 = vpack.c.b16 %v1977, %v1973
      %v2726 = vpack.c.b16 %v1982, %v1978
      %v2727 = vpack.c.b16 %v1983, %v1979
      %v2728 = vpack.c.b16 %v1984, %v1980
      %v2729 = vpack.c.b16 %v1985, %v1981
      %v2730 = vpack.c.b16 %v1990, %v1986
      %v2731 = vpack.c.b16 %v1991, %v1987
      %v2732 = vpack.c.b16 %v1992, %v1988
      %v2733 = vpack.c.b16 %v1993, %v1989
      %v2734 = vpack.c.b16 %v1998, %v1994
      %v2735 = vpack.c.b16 %v1999, %v1995
      %v2736 = vpack.c.b16 %v2000, %v1996
      %v2737 = vpack.c.b16 %v2001, %v1997
      %v2738 = vpack.c.b16 %v2006, %v2002
      %v2739 = vpack.c.b16 %v2007, %v2003
      %v2740 = vpack.c.b16 %v2008, %v2004
      %v2741 = vpack.c.b16 %v2009, %v2005
      %v2742 = vpack.c.b16 %v2014, %v2010
      %v2743 = vpack.c.b16 %v2015, %v2011
      %v2744 = vpack.c.b16 %v2016, %v2012
      %v2745 = vpack.c.b16 %v2017, %v2013
      %v2746 = vpack.c.b16 %v2022, %v2018
      %v2747 = vpack.c.b16 %v2023, %v2019
      %v2748 = vpack.c.b16 %v2024, %v2020
      %v2749 = vpack.c.b16 %v2025, %v2021
      %v2750 = vpack.c.b16 %v2030, %v2026
      %v2751 = vpack.c.b16 %v2031, %v2027
      %v2752 = vpack.c.b16 %v2032, %v2028
      %v2753 = vpack.c.b16 %v2033, %v2029
      %v2754 = vpack.c.b16 %v2038, %v2034
      %v2755 = vpack.c.b16 %v2039, %v2035
      %v2756 = vpack.c.b16 %v2040, %v2036
      %v2757 = vpack.c.b16 %v2041, %v2037
      %v2758 = vpack.c.b16 %v2046, %v2042
      %v2759 = vpack.c.b16 %v2047, %v2043
      %v2760 = vpack.c.b16 %v2048, %v2044
      %v2761 = vpack.c.b16 %v2049, %v2045
      %v2762 = vpack.c.b16 %v2054, %v2050
      %v2763 = vpack.c.b16 %v2055, %v2051
      %v2764 = vpack.c.b16 %v2056, %v2052
      %v2765 = vpack.c.b16 %v2057, %v2053
      %v2766 = vpack.c.b16 %v2062, %v2058
      %v2767 = vpack.c.b16 %v2063, %v2059
      %v2768 = vpack.c.b16 %v2064, %v2060
      %v2769 = vpack.c.b16 %v2065, %v2061
      %v2770 = vpack.c.b16 %v2070, %v2066
      %v2771 = vpack.c.b16 %v2071, %v2067
      %v2772 = vpack.c.b16 %v2072, %v2068
      %v2773 = vpack.c.b16 %v2073, %v2069
      %v2774 = vpack.c.b16 %v2078, %v2074
      %v2775 = vpack.c.b16 %v2079, %v2075
      %v2776 = vpack.c.b16 %v2080, %v2076
      %v2777 = vpack.c.b16 %v2081, %v2077
      %v2778 = vpack.c.b16 %v2086, %v2082
      %v2779 = vpack.c.b16 %v2087, %v2083
      %v2780 = vpack.c.b16 %v2088, %v2084
      %v2781 = vpack.c.b16 %v2089, %v2085
      %v2782 = vpack.c.b16 %v2094, %v2090
      %v2783 = vpack.c.b16 %v2095, %v2091
      %v2784 = vpack.c.b16 %v2096, %v2092
      %v2785 = vpack.c.b16 %v2097, %v2093
      %v2786 = vpack.c.b16 %v2102, %v2098
      %v2787 = vpack.c.b16 %v2103, %v2099
      %v2788 = vpack.c.b16 %v2104, %v2100
      %v2789 = vpack.c.b16 %v2105, %v2101
      %v2790 = vpack.c.b16 %v2110, %v2106
      %v2791 = vpack.c.b16 %v2111, %v2107
      %v2792 = vpack.c.b16 %v2112, %v2108
      %v2793 = vpack.c.b16 %v2113, %v2109
      %v2794 = vpack.c.b16 %v2118, %v2114
      %v2795 = vpack.c.b16 %v2119, %v2115
      %v2796 = vpack.c.b16 %v2120, %v2116
      %v2797 = vpack.c.b16 %v2121, %v2117
      %v2798 = vpack.c.b16 %v2126, %v2122
      %v2799 = vpack.c.b16 %v2127, %v2123
      %v2800 = vpack.c.b16 %v2128, %v2124
      %v2801 = vpack.c.b16 %v2129, %v2125
      %v2802 = vpack.c.b16 %v2134, %v2130
      %v2803 = vpack.c.b16 %v2135, %v2131
      %v2804 = vpack.c.b16 %v2136, %v2132
      %v2805 = vpack.c.b16 %v2137, %v2133
      %v2806 = vpack.c.b16 %v2142, %v2138
      %v2807 = vpack.c.b16 %v2143, %v2139
      %v2808 = vpack.c.b16 %v2144, %v2140
      %v2809 = vpack.c.b16 %v2145, %v2141
      %v2810 = vpack.c.b16 %v2150, %v2146
      %v2811 = vpack.c.b16 %v2151, %v2147
      %v2812 = vpack.c.b16 %v2152, %v2148
      %v2813 = vpack.c.b16 %v2153, %v2149
      %v2814 = vpack.c.b16 %v2158, %v2154
      %v2815 = vpack.c.b16 %v2159, %v2155
      %v2816 = vpack.c.b16 %v2160, %v2156
      %v2817 = vpack.c.b16 %v2161, %v2157
      %v2818 = vpack.c.b16 %v2166, %v2162
      %v2819 = vpack.c.b16 %v2167, %v2163
      %v2820 = vpack.c.b16 %v2168, %v2164
      %v2821 = vpack.c.b16 %v2169, %v2165
      %v2822 = vpack.c.b16 %v2174, %v2170
      %v2823 = vpack.c.b16 %v2175, %v2171
      %v2824 = vpack.c.b16 %v2176, %v2172
      %v2825 = vpack.c.b16 %v2177, %v2173
      %v2826 = vpack.c.b16 %v2182, %v2178
      %v2827 = vpack.c.b16 %v2183, %v2179
      %v2828 = vpack.c.b16 %v2184, %v2180
      %v2829 = vpack.c.b16 %v2185, %v2181
      %v2830 = vpack.c.b16 %v2190, %v2186
      %v2831 = vpack.c.b16 %v2191, %v2187
      %v2832 = vpack.c.b16 %v2192, %v2188
      %v2833 = vpack.c.b16 %v2193, %v2189
      %v2834 = vpack.c.b16 %v2198, %v2194
      %v2835 = vpack.c.b16 %v2199, %v2195
      %v2836 = vpack.c.b16 %v2200, %v2196
      %v2837 = vpack.c.b16 %v2201, %v2197
      %v2838 = vpack.c.b16 %v2206, %v2202
      %v2839 = vpack.c.b16 %v2207, %v2203
      %v2840 = vpack.c.b16 %v2208, %v2204
      %v2841 = vpack.c.b16 %v2209, %v2205
      %v2842 = vpack.c.b16 %v2214, %v2210
      %v2843 = vpack.c.b16 %v2215, %v2211
      %v2844 = vpack.c.b16 %v2216, %v2212
      %v2845 = vpack.c.b16 %v2217, %v2213
      %v2846 = vpack.c.b16 %v2222, %v2218
      %v2847 = vpack.c.b16 %v2223, %v2219
      %v2848 = vpack.c.b16 %v2224, %v2220
      %v2849 = vpack.c.b16 %v2225, %v2221
      %v2850 = vpack.c.b16 %v2230, %v2226
      %v2851 = vpack.c.b16 %v2231, %v2227
      %v2852 = vpack.c.b16 %v2232, %v2228
      %v2853 = vpack.c.b16 %v2233, %v2229
      %v2854 = vpack.c.b16 %v2238, %v2234
      %v2855 = vpack.c.b16 %v2239, %v2235
      %v2856 = vpack.c.b16 %v2240, %v2236
      %v2857 = vpack.c.b16 %v2241, %v2237
      %v2858 = vpack.c.b16 %v2246, %v2242
      %v2859 = vpack.c.b16 %v2247, %v2243
      %v2860 = vpack.c.b16 %v2248, %v2244
      %v2861 = vpack.c.b16 %v2249, %v2245
      %v2862 = vpack.c.b16 %v2254, %v2250
      %v2863 = vpack.c.b16 %v2255, %v2251
      %v2864 = vpack.c.b16 %v2256, %v2252
      %v2865 = vpack.c.b16 %v2257, %v2253
      %v2866 = vpack.c.b16 %v2262, %v2258
      %v2867 = vpack.c.b16 %v2263, %v2259
      %v2868 = vpack.c.b16 %v2264, %v2260
      %v2869 = vpack.c.b16 %v2265, %v2261
      %v2870 = vpack.c.b16 %v2270, %v2266
      %v2871 = vpack.c.b16 %v2271, %v2267
      %v2872 = vpack.c.b16 %v2272, %v2268
      %v2873 = vpack.c.b16 %v2273, %v2269
      %v2874 = vpack.c.b16 %v2278, %v2274
      %v2875 = vpack.c.b16 %v2279, %v2275
      %v2876 = vpack.c.b16 %v2280, %v2276
      %v2877 = vpack.c.b16 %v2281, %v2277
      %v2878 = vpack.c.b16 %v2286, %v2282
      %v2879 = vpack.c.b16 %v2287, %v2283
      %v2880 = vpack.c.b16 %v2288, %v2284
      %v2881 = vpack.c.b16 %v2289, %v2285
      %v2882 = vpack.c.b16 %v2294, %v2290
      %v2883 = vpack.c.b16 %v2295, %v2291
      %v2884 = vpack.c.b16 %v2296, %v2292
      %v2885 = vpack.c.b16 %v2297, %v2293
      %v2886 = vpack.c.b16 %v2302, %v2298
      %v2887 = vpack.c.b16 %v2303, %v2299
      %v2888 = vpack.c.b16 %v2304, %v2300
      %v2889 = vpack.c.b16 %v2305, %v2301
      %v2890 = vpack.c.b16 %v2310, %v2306
      %v2891 = vpack.c.b16 %v2311, %v2307
      %v2892 = vpack.c.b16 %v2312, %v2308
      %v2893 = vpack.c.b16 %v2313, %v2309
      %v2894 = vpack.c.b16 %v2318, %v2314
      %v2895 = vpack.c.b16 %v2319, %v2315
      %v2896 = vpack.c.b16 %v2320, %v2316
      %v2897 = vpack.c.b16 %v2321, %v2317
      %v2898 = vpack.c.b16 %v2326, %v2322
      %v2899 = vpack.c.b16 %v2327, %v2323
      %v2900 = vpack.c.b16 %v2328, %v2324
      %v2901 = vpack.c.b16 %v2329, %v2325
      %v2902 = vpack.c.b16 %v2334, %v2330
      %v2903 = vpack.c.b16 %v2335, %v2331
      %v2904 = vpack.c.b16 %v2336, %v2332
      %v2905 = vpack.c.b16 %v2337, %v2333
      %v2906 = vpack.c.b16 %v2342, %v2338
      %v2907 = vpack.c.b16 %v2343, %v2339
      %v2908 = vpack.c.b16 %v2344, %v2340
      %v2909 = vpack.c.b16 %v2345, %v2341
      %v2910 = vpack.c.b16 %v2350, %v2346
      %v2911 = vpack.c.b16 %v2351, %v2347
      %v2912 = vpack.c.b16 %v2352, %v2348
      %v2913 = vpack.c.b16 %v2353, %v2349
      %v2914 = vpack.c.b16 %v2358, %v2354
      %v2915 = vpack.c.b16 %v2359, %v2355
      %v2916 = vpack.c.b16 %v2360, %v2356
      %v2917 = vpack.c.b16 %v2361, %v2357
      %v2918 = vpack.c.b16 %v2366, %v2362
      %v2919 = vpack.c.b16 %v2367, %v2363
      %v2920 = vpack.c.b16 %v2368, %v2364
      %v2921 = vpack.c.b16 %v2369, %v2365
      %v2922 = vpack.c.b16 %v2374, %v2370
      %v2923 = vpack.c.b16 %v2375, %v2371
      %v2924 = vpack.c.b16 %v2376, %v2372
      %v2925 = vpack.c.b16 %v2377, %v2373
      %v2926 = vpack.c.b16 %v2382, %v2378
      %v2927 = vpack.c.b16 %v2383, %v2379
      %v2928 = vpack.c.b16 %v2384, %v2380
      %v2929 = vpack.c.b16 %v2385, %v2381
      %v2930 = vpack.c.b16 %v2390, %v2386
      %v2931 = vpack.c.b16 %v2391, %v2387
      %v2932 = vpack.c.b16 %v2392, %v2388
      %v2933 = vpack.c.b16 %v2393, %v2389
      %v2934 = vpack.c.b16 %v2398, %v2394
      %v2935 = vpack.c.b16 %v2399, %v2395
      %v2936 = vpack.c.b16 %v2400, %v2396
      %v2937 = vpack.c.b16 %v2401, %v2397
      %v2938 = vpack.c.b16 %v2406, %v2402
      %v2939 = vpack.c.b16 %v2407, %v2403
      %v2940 = vpack.c.b16 %v2408, %v2404
      %v2941 = vpack.c.b16 %v2409, %v2405
      %v2942 = vpack.c.b16 %v2414, %v2410
      %v2943 = vpack.c.b16 %v2415, %v2411
      %v2944 = vpack.c.b16 %v2416, %v2412
      %v2945 = vpack.c.b16 %v2417, %v2413
      %v2946 = vpack.c.b16 %v2422, %v2418
      %v2947 = vpack.c.b16 %v2423, %v2419
      %v2948 = vpack.c.b16 %v2424, %v2420
      %v2949 = vpack.c.b16 %v2425, %v2421
      %v2950 = vpack.c.b16 %v2430, %v2426
      %v2951 = vpack.c.b16 %v2431, %v2427
      %v2952 = vpack.c.b16 %v2432, %v2428
      %v2953 = vpack.c.b16 %v2433, %v2429
      %v2954 = vpack.c.b16 %v2438, %v2434
      %v2955 = vpack.c.b16 %v2439, %v2435
      %v2956 = vpack.c.b16 %v2440, %v2436
      %v2957 = vpack.c.b16 %v2441, %v2437
      %v2958 = vpack.c.b16 %v2446, %v2442
      %v2959 = vpack.c.b16 %v2447, %v2443
      %v2960 = vpack.c.b16 %v2448, %v2444
      %v2961 = vpack.c.b16 %v2449, %v2445
      %3474 = vmatprep.subr.bf16.mxu0 %v2479
      %3475 = vmatpush1.bf16.msra.mxu0 %v2478
      %3476 = vmatprep.subr.bf16.mxu0 %v2475
      %3477 = vmatpush1.bf16.msra.mxu0 %v2474
      %3478 = vmatprep.subr.bf16.mxu0 %v2471
      %3479 = vmatpush1.bf16.msra.mxu0 %v2470
      %3480 = vmatprep.subr.bf16.mxu0 %v2467
      %3481 = vmatpush1.bf16.msra.mxu0 %v2466
      %3482 = vmatprep.subr.bf16.mxu0 %v2463
      %3483 = vmatpush1.bf16.msra.mxu0 %v2462
      %3484 = vmatprep.subr.bf16.mxu0 %v2459
      %3485 = vmatpush1.bf16.msra.mxu0 %v2458
      %3486 = vmatprep.subr.bf16.mxu0 %v2455
      %3487 = vmatpush1.bf16.msra.mxu0 %v2454
      %3488 = vmatprep.subr.bf16.mxu0 %v2451
      %3489 = vmatpush1.bf16.msra.mxu0 %v2450
      %3490 = vmatprep.subr.bf16.mxu0 %v2511
      %3491 = vmatpush2.bf16.msra.mxu0 %v2510
      %3492 = vmatprep.subr.bf16.mxu0 %v2507
      %3493 = vmatpush2.bf16.msra.mxu0 %v2506
      %3494 = vmatprep.subr.bf16.mxu0 %v2503
      %3495 = vmatpush2.bf16.msra.mxu0 %v2502
      %3496 = vmatprep.subr.bf16.mxu0 %v2499
      %3497 = vmatpush2.bf16.msra.mxu0 %v2498
      %3498 = vmatprep.subr.bf16.mxu0 %v2495
      %3499 = vmatpush2.bf16.msra.mxu0 %v2494
      %3500 = vmatprep.subr.bf16.mxu0 %v2491
      %3501 = vmatpush2.bf16.msra.mxu0 %v2490
      %3502 = vmatprep.subr.bf16.mxu0 %v2487
      %3503 = vmatpush2.bf16.msra.mxu0 %v2486
      %3504 = vmatprep.subr.bf16.mxu0 %v2483
      %3505 = vmatpush2.bf16.msra.mxu0 %v2482
      %3506 = vmatprep.mubr.bf16.mxu0 %v387
      %3507 = vmatmul.mubr.bf16.gmra.mxu0 %v386
      %v3508 = vpop.f32.mrf.mxu0
      %v3509 = vadd.f32 0.0, %v3508
      %v3510 = vpop.f32.mrf.mxu0
      %v3511 = vadd.f32 0.0, %v3510
      %v3512 = vpop.f32.mrf.mxu0
      %v3513 = vpop.f32.mrf.mxu0
      %3514 = vdwg.mxu0
      %3515 = vmatprep.subr.bf16.mxu0 %v2543
      %3516 = vmatpush1.bf16.msra.mxu0 %v2542
      %3517 = vmatprep.subr.bf16.mxu0 %v2539
      %3518 = vmatpush1.bf16.msra.mxu0 %v2538
      %3519 = vmatprep.subr.bf16.mxu0 %v2535
      %3520 = vmatpush1.bf16.msra.mxu0 %v2534
      %3521 = vmatprep.subr.bf16.mxu0 %v2531
      %3522 = vmatpush1.bf16.msra.mxu0 %v2530
      %3523 = vmatprep.subr.bf16.mxu0 %v2527
      %3524 = vmatpush1.bf16.msra.mxu0 %v2526
      %3525 = vmatprep.subr.bf16.mxu0 %v2523
      %3526 = vmatpush1.bf16.msra.mxu0 %v2522
      %3527 = vmatprep.subr.bf16.mxu0 %v2519
      %3528 = vmatpush1.bf16.msra.mxu0 %v2518
      %3529 = vmatprep.subr.bf16.mxu0 %v2515
      %3530 = vmatpush1.bf16.msra.mxu0 %v2514
      %3531 = vmatprep.subr.bf16.mxu0 %v2575
      %3532 = vmatpush2.bf16.msra.mxu0 %v2574
      %3533 = vmatprep.subr.bf16.mxu0 %v2571
      %3534 = vmatpush2.bf16.msra.mxu0 %v2570
      %3535 = vmatprep.subr.bf16.mxu0 %v2567
      %3536 = vmatpush2.bf16.msra.mxu0 %v2566
      %3537 = vmatprep.subr.bf16.mxu0 %v2563
      %3538 = vmatpush2.bf16.msra.mxu0 %v2562
      %3539 = vmatprep.subr.bf16.mxu0 %v2559
      %3540 = vmatpush2.bf16.msra.mxu0 %v2558
      %3541 = vmatprep.subr.bf16.mxu0 %v2555
      %3542 = vmatpush2.bf16.msra.mxu0 %v2554
      %3543 = vmatprep.subr.bf16.mxu0 %v2551
      %3544 = vmatpush2.bf16.msra.mxu0 %v2550
      %3545 = vmatprep.subr.bf16.mxu0 %v2547
      %3546 = vmatpush2.bf16.msra.mxu0 %v2546
      %3547 = vmatprep.mubr.bf16.mxu0 %v389
      %3548 = vmatmul.mubr.bf16.gmra.mxu0 %v388
      %v3549 = vpop.f32.mrf.mxu0
      %v3550 = vadd.f32 %v3509, %v3549
      %v3551 = vpop.f32.mrf.mxu0
      %v3552 = vadd.f32 %v3511, %v3551
      %v3553 = vpop.f32.mrf.mxu0
      %v3554 = vpop.f32.mrf.mxu0
      %3555 = vdwg.mxu0
      %3556 = vmatprep.subr.bf16.mxu0 %v2607
      %3557 = vmatpush1.bf16.msra.mxu0 %v2606
      %3558 = vmatprep.subr.bf16.mxu0 %v2603
      %3559 = vmatpush1.bf16.msra.mxu0 %v2602
      %3560 = vmatprep.subr.bf16.mxu0 %v2599
      %3561 = vmatpush1.bf16.msra.mxu0 %v2598
      %3562 = vmatprep.subr.bf16.mxu0 %v2595
      %3563 = vmatpush1.bf16.msra.mxu0 %v2594
      %3564 = vmatprep.subr.bf16.mxu0 %v2591
      %3565 = vmatpush1.bf16.msra.mxu0 %v2590
      %3566 = vmatprep.subr.bf16.mxu0 %v2587
      %3567 = vmatpush1.bf16.msra.mxu0 %v2586
      %3568 = vmatprep.subr.bf16.mxu0 %v2583
      %3569 = vmatpush1.bf16.msra.mxu0 %v2582
      %3570 = vmatprep.subr.bf16.mxu0 %v2579
      %3571 = vmatpush1.bf16.msra.mxu0 %v2578
      %3572 = vmatprep.subr.bf16.mxu0 %v2639
      %3573 = vmatpush2.bf16.msra.mxu0 %v2638
      %3574 = vmatprep.subr.bf16.mxu0 %v2635
      %3575 = vmatpush2.bf16.msra.mxu0 %v2634
      %3576 = vmatprep.subr.bf16.mxu0 %v2631
      %3577 = vmatpush2.bf16.msra.mxu0 %v2630
      %3578 = vmatprep.subr.bf16.mxu0 %v2627
      %3579 = vmatpush2.bf16.msra.mxu0 %v2626
      %3580 = vmatprep.subr.bf16.mxu0 %v2623
      %3581 = vmatpush2.bf16.msra.mxu0 %v2622
      %3582 = vmatprep.subr.bf16.mxu0 %v2619
      %3583 = vmatpush2.bf16.msra.mxu0 %v2618
      %3584 = vmatprep.subr.bf16.mxu0 %v2615
      %3585 = vmatpush2.bf16.msra.mxu0 %v2614
      %3586 = vmatprep.subr.bf16.mxu0 %v2611
      %3587 = vmatpush2.bf16.msra.mxu0 %v2610
      %3588 = vmatprep.mubr.bf16.mxu0 %v391
      %3589 = vmatmul.mubr.bf16.gmra.mxu0 %v390
      %v3590 = vpop.f32.mrf.mxu0
      %v3591 = vadd.f32 %v3550, %v3590
      %v3592 = vpop.f32.mrf.mxu0
      %v3593 = vadd.f32 %v3552, %v3592
      %v3594 = vpop.f32.mrf.mxu0
      %v3595 = vpop.f32.mrf.mxu0
      %3596 = vdwg.mxu0
      %3597 = vmatprep.subr.bf16.mxu0 %v2671
      %3598 = vmatpush1.bf16.msra.mxu0 %v2670
      %3599 = vmatprep.subr.bf16.mxu0 %v2667
      %3600 = vmatpush1.bf16.msra.mxu0 %v2666
      %3601 = vmatprep.subr.bf16.mxu0 %v2663
      %3602 = vmatpush1.bf16.msra.mxu0 %v2662
      %3603 = vmatprep.subr.bf16.mxu0 %v2659
      %3604 = vmatpush1.bf16.msra.mxu0 %v2658
      %3605 = vmatprep.subr.bf16.mxu0 %v2655
      %3606 = vmatpush1.bf16.msra.mxu0 %v2654
      %3607 = vmatprep.subr.bf16.mxu0 %v2651
      %3608 = vmatpush1.bf16.msra.mxu0 %v2650
      %3609 = vmatprep.subr.bf16.mxu0 %v2647
      %3610 = vmatpush1.bf16.msra.mxu0 %v2646
      %3611 = vmatprep.subr.bf16.mxu0 %v2643
      %3612 = vmatpush1.bf16.msra.mxu0 %v2642
      %3613 = vmatprep.subr.bf16.mxu0 %v2703
      %3614 = vmatpush2.bf16.msra.mxu0 %v2702
      %3615 = vmatprep.subr.bf16.mxu0 %v2699
      %3616 = vmatpush2.bf16.msra.mxu0 %v2698
      %3617 = vmatprep.subr.bf16.mxu0 %v2695
      %3618 = vmatpush2.bf16.msra.mxu0 %v2694
      %3619 = vmatprep.subr.bf16.mxu0 %v2691
      %3620 = vmatpush2.bf16.msra.mxu0 %v2690
      %3621 = vmatprep.subr.bf16.mxu0 %v2687
      %3622 = vmatpush2.bf16.msra.mxu0 %v2686
      %3623 = vmatprep.subr.bf16.mxu0 %v2683
      %3624 = vmatpush2.bf16.msra.mxu0 %v2682
      %3625 = vmatprep.subr.bf16.mxu0 %v2679
      %3626 = vmatpush2.bf16.msra.mxu0 %v2678
      %3627 = vmatprep.subr.bf16.mxu0 %v2675
      %3628 = vmatpush2.bf16.msra.mxu0 %v2674
      %3629 = vmatprep.mubr.bf16.mxu0 %v393
      %3630 = vmatmul.mubr.bf16.gmra.mxu0 %v392
      %v3631 = vpop.f32.mrf.mxu0
      %v3632 = vadd.f32 %v3591, %v3631
      %v3633 = vpop.f32.mrf.mxu0
      %v3634 = vadd.f32 %v3593, %v3633
      %v3635 = vpop.f32.mrf.mxu0
      %v3636 = vpop.f32.mrf.mxu0
      %3637 = vdwg.mxu0
      %3638 = vmatprep.subr.bf16.mxu0 %v2735
      %3639 = vmatpush1.bf16.msra.mxu0 %v2734
      %3640 = vmatprep.subr.bf16.mxu0 %v2731
      %3641 = vmatpush1.bf16.msra.mxu0 %v2730
      %3642 = vmatprep.subr.bf16.mxu0 %v2727
      %3643 = vmatpush1.bf16.msra.mxu0 %v2726
      %3644 = vmatprep.subr.bf16.mxu0 %v2723
      %3645 = vmatpush1.bf16.msra.mxu0 %v2722
      %3646 = vmatprep.subr.bf16.mxu0 %v2719
      %3647 = vmatpush1.bf16.msra.mxu0 %v2718
      %3648 = vmatprep.subr.bf16.mxu0 %v2715
      %3649 = vmatpush1.bf16.msra.mxu0 %v2714
      %3650 = vmatprep.subr.bf16.mxu0 %v2711
      %3651 = vmatpush1.bf16.msra.mxu0 %v2710
      %3652 = vmatprep.subr.bf16.mxu0 %v2707
      %3653 = vmatpush1.bf16.msra.mxu0 %v2706
      %3654 = vmatprep.subr.bf16.mxu0 %v2767
      %3655 = vmatpush2.bf16.msra.mxu0 %v2766
      %3656 = vmatprep.subr.bf16.mxu0 %v2763
      %3657 = vmatpush2.bf16.msra.mxu0 %v2762
      %3658 = vmatprep.subr.bf16.mxu0 %v2759
      %3659 = vmatpush2.bf16.msra.mxu0 %v2758
      %3660 = vmatprep.subr.bf16.mxu0 %v2755
      %3661 = vmatpush2.bf16.msra.mxu0 %v2754
      %3662 = vmatprep.subr.bf16.mxu0 %v2751
      %3663 = vmatpush2.bf16.msra.mxu0 %v2750
      %3664 = vmatprep.subr.bf16.mxu0 %v2747
      %3665 = vmatpush2.bf16.msra.mxu0 %v2746
      %3666 = vmatprep.subr.bf16.mxu0 %v2743
      %3667 = vmatpush2.bf16.msra.mxu0 %v2742
      %3668 = vmatprep.subr.bf16.mxu0 %v2739
      %3669 = vmatpush2.bf16.msra.mxu0 %v2738
      %3670 = vmatprep.mubr.bf16.mxu0 %v395
      %3671 = vmatmul.mubr.bf16.gmra.mxu0 %v394
      %v3672 = vpop.f32.mrf.mxu0
      %v3673 = vadd.f32 %v3632, %v3672
      %v3674 = vpop.f32.mrf.mxu0
      %v3675 = vadd.f32 %v3634, %v3674
      %v3676 = vpop.f32.mrf.mxu0
      %v3677 = vpop.f32.mrf.mxu0
      %3678 = vdwg.mxu0
      %3679 = vmatprep.subr.bf16.mxu0 %v2799
      %3680 = vmatpush1.bf16.msra.mxu0 %v2798
      %3681 = vmatprep.subr.bf16.mxu0 %v2795
      %3682 = vmatpush1.bf16.msra.mxu0 %v2794
      %3683 = vmatprep.subr.bf16.mxu0 %v2791
      %3684 = vmatpush1.bf16.msra.mxu0 %v2790
      %3685 = vmatprep.subr.bf16.mxu0 %v2787
      %3686 = vmatpush1.bf16.msra.mxu0 %v2786
      %3687 = vmatprep.subr.bf16.mxu0 %v2783
      %3688 = vmatpush1.bf16.msra.mxu0 %v2782
      %3689 = vmatprep.subr.bf16.mxu0 %v2779
      %3690 = vmatpush1.bf16.msra.mxu0 %v2778
      %3691 = vmatprep.subr.bf16.mxu0 %v2775
      %3692 = vmatpush1.bf16.msra.mxu0 %v2774
      %3693 = vmatprep.subr.bf16.mxu0 %v2771
      %3694 = vmatpush1.bf16.msra.mxu0 %v2770
      %3695 = vmatprep.subr.bf16.mxu0 %v2831
      %3696 = vmatpush2.bf16.msra.mxu0 %v2830
      %3697 = vmatprep.subr.bf16.mxu0 %v2827
      %3698 = vmatpush2.bf16.msra.mxu0 %v2826
      %3699 = vmatprep.subr.bf16.mxu0 %v2823
      %3700 = vmatpush2.bf16.msra.mxu0 %v2822
      %3701 = vmatprep.subr.bf16.mxu0 %v2819
      %3702 = vmatpush2.bf16.msra.mxu0 %v2818
      %3703 = vmatprep.subr.bf16.mxu0 %v2815
      %3704 = vmatpush2.bf16.msra.mxu0 %v2814
      %3705 = vmatprep.subr.bf16.mxu0 %v2811
      %3706 = vmatpush2.bf16.msra.mxu0 %v2810
      %3707 = vmatprep.subr.bf16.mxu0 %v2807
      %3708 = vmatpush2.bf16.msra.mxu0 %v2806
      %3709 = vmatprep.subr.bf16.mxu0 %v2803
      %3710 = vmatpush2.bf16.msra.mxu0 %v2802
      %3711 = vmatprep.mubr.bf16.mxu0 %v397
      %3712 = vmatmul.mubr.bf16.gmra.mxu0 %v396
      %v3713 = vpop.f32.mrf.mxu0
      %v3714 = vadd.f32 %v3673, %v3713
      %v3715 = vpop.f32.mrf.mxu0
      %v3716 = vadd.f32 %v3675, %v3715
      %v3717 = vpop.f32.mrf.mxu0
      %v3718 = vpop.f32.mrf.mxu0
      %3719 = vdwg.mxu0
      %3720 = vmatprep.subr.bf16.mxu0 %v2863
      %3721 = vmatpush1.bf16.msra.mxu0 %v2862
      %3722 = vmatprep.subr.bf16.mxu0 %v2859
      %3723 = vmatpush1.bf16.msra.mxu0 %v2858
      %3724 = vmatprep.subr.bf16.mxu0 %v2855
      %3725 = vmatpush1.bf16.msra.mxu0 %v2854
      %3726 = vmatprep.subr.bf16.mxu0 %v2851
      %3727 = vmatpush1.bf16.msra.mxu0 %v2850
      %3728 = vmatprep.subr.bf16.mxu0 %v2847
      %3729 = vmatpush1.bf16.msra.mxu0 %v2846
      %3730 = vmatprep.subr.bf16.mxu0 %v2843
      %3731 = vmatpush1.bf16.msra.mxu0 %v2842
      %3732 = vmatprep.subr.bf16.mxu0 %v2839
      %3733 = vmatpush1.bf16.msra.mxu0 %v2838
      %3734 = vmatprep.subr.bf16.mxu0 %v2835
      %3735 = vmatpush1.bf16.msra.mxu0 %v2834
      %3736 = vmatprep.subr.bf16.mxu0 %v2895
      %3737 = vmatpush2.bf16.msra.mxu0 %v2894
      %3738 = vmatprep.subr.bf16.mxu0 %v2891
      %3739 = vmatpush2.bf16.msra.mxu0 %v2890
      %3740 = vmatprep.subr.bf16.mxu0 %v2887
      %3741 = vmatpush2.bf16.msra.mxu0 %v2886
      %3742 = vmatprep.subr.bf16.mxu0 %v2883
      %3743 = vmatpush2.bf16.msra.mxu0 %v2882
      %3744 = vmatprep.subr.bf16.mxu0 %v2879
      %3745 = vmatpush2.bf16.msra.mxu0 %v2878
      %3746 = vmatprep.subr.bf16.mxu0 %v2875
      %3747 = vmatpush2.bf16.msra.mxu0 %v2874
      %3748 = vmatprep.subr.bf16.mxu0 %v2871
      %3749 = vmatpush2.bf16.msra.mxu0 %v2870
      %3750 = vmatprep.subr.bf16.mxu0 %v2867
      %3751 = vmatpush2.bf16.msra.mxu0 %v2866
      %3752 = vmatprep.mubr.bf16.mxu0 %v399
      %3753 = vmatmul.mubr.bf16.gmra.mxu0 %v398
      %v3754 = vpop.f32.mrf.mxu0
      %v3755 = vadd.f32 %v3714, %v3754
      %v3756 = vpop.f32.mrf.mxu0
      %v3757 = vadd.f32 %v3716, %v3756
      %v3758 = vpop.f32.mrf.mxu0
      %v3759 = vpop.f32.mrf.mxu0
      %3760 = vdwg.mxu0
      %3761 = vmatprep.subr.bf16.mxu0 %v2927
      %3762 = vmatpush1.bf16.msra.mxu0 %v2926
      %3763 = vmatprep.subr.bf16.mxu0 %v2923
      %3764 = vmatpush1.bf16.msra.mxu0 %v2922
      %3765 = vmatprep.subr.bf16.mxu0 %v2919
      %3766 = vmatpush1.bf16.msra.mxu0 %v2918
      %3767 = vmatprep.subr.bf16.mxu0 %v2915
      %3768 = vmatpush1.bf16.msra.mxu0 %v2914
      %3769 = vmatprep.subr.bf16.mxu0 %v2911
      %3770 = vmatpush1.bf16.msra.mxu0 %v2910
      %3771 = vmatprep.subr.bf16.mxu0 %v2907
      %3772 = vmatpush1.bf16.msra.mxu0 %v2906
      %3773 = vmatprep.subr.bf16.mxu0 %v2903
      %3774 = vmatpush1.bf16.msra.mxu0 %v2902
      %3775 = vmatprep.subr.bf16.mxu0 %v2899
      %3776 = vmatpush1.bf16.msra.mxu0 %v2898
      %3777 = vmatprep.subr.bf16.mxu0 %v2959
      %3778 = vmatpush2.bf16.msra.mxu0 %v2958
      %3779 = vmatprep.subr.bf16.mxu0 %v2955
      %3780 = vmatpush2.bf16.msra.mxu0 %v2954
      %3781 = vmatprep.subr.bf16.mxu0 %v2951
      %3782 = vmatpush2.bf16.msra.mxu0 %v2950
      %3783 = vmatprep.subr.bf16.mxu0 %v2947
      %3784 = vmatpush2.bf16.msra.mxu0 %v2946
      %3785 = vmatprep.subr.bf16.mxu0 %v2943
      %3786 = vmatpush2.bf16.msra.mxu0 %v2942
      %3787 = vmatprep.subr.bf16.mxu0 %v2939
      %3788 = vmatpush2.bf16.msra.mxu0 %v2938
      %3789 = vmatprep.subr.bf16.mxu0 %v2935
      %3790 = vmatpush2.bf16.msra.mxu0 %v2934
      %3791 = vmatprep.subr.bf16.mxu0 %v2931
      %3792 = vmatpush2.bf16.msra.mxu0 %v2930
      %3793 = vmatprep.mubr.bf16.mxu0 %v401
      %3794 = vmatmul.mubr.bf16.gmra.mxu0 %v400
      %v3795 = vpop.f32.mrf.mxu0
      %v3796 = vadd.f32 %v3755, %v3795
      %v3797 = vpop.f32.mrf.mxu0
      %v3798 = vadd.f32 %v3757, %v3797
      %v3799 = vpop.f32.mrf.mxu0
      %v3800 = vpop.f32.mrf.mxu0
      %3801 = vdwg.mxu0
      %3802 = vmatprep.subr.bf16.mxu0 %v2481
      %3803 = vmatpush1.bf16.msra.mxu0 %v2480
      %3804 = vmatprep.subr.bf16.mxu0 %v2477
      %3805 = vmatpush1.bf16.msra.mxu0 %v2476
      %3806 = vmatprep.subr.bf16.mxu0 %v2473
      %3807 = vmatpush1.bf16.msra.mxu0 %v2472
      %3808 = vmatprep.subr.bf16.mxu0 %v2469
      %3809 = vmatpush1.bf16.msra.mxu0 %v2468
      %3810 = vmatprep.subr.bf16.mxu0 %v2465
      %3811 = vmatpush1.bf16.msra.mxu0 %v2464
      %3812 = vmatprep.subr.bf16.mxu0 %v2461
      %3813 = vmatpush1.bf16.msra.mxu0 %v2460
      %3814 = vmatprep.subr.bf16.mxu0 %v2457
      %3815 = vmatpush1.bf16.msra.mxu0 %v2456
      %3816 = vmatprep.subr.bf16.mxu0 %v2453
      %3817 = vmatpush1.bf16.msra.mxu0 %v2452
      %3818 = vmatprep.subr.bf16.mxu0 %v2513
      %3819 = vmatpush2.bf16.msra.mxu0 %v2512
      %3820 = vmatprep.subr.bf16.mxu0 %v2509
      %3821 = vmatpush2.bf16.msra.mxu0 %v2508
      %3822 = vmatprep.subr.bf16.mxu0 %v2505
      %3823 = vmatpush2.bf16.msra.mxu0 %v2504
      %3824 = vmatprep.subr.bf16.mxu0 %v2501
      %3825 = vmatpush2.bf16.msra.mxu0 %v2500
      %3826 = vmatprep.subr.bf16.mxu0 %v2497
      %3827 = vmatpush2.bf16.msra.mxu0 %v2496
      %3828 = vmatprep.subr.bf16.mxu0 %v2493
      %3829 = vmatpush2.bf16.msra.mxu0 %v2492
      %3830 = vmatprep.subr.bf16.mxu0 %v2489
      %3831 = vmatpush2.bf16.msra.mxu0 %v2488
      %3832 = vmatprep.subr.bf16.mxu0 %v2485
      %3833 = vmatpush2.bf16.msra.mxu0 %v2484
      %3834 = vmatprep.mubr.bf16.mxu0 %v387
      %3835 = vmatmul.mubr.bf16.gmra.mxu0 %v386
      %v3836 = vpop.f32.mrf.mxu0
      %v3837 = vadd.f32 0.0, %v3836
      %v3838 = vpop.f32.mrf.mxu0
      %v3839 = vadd.f32 0.0, %v3838
      %v3840 = vpop.f32.mrf.mxu0
      %v3841 = vpop.f32.mrf.mxu0
      %3842 = vdwg.mxu0
      %3843 = vmatprep.subr.bf16.mxu0 %v2545
      %3844 = vmatpush1.bf16.msra.mxu0 %v2544
      %3845 = vmatprep.subr.bf16.mxu0 %v2541
      %3846 = vmatpush1.bf16.msra.mxu0 %v2540
      %3847 = vmatprep.subr.bf16.mxu0 %v2537
      %3848 = vmatpush1.bf16.msra.mxu0 %v2536
      %3849 = vmatprep.subr.bf16.mxu0 %v2533
      %3850 = vmatpush1.bf16.msra.mxu0 %v2532
      %3851 = vmatprep.subr.bf16.mxu0 %v2529
      %3852 = vmatpush1.bf16.msra.mxu0 %v2528
      %3853 = vmatprep.subr.bf16.mxu0 %v2525
      %3854 = vmatpush1.bf16.msra.mxu0 %v2524
      %3855 = vmatprep.subr.bf16.mxu0 %v2521
      %3856 = vmatpush1.bf16.msra.mxu0 %v2520
      %3857 = vmatprep.subr.bf16.mxu0 %v2517
      %3858 = vmatpush1.bf16.msra.mxu0 %v2516
      %3859 = vmatprep.subr.bf16.mxu0 %v2577
      %3860 = vmatpush2.bf16.msra.mxu0 %v2576
      %3861 = vmatprep.subr.bf16.mxu0 %v2573
      %3862 = vmatpush2.bf16.msra.mxu0 %v2572
      %3863 = vmatprep.subr.bf16.mxu0 %v2569
      %3864 = vmatpush2.bf16.msra.mxu0 %v2568
      %3865 = vmatprep.subr.bf16.mxu0 %v2565
      %3866 = vmatpush2.bf16.msra.mxu0 %v2564
      %3867 = vmatprep.subr.bf16.mxu0 %v2561
      %3868 = vmatpush2.bf16.msra.mxu0 %v2560
      %3869 = vmatprep.subr.bf16.mxu0 %v2557
      %3870 = vmatpush2.bf16.msra.mxu0 %v2556
      %3871 = vmatprep.subr.bf16.mxu0 %v2553
      %3872 = vmatpush2.bf16.msra.mxu0 %v2552
      %3873 = vmatprep.subr.bf16.mxu0 %v2549
      %3874 = vmatpush2.bf16.msra.mxu0 %v2548
      %3875 = vmatprep.mubr.bf16.mxu0 %v389
      %3876 = vmatmul.mubr.bf16.gmra.mxu0 %v388
      %v3877 = vpop.f32.mrf.mxu0
      %v3878 = vadd.f32 %v3837, %v3877
      %v3879 = vpop.f32.mrf.mxu0
      %v3880 = vadd.f32 %v3839, %v3879
      %v3881 = vpop.f32.mrf.mxu0
      %v3882 = vpop.f32.mrf.mxu0
      %3883 = vdwg.mxu0
      %3884 = vmatprep.subr.bf16.mxu0 %v2609
      %3885 = vmatpush1.bf16.msra.mxu0 %v2608
      %3886 = vmatprep.subr.bf16.mxu0 %v2605
      %3887 = vmatpush1.bf16.msra.mxu0 %v2604
      %3888 = vmatprep.subr.bf16.mxu0 %v2601
      %3889 = vmatpush1.bf16.msra.mxu0 %v2600
      %3890 = vmatprep.subr.bf16.mxu0 %v2597
      %3891 = vmatpush1.bf16.msra.mxu0 %v2596
      %3892 = vmatprep.subr.bf16.mxu0 %v2593
      %3893 = vmatpush1.bf16.msra.mxu0 %v2592
      %3894 = vmatprep.subr.bf16.mxu0 %v2589
      %3895 = vmatpush1.bf16.msra.mxu0 %v2588
      %3896 = vmatprep.subr.bf16.mxu0 %v2585
      %3897 = vmatpush1.bf16.msra.mxu0 %v2584
      %3898 = vmatprep.subr.bf16.mxu0 %v2581
      %3899 = vmatpush1.bf16.msra.mxu0 %v2580
      %3900 = vmatprep.subr.bf16.mxu0 %v2641
      %3901 = vmatpush2.bf16.msra.mxu0 %v2640
      %3902 = vmatprep.subr.bf16.mxu0 %v2637
      %3903 = vmatpush2.bf16.msra.mxu0 %v2636
      %3904 = vmatprep.subr.bf16.mxu0 %v2633
      %3905 = vmatpush2.bf16.msra.mxu0 %v2632
      %3906 = vmatprep.subr.bf16.mxu0 %v2629
      %3907 = vmatpush2.bf16.msra.mxu0 %v2628
      %3908 = vmatprep.subr.bf16.mxu0 %v2625
      %3909 = vmatpush2.bf16.msra.mxu0 %v2624
      %3910 = vmatprep.subr.bf16.mxu0 %v2621
      %3911 = vmatpush2.bf16.msra.mxu0 %v2620
      %3912 = vmatprep.subr.bf16.mxu0 %v2617
      %3913 = vmatpush2.bf16.msra.mxu0 %v2616
      %3914 = vmatprep.subr.bf16.mxu0 %v2613
      %3915 = vmatpush2.bf16.msra.mxu0 %v2612
      %3916 = vmatprep.mubr.bf16.mxu0 %v391
      %3917 = vmatmul.mubr.bf16.gmra.mxu0 %v390
      %v3918 = vpop.f32.mrf.mxu0
      %v3919 = vadd.f32 %v3878, %v3918
      %v3920 = vpop.f32.mrf.mxu0
      %v3921 = vadd.f32 %v3880, %v3920
      %v3922 = vpop.f32.mrf.mxu0
      %v3923 = vpop.f32.mrf.mxu0
      %3924 = vdwg.mxu0
      %3925 = vmatprep.subr.bf16.mxu0 %v2673
      %3926 = vmatpush1.bf16.msra.mxu0 %v2672
      %3927 = vmatprep.subr.bf16.mxu0 %v2669
      %3928 = vmatpush1.bf16.msra.mxu0 %v2668
      %3929 = vmatprep.subr.bf16.mxu0 %v2665
      %3930 = vmatpush1.bf16.msra.mxu0 %v2664
      %3931 = vmatprep.subr.bf16.mxu0 %v2661
      %3932 = vmatpush1.bf16.msra.mxu0 %v2660
      %3933 = vmatprep.subr.bf16.mxu0 %v2657
      %3934 = vmatpush1.bf16.msra.mxu0 %v2656
      %3935 = vmatprep.subr.bf16.mxu0 %v2653
      %3936 = vmatpush1.bf16.msra.mxu0 %v2652
      %3937 = vmatprep.subr.bf16.mxu0 %v2649
      %3938 = vmatpush1.bf16.msra.mxu0 %v2648
      %3939 = vmatprep.subr.bf16.mxu0 %v2645
      %3940 = vmatpush1.bf16.msra.mxu0 %v2644
      %3941 = vmatprep.subr.bf16.mxu0 %v2705
      %3942 = vmatpush2.bf16.msra.mxu0 %v2704
      %3943 = vmatprep.subr.bf16.mxu0 %v2701
      %3944 = vmatpush2.bf16.msra.mxu0 %v2700
      %3945 = vmatprep.subr.bf16.mxu0 %v2697
      %3946 = vmatpush2.bf16.msra.mxu0 %v2696
      %3947 = vmatprep.subr.bf16.mxu0 %v2693
      %3948 = vmatpush2.bf16.msra.mxu0 %v2692
      %3949 = vmatprep.subr.bf16.mxu0 %v2689
      %3950 = vmatpush2.bf16.msra.mxu0 %v2688
      %3951 = vmatprep.subr.bf16.mxu0 %v2685
      %3952 = vmatpush2.bf16.msra.mxu0 %v2684
      %3953 = vmatprep.subr.bf16.mxu0 %v2681
      %3954 = vmatpush2.bf16.msra.mxu0 %v2680
      %3955 = vmatprep.subr.bf16.mxu0 %v2677
      %3956 = vmatpush2.bf16.msra.mxu0 %v2676
      %3957 = vmatprep.mubr.bf16.mxu0 %v393
      %3958 = vmatmul.mubr.bf16.gmra.mxu0 %v392
      %v3959 = vpop.f32.mrf.mxu0
      %v3960 = vadd.f32 %v3919, %v3959
      %v3961 = vpop.f32.mrf.mxu0
      %v3962 = vadd.f32 %v3921, %v3961
      %v3963 = vpop.f32.mrf.mxu0
      %v3964 = vpop.f32.mrf.mxu0
      %3965 = vdwg.mxu0
      %3966 = vmatprep.subr.bf16.mxu0 %v2737
      %3967 = vmatpush1.bf16.msra.mxu0 %v2736
      %3968 = vmatprep.subr.bf16.mxu0 %v2733
      %3969 = vmatpush1.bf16.msra.mxu0 %v2732
      %3970 = vmatprep.subr.bf16.mxu0 %v2729
      %3971 = vmatpush1.bf16.msra.mxu0 %v2728
      %3972 = vmatprep.subr.bf16.mxu0 %v2725
      %3973 = vmatpush1.bf16.msra.mxu0 %v2724
      %3974 = vmatprep.subr.bf16.mxu0 %v2721
      %3975 = vmatpush1.bf16.msra.mxu0 %v2720
      %3976 = vmatprep.subr.bf16.mxu0 %v2717
      %3977 = vmatpush1.bf16.msra.mxu0 %v2716
      %3978 = vmatprep.subr.bf16.mxu0 %v2713
      %3979 = vmatpush1.bf16.msra.mxu0 %v2712
      %3980 = vmatprep.subr.bf16.mxu0 %v2709
      %3981 = vmatpush1.bf16.msra.mxu0 %v2708
      %3982 = vmatprep.subr.bf16.mxu0 %v2769
      %3983 = vmatpush2.bf16.msra.mxu0 %v2768
      %3984 = vmatprep.subr.bf16.mxu0 %v2765
      %3985 = vmatpush2.bf16.msra.mxu0 %v2764
      %3986 = vmatprep.subr.bf16.mxu0 %v2761
      %3987 = vmatpush2.bf16.msra.mxu0 %v2760
      %3988 = vmatprep.subr.bf16.mxu0 %v2757
      %3989 = vmatpush2.bf16.msra.mxu0 %v2756
      %3990 = vmatprep.subr.bf16.mxu0 %v2753
      %3991 = vmatpush2.bf16.msra.mxu0 %v2752
      %3992 = vmatprep.subr.bf16.mxu0 %v2749
      %3993 = vmatpush2.bf16.msra.mxu0 %v2748
      %3994 = vmatprep.subr.bf16.mxu0 %v2745
      %3995 = vmatpush2.bf16.msra.mxu0 %v2744
      %3996 = vmatprep.subr.bf16.mxu0 %v2741
      %3997 = vmatpush2.bf16.msra.mxu0 %v2740
      %3998 = vmatprep.mubr.bf16.mxu0 %v395
      %3999 = vmatmul.mubr.bf16.gmra.mxu0 %v394
      %v4000 = vpop.f32.mrf.mxu0
      %v4001 = vadd.f32 %v3960, %v4000
      %v4002 = vpop.f32.mrf.mxu0
      %v4003 = vadd.f32 %v3962, %v4002
      %v4004 = vpop.f32.mrf.mxu0
      %v4005 = vpop.f32.mrf.mxu0
      %4006 = vdwg.mxu0
      %4007 = vmatprep.subr.bf16.mxu0 %v2801
      %4008 = vmatpush1.bf16.msra.mxu0 %v2800
      %4009 = vmatprep.subr.bf16.mxu0 %v2797
      %4010 = vmatpush1.bf16.msra.mxu0 %v2796
      %4011 = vmatprep.subr.bf16.mxu0 %v2793
      %4012 = vmatpush1.bf16.msra.mxu0 %v2792
      %4013 = vmatprep.subr.bf16.mxu0 %v2789
      %4014 = vmatpush1.bf16.msra.mxu0 %v2788
      %4015 = vmatprep.subr.bf16.mxu0 %v2785
      %4016 = vmatpush1.bf16.msra.mxu0 %v2784
      %4017 = vmatprep.subr.bf16.mxu0 %v2781
      %4018 = vmatpush1.bf16.msra.mxu0 %v2780
      %4019 = vmatprep.subr.bf16.mxu0 %v2777
      %4020 = vmatpush1.bf16.msra.mxu0 %v2776
      %4021 = vmatprep.subr.bf16.mxu0 %v2773
      %4022 = vmatpush1.bf16.msra.mxu0 %v2772
      %4023 = vmatprep.subr.bf16.mxu0 %v2833
      %4024 = vmatpush2.bf16.msra.mxu0 %v2832
      %4025 = vmatprep.subr.bf16.mxu0 %v2829
      %4026 = vmatpush2.bf16.msra.mxu0 %v2828
      %4027 = vmatprep.subr.bf16.mxu0 %v2825
      %4028 = vmatpush2.bf16.msra.mxu0 %v2824
      %4029 = vmatprep.subr.bf16.mxu0 %v2821
      %4030 = vmatpush2.bf16.msra.mxu0 %v2820
      %4031 = vmatprep.subr.bf16.mxu0 %v2817
      %4032 = vmatpush2.bf16.msra.mxu0 %v2816
      %4033 = vmatprep.subr.bf16.mxu0 %v2813
      %4034 = vmatpush2.bf16.msra.mxu0 %v2812
      %4035 = vmatprep.subr.bf16.mxu0 %v2809
      %4036 = vmatpush2.bf16.msra.mxu0 %v2808
      %4037 = vmatprep.subr.bf16.mxu0 %v2805
      %4038 = vmatpush2.bf16.msra.mxu0 %v2804
      %4039 = vmatprep.mubr.bf16.mxu0 %v397
      %4040 = vmatmul.mubr.bf16.gmra.mxu0 %v396
      %v4041 = vpop.f32.mrf.mxu0
      %v4042 = vadd.f32 %v4001, %v4041
      %v4043 = vpop.f32.mrf.mxu0
      %v4044 = vadd.f32 %v4003, %v4043
      %v4045 = vpop.f32.mrf.mxu0
      %v4046 = vpop.f32.mrf.mxu0
      %4047 = vdwg.mxu0
      %4048 = vmatprep.subr.bf16.mxu0 %v2865
      %4049 = vmatpush1.bf16.msra.mxu0 %v2864
      %4050 = vmatprep.subr.bf16.mxu0 %v2861
      %4051 = vmatpush1.bf16.msra.mxu0 %v2860
      %4052 = vmatprep.subr.bf16.mxu0 %v2857
      %4053 = vmatpush1.bf16.msra.mxu0 %v2856
      %4054 = vmatprep.subr.bf16.mxu0 %v2853
      %4055 = vmatpush1.bf16.msra.mxu0 %v2852
      %4056 = vmatprep.subr.bf16.mxu0 %v2849
      %4057 = vmatpush1.bf16.msra.mxu0 %v2848
      %4058 = vmatprep.subr.bf16.mxu0 %v2845
      %4059 = vmatpush1.bf16.msra.mxu0 %v2844
      %4060 = vmatprep.subr.bf16.mxu0 %v2841
      %4061 = vmatpush1.bf16.msra.mxu0 %v2840
      %4062 = vmatprep.subr.bf16.mxu0 %v2837
      %4063 = vmatpush1.bf16.msra.mxu0 %v2836
      %4064 = vmatprep.subr.bf16.mxu0 %v2897
      %4065 = vmatpush2.bf16.msra.mxu0 %v2896
      %4066 = vmatprep.subr.bf16.mxu0 %v2893
      %4067 = vmatpush2.bf16.msra.mxu0 %v2892
      %4068 = vmatprep.subr.bf16.mxu0 %v2889
      %4069 = vmatpush2.bf16.msra.mxu0 %v2888
      %4070 = vmatprep.subr.bf16.mxu0 %v2885
      %4071 = vmatpush2.bf16.msra.mxu0 %v2884
      %4072 = vmatprep.subr.bf16.mxu0 %v2881
      %4073 = vmatpush2.bf16.msra.mxu0 %v2880
      %4074 = vmatprep.subr.bf16.mxu0 %v2877
      %4075 = vmatpush2.bf16.msra.mxu0 %v2876
      %4076 = vmatprep.subr.bf16.mxu0 %v2873
      %4077 = vmatpush2.bf16.msra.mxu0 %v2872
      %4078 = vmatprep.subr.bf16.mxu0 %v2869
      %4079 = vmatpush2.bf16.msra.mxu0 %v2868
      %4080 = vmatprep.mubr.bf16.mxu0 %v399
      %4081 = vmatmul.mubr.bf16.gmra.mxu0 %v398
      %v4082 = vpop.f32.mrf.mxu0
      %v4083 = vadd.f32 %v4042, %v4082
      %v4084 = vpop.f32.mrf.mxu0
      %v4085 = vadd.f32 %v4044, %v4084
      %v4086 = vpop.f32.mrf.mxu0
      %v4087 = vpop.f32.mrf.mxu0
      %4088 = vdwg.mxu0
      %4089 = vmatprep.subr.bf16.mxu0 %v2929
      %4090 = vmatpush1.bf16.msra.mxu0 %v2928
      %4091 = vmatprep.subr.bf16.mxu0 %v2925
      %4092 = vmatpush1.bf16.msra.mxu0 %v2924
      %4093 = vmatprep.subr.bf16.mxu0 %v2921
      %4094 = vmatpush1.bf16.msra.mxu0 %v2920
      %4095 = vmatprep.subr.bf16.mxu0 %v2917
      %4096 = vmatpush1.bf16.msra.mxu0 %v2916
      %4097 = vmatprep.subr.bf16.mxu0 %v2913
      %4098 = vmatpush1.bf16.msra.mxu0 %v2912
      %4099 = vmatprep.subr.bf16.mxu0 %v2909
      %4100 = vmatpush1.bf16.msra.mxu0 %v2908
      %4101 = vmatprep.subr.bf16.mxu0 %v2905
      %4102 = vmatpush1.bf16.msra.mxu0 %v2904
      %4103 = vmatprep.subr.bf16.mxu0 %v2901
      %4104 = vmatpush1.bf16.msra.mxu0 %v2900
      %4105 = vmatprep.subr.bf16.mxu0 %v2961
      %4106 = vmatpush2.bf16.msra.mxu0 %v2960
      %4107 = vmatprep.subr.bf16.mxu0 %v2957
      %4108 = vmatpush2.bf16.msra.mxu0 %v2956
      %4109 = vmatprep.subr.bf16.mxu0 %v2953
      %4110 = vmatpush2.bf16.msra.mxu0 %v2952
      %4111 = vmatprep.subr.bf16.mxu0 %v2949
      %4112 = vmatpush2.bf16.msra.mxu0 %v2948
      %4113 = vmatprep.subr.bf16.mxu0 %v2945
      %4114 = vmatpush2.bf16.msra.mxu0 %v2944
      %4115 = vmatprep.subr.bf16.mxu0 %v2941
      %4116 = vmatpush2.bf16.msra.mxu0 %v2940
      %4117 = vmatprep.subr.bf16.mxu0 %v2937
      %4118 = vmatpush2.bf16.msra.mxu0 %v2936
      %4119 = vmatprep.subr.bf16.mxu0 %v2933
      %4120 = vmatpush2.bf16.msra.mxu0 %v2932
      %4121 = vmatprep.mubr.bf16.mxu0 %v401
      %4122 = vmatmul.mubr.bf16.gmra.mxu0 %v400
      %v4123 = vpop.f32.mrf.mxu0
      %v4124 = vadd.f32 %v4083, %v4123
      %v4125 = vpop.f32.mrf.mxu0
      %v4126 = vadd.f32 %v4085, %v4125
      %v4127 = vpop.f32.mrf.mxu0
      %v4128 = vpop.f32.mrf.mxu0
      %4129 = vdwg.mxu0
      %v4134 = vcombine.low %v3796, %v3798
      %v4135 = vcombine.low %v4124, %v4126
      %v4138 = vadd.f32 %v352, %v4134
      %v4139 = vadd.f32 %v353, %v4135
      %4140 = vst [vmem:[#allocation2] sm:$0xff] %v4138
      %4141 = vst [vmem:[#allocation2 + $0x8] sm:$0xff] %v4139
      %p4142 = scmp.eq.s32.totalorder %s20, 3
      // Predicated region
      $region61: #{siamese_forward.9} parent=55 // pred_check
        %p4143 = pneg %p4142
      $region62: #{siamese_forward.9} parent=55 // pred_check_branch
        %4145 = sbr.rel (%p4143) target = $region64
      $region63: #{siamese_forward.9} parent=55 // pred_region
        %v4146 = vld [vmem:[#allocation2] sm:$0xff]
        %v4147 = vld [vmem:[#allocation2 + $0x8] sm:$0xff]
        %v4148 = vld [vmem:[%s2] sm:$0xf]
        %v4150 = vlaneseq
        %v4151 = vshrl.u32 %v4150, 7
        %v4152 = vsub.s32 0, %v4151
        %v4153 = vrot.slane %v4148, %v4152
        %v4154 = vlaneseq
        %v4155 = vshrl.u32 %v4154, 7
        %v4156 = vsub.s32 1, %v4155
        %v4157 = vrot.slane %v4148, %v4156
        %v4158 = vlaneseq
        %v4159 = vshrl.u32 %v4158, 7
        %v4160 = vsub.s32 2, %v4159
        %v4161 = vrot.slane %v4148, %v4160
        %v4162 = vlaneseq
        %v4163 = vshrl.u32 %v4162, 7
        %v4164 = vsub.s32 3, %v4163
        %v4165 = vrot.slane %v4148, %v4164
        %v4166 = vcombine.low %v4153, %v4157
        %v4167 = vcombine.low %v4161, %v4165
        %v4170 = vadd.f32 %v4146, %v4166
        %v4171 = vadd.f32 %v4147, %v4167
        %v4172 = vmax.f32 %v4170, 0.0
        %v4173 = vmax.f32 %v4171, 0.0
        %v4176 = vcombine.high %v4172, %v4172
        %v4177 = vcombine.high %v4173, %v4173
        %v4180 = vpack.c.bf16 %v4172, %v4172
        %v4181 = vpack.c.bf16 %v4176, %v4176
        %v4182 = vpack.c.bf16 %v4173, %v4173
        %v4183 = vpack.c.bf16 %v4177, %v4177
        %v4184 = vld [vmem:[%s3] sm:$0xff]
        %v4185 = vld [vmem:[%s3 + $0x8] sm:$0xff]
        %v4186 = vld [vmem:[%s3 + $0x10] sm:$0xff]
        %v4187 = vld [vmem:[%s3 + $0x18] sm:$0xff]
        %v4188 = vld [vmem:[%s3 + $0x20] sm:$0xff]
        %v4189 = vld [vmem:[%s3 + $0x28] sm:$0xff]
        %v4190 = vld [vmem:[%s3 + $0x30] sm:$0xff]
        %v4191 = vld [vmem:[%s3 + $0x38] sm:$0xff]
        %v4192 = vld [vmem:[%s3 + $0x40] sm:$0xff]
        %v4193 = vld [vmem:[%s3 + $0x48] sm:$0xff]
        %v4194 = vld [vmem:[%s3 + $0x50] sm:$0xff]
        %v4195 = vld [vmem:[%s3 + $0x58] sm:$0xff]
        %v4196 = vld [vmem:[%s3 + $0x60] sm:$0xff]
        %v4197 = vld [vmem:[%s3 + $0x68] sm:$0xff]
        %v4198 = vld [vmem:[%s3 + $0x70] sm:$0xff]
        %v4199 = vld [vmem:[%s3 + $0x78] sm:$0xff]
        %v4200 = vld [vmem:[%s3 + $0x80] sm:$0xff]
        %v4201 = vld [vmem:[%s3 + $0x88] sm:$0xff]
        %v4202 = vld [vmem:[%s3 + $0x90] sm:$0xff]
        %v4203 = vld [vmem:[%s3 + $0x98] sm:$0xff]
        %v4204 = vld [vmem:[%s3 + $0xa0] sm:$0xff]
        %v4205 = vld [vmem:[%s3 + $0xa8] sm:$0xff]
        %v4206 = vld [vmem:[%s3 + $0xb0] sm:$0xff]
        %v4207 = vld [vmem:[%s3 + $0xb8] sm:$0xff]
        %v4208 = vld [vmem:[%s3 + $0xc0] sm:$0xff]
        %v4209 = vld [vmem:[%s3 + $0xc8] sm:$0xff]
        %v4210 = vld [vmem:[%s3 + $0xd0] sm:$0xff]
        %v4211 = vld [vmem:[%s3 + $0xd8] sm:$0xff]
        %v4212 = vld [vmem:[%s3 + $0xe0] sm:$0xff]
        %v4213 = vld [vmem:[%s3 + $0xe8] sm:$0xff]
        %v4214 = vld [vmem:[%s3 + $0xf0] sm:$0xff]
        %v4215 = vld [vmem:[%s3 + $0xf8] sm:$0xff]
        %v4216 = vld [vmem:[%s3 + $0x100] sm:$0xff]
        %v4217 = vld [vmem:[%s3 + $0x108] sm:$0xff]
        %v4218 = vld [vmem:[%s3 + $0x110] sm:$0xff]
        %v4219 = vld [vmem:[%s3 + $0x118] sm:$0xff]
        %v4220 = vld [vmem:[%s3 + $0x120] sm:$0xff]
        %v4221 = vld [vmem:[%s3 + $0x128] sm:$0xff]
        %v4222 = vld [vmem:[%s3 + $0x130] sm:$0xff]
        %v4223 = vld [vmem:[%s3 + $0x138] sm:$0xff]
        %v4224 = vld [vmem:[%s3 + $0x140] sm:$0xff]
        %v4225 = vld [vmem:[%s3 + $0x148] sm:$0xff]
        %v4226 = vld [vmem:[%s3 + $0x150] sm:$0xff]
        %v4227 = vld [vmem:[%s3 + $0x158] sm:$0xff]
        %v4228 = vld [vmem:[%s3 + $0x160] sm:$0xff]
        %v4229 = vld [vmem:[%s3 + $0x168] sm:$0xff]
        %v4230 = vld [vmem:[%s3 + $0x170] sm:$0xff]
        %v4231 = vld [vmem:[%s3 + $0x178] sm:$0xff]
        %v4232 = vld [vmem:[%s3 + $0x180] sm:$0xff]
        %v4233 = vld [vmem:[%s3 + $0x188] sm:$0xff]
        %v4234 = vld [vmem:[%s3 + $0x190] sm:$0xff]
        %v4235 = vld [vmem:[%s3 + $0x198] sm:$0xff]
        %v4236 = vld [vmem:[%s3 + $0x1a0] sm:$0xff]
        %v4237 = vld [vmem:[%s3 + $0x1a8] sm:$0xff]
        %v4238 = vld [vmem:[%s3 + $0x1b0] sm:$0xff]
        %v4239 = vld [vmem:[%s3 + $0x1b8] sm:$0xff]
        %v4240 = vld [vmem:[%s3 + $0x1c0] sm:$0xff]
        %v4241 = vld [vmem:[%s3 + $0x1c8] sm:$0xff]
        %v4242 = vld [vmem:[%s3 + $0x1d0] sm:$0xff]
        %v4243 = vld [vmem:[%s3 + $0x1d8] sm:$0xff]
        %v4244 = vld [vmem:[%s3 + $0x1e0] sm:$0xff]
        %v4245 = vld [vmem:[%s3 + $0x1e8] sm:$0xff]
        %v4246 = vld [vmem:[%s3 + $0x1f0] sm:$0xff]
        %v4247 = vld [vmem:[%s3 + $0x1f8] sm:$0xff]
        %v4248 = vld [vmem:[%s3 + $0x200] sm:$0xff]
        %v4249 = vld [vmem:[%s3 + $0x208] sm:$0xff]
        %v4250 = vld [vmem:[%s3 + $0x210] sm:$0xff]
        %v4251 = vld [vmem:[%s3 + $0x218] sm:$0xff]
        %v4252 = vld [vmem:[%s3 + $0x220] sm:$0xff]
        %v4253 = vld [vmem:[%s3 + $0x228] sm:$0xff]
        %v4254 = vld [vmem:[%s3 + $0x230] sm:$0xff]
        %v4255 = vld [vmem:[%s3 + $0x238] sm:$0xff]
        %v4256 = vld [vmem:[%s3 + $0x240] sm:$0xff]
        %v4257 = vld [vmem:[%s3 + $0x248] sm:$0xff]
        %v4258 = vld [vmem:[%s3 + $0x250] sm:$0xff]
        %v4259 = vld [vmem:[%s3 + $0x258] sm:$0xff]
        %v4260 = vld [vmem:[%s3 + $0x260] sm:$0xff]
        %v4261 = vld [vmem:[%s3 + $0x268] sm:$0xff]
        %v4262 = vld [vmem:[%s3 + $0x270] sm:$0xff]
        %v4263 = vld [vmem:[%s3 + $0x278] sm:$0xff]
        %v4264 = vld [vmem:[%s3 + $0x280] sm:$0xff]
        %v4265 = vld [vmem:[%s3 + $0x288] sm:$0xff]
        %v4266 = vld [vmem:[%s3 + $0x290] sm:$0xff]
        %v4267 = vld [vmem:[%s3 + $0x298] sm:$0xff]
        %v4268 = vld [vmem:[%s3 + $0x2a0] sm:$0xff]
        %v4269 = vld [vmem:[%s3 + $0x2a8] sm:$0xff]
        %v4270 = vld [vmem:[%s3 + $0x2b0] sm:$0xff]
        %v4271 = vld [vmem:[%s3 + $0x2b8] sm:$0xff]
        %v4272 = vld [vmem:[%s3 + $0x2c0] sm:$0xff]
        %v4273 = vld [vmem:[%s3 + $0x2c8] sm:$0xff]
        %v4274 = vld [vmem:[%s3 + $0x2d0] sm:$0xff]
        %v4275 = vld [vmem:[%s3 + $0x2d8] sm:$0xff]
        %v4276 = vld [vmem:[%s3 + $0x2e0] sm:$0xff]
        %v4277 = vld [vmem:[%s3 + $0x2e8] sm:$0xff]
        %v4278 = vld [vmem:[%s3 + $0x2f0] sm:$0xff]
        %v4279 = vld [vmem:[%s3 + $0x2f8] sm:$0xff]
        %v4280 = vld [vmem:[%s3 + $0x300] sm:$0xff]
        %v4281 = vld [vmem:[%s3 + $0x308] sm:$0xff]
        %v4282 = vld [vmem:[%s3 + $0x310] sm:$0xff]
        %v4283 = vld [vmem:[%s3 + $0x318] sm:$0xff]
        %v4284 = vld [vmem:[%s3 + $0x320] sm:$0xff]
        %v4285 = vld [vmem:[%s3 + $0x328] sm:$0xff]
        %v4286 = vld [vmem:[%s3 + $0x330] sm:$0xff]
        %v4287 = vld [vmem:[%s3 + $0x338] sm:$0xff]
        %v4288 = vld [vmem:[%s3 + $0x340] sm:$0xff]
        %v4289 = vld [vmem:[%s3 + $0x348] sm:$0xff]
        %v4290 = vld [vmem:[%s3 + $0x350] sm:$0xff]
        %v4291 = vld [vmem:[%s3 + $0x358] sm:$0xff]
        %v4292 = vld [vmem:[%s3 + $0x360] sm:$0xff]
        %v4293 = vld [vmem:[%s3 + $0x368] sm:$0xff]
        %v4294 = vld [vmem:[%s3 + $0x370] sm:$0xff]
        %v4295 = vld [vmem:[%s3 + $0x378] sm:$0xff]
        %v4296 = vld [vmem:[%s3 + $0x380] sm:$0xff]
        %v4297 = vld [vmem:[%s3 + $0x388] sm:$0xff]
        %v4298 = vld [vmem:[%s3 + $0x390] sm:$0xff]
        %v4299 = vld [vmem:[%s3 + $0x398] sm:$0xff]
        %v4300 = vld [vmem:[%s3 + $0x3a0] sm:$0xff]
        %v4301 = vld [vmem:[%s3 + $0x3a8] sm:$0xff]
        %v4302 = vld [vmem:[%s3 + $0x3b0] sm:$0xff]
        %v4303 = vld [vmem:[%s3 + $0x3b8] sm:$0xff]
        %v4304 = vld [vmem:[%s3 + $0x3c0] sm:$0xff]
        %v4305 = vld [vmem:[%s3 + $0x3c8] sm:$0xff]
        %v4306 = vld [vmem:[%s3 + $0x3d0] sm:$0xff]
        %v4307 = vld [vmem:[%s3 + $0x3d8] sm:$0xff]
        %v4308 = vld [vmem:[%s3 + $0x3e0] sm:$0xff]
        %v4309 = vld [vmem:[%s3 + $0x3e8] sm:$0xff]
        %v4310 = vld [vmem:[%s3 + $0x3f0] sm:$0xff]
        %v4311 = vld [vmem:[%s3 + $0x3f8] sm:$0xff]
        %v4312 = vld [vmem:[%s4] sm:$0xf]
        %v4314 = vlaneseq
        %v4315 = vshrl.u32 %v4314, 7
        %v4316 = vsub.s32 0, %v4315
        %v4317 = vrot.slane %v4312, %v4316
        %v4318 = vlaneseq
        %v4319 = vshrl.u32 %v4318, 7
        %v4320 = vsub.s32 1, %v4319
        %v4321 = vrot.slane %v4312, %v4320
        %v4322 = vlaneseq
        %v4323 = vshrl.u32 %v4322, 7
        %v4324 = vsub.s32 2, %v4323
        %v4325 = vrot.slane %v4312, %v4324
        %v4326 = vlaneseq
        %v4327 = vshrl.u32 %v4326, 7
        %v4328 = vsub.s32 3, %v4327
        %v4329 = vrot.slane %v4312, %v4328
        %v4462 = vunpack.c.l.b16 %v4184
        %v4463 = vunpack.c.h.b16 %v4184
        %v4464 = vunpack.c.l.b16 %v4185
        %v4465 = vunpack.c.h.b16 %v4185
        %v4466 = vunpack.c.l.b16 %v4186
        %v4467 = vunpack.c.h.b16 %v4186
        %v4468 = vunpack.c.l.b16 %v4187
        %v4469 = vunpack.c.h.b16 %v4187
        %v4470 = vunpack.c.l.b16 %v4188
        %v4471 = vunpack.c.h.b16 %v4188
        %v4472 = vunpack.c.l.b16 %v4189
        %v4473 = vunpack.c.h.b16 %v4189
        %v4474 = vunpack.c.l.b16 %v4190
        %v4475 = vunpack.c.h.b16 %v4190
        %v4476 = vunpack.c.l.b16 %v4191
        %v4477 = vunpack.c.h.b16 %v4191
        %v4478 = vunpack.c.l.b16 %v4192
        %v4479 = vunpack.c.h.b16 %v4192
        %v4480 = vunpack.c.l.b16 %v4193
        %v4481 = vunpack.c.h.b16 %v4193
        %v4482 = vunpack.c.l.b16 %v4194
        %v4483 = vunpack.c.h.b16 %v4194
        %v4484 = vunpack.c.l.b16 %v4195
        %v4485 = vunpack.c.h.b16 %v4195
        %v4486 = vunpack.c.l.b16 %v4196
        %v4487 = vunpack.c.h.b16 %v4196
        %v4488 = vunpack.c.l.b16 %v4197
        %v4489 = vunpack.c.h.b16 %v4197
        %v4490 = vunpack.c.l.b16 %v4198
        %v4491 = vunpack.c.h.b16 %v4198
        %v4492 = vunpack.c.l.b16 %v4199
        %v4493 = vunpack.c.h.b16 %v4199
        %v4494 = vunpack.c.l.b16 %v4200
        %v4495 = vunpack.c.h.b16 %v4200
        %v4496 = vunpack.c.l.b16 %v4201
        %v4497 = vunpack.c.h.b16 %v4201
        %v4498 = vunpack.c.l.b16 %v4202
        %v4499 = vunpack.c.h.b16 %v4202
        %v4500 = vunpack.c.l.b16 %v4203
        %v4501 = vunpack.c.h.b16 %v4203
        %v4502 = vunpack.c.l.b16 %v4204
        %v4503 = vunpack.c.h.b16 %v4204
        %v4504 = vunpack.c.l.b16 %v4205
        %v4505 = vunpack.c.h.b16 %v4205
        %v4506 = vunpack.c.l.b16 %v4206
        %v4507 = vunpack.c.h.b16 %v4206
        %v4508 = vunpack.c.l.b16 %v4207
        %v4509 = vunpack.c.h.b16 %v4207
        %v4510 = vunpack.c.l.b16 %v4208
        %v4511 = vunpack.c.h.b16 %v4208
        %v4512 = vunpack.c.l.b16 %v4209
        %v4513 = vunpack.c.h.b16 %v4209
        %v4514 = vunpack.c.l.b16 %v4210
        %v4515 = vunpack.c.h.b16 %v4210
        %v4516 = vunpack.c.l.b16 %v4211
        %v4517 = vunpack.c.h.b16 %v4211
        %v4518 = vunpack.c.l.b16 %v4212
        %v4519 = vunpack.c.h.b16 %v4212
        %v4520 = vunpack.c.l.b16 %v4213
        %v4521 = vunpack.c.h.b16 %v4213
        %v4522 = vunpack.c.l.b16 %v4214
        %v4523 = vunpack.c.h.b16 %v4214
        %v4524 = vunpack.c.l.b16 %v4215
        %v4525 = vunpack.c.h.b16 %v4215
        %v4526 = vunpack.c.l.b16 %v4216
        %v4527 = vunpack.c.h.b16 %v4216
        %v4528 = vunpack.c.l.b16 %v4217
        %v4529 = vunpack.c.h.b16 %v4217
        %v4530 = vunpack.c.l.b16 %v4218
        %v4531 = vunpack.c.h.b16 %v4218
        %v4532 = vunpack.c.l.b16 %v4219
        %v4533 = vunpack.c.h.b16 %v4219
        %v4534 = vunpack.c.l.b16 %v4220
        %v4535 = vunpack.c.h.b16 %v4220
        %v4536 = vunpack.c.l.b16 %v4221
        %v4537 = vunpack.c.h.b16 %v4221
        %v4538 = vunpack.c.l.b16 %v4222
        %v4539 = vunpack.c.h.b16 %v4222
        %v4540 = vunpack.c.l.b16 %v4223
        %v4541 = vunpack.c.h.b16 %v4223
        %v4542 = vunpack.c.l.b16 %v4224
        %v4543 = vunpack.c.h.b16 %v4224
        %v4544 = vunpack.c.l.b16 %v4225
        %v4545 = vunpack.c.h.b16 %v4225
        %v4546 = vunpack.c.l.b16 %v4226
        %v4547 = vunpack.c.h.b16 %v4226
        %v4548 = vunpack.c.l.b16 %v4227
        %v4549 = vunpack.c.h.b16 %v4227
        %v4550 = vunpack.c.l.b16 %v4228
        %v4551 = vunpack.c.h.b16 %v4228
        %v4552 = vunpack.c.l.b16 %v4229
        %v4553 = vunpack.c.h.b16 %v4229
        %v4554 = vunpack.c.l.b16 %v4230
        %v4555 = vunpack.c.h.b16 %v4230
        %v4556 = vunpack.c.l.b16 %v4231
        %v4557 = vunpack.c.h.b16 %v4231
        %v4558 = vunpack.c.l.b16 %v4232
        %v4559 = vunpack.c.h.b16 %v4232
        %v4560 = vunpack.c.l.b16 %v4233
        %v4561 = vunpack.c.h.b16 %v4233
        %v4562 = vunpack.c.l.b16 %v4234
        %v4563 = vunpack.c.h.b16 %v4234
        %v4564 = vunpack.c.l.b16 %v4235
        %v4565 = vunpack.c.h.b16 %v4235
        %v4566 = vunpack.c.l.b16 %v4236
        %v4567 = vunpack.c.h.b16 %v4236
        %v4568 = vunpack.c.l.b16 %v4237
        %v4569 = vunpack.c.h.b16 %v4237
        %v4570 = vunpack.c.l.b16 %v4238
        %v4571 = vunpack.c.h.b16 %v4238
        %v4572 = vunpack.c.l.b16 %v4239
        %v4573 = vunpack.c.h.b16 %v4239
        %v4574 = vunpack.c.l.b16 %v4240
        %v4575 = vunpack.c.h.b16 %v4240
        %v4576 = vunpack.c.l.b16 %v4241
        %v4577 = vunpack.c.h.b16 %v4241
        %v4578 = vunpack.c.l.b16 %v4242
        %v4579 = vunpack.c.h.b16 %v4242
        %v4580 = vunpack.c.l.b16 %v4243
        %v4581 = vunpack.c.h.b16 %v4243
        %v4582 = vunpack.c.l.b16 %v4244
        %v4583 = vunpack.c.h.b16 %v4244
        %v4584 = vunpack.c.l.b16 %v4245
        %v4585 = vunpack.c.h.b16 %v4245
        %v4586 = vunpack.c.l.b16 %v4246
        %v4587 = vunpack.c.h.b16 %v4246
        %v4588 = vunpack.c.l.b16 %v4247
        %v4589 = vunpack.c.h.b16 %v4247
        %v4590 = vunpack.c.l.b16 %v4248
        %v4591 = vunpack.c.h.b16 %v4248
        %v4592 = vunpack.c.l.b16 %v4249
        %v4593 = vunpack.c.h.b16 %v4249
        %v4594 = vunpack.c.l.b16 %v4250
        %v4595 = vunpack.c.h.b16 %v4250
        %v4596 = vunpack.c.l.b16 %v4251
        %v4597 = vunpack.c.h.b16 %v4251
        %v4598 = vunpack.c.l.b16 %v4252
        %v4599 = vunpack.c.h.b16 %v4252
        %v4600 = vunpack.c.l.b16 %v4253
        %v4601 = vunpack.c.h.b16 %v4253
        %v4602 = vunpack.c.l.b16 %v4254
        %v4603 = vunpack.c.h.b16 %v4254
        %v4604 = vunpack.c.l.b16 %v4255
        %v4605 = vunpack.c.h.b16 %v4255
        %v4606 = vunpack.c.l.b16 %v4256
        %v4607 = vunpack.c.h.b16 %v4256
        %v4608 = vunpack.c.l.b16 %v4257
        %v4609 = vunpack.c.h.b16 %v4257
        %v4610 = vunpack.c.l.b16 %v4258
        %v4611 = vunpack.c.h.b16 %v4258
        %v4612 = vunpack.c.l.b16 %v4259
        %v4613 = vunpack.c.h.b16 %v4259
        %v4614 = vunpack.c.l.b16 %v4260
        %v4615 = vunpack.c.h.b16 %v4260
        %v4616 = vunpack.c.l.b16 %v4261
        %v4617 = vunpack.c.h.b16 %v4261
        %v4618 = vunpack.c.l.b16 %v4262
        %v4619 = vunpack.c.h.b16 %v4262
        %v4620 = vunpack.c.l.b16 %v4263
        %v4621 = vunpack.c.h.b16 %v4263
        %v4622 = vunpack.c.l.b16 %v4264
        %v4623 = vunpack.c.h.b16 %v4264
        %v4624 = vunpack.c.l.b16 %v4265
        %v4625 = vunpack.c.h.b16 %v4265
        %v4626 = vunpack.c.l.b16 %v4266
        %v4627 = vunpack.c.h.b16 %v4266
        %v4628 = vunpack.c.l.b16 %v4267
        %v4629 = vunpack.c.h.b16 %v4267
        %v4630 = vunpack.c.l.b16 %v4268
        %v4631 = vunpack.c.h.b16 %v4268
        %v4632 = vunpack.c.l.b16 %v4269
        %v4633 = vunpack.c.h.b16 %v4269
        %v4634 = vunpack.c.l.b16 %v4270
        %v4635 = vunpack.c.h.b16 %v4270
        %v4636 = vunpack.c.l.b16 %v4271
        %v4637 = vunpack.c.h.b16 %v4271
        %v4638 = vunpack.c.l.b16 %v4272
        %v4639 = vunpack.c.h.b16 %v4272
        %v4640 = vunpack.c.l.b16 %v4273
        %v4641 = vunpack.c.h.b16 %v4273
        %v4642 = vunpack.c.l.b16 %v4274
        %v4643 = vunpack.c.h.b16 %v4274
        %v4644 = vunpack.c.l.b16 %v4275
        %v4645 = vunpack.c.h.b16 %v4275
        %v4646 = vunpack.c.l.b16 %v4276
        %v4647 = vunpack.c.h.b16 %v4276
        %v4648 = vunpack.c.l.b16 %v4277
        %v4649 = vunpack.c.h.b16 %v4277
        %v4650 = vunpack.c.l.b16 %v4278
        %v4651 = vunpack.c.h.b16 %v4278
        %v4652 = vunpack.c.l.b16 %v4279
        %v4653 = vunpack.c.h.b16 %v4279
        %v4654 = vunpack.c.l.b16 %v4280
        %v4655 = vunpack.c.h.b16 %v4280
        %v4656 = vunpack.c.l.b16 %v4281
        %v4657 = vunpack.c.h.b16 %v4281
        %v4658 = vunpack.c.l.b16 %v4282
        %v4659 = vunpack.c.h.b16 %v4282
        %v4660 = vunpack.c.l.b16 %v4283
        %v4661 = vunpack.c.h.b16 %v4283
        %v4662 = vunpack.c.l.b16 %v4284
        %v4663 = vunpack.c.h.b16 %v4284
        %v4664 = vunpack.c.l.b16 %v4285
        %v4665 = vunpack.c.h.b16 %v4285
        %v4666 = vunpack.c.l.b16 %v4286
        %v4667 = vunpack.c.h.b16 %v4286
        %v4668 = vunpack.c.l.b16 %v4287
        %v4669 = vunpack.c.h.b16 %v4287
        %v4670 = vunpack.c.l.b16 %v4288
        %v4671 = vunpack.c.h.b16 %v4288
        %v4672 = vunpack.c.l.b16 %v4289
        %v4673 = vunpack.c.h.b16 %v4289
        %v4674 = vunpack.c.l.b16 %v4290
        %v4675 = vunpack.c.h.b16 %v4290
        %v4676 = vunpack.c.l.b16 %v4291
        %v4677 = vunpack.c.h.b16 %v4291
        %v4678 = vunpack.c.l.b16 %v4292
        %v4679 = vunpack.c.h.b16 %v4292
        %v4680 = vunpack.c.l.b16 %v4293
        %v4681 = vunpack.c.h.b16 %v4293
        %v4682 = vunpack.c.l.b16 %v4294
        %v4683 = vunpack.c.h.b16 %v4294
        %v4684 = vunpack.c.l.b16 %v4295
        %v4685 = vunpack.c.h.b16 %v4295
        %v4686 = vunpack.c.l.b16 %v4296
        %v4687 = vunpack.c.h.b16 %v4296
        %v4688 = vunpack.c.l.b16 %v4297
        %v4689 = vunpack.c.h.b16 %v4297
        %v4690 = vunpack.c.l.b16 %v4298
        %v4691 = vunpack.c.h.b16 %v4298
        %v4692 = vunpack.c.l.b16 %v4299
        %v4693 = vunpack.c.h.b16 %v4299
        %v4694 = vunpack.c.l.b16 %v4300
        %v4695 = vunpack.c.h.b16 %v4300
        %v4696 = vunpack.c.l.b16 %v4301
        %v4697 = vunpack.c.h.b16 %v4301
        %v4698 = vunpack.c.l.b16 %v4302
        %v4699 = vunpack.c.h.b16 %v4302
        %v4700 = vunpack.c.l.b16 %v4303
        %v4701 = vunpack.c.h.b16 %v4303
        %v4702 = vunpack.c.l.b16 %v4304
        %v4703 = vunpack.c.h.b16 %v4304
        %v4704 = vunpack.c.l.b16 %v4305
        %v4705 = vunpack.c.h.b16 %v4305
        %v4706 = vunpack.c.l.b16 %v4306
        %v4707 = vunpack.c.h.b16 %v4306
        %v4708 = vunpack.c.l.b16 %v4307
        %v4709 = vunpack.c.h.b16 %v4307
        %v4710 = vunpack.c.l.b16 %v4308
        %v4711 = vunpack.c.h.b16 %v4308
        %v4712 = vunpack.c.l.b16 %v4309
        %v4713 = vunpack.c.h.b16 %v4309
        %v4714 = vunpack.c.l.b16 %v4310
        %v4715 = vunpack.c.h.b16 %v4310
        %v4716 = vunpack.c.l.b16 %v4311
        %v4717 = vunpack.c.h.b16 %v4311
        %v4718 = vpack.c.b16 %v4466, %v4462
        %v4719 = vpack.c.b16 %v4467, %v4463
        %v4720 = vpack.c.b16 %v4468, %v4464
        %v4721 = vpack.c.b16 %v4469, %v4465
        %v4722 = vpack.c.b16 %v4474, %v4470
        %v4723 = vpack.c.b16 %v4475, %v4471
        %v4724 = vpack.c.b16 %v4476, %v4472
        %v4725 = vpack.c.b16 %v4477, %v4473
        %v4726 = vpack.c.b16 %v4482, %v4478
        %v4727 = vpack.c.b16 %v4483, %v4479
        %v4728 = vpack.c.b16 %v4484, %v4480
        %v4729 = vpack.c.b16 %v4485, %v4481
        %v4730 = vpack.c.b16 %v4490, %v4486
        %v4731 = vpack.c.b16 %v4491, %v4487
        %v4732 = vpack.c.b16 %v4492, %v4488
        %v4733 = vpack.c.b16 %v4493, %v4489
        %v4734 = vpack.c.b16 %v4498, %v4494
        %v4735 = vpack.c.b16 %v4499, %v4495
        %v4736 = vpack.c.b16 %v4500, %v4496
        %v4737 = vpack.c.b16 %v4501, %v4497
        %v4738 = vpack.c.b16 %v4506, %v4502
        %v4739 = vpack.c.b16 %v4507, %v4503
        %v4740 = vpack.c.b16 %v4508, %v4504
        %v4741 = vpack.c.b16 %v4509, %v4505
        %v4742 = vpack.c.b16 %v4514, %v4510
        %v4743 = vpack.c.b16 %v4515, %v4511
        %v4744 = vpack.c.b16 %v4516, %v4512
        %v4745 = vpack.c.b16 %v4517, %v4513
        %v4746 = vpack.c.b16 %v4522, %v4518
        %v4747 = vpack.c.b16 %v4523, %v4519
        %v4748 = vpack.c.b16 %v4524, %v4520
        %v4749 = vpack.c.b16 %v4525, %v4521
        %v4750 = vpack.c.b16 %v4530, %v4526
        %v4751 = vpack.c.b16 %v4531, %v4527
        %v4752 = vpack.c.b16 %v4532, %v4528
        %v4753 = vpack.c.b16 %v4533, %v4529
        %v4754 = vpack.c.b16 %v4538, %v4534
        %v4755 = vpack.c.b16 %v4539, %v4535
        %v4756 = vpack.c.b16 %v4540, %v4536
        %v4757 = vpack.c.b16 %v4541, %v4537
        %v4758 = vpack.c.b16 %v4546, %v4542
        %v4759 = vpack.c.b16 %v4547, %v4543
        %v4760 = vpack.c.b16 %v4548, %v4544
        %v4761 = vpack.c.b16 %v4549, %v4545
        %v4762 = vpack.c.b16 %v4554, %v4550
        %v4763 = vpack.c.b16 %v4555, %v4551
        %v4764 = vpack.c.b16 %v4556, %v4552
        %v4765 = vpack.c.b16 %v4557, %v4553
        %v4766 = vpack.c.b16 %v4562, %v4558
        %v4767 = vpack.c.b16 %v4563, %v4559
        %v4768 = vpack.c.b16 %v4564, %v4560
        %v4769 = vpack.c.b16 %v4565, %v4561
        %v4770 = vpack.c.b16 %v4570, %v4566
        %v4771 = vpack.c.b16 %v4571, %v4567
        %v4772 = vpack.c.b16 %v4572, %v4568
        %v4773 = vpack.c.b16 %v4573, %v4569
        %v4774 = vpack.c.b16 %v4578, %v4574
        %v4775 = vpack.c.b16 %v4579, %v4575
        %v4776 = vpack.c.b16 %v4580, %v4576
        %v4777 = vpack.c.b16 %v4581, %v4577
        %v4778 = vpack.c.b16 %v4586, %v4582
        %v4779 = vpack.c.b16 %v4587, %v4583
        %v4780 = vpack.c.b16 %v4588, %v4584
        %v4781 = vpack.c.b16 %v4589, %v4585
        %v4782 = vpack.c.b16 %v4594, %v4590
        %v4783 = vpack.c.b16 %v4595, %v4591
        %v4784 = vpack.c.b16 %v4596, %v4592
        %v4785 = vpack.c.b16 %v4597, %v4593
        %v4786 = vpack.c.b16 %v4602, %v4598
        %v4787 = vpack.c.b16 %v4603, %v4599
        %v4788 = vpack.c.b16 %v4604, %v4600
        %v4789 = vpack.c.b16 %v4605, %v4601
        %v4790 = vpack.c.b16 %v4610, %v4606
        %v4791 = vpack.c.b16 %v4611, %v4607
        %v4792 = vpack.c.b16 %v4612, %v4608
        %v4793 = vpack.c.b16 %v4613, %v4609
        %v4794 = vpack.c.b16 %v4618, %v4614
        %v4795 = vpack.c.b16 %v4619, %v4615
        %v4796 = vpack.c.b16 %v4620, %v4616
        %v4797 = vpack.c.b16 %v4621, %v4617
        %v4798 = vpack.c.b16 %v4626, %v4622
        %v4799 = vpack.c.b16 %v4627, %v4623
        %v4800 = vpack.c.b16 %v4628, %v4624
        %v4801 = vpack.c.b16 %v4629, %v4625
        %v4802 = vpack.c.b16 %v4634, %v4630
        %v4803 = vpack.c.b16 %v4635, %v4631
        %v4804 = vpack.c.b16 %v4636, %v4632
        %v4805 = vpack.c.b16 %v4637, %v4633
        %v4806 = vpack.c.b16 %v4642, %v4638
        %v4807 = vpack.c.b16 %v4643, %v4639
        %v4808 = vpack.c.b16 %v4644, %v4640
        %v4809 = vpack.c.b16 %v4645, %v4641
        %v4810 = vpack.c.b16 %v4650, %v4646
        %v4811 = vpack.c.b16 %v4651, %v4647
        %v4812 = vpack.c.b16 %v4652, %v4648
        %v4813 = vpack.c.b16 %v4653, %v4649
        %v4814 = vpack.c.b16 %v4658, %v4654
        %v4815 = vpack.c.b16 %v4659, %v4655
        %v4816 = vpack.c.b16 %v4660, %v4656
        %v4817 = vpack.c.b16 %v4661, %v4657
        %v4818 = vpack.c.b16 %v4666, %v4662
        %v4819 = vpack.c.b16 %v4667, %v4663
        %v4820 = vpack.c.b16 %v4668, %v4664
        %v4821 = vpack.c.b16 %v4669, %v4665
        %v4822 = vpack.c.b16 %v4674, %v4670
        %v4823 = vpack.c.b16 %v4675, %v4671
        %v4824 = vpack.c.b16 %v4676, %v4672
        %v4825 = vpack.c.b16 %v4677, %v4673
        %v4826 = vpack.c.b16 %v4682, %v4678
        %v4827 = vpack.c.b16 %v4683, %v4679
        %v4828 = vpack.c.b16 %v4684, %v4680
        %v4829 = vpack.c.b16 %v4685, %v4681
        %v4830 = vpack.c.b16 %v4690, %v4686
        %v4831 = vpack.c.b16 %v4691, %v4687
        %v4832 = vpack.c.b16 %v4692, %v4688
        %v4833 = vpack.c.b16 %v4693, %v4689
        %v4834 = vpack.c.b16 %v4698, %v4694
        %v4835 = vpack.c.b16 %v4699, %v4695
        %v4836 = vpack.c.b16 %v4700, %v4696
        %v4837 = vpack.c.b16 %v4701, %v4697
        %v4838 = vpack.c.b16 %v4706, %v4702
        %v4839 = vpack.c.b16 %v4707, %v4703
        %v4840 = vpack.c.b16 %v4708, %v4704
        %v4841 = vpack.c.b16 %v4709, %v4705
        %v4842 = vpack.c.b16 %v4714, %v4710
        %v4843 = vpack.c.b16 %v4715, %v4711
        %v4844 = vpack.c.b16 %v4716, %v4712
        %v4845 = vpack.c.b16 %v4717, %v4713
        %4974 = vmatprep.subr.bf16.mxu0 %v4747
        %4975 = vmatpush1.bf16.msra.mxu0 %v4746
        %4976 = vmatprep.subr.bf16.mxu0 %v4743
        %4977 = vmatpush1.bf16.msra.mxu0 %v4742
        %4978 = vmatprep.subr.bf16.mxu0 %v4739
        %4979 = vmatpush1.bf16.msra.mxu0 %v4738
        %4980 = vmatprep.subr.bf16.mxu0 %v4735
        %4981 = vmatpush1.bf16.msra.mxu0 %v4734
        %4982 = vmatprep.subr.bf16.mxu0 %v4731
        %4983 = vmatpush1.bf16.msra.mxu0 %v4730
        %4984 = vmatprep.subr.bf16.mxu0 %v4727
        %4985 = vmatpush1.bf16.msra.mxu0 %v4726
        %4986 = vmatprep.subr.bf16.mxu0 %v4723
        %4987 = vmatpush1.bf16.msra.mxu0 %v4722
        %4988 = vmatprep.subr.bf16.mxu0 %v4719
        %4989 = vmatpush1.bf16.msra.mxu0 %v4718
        %4990 = vmatprep.subr.bf16.mxu0 %v4779
        %4991 = vmatpush2.bf16.msra.mxu0 %v4778
        %4992 = vmatprep.subr.bf16.mxu0 %v4775
        %4993 = vmatpush2.bf16.msra.mxu0 %v4774
        %4994 = vmatprep.subr.bf16.mxu0 %v4771
        %4995 = vmatpush2.bf16.msra.mxu0 %v4770
        %4996 = vmatprep.subr.bf16.mxu0 %v4767
        %4997 = vmatpush2.bf16.msra.mxu0 %v4766
        %4998 = vmatprep.subr.bf16.mxu0 %v4763
        %4999 = vmatpush2.bf16.msra.mxu0 %v4762
        %5000 = vmatprep.subr.bf16.mxu0 %v4759
        %5001 = vmatpush2.bf16.msra.mxu0 %v4758
        %5002 = vmatprep.subr.bf16.mxu0 %v4755
        %5003 = vmatpush2.bf16.msra.mxu0 %v4754
        %5004 = vmatprep.subr.bf16.mxu0 %v4751
        %5005 = vmatpush2.bf16.msra.mxu0 %v4750
        %5006 = vmatprep.mubr.bf16.mxu0 %v4181
        %5007 = vmatmul.mubr.bf16.gmra.mxu0 %v4180
        %v5008 = vpop.f32.mrf.mxu0
        %v5009 = vadd.f32 %v4317, %v5008
        %v5010 = vpop.f32.mrf.mxu0
        %v5011 = vadd.f32 %v4321, %v5010
        %v5012 = vpop.f32.mrf.mxu0
        %v5013 = vpop.f32.mrf.mxu0
        %5014 = vdwg.mxu0
        %5015 = vmatprep.subr.bf16.mxu0 %v4811
        %5016 = vmatpush1.bf16.msra.mxu0 %v4810
        %5017 = vmatprep.subr.bf16.mxu0 %v4807
        %5018 = vmatpush1.bf16.msra.mxu0 %v4806
        %5019 = vmatprep.subr.bf16.mxu0 %v4803
        %5020 = vmatpush1.bf16.msra.mxu0 %v4802
        %5021 = vmatprep.subr.bf16.mxu0 %v4799
        %5022 = vmatpush1.bf16.msra.mxu0 %v4798
        %5023 = vmatprep.subr.bf16.mxu0 %v4795
        %5024 = vmatpush1.bf16.msra.mxu0 %v4794
        %5025 = vmatprep.subr.bf16.mxu0 %v4791
        %5026 = vmatpush1.bf16.msra.mxu0 %v4790
        %5027 = vmatprep.subr.bf16.mxu0 %v4787
        %5028 = vmatpush1.bf16.msra.mxu0 %v4786
        %5029 = vmatprep.subr.bf16.mxu0 %v4783
        %5030 = vmatpush1.bf16.msra.mxu0 %v4782
        %5031 = vmatprep.subr.bf16.mxu0 %v4843
        %5032 = vmatpush2.bf16.msra.mxu0 %v4842
        %5033 = vmatprep.subr.bf16.mxu0 %v4839
        %5034 = vmatpush2.bf16.msra.mxu0 %v4838
        %5035 = vmatprep.subr.bf16.mxu0 %v4835
        %5036 = vmatpush2.bf16.msra.mxu0 %v4834
        %5037 = vmatprep.subr.bf16.mxu0 %v4831
        %5038 = vmatpush2.bf16.msra.mxu0 %v4830
        %5039 = vmatprep.subr.bf16.mxu0 %v4827
        %5040 = vmatpush2.bf16.msra.mxu0 %v4826
        %5041 = vmatprep.subr.bf16.mxu0 %v4823
        %5042 = vmatpush2.bf16.msra.mxu0 %v4822
        %5043 = vmatprep.subr.bf16.mxu0 %v4819
        %5044 = vmatpush2.bf16.msra.mxu0 %v4818
        %5045 = vmatprep.subr.bf16.mxu0 %v4815
        %5046 = vmatpush2.bf16.msra.mxu0 %v4814
        %5047 = vmatprep.mubr.bf16.mxu0 %v4183
        %5048 = vmatmul.mubr.bf16.gmra.mxu0 %v4182
        %v5049 = vpop.f32.mrf.mxu0
        %v5050 = vadd.f32 %v5009, %v5049
        %v5051 = vpop.f32.mrf.mxu0
        %v5052 = vadd.f32 %v5011, %v5051
        %v5053 = vpop.f32.mrf.mxu0
        %v5054 = vpop.f32.mrf.mxu0
        %5055 = vdwg.mxu0
        %5056 = vmatprep.subr.bf16.mxu0 %v4749
        %5057 = vmatpush1.bf16.msra.mxu0 %v4748
        %5058 = vmatprep.subr.bf16.mxu0 %v4745
        %5059 = vmatpush1.bf16.msra.mxu0 %v4744
        %5060 = vmatprep.subr.bf16.mxu0 %v4741
        %5061 = vmatpush1.bf16.msra.mxu0 %v4740
        %5062 = vmatprep.subr.bf16.mxu0 %v4737
        %5063 = vmatpush1.bf16.msra.mxu0 %v4736
        %5064 = vmatprep.subr.bf16.mxu0 %v4733
        %5065 = vmatpush1.bf16.msra.mxu0 %v4732
        %5066 = vmatprep.subr.bf16.mxu0 %v4729
        %5067 = vmatpush1.bf16.msra.mxu0 %v4728
        %5068 = vmatprep.subr.bf16.mxu0 %v4725
        %5069 = vmatpush1.bf16.msra.mxu0 %v4724
        %5070 = vmatprep.subr.bf16.mxu0 %v4721
        %5071 = vmatpush1.bf16.msra.mxu0 %v4720
        %5072 = vmatprep.subr.bf16.mxu0 %v4781
        %5073 = vmatpush2.bf16.msra.mxu0 %v4780
        %5074 = vmatprep.subr.bf16.mxu0 %v4777
        %5075 = vmatpush2.bf16.msra.mxu0 %v4776
        %5076 = vmatprep.subr.bf16.mxu0 %v4773
        %5077 = vmatpush2.bf16.msra.mxu0 %v4772
        %5078 = vmatprep.subr.bf16.mxu0 %v4769
        %5079 = vmatpush2.bf16.msra.mxu0 %v4768
        %5080 = vmatprep.subr.bf16.mxu0 %v4765
        %5081 = vmatpush2.bf16.msra.mxu0 %v4764
        %5082 = vmatprep.subr.bf16.mxu0 %v4761
        %5083 = vmatpush2.bf16.msra.mxu0 %v4760
        %5084 = vmatprep.subr.bf16.mxu0 %v4757
        %5085 = vmatpush2.bf16.msra.mxu0 %v4756
        %5086 = vmatprep.subr.bf16.mxu0 %v4753
        %5087 = vmatpush2.bf16.msra.mxu0 %v4752
        %5088 = vmatprep.mubr.bf16.mxu0 %v4181
        %5089 = vmatmul.mubr.bf16.gmra.mxu0 %v4180
        %v5090 = vpop.f32.mrf.mxu0
        %v5091 = vadd.f32 %v4325, %v5090
        %v5092 = vpop.f32.mrf.mxu0
        %v5093 = vadd.f32 %v4329, %v5092
        %v5094 = vpop.f32.mrf.mxu0
        %v5095 = vpop.f32.mrf.mxu0
        %5096 = vdwg.mxu0
        %5097 = vmatprep.subr.bf16.mxu0 %v4813
        %5098 = vmatpush1.bf16.msra.mxu0 %v4812
        %5099 = vmatprep.subr.bf16.mxu0 %v4809
        %5100 = vmatpush1.bf16.msra.mxu0 %v4808
        %5101 = vmatprep.subr.bf16.mxu0 %v4805
        %5102 = vmatpush1.bf16.msra.mxu0 %v4804
        %5103 = vmatprep.subr.bf16.mxu0 %v4801
        %5104 = vmatpush1.bf16.msra.mxu0 %v4800
        %5105 = vmatprep.subr.bf16.mxu0 %v4797
        %5106 = vmatpush1.bf16.msra.mxu0 %v4796
        %5107 = vmatprep.subr.bf16.mxu0 %v4793
        %5108 = vmatpush1.bf16.msra.mxu0 %v4792
        %5109 = vmatprep.subr.bf16.mxu0 %v4789
        %5110 = vmatpush1.bf16.msra.mxu0 %v4788
        %5111 = vmatprep.subr.bf16.mxu0 %v4785
        %5112 = vmatpush1.bf16.msra.mxu0 %v4784
        %5113 = vmatprep.subr.bf16.mxu0 %v4845
        %5114 = vmatpush2.bf16.msra.mxu0 %v4844
        %5115 = vmatprep.subr.bf16.mxu0 %v4841
        %5116 = vmatpush2.bf16.msra.mxu0 %v4840
        %5117 = vmatprep.subr.bf16.mxu0 %v4837
        %5118 = vmatpush2.bf16.msra.mxu0 %v4836
        %5119 = vmatprep.subr.bf16.mxu0 %v4833
        %5120 = vmatpush2.bf16.msra.mxu0 %v4832
        %5121 = vmatprep.subr.bf16.mxu0 %v4829
        %5122 = vmatpush2.bf16.msra.mxu0 %v4828
        %5123 = vmatprep.subr.bf16.mxu0 %v4825
        %5124 = vmatpush2.bf16.msra.mxu0 %v4824
        %5125 = vmatprep.subr.bf16.mxu0 %v4821
        %5126 = vmatpush2.bf16.msra.mxu0 %v4820
        %5127 = vmatprep.subr.bf16.mxu0 %v4817
        %5128 = vmatpush2.bf16.msra.mxu0 %v4816
        %5129 = vmatprep.mubr.bf16.mxu0 %v4183
        %5130 = vmatmul.mubr.bf16.gmra.mxu0 %v4182
        %v5131 = vpop.f32.mrf.mxu0
        %v5132 = vadd.f32 %v5091, %v5131
        %v5133 = vpop.f32.mrf.mxu0
        %v5134 = vadd.f32 %v5093, %v5133
        %v5135 = vpop.f32.mrf.mxu0
        %v5136 = vpop.f32.mrf.mxu0
        %5137 = vdwg.mxu0
        %v5138 = vmax.f32 %v5050, 0.0
        %v5139 = vmax.f32 %v5052, 0.0
        %v5140 = vmax.f32 %v5132, 0.0
        %v5141 = vmax.f32 %v5134, 0.0
        %v5142 = vpack.c.bf16 %v5138, %v5138
        %v5143 = vpack.c.bf16 %v5139, %v5139
        %v5144 = vpack.c.bf16 %v5140, %v5140
        %v5145 = vpack.c.bf16 %v5141, %v5141
        %v5146 = vld [vmem:[%s5] sm:$0xff]
        %v5147 = vld [vmem:[%s5 + $0x8] sm:$0xff]
        %v5148 = vld [vmem:[%s5 + $0x10] sm:$0xff]
        %v5149 = vld [vmem:[%s5 + $0x18] sm:$0xff]
        %v5150 = vld [vmem:[%s5 + $0x20] sm:$0xff]
        %v5151 = vld [vmem:[%s5 + $0x28] sm:$0xff]
        %v5152 = vld [vmem:[%s5 + $0x30] sm:$0xff]
        %v5153 = vld [vmem:[%s5 + $0x38] sm:$0xff]
        %v5154 = vld [vmem:[%s5 + $0x40] sm:$0xff]
        %v5155 = vld [vmem:[%s5 + $0x48] sm:$0xff]
        %v5156 = vld [vmem:[%s5 + $0x50] sm:$0xff]
        %v5157 = vld [vmem:[%s5 + $0x58] sm:$0xff]
        %v5158 = vld [vmem:[%s5 + $0x60] sm:$0xff]
        %v5159 = vld [vmem:[%s5 + $0x68] sm:$0xff]
        %v5160 = vld [vmem:[%s5 + $0x70] sm:$0xff]
        %v5161 = vld [vmem:[%s5 + $0x78] sm:$0xff]
        %v5162 = vld [vmem:[%s5 + $0x80] sm:$0xff]
        %v5163 = vld [vmem:[%s5 + $0x88] sm:$0xff]
        %v5164 = vld [vmem:[%s5 + $0x90] sm:$0xff]
        %v5165 = vld [vmem:[%s5 + $0x98] sm:$0xff]
        %v5166 = vld [vmem:[%s5 + $0xa0] sm:$0xff]
        %v5167 = vld [vmem:[%s5 + $0xa8] sm:$0xff]
        %v5168 = vld [vmem:[%s5 + $0xb0] sm:$0xff]
        %v5169 = vld [vmem:[%s5 + $0xb8] sm:$0xff]
        %v5170 = vld [vmem:[%s5 + $0xc0] sm:$0xff]
        %v5171 = vld [vmem:[%s5 + $0xc8] sm:$0xff]
        %v5172 = vld [vmem:[%s5 + $0xd0] sm:$0xff]
        %v5173 = vld [vmem:[%s5 + $0xd8] sm:$0xff]
        %v5174 = vld [vmem:[%s5 + $0xe0] sm:$0xff]
        %v5175 = vld [vmem:[%s5 + $0xe8] sm:$0xff]
        %v5176 = vld [vmem:[%s5 + $0xf0] sm:$0xff]
        %v5177 = vld [vmem:[%s5 + $0xf8] sm:$0xff]
        %v5178 = vld [vmem:[%s5 + $0x100] sm:$0xff]
        %v5179 = vld [vmem:[%s5 + $0x108] sm:$0xff]
        %v5180 = vld [vmem:[%s5 + $0x110] sm:$0xff]
        %v5181 = vld [vmem:[%s5 + $0x118] sm:$0xff]
        %v5182 = vld [vmem:[%s5 + $0x120] sm:$0xff]
        %v5183 = vld [vmem:[%s5 + $0x128] sm:$0xff]
        %v5184 = vld [vmem:[%s5 + $0x130] sm:$0xff]
        %v5185 = vld [vmem:[%s5 + $0x138] sm:$0xff]
        %v5186 = vld [vmem:[%s5 + $0x140] sm:$0xff]
        %v5187 = vld [vmem:[%s5 + $0x148] sm:$0xff]
        %v5188 = vld [vmem:[%s5 + $0x150] sm:$0xff]
        %v5189 = vld [vmem:[%s5 + $0x158] sm:$0xff]
        %v5190 = vld [vmem:[%s5 + $0x160] sm:$0xff]
        %v5191 = vld [vmem:[%s5 + $0x168] sm:$0xff]
        %v5192 = vld [vmem:[%s5 + $0x170] sm:$0xff]
        %v5193 = vld [vmem:[%s5 + $0x178] sm:$0xff]
        %v5194 = vld [vmem:[%s5 + $0x180] sm:$0xff]
        %v5195 = vld [vmem:[%s5 + $0x188] sm:$0xff]
        %v5196 = vld [vmem:[%s5 + $0x190] sm:$0xff]
        %v5197 = vld [vmem:[%s5 + $0x198] sm:$0xff]
        %v5198 = vld [vmem:[%s5 + $0x1a0] sm:$0xff]
        %v5199 = vld [vmem:[%s5 + $0x1a8] sm:$0xff]
        %v5200 = vld [vmem:[%s5 + $0x1b0] sm:$0xff]
        %v5201 = vld [vmem:[%s5 + $0x1b8] sm:$0xff]
        %v5202 = vld [vmem:[%s5 + $0x1c0] sm:$0xff]
        %v5203 = vld [vmem:[%s5 + $0x1c8] sm:$0xff]
        %v5204 = vld [vmem:[%s5 + $0x1d0] sm:$0xff]
        %v5205 = vld [vmem:[%s5 + $0x1d8] sm:$0xff]
        %v5206 = vld [vmem:[%s5 + $0x1e0] sm:$0xff]
        %v5207 = vld [vmem:[%s5 + $0x1e8] sm:$0xff]
        %v5208 = vld [vmem:[%s5 + $0x1f0] sm:$0xff]
        %v5209 = vld [vmem:[%s5 + $0x1f8] sm:$0xff]
        %v5210 = vld [vmem:[%s6] sm:$0x3]
        %v5212 = vlaneseq
        %v5213 = vshrl.u32 %v5212, 7
        %v5214 = vsub.s32 0, %v5213
        %v5215 = vrot.slane %v5210, %v5214
        %v5216 = vlaneseq
        %v5217 = vshrl.u32 %v5216, 7
        %v5218 = vsub.s32 1, %v5217
        %v5219 = vrot.slane %v5210, %v5218
        %v5286 = vunpack.c.l.b16 %v5146
        %v5287 = vunpack.c.h.b16 %v5146
        %v5288 = vunpack.c.l.b16 %v5147
        %v5289 = vunpack.c.h.b16 %v5147
        %v5290 = vunpack.c.l.b16 %v5148
        %v5291 = vunpack.c.h.b16 %v5148
        %v5292 = vunpack.c.l.b16 %v5149
        %v5293 = vunpack.c.h.b16 %v5149
        %v5294 = vunpack.c.l.b16 %v5150
        %v5295 = vunpack.c.h.b16 %v5150
        %v5296 = vunpack.c.l.b16 %v5151
        %v5297 = vunpack.c.h.b16 %v5151
        %v5298 = vunpack.c.l.b16 %v5152
        %v5299 = vunpack.c.h.b16 %v5152
        %v5300 = vunpack.c.l.b16 %v5153
        %v5301 = vunpack.c.h.b16 %v5153
        %v5302 = vunpack.c.l.b16 %v5154
        %v5303 = vunpack.c.h.b16 %v5154
        %v5304 = vunpack.c.l.b16 %v5155
        %v5305 = vunpack.c.h.b16 %v5155
        %v5306 = vunpack.c.l.b16 %v5156
        %v5307 = vunpack.c.h.b16 %v5156
        %v5308 = vunpack.c.l.b16 %v5157
        %v5309 = vunpack.c.h.b16 %v5157
        %v5310 = vunpack.c.l.b16 %v5158
        %v5311 = vunpack.c.h.b16 %v5158
        %v5312 = vunpack.c.l.b16 %v5159
        %v5313 = vunpack.c.h.b16 %v5159
        %v5314 = vunpack.c.l.b16 %v5160
        %v5315 = vunpack.c.h.b16 %v5160
        %v5316 = vunpack.c.l.b16 %v5161
        %v5317 = vunpack.c.h.b16 %v5161
        %v5318 = vunpack.c.l.b16 %v5162
        %v5319 = vunpack.c.h.b16 %v5162
        %v5320 = vunpack.c.l.b16 %v5163
        %v5321 = vunpack.c.h.b16 %v5163
        %v5322 = vunpack.c.l.b16 %v5164
        %v5323 = vunpack.c.h.b16 %v5164
        %v5324 = vunpack.c.l.b16 %v5165
        %v5325 = vunpack.c.h.b16 %v5165
        %v5326 = vunpack.c.l.b16 %v5166
        %v5327 = vunpack.c.h.b16 %v5166
        %v5328 = vunpack.c.l.b16 %v5167
        %v5329 = vunpack.c.h.b16 %v5167
        %v5330 = vunpack.c.l.b16 %v5168
        %v5331 = vunpack.c.h.b16 %v5168
        %v5332 = vunpack.c.l.b16 %v5169
        %v5333 = vunpack.c.h.b16 %v5169
        %v5334 = vunpack.c.l.b16 %v5170
        %v5335 = vunpack.c.h.b16 %v5170
        %v5336 = vunpack.c.l.b16 %v5171
        %v5337 = vunpack.c.h.b16 %v5171
        %v5338 = vunpack.c.l.b16 %v5172
        %v5339 = vunpack.c.h.b16 %v5172
        %v5340 = vunpack.c.l.b16 %v5173
        %v5341 = vunpack.c.h.b16 %v5173
        %v5342 = vunpack.c.l.b16 %v5174
        %v5343 = vunpack.c.h.b16 %v5174
        %v5344 = vunpack.c.l.b16 %v5175
        %v5345 = vunpack.c.h.b16 %v5175
        %v5346 = vunpack.c.l.b16 %v5176
        %v5347 = vunpack.c.h.b16 %v5176
        %v5348 = vunpack.c.l.b16 %v5177
        %v5349 = vunpack.c.h.b16 %v5177
        %v5350 = vunpack.c.l.b16 %v5178
        %v5351 = vunpack.c.h.b16 %v5178
        %v5352 = vunpack.c.l.b16 %v5179
        %v5353 = vunpack.c.h.b16 %v5179
        %v5354 = vunpack.c.l.b16 %v5180
        %v5355 = vunpack.c.h.b16 %v5180
        %v5356 = vunpack.c.l.b16 %v5181
        %v5357 = vunpack.c.h.b16 %v5181
        %v5358 = vunpack.c.l.b16 %v5182
        %v5359 = vunpack.c.h.b16 %v5182
        %v5360 = vunpack.c.l.b16 %v5183
        %v5361 = vunpack.c.h.b16 %v5183
        %v5362 = vunpack.c.l.b16 %v5184
        %v5363 = vunpack.c.h.b16 %v5184
        %v5364 = vunpack.c.l.b16 %v5185
        %v5365 = vunpack.c.h.b16 %v5185
        %v5366 = vunpack.c.l.b16 %v5186
        %v5367 = vunpack.c.h.b16 %v5186
        %v5368 = vunpack.c.l.b16 %v5187
        %v5369 = vunpack.c.h.b16 %v5187
        %v5370 = vunpack.c.l.b16 %v5188
        %v5371 = vunpack.c.h.b16 %v5188
        %v5372 = vunpack.c.l.b16 %v5189
        %v5373 = vunpack.c.h.b16 %v5189
        %v5374 = vunpack.c.l.b16 %v5190
        %v5375 = vunpack.c.h.b16 %v5190
        %v5376 = vunpack.c.l.b16 %v5191
        %v5377 = vunpack.c.h.b16 %v5191
        %v5378 = vunpack.c.l.b16 %v5192
        %v5379 = vunpack.c.h.b16 %v5192
        %v5380 = vunpack.c.l.b16 %v5193
        %v5381 = vunpack.c.h.b16 %v5193
        %v5382 = vunpack.c.l.b16 %v5194
        %v5383 = vunpack.c.h.b16 %v5194
        %v5384 = vunpack.c.l.b16 %v5195
        %v5385 = vunpack.c.h.b16 %v5195
        %v5386 = vunpack.c.l.b16 %v5196
        %v5387 = vunpack.c.h.b16 %v5196
        %v5388 = vunpack.c.l.b16 %v5197
        %v5389 = vunpack.c.h.b16 %v5197
        %v5390 = vunpack.c.l.b16 %v5198
        %v5391 = vunpack.c.h.b16 %v5198
        %v5392 = vunpack.c.l.b16 %v5199
        %v5393 = vunpack.c.h.b16 %v5199
        %v5394 = vunpack.c.l.b16 %v5200
        %v5395 = vunpack.c.h.b16 %v5200
        %v5396 = vunpack.c.l.b16 %v5201
        %v5397 = vunpack.c.h.b16 %v5201
        %v5398 = vunpack.c.l.b16 %v5202
        %v5399 = vunpack.c.h.b16 %v5202
        %v5400 = vunpack.c.l.b16 %v5203
        %v5401 = vunpack.c.h.b16 %v5203
        %v5402 = vunpack.c.l.b16 %v5204
        %v5403 = vunpack.c.h.b16 %v5204
        %v5404 = vunpack.c.l.b16 %v5205
        %v5405 = vunpack.c.h.b16 %v5205
        %v5406 = vunpack.c.l.b16 %v5206
        %v5407 = vunpack.c.h.b16 %v5206
        %v5408 = vunpack.c.l.b16 %v5207
        %v5409 = vunpack.c.h.b16 %v5207
        %v5410 = vunpack.c.l.b16 %v5208
        %v5411 = vunpack.c.h.b16 %v5208
        %v5412 = vunpack.c.l.b16 %v5209
        %v5413 = vunpack.c.h.b16 %v5209
        %v5414 = vpack.c.b16 %v5288, %v5286
        %v5415 = vpack.c.b16 %v5289, %v5287
        %v5416 = vpack.c.b16 %v5292, %v5290
        %v5417 = vpack.c.b16 %v5293, %v5291
        %v5418 = vpack.c.b16 %v5296, %v5294
        %v5419 = vpack.c.b16 %v5297, %v5295
        %v5420 = vpack.c.b16 %v5300, %v5298
        %v5421 = vpack.c.b16 %v5301, %v5299
        %v5422 = vpack.c.b16 %v5304, %v5302
        %v5423 = vpack.c.b16 %v5305, %v5303
        %v5424 = vpack.c.b16 %v5308, %v5306
        %v5425 = vpack.c.b16 %v5309, %v5307
        %v5426 = vpack.c.b16 %v5312, %v5310
        %v5427 = vpack.c.b16 %v5313, %v5311
        %v5428 = vpack.c.b16 %v5316, %v5314
        %v5429 = vpack.c.b16 %v5317, %v5315
        %v5430 = vpack.c.b16 %v5320, %v5318
        %v5431 = vpack.c.b16 %v5321, %v5319
        %v5432 = vpack.c.b16 %v5324, %v5322
        %v5433 = vpack.c.b16 %v5325, %v5323
        %v5434 = vpack.c.b16 %v5328, %v5326
        %v5435 = vpack.c.b16 %v5329, %v5327
        %v5436 = vpack.c.b16 %v5332, %v5330
        %v5437 = vpack.c.b16 %v5333, %v5331
        %v5438 = vpack.c.b16 %v5336, %v5334
        %v5439 = vpack.c.b16 %v5337, %v5335
        %v5440 = vpack.c.b16 %v5340, %v5338
        %v5441 = vpack.c.b16 %v5341, %v5339
        %v5442 = vpack.c.b16 %v5344, %v5342
        %v5443 = vpack.c.b16 %v5345, %v5343
        %v5444 = vpack.c.b16 %v5348, %v5346
        %v5445 = vpack.c.b16 %v5349, %v5347
        %v5446 = vpack.c.b16 %v5352, %v5350
        %v5447 = vpack.c.b16 %v5353, %v5351
        %v5448 = vpack.c.b16 %v5356, %v5354
        %v5449 = vpack.c.b16 %v5357, %v5355
        %v5450 = vpack.c.b16 %v5360, %v5358
        %v5451 = vpack.c.b16 %v5361, %v5359
        %v5452 = vpack.c.b16 %v5364, %v5362
        %v5453 = vpack.c.b16 %v5365, %v5363
        %v5454 = vpack.c.b16 %v5368, %v5366
        %v5455 = vpack.c.b16 %v5369, %v5367
        %v5456 = vpack.c.b16 %v5372, %v5370
        %v5457 = vpack.c.b16 %v5373, %v5371
        %v5458 = vpack.c.b16 %v5376, %v5374
        %v5459 = vpack.c.b16 %v5377, %v5375
        %v5460 = vpack.c.b16 %v5380, %v5378
        %v5461 = vpack.c.b16 %v5381, %v5379
        %v5462 = vpack.c.b16 %v5384, %v5382
        %v5463 = vpack.c.b16 %v5385, %v5383
        %v5464 = vpack.c.b16 %v5388, %v5386
        %v5465 = vpack.c.b16 %v5389, %v5387
        %v5466 = vpack.c.b16 %v5392, %v5390
        %v5467 = vpack.c.b16 %v5393, %v5391
        %v5468 = vpack.c.b16 %v5396, %v5394
        %v5469 = vpack.c.b16 %v5397, %v5395
        %v5470 = vpack.c.b16 %v5400, %v5398
        %v5471 = vpack.c.b16 %v5401, %v5399
        %v5472 = vpack.c.b16 %v5404, %v5402
        %v5473 = vpack.c.b16 %v5405, %v5403
        %v5474 = vpack.c.b16 %v5408, %v5406
        %v5475 = vpack.c.b16 %v5409, %v5407
        %v5476 = vpack.c.b16 %v5412, %v5410
        %v5477 = vpack.c.b16 %v5413, %v5411
        %5542 = vmatprep.subr.bf16.mxu0 %v5429
        %5543 = vmatpush1.bf16.msra.mxu0 %v5428
        %5544 = vmatprep.subr.bf16.mxu0 %v5427
        %5545 = vmatpush1.bf16.msra.mxu0 %v5426
        %5546 = vmatprep.subr.bf16.mxu0 %v5425
        %5547 = vmatpush1.bf16.msra.mxu0 %v5424
        %5548 = vmatprep.subr.bf16.mxu0 %v5423
        %5549 = vmatpush1.bf16.msra.mxu0 %v5422
        %5550 = vmatprep.subr.bf16.mxu0 %v5421
        %5551 = vmatpush1.bf16.msra.mxu0 %v5420
        %5552 = vmatprep.subr.bf16.mxu0 %v5419
        %5553 = vmatpush1.bf16.msra.mxu0 %v5418
        %5554 = vmatprep.subr.bf16.mxu0 %v5417
        %5555 = vmatpush1.bf16.msra.mxu0 %v5416
        %5556 = vmatprep.subr.bf16.mxu0 %v5415
        %5557 = vmatpush1.bf16.msra.mxu0 %v5414
        %5558 = vmatprep.subr.bf16.mxu0 %v5445
        %5559 = vmatpush2.bf16.msra.mxu0 %v5444
        %5560 = vmatprep.subr.bf16.mxu0 %v5443
        %5561 = vmatpush2.bf16.msra.mxu0 %v5442
        %5562 = vmatprep.subr.bf16.mxu0 %v5441
        %5563 = vmatpush2.bf16.msra.mxu0 %v5440
        %5564 = vmatprep.subr.bf16.mxu0 %v5439
        %5565 = vmatpush2.bf16.msra.mxu0 %v5438
        %5566 = vmatprep.subr.bf16.mxu0 %v5437
        %5567 = vmatpush2.bf16.msra.mxu0 %v5436
        %5568 = vmatprep.subr.bf16.mxu0 %v5435
        %5569 = vmatpush2.bf16.msra.mxu0 %v5434
        %5570 = vmatprep.subr.bf16.mxu0 %v5433
        %5571 = vmatpush2.bf16.msra.mxu0 %v5432
        %5572 = vmatprep.subr.bf16.mxu0 %v5431
        %5573 = vmatpush2.bf16.msra.mxu0 %v5430
        %5574 = vmatprep.mubr.bf16.mxu0 %v5143
        %5575 = vmatmul.mubr.bf16.gmra.mxu0 %v5142
        %v5576 = vpop.f32.mrf.mxu0
        %v5577 = vadd.f32 %v5215, %v5576
        %v5578 = vpop.f32.mrf.mxu0
        %v5579 = vadd.f32 %v5219, %v5578
        %v5580 = vpop.f32.mrf.mxu0
        %v5581 = vpop.f32.mrf.mxu0
        %5582 = vdwg.mxu0
        %5583 = vmatprep.subr.bf16.mxu0 %v5461
        %5584 = vmatpush1.bf16.msra.mxu0 %v5460
        %5585 = vmatprep.subr.bf16.mxu0 %v5459
        %5586 = vmatpush1.bf16.msra.mxu0 %v5458
        %5587 = vmatprep.subr.bf16.mxu0 %v5457
        %5588 = vmatpush1.bf16.msra.mxu0 %v5456
        %5589 = vmatprep.subr.bf16.mxu0 %v5455
        %5590 = vmatpush1.bf16.msra.mxu0 %v5454
        %5591 = vmatprep.subr.bf16.mxu0 %v5453
        %5592 = vmatpush1.bf16.msra.mxu0 %v5452
        %5593 = vmatprep.subr.bf16.mxu0 %v5451
        %5594 = vmatpush1.bf16.msra.mxu0 %v5450
        %5595 = vmatprep.subr.bf16.mxu0 %v5449
        %5596 = vmatpush1.bf16.msra.mxu0 %v5448
        %5597 = vmatprep.subr.bf16.mxu0 %v5447
        %5598 = vmatpush1.bf16.msra.mxu0 %v5446
        %5599 = vmatprep.subr.bf16.mxu0 %v5477
        %5600 = vmatpush2.bf16.msra.mxu0 %v5476
        %5601 = vmatprep.subr.bf16.mxu0 %v5475
        %5602 = vmatpush2.bf16.msra.mxu0 %v5474
        %5603 = vmatprep.subr.bf16.mxu0 %v5473
        %5604 = vmatpush2.bf16.msra.mxu0 %v5472
        %5605 = vmatprep.subr.bf16.mxu0 %v5471
        %5606 = vmatpush2.bf16.msra.mxu0 %v5470
        %5607 = vmatprep.subr.bf16.mxu0 %v5469
        %5608 = vmatpush2.bf16.msra.mxu0 %v5468
        %5609 = vmatprep.subr.bf16.mxu0 %v5467
        %5610 = vmatpush2.bf16.msra.mxu0 %v5466
        %5611 = vmatprep.subr.bf16.mxu0 %v5465
        %5612 = vmatpush2.bf16.msra.mxu0 %v5464
        %5613 = vmatprep.subr.bf16.mxu0 %v5463
        %5614 = vmatpush2.bf16.msra.mxu0 %v5462
        %5615 = vmatprep.mubr.bf16.mxu0 %v5145
        %5616 = vmatmul.mubr.bf16.gmra.mxu0 %v5144
        %v5617 = vpop.f32.mrf.mxu0
        %v5618 = vadd.f32 %v5577, %v5617
        %v5619 = vpop.f32.mrf.mxu0
        %v5620 = vadd.f32 %v5579, %v5619
        %v5621 = vpop.f32.mrf.mxu0
        %v5622 = vpop.f32.mrf.mxu0
        %5623 = vdwg.mxu0
        %v5624 = vmax.f32 %v5618, 0.0
        %v5625 = vmax.f32 %v5620, 0.0
        %v5626 = vpack.c.bf16 %v5624, %v5624
        %v5627 = vpack.c.bf16 %v5625, %v5625
        %v5628 = vld [vmem:[%s7] sm:$0xf]
        %v5629 = vld [vmem:[%s7 + $0x4] sm:$0xf]
        %v5630 = vld [vmem:[%s7 + $0x8] sm:$0xf]
        %v5631 = vld [vmem:[%s7 + $0xc] sm:$0xf]
        %v5632 = vld [vmem:[%s7 + $0x10] sm:$0xf]
        %v5633 = vld [vmem:[%s7 + $0x14] sm:$0xf]
        %v5634 = vld [vmem:[%s7 + $0x18] sm:$0xf]
        %v5635 = vld [vmem:[%s7 + $0x1c] sm:$0xf]
        %v5636 = vld [vmem:[%s7 + $0x20] sm:$0xf]
        %v5637 = vld [vmem:[%s7 + $0x24] sm:$0xf]
        %v5638 = vld [vmem:[%s7 + $0x28] sm:$0xf]
        %v5639 = vld [vmem:[%s7 + $0x2c] sm:$0xf]
        %v5640 = vld [vmem:[%s7 + $0x30] sm:$0xf]
        %v5641 = vld [vmem:[%s7 + $0x34] sm:$0xf]
        %v5642 = vld [vmem:[%s7 + $0x38] sm:$0xf]
        %v5643 = vld [vmem:[%s7 + $0x3c] sm:$0xf]
        %v5644 = vld [vmem:[%s7 + $0x40] sm:$0xf]
        %v5645 = vld [vmem:[%s7 + $0x44] sm:$0xf]
        %v5646 = vld [vmem:[%s7 + $0x48] sm:$0xf]
        %v5647 = vld [vmem:[%s7 + $0x4c] sm:$0xf]
        %v5648 = vld [vmem:[%s7 + $0x50] sm:$0xf]
        %v5649 = vld [vmem:[%s7 + $0x54] sm:$0xf]
        %v5650 = vld [vmem:[%s7 + $0x58] sm:$0xf]
        %v5651 = vld [vmem:[%s7 + $0x5c] sm:$0xf]
        %v5652 = vld [vmem:[%s7 + $0x60] sm:$0xf]
        %v5653 = vld [vmem:[%s7 + $0x64] sm:$0xf]
        %v5654 = vld [vmem:[%s7 + $0x68] sm:$0xf]
        %v5655 = vld [vmem:[%s7 + $0x6c] sm:$0xf]
        %v5656 = vld [vmem:[%s7 + $0x70] sm:$0xf]
        %v5657 = vld [vmem:[%s7 + $0x74] sm:$0xf]
        %v5658 = vld [vmem:[%s7 + $0x78] sm:$0xf]
        %v5659 = vld [vmem:[%s7 + $0x7c] sm:$0xf]
        %v5660 = vld [vmem:[%s8] sm:$0x1]
        %v5662 = vlaneseq
        %v5663 = vshrl.u32 %v5662, 7
        %v5664 = vsub.s32 0, %v5663
        %v5665 = vrot.slane %v5660, %v5664
        %v5699 = vunpack.c.l.b16 %v5628
        %v5700 = vunpack.c.l.b16 %v5629
        %v5701 = vunpack.c.l.b16 %v5630
        %v5702 = vunpack.c.l.b16 %v5631
        %v5703 = vunpack.c.l.b16 %v5632
        %v5704 = vunpack.c.l.b16 %v5633
        %v5705 = vunpack.c.l.b16 %v5634
        %v5706 = vunpack.c.l.b16 %v5635
        %v5707 = vunpack.c.l.b16 %v5636
        %v5708 = vunpack.c.l.b16 %v5637
        %v5709 = vunpack.c.l.b16 %v5638
        %v5710 = vunpack.c.l.b16 %v5639
        %v5711 = vunpack.c.l.b16 %v5640
        %v5712 = vunpack.c.l.b16 %v5641
        %v5713 = vunpack.c.l.b16 %v5642
        %v5714 = vunpack.c.l.b16 %v5643
        %v5715 = vunpack.c.l.b16 %v5644
        %v5716 = vunpack.c.l.b16 %v5645
        %v5717 = vunpack.c.l.b16 %v5646
        %v5718 = vunpack.c.l.b16 %v5647
        %v5719 = vunpack.c.l.b16 %v5648
        %v5720 = vunpack.c.l.b16 %v5649
        %v5721 = vunpack.c.l.b16 %v5650
        %v5722 = vunpack.c.l.b16 %v5651
        %v5723 = vunpack.c.l.b16 %v5652
        %v5724 = vunpack.c.l.b16 %v5653
        %v5725 = vunpack.c.l.b16 %v5654
        %v5726 = vunpack.c.l.b16 %v5655
        %v5727 = vunpack.c.l.b16 %v5656
        %v5728 = vunpack.c.l.b16 %v5657
        %v5729 = vunpack.c.l.b16 %v5658
        %v5730 = vunpack.c.l.b16 %v5659
        %v5731 = vpack.c.b16 %v5700, %v5699
        %v5732 = vpack.c.b16 %v5702, %v5701
        %v5733 = vpack.c.b16 %v5704, %v5703
        %v5734 = vpack.c.b16 %v5706, %v5705
        %v5735 = vpack.c.b16 %v5708, %v5707
        %v5736 = vpack.c.b16 %v5710, %v5709
        %v5737 = vpack.c.b16 %v5712, %v5711
        %v5738 = vpack.c.b16 %v5714, %v5713
        %v5739 = vpack.c.b16 %v5716, %v5715
        %v5740 = vpack.c.b16 %v5718, %v5717
        %v5741 = vpack.c.b16 %v5720, %v5719
        %v5742 = vpack.c.b16 %v5722, %v5721
        %v5743 = vpack.c.b16 %v5724, %v5723
        %v5744 = vpack.c.b16 %v5726, %v5725
        %v5745 = vpack.c.b16 %v5728, %v5727
        %v5746 = vpack.c.b16 %v5730, %v5729
        %5763 = vmatprep.subr.bf16.mxu0 0
        %5764 = vmatpush1.bf16.msra.mxu0 %v5738
        %5765 = vmatprep.subr.bf16.mxu0 0
        %5766 = vmatpush1.bf16.msra.mxu0 %v5737
        %5767 = vmatprep.subr.bf16.mxu0 0
        %5768 = vmatpush1.bf16.msra.mxu0 %v5736
        %5769 = vmatprep.subr.bf16.mxu0 0
        %5770 = vmatpush1.bf16.msra.mxu0 %v5735
        %5771 = vmatprep.subr.bf16.mxu0 0
        %5772 = vmatpush1.bf16.msra.mxu0 %v5734
        %5773 = vmatprep.subr.bf16.mxu0 0
        %5774 = vmatpush1.bf16.msra.mxu0 %v5733
        %5775 = vmatprep.subr.bf16.mxu0 0
        %5776 = vmatpush1.bf16.msra.mxu0 %v5732
        %5777 = vmatprep.subr.bf16.mxu0 0
        %5778 = vmatpush1.bf16.msra.mxu0 %v5731
        %5779 = vmatprep.subr.bf16.mxu0 0
        %5780 = vmatpush2.bf16.msra.mxu0 %v5746
        %5781 = vmatprep.subr.bf16.mxu0 0
        %5782 = vmatpush2.bf16.msra.mxu0 %v5745
        %5783 = vmatprep.subr.bf16.mxu0 0
        %5784 = vmatpush2.bf16.msra.mxu0 %v5744
        %5785 = vmatprep.subr.bf16.mxu0 0
        %5786 = vmatpush2.bf16.msra.mxu0 %v5743
        %5787 = vmatprep.subr.bf16.mxu0 0
        %5788 = vmatpush2.bf16.msra.mxu0 %v5742
        %5789 = vmatprep.subr.bf16.mxu0 0
        %5790 = vmatpush2.bf16.msra.mxu0 %v5741
        %5791 = vmatprep.subr.bf16.mxu0 0
        %5792 = vmatpush2.bf16.msra.mxu0 %v5740
        %5793 = vmatprep.subr.bf16.mxu0 0
        %5794 = vmatpush2.bf16.msra.mxu0 %v5739
        %5795 = vmatprep.mubr.bf16.mxu0 %v5627
        %5796 = vmatmul.mubr.bf16.gmra.mxu0 %v5626
        %v5797 = vpop.f32.mrf.mxu0
        %v5798 = vadd.f32 %v5665, %v5797
        %v5799 = vpop.f32.mrf.mxu0
        %v5800 = vpop.f32.mrf.mxu0
        %v5801 = vpop.f32.mrf.mxu0
        %5802 = vdwg.mxu0
        %v5803 = vmul.f32 %v5798, %v5798
        %vm5804 = vcmask 1043456
        %v5805 = vsel %vm5804, %v5803, 0.0
        %5806 = vadd.xlane.f32.xlu0 %v5805
        %v5807 = vpop.xlane.xlu0 %5806
        %v5808 = vmax.f32 %v5807, 1e-24
        %v5809 = vrsqrt.pop %v5808
        %v5810 = vmul.f32 %v5798, %v5809
        %5811 = vst [vmem:[%s9] sm:$0xf] %v5810
      $region64: #{siamese_forward.9} parent=55 // pred_fallthru
        _
      // Predicated region
      $region65: #{siamese_forward.9} parent=55 // pred_check
        %p5812 = pneg %p232
      $region66: #{siamese_forward.9} parent=55 // pred_check_branch
        %5814 = sbr.rel (%p5812) target = $region68
      $region67: #{siamese_forward.9} parent=55 // pred_region
        _
      $region68: #{siamese_forward.9} parent=55 // pred_fallthru
        _
      // Predicated region
      $region69: #{siamese_forward.9} parent=55 // pred_check
        %p5815 = pneg %p232
      $region70: #{siamese_forward.9} parent=55 // pred_check_branch
        %5817 = sbr.rel (%p5815) target = $region72
      $region71: #{siamese_forward.9} parent=55 // pred_region
        _
      $region72: #{siamese_forward.9} parent=55 // pred_fallthru
        _
    $region56: #{siamese_forward.9} parent=5 // pred_fallthru
      _
    %p5818 = scmp.le.s32.totalorder 2, %s15
    // Predicated region
    $region73: #{siamese_forward.9} parent=5 // pred_check
      %p5819 = pneg %p5818
    $region74: #{siamese_forward.9} parent=5 // pred_check_branch
      %5821 = sbr.rel (%p5819) target = $region76
    $region75: #{siamese_forward.9} parent=5 // pred_region
      %s5822 = ssub.s32 %s15, 2
    $region76: #{siamese_forward.9} parent=5 // pred_fallthru
      _
  $region6: #{siamese_forward.9} parent=0 // loop_footer
    %s19 = sadd.s32 1, %s15
  $region7: #{siamese_forward.9} parent=0 // loop_footer_branch
    %14 = sbr.rel target = $region3
  $region8: #{siamese_forward.9} parent=0 // loop_exit
    _

</llo_original>
